<compile_context>
chip_gen: v7x
topology: tpu7x:2x2x1
jax: 0.10.0
libtpu: 0.0.40
codegen_flags: <defaults>
</compile_context>

<pallas_src>
import functools

import jax
import jax.numpy as jnp
from jax.experimental import pallas as pl
from jax.experimental.pallas import tpu as pltpu


def _round_up(n, m):
    return ((n + m - 1) // m) * m


# ----------------------------- Pallas kernel -------------------------------

def ae_kernel(*refs, relu_flags):
    """refs = (x_ref, w1, b1, w2, b2, ..., w8, b8, out_ref).

    x tile:   (TB, in_pad)  bf16
    weights:  (in_pad_i, out_pad_i) bf16 (resident in VMEM, constant index_map)
    biases:   (1, out_pad_i) f32
    Per layer: acc_f32 = dot(h_bf16, W_bf16, f32 accumulate) + b_f32;
    ReLU in f32 when flagged; recast to bf16 for the next MXU pass.
    """
    x_ref = refs[0]
    out_ref = refs[-1]
    param_refs = refs[1:-1]
    n_layers = len(param_refs) // 2

    h = x_ref[...].astype(jnp.bfloat16)
    for i in range(n_layers):
        w = param_refs[2 * i][...]                 # bf16 (in_pad, out_pad)
        b = param_refs[2 * i + 1][...]             # f32  (1, out_pad) -> broadcasts
        acc = jnp.dot(h, w, preferred_element_type=jnp.float32) + b
        if relu_flags[i]:
            acc = jnp.maximum(acc, 0.0)
        if i + 1 < n_layers:
            h = acc.astype(jnp.bfloat16)
        else:
            out_ref[...] = acc.astype(out_ref.dtype)


# ------------------------------ wrapper -------------------------------------

def ae_forward(x, params, relu_flags, *, batch_tile=None):
    """x: (batch, 1000) float32. params: list of (W(in,out) f32, b(out,) f32)."""
    batch, in_features = x.shape
    out_features = params[-1][0].shape[1]

    # ---- pad feature dims to lane multiples (128), cast weights to bf16 ----
    padded_params = []
    for w, b in params:
        fi, fo = w.shape
        fi_p, fo_p = _round_up(fi, 128), _round_up(fo, 128)
        w_p = (jnp.zeros((fi_p, fo_p), jnp.float32)
               .at[:fi, :fo].set(w)).astype(jnp.bfloat16)
        b_p = jnp.zeros((1, fo_p), jnp.float32).at[0, :fo].set(b)
        padded_params.append((w_p, b_p))

    in_pad = padded_params[0][0].shape[0]
    out_pad = padded_params[-1][0].shape[1]

    # ---- batch tile that keeps the MXU fed; pad batch to a tile multiple ----
    if batch_tile is None:
        batch_tile = 256 if batch >= 256 else 128
    b_pad = _round_up(batch, batch_tile)
    x_p = (jnp.zeros((b_pad, in_pad), jnp.bfloat16)
           .at[:batch, :in_features].set(x.astype(jnp.bfloat16)))

    flat = []
    in_specs = [pl.BlockSpec((batch_tile, in_pad), lambda i: (i, 0))]
    for w_p, b_p in padded_params:
        flat.append(w_p)
        flat.append(b_p)
        # Constant index_map -> weights/biases fetched once, resident in VMEM.
        in_specs.append(pl.BlockSpec(w_p.shape, lambda i: (0, 0)))
        in_specs.append(pl.BlockSpec(b_p.shape, lambda i: (0, 0)))

    kernel = functools.partial(ae_kernel, relu_flags=tuple(relu_flags))
    grid = (b_pad // batch_tile,)

    out_p = pl.pallas_call(
        kernel,
        out_shape=jax.ShapeDtypeStruct((b_pad, out_pad), jnp.float32),
        grid_spec=pltpu.PrefetchScalarGridSpec(
            num_scalar_prefetch=0,
            grid=grid,
            in_specs=in_specs,
            out_specs=pl.BlockSpec((batch_tile, out_pad), lambda i: (i, 0)),
        ),
        compiler_params=pltpu.CompilerParams(
            dimension_semantics=("parallel",),   # shard batch tiles on v7x's 2 TCs
            vmem_limit_bytes=48 << 20,           # fits v7x 64 MiB, above v5e 16 MiB default
        ),
    )(x_p, *flat)

    return out_p[:batch, :out_features]


# --------------------------- parameter init ---------------------------------

def init_ae_params(key, dim):
    """Deterministic init mimicking nn.Linear's U(-1/sqrt(fan_in), 1/sqrt(fan_in)).

    Weights are stored (in_features, out_features), i.e. transposed vs PyTorch,
    so the kernel computes h @ W + b directly.
    """
    layer_dims = [
        (1000, 650), (650, 350), (350, 150), (150, dim),   # encoder
        (dim, 150), (150, 350), (350, 650), (650, 1000),   # decoder
    ]
    params = []
    for (fan_in, fan_out) in layer_dims:
        key, kw, kb = jax.random.split(key, 3)
        bound = 1.0 / jnp.sqrt(jnp.float32(fan_in))
        w = jax.random.uniform(kw, (fan_in, fan_out), jnp.float32, -bound, bound)
        b = jax.random.uniform(kb, (fan_out,), jnp.float32, -bound, bound)
        params.append((w, b))
    # ReLU after every Linear except the encoder bottleneck and the final decoder layer.
    relu_flags = [True, True, True, False, True, True, True, False]
    return params, relu_flags


# ------------------------------ references ----------------------------------

def ae_reference_f32(x, params, relu_flags):
    h = x
    for (w, b), r in zip(params, relu_flags):
        h = h @ w + b
        if r:
            h = jnp.maximum(h, 0.0)
    return h


def ae_reference_bf16(x, params, relu_flags):
    """Same math as the kernel: bf16 operands, f32 MXU accumulation, f32 bias/ReLU."""
    h = x.astype(jnp.bfloat16)
    acc = None
    for (w, b), r in zip(params, relu_flags):
        acc = jnp.dot(h, w.astype(jnp.bfloat16),
                      preferred_element_type=jnp.float32) + b
        if r:
            acc = jnp.maximum(acc, 0.0)
        h = acc.astype(jnp.bfloat16)
    return acc


# ------------------------------- main ---------------------------------------

if __name__ == "__main__":
    key = jax.random.PRNGKey(0)
    dim = 32          # reduced-dimension bottleneck
    batch = 8

    key, kx = jax.random.split(key)
    x = jax.random.normal(kx, (batch, 1000), jnp.float32)

    params, relu_flags = init_ae_params(key, dim)

    out = ae_forward(x, params, relu_flags)
    out = jax.block_until_ready(out)
    assert out.shape == (batch, 1000)

    # exact-math check against a bf16-consistent reference
    ref_bf16 = ae_reference_bf16(x, params, relu_flags)
    assert jnp.allclose(out, ref_bf16, atol=1e-2, rtol=1e-2)

    # loose check against the full-precision (PyTorch-equivalent) reference;
    # bf16 weight quantization makes the original 1e-4 tolerance inapplicable.
    ref_f32 = ae_reference_f32(x, params, relu_flags)
    assert jnp.allclose(out, ref_f32, atol=1e-1, rtol=1e-1)

    print("KERNEL_OK")
</pallas_src>

<mosaic_0001>
module attributes {stable_mosaic.version = 11 : i64} {
  func.func @ae_kernel(%arg0: i32, %arg1: memref<128x1024xbf16, #tpu.memory_space<vmem>>, %arg2: memref<1024x768xbf16, #tpu.memory_space<vmem>>, %arg3: memref<1x768xf32, #tpu.memory_space<vmem>>, %arg4: memref<768x384xbf16, #tpu.memory_space<vmem>>, %arg5: memref<1x384xf32, #tpu.memory_space<vmem>>, %arg6: memref<384x256xbf16, #tpu.memory_space<vmem>>, %arg7: memref<1x256xf32, #tpu.memory_space<vmem>>, %arg8: memref<256x128xbf16, #tpu.memory_space<vmem>>, %arg9: memref<1x128xf32, #tpu.memory_space<vmem>>, %arg10: memref<128x256xbf16, #tpu.memory_space<vmem>>, %arg11: memref<1x256xf32, #tpu.memory_space<vmem>>, %arg12: memref<256x384xbf16, #tpu.memory_space<vmem>>, %arg13: memref<1x384xf32, #tpu.memory_space<vmem>>, %arg14: memref<384x768xbf16, #tpu.memory_space<vmem>>, %arg15: memref<1x768xf32, #tpu.memory_space<vmem>>, %arg16: memref<768x1024xbf16, #tpu.memory_space<vmem>>, %arg17: memref<1x1024xf32, #tpu.memory_space<vmem>>, %arg18: memref<128x1024xf32, #tpu.memory_space<vmem>>) attributes {dimension_semantics = [#tpu.dimension_semantics<parallel>], iteration_bounds = array<i64: 1>, scalar_prefetch = 0 : i64, scratch_operands = 0 : i64, tpu.core_type = #tpu.core_type<tc>, window_params = [{transform_indices = @transform_0, window_bounds = array<i64: 128, 1024>}, {pipeline_mode = #tpu.pipeline_mode<synchronous>, transform_indices = @transform_1, window_bounds = array<i64: 1024, 768>}, {pipeline_mode = #tpu.pipeline_mode<synchronous>, transform_indices = @transform_2, window_bounds = array<i64: 1, 768>}, {pipeline_mode = #tpu.pipeline_mode<synchronous>, transform_indices = @transform_3, window_bounds = array<i64: 768, 384>}, {pipeline_mode = #tpu.pipeline_mode<synchronous>, transform_indices = @transform_4, window_bounds = array<i64: 1, 384>}, {pipeline_mode = #tpu.pipeline_mode<synchronous>, transform_indices = @transform_5, window_bounds = array<i64: 384, 256>}, {pipeline_mode = #tpu.pipeline_mode<synchronous>, transform_indices = @transform_6, window_bounds = array<i64: 1, 256>}, {pipeline_mode = #tpu.pipeline_mode<synchronous>, transform_indices = @transform_7, window_bounds = array<i64: 256, 128>}, {pipeline_mode = #tpu.pipeline_mode<synchronous>, transform_indices = @transform_8, window_bounds = array<i64: 1, 128>}, {pipeline_mode = #tpu.pipeline_mode<synchronous>, transform_indices = @transform_9, window_bounds = array<i64: 128, 256>}, {pipeline_mode = #tpu.pipeline_mode<synchronous>, transform_indices = @transform_10, window_bounds = array<i64: 1, 256>}, {pipeline_mode = #tpu.pipeline_mode<synchronous>, transform_indices = @transform_11, window_bounds = array<i64: 256, 384>}, {pipeline_mode = #tpu.pipeline_mode<synchronous>, transform_indices = @transform_12, window_bounds = array<i64: 1, 384>}, {pipeline_mode = #tpu.pipeline_mode<synchronous>, transform_indices = @transform_13, window_bounds = array<i64: 384, 768>}, {pipeline_mode = #tpu.pipeline_mode<synchronous>, transform_indices = @transform_14, window_bounds = array<i64: 1, 768>}, {pipeline_mode = #tpu.pipeline_mode<synchronous>, transform_indices = @transform_15, window_bounds = array<i64: 768, 1024>}, {pipeline_mode = #tpu.pipeline_mode<synchronous>, transform_indices = @transform_16, window_bounds = array<i64: 1, 1024>}, {transform_indices = @transform_17, window_bounds = array<i64: 128, 1024>}]} {
    %c0 = arith.constant 0 : index
    %c0_0 = arith.constant 0 : index
    %0 = vector.load %arg1[%c0, %c0_0] : memref<128x1024xbf16, #tpu.memory_space<vmem>>, vector<128x1024xbf16>
    %c0_1 = arith.constant 0 : index
    %c0_2 = arith.constant 0 : index
    %1 = vector.load %arg2[%c0_1, %c0_2] : memref<1024x768xbf16, #tpu.memory_space<vmem>>, vector<1024x768xbf16>
    %c0_3 = arith.constant 0 : index
    %c0_4 = arith.constant 0 : index
    %2 = vector.load %arg3[%c0_3, %c0_4] : memref<1x768xf32, #tpu.memory_space<vmem>>, vector<1x768xf32>
    %cst = arith.constant dense<0.000000e+00> : vector<128x768xf32>
    %3 = tpu.matmul %0, %1, %cst {dimension_numbers = #tpu.dot_dimension_numbers<[1], [0], [0], [1], [0, 0, 1, 1], [], []>} : vector<128x1024xbf16>, vector<1024x768xbf16>, vector<128x768xf32> -> vector<128x768xf32>
    %4 = vector.broadcast %2 : vector<1x768xf32> to vector<128x768xf32>
    %5 = arith.addf %3, %4 : vector<128x768xf32>
    %cst_5 = arith.constant 0.000000e+00 : f32
    %6 = vector.broadcast %cst_5 : f32 to vector<128x768xf32>
    %7 = arith.maximumf %5, %6 : vector<128x768xf32>
    %8 = arith.truncf %7 : vector<128x768xf32> to vector<128x768xbf16>
    %c0_6 = arith.constant 0 : index
    %c0_7 = arith.constant 0 : index
    %9 = vector.load %arg4[%c0_6, %c0_7] : memref<768x384xbf16, #tpu.memory_space<vmem>>, vector<768x384xbf16>
    %c0_8 = arith.constant 0 : index
    %c0_9 = arith.constant 0 : index
    %10 = vector.load %arg5[%c0_8, %c0_9] : memref<1x384xf32, #tpu.memory_space<vmem>>, vector<1x384xf32>
    %cst_10 = arith.constant dense<0.000000e+00> : vector<128x384xf32>
    %11 = tpu.matmul %8, %9, %cst_10 {dimension_numbers = #tpu.dot_dimension_numbers<[1], [0], [0], [1], [0, 0, 1, 1], [], []>} : vector<128x768xbf16>, vector<768x384xbf16>, vector<128x384xf32> -> vector<128x384xf32>
    %12 = vector.broadcast %10 : vector<1x384xf32> to vector<128x384xf32>
    %13 = arith.addf %11, %12 : vector<128x384xf32>
    %cst_11 = arith.constant 0.000000e+00 : f32
    %14 = vector.broadcast %cst_11 : f32 to vector<128x384xf32>
    %15 = arith.maximumf %13, %14 : vector<128x384xf32>
    %16 = arith.truncf %15 : vector<128x384xf32> to vector<128x384xbf16>
    %c0_12 = arith.constant 0 : index
    %c0_13 = arith.constant 0 : index
    %17 = vector.load %arg6[%c0_12, %c0_13] : memref<384x256xbf16, #tpu.memory_space<vmem>>, vector<384x256xbf16>
    %c0_14 = arith.constant 0 : index
    %c0_15 = arith.constant 0 : index
    %18 = vector.load %arg7[%c0_14, %c0_15] : memref<1x256xf32, #tpu.memory_space<vmem>>, vector<1x256xf32>
    %cst_16 = arith.constant dense<0.000000e+00> : vector<128x256xf32>
    %19 = tpu.matmul %16, %17, %cst_16 {dimension_numbers = #tpu.dot_dimension_numbers<[1], [0], [0], [1], [0, 0, 1, 1], [], []>} : vector<128x384xbf16>, vector<384x256xbf16>, vector<128x256xf32> -> vector<128x256xf32>
    %20 = vector.broadcast %18 : vector<1x256xf32> to vector<128x256xf32>
    %21 = arith.addf %19, %20 : vector<128x256xf32>
    %cst_17 = arith.constant 0.000000e+00 : f32
    %22 = vector.broadcast %cst_17 : f32 to vector<128x256xf32>
    %23 = arith.maximumf %21, %22 : vector<128x256xf32>
    %24 = arith.truncf %23 : vector<128x256xf32> to vector<128x256xbf16>
    %c0_18 = arith.constant 0 : index
    %c0_19 = arith.constant 0 : index
    %25 = vector.load %arg8[%c0_18, %c0_19] : memref<256x128xbf16, #tpu.memory_space<vmem>>, vector<256x128xbf16>
    %c0_20 = arith.constant 0 : index
    %c0_21 = arith.constant 0 : index
    %26 = vector.load %arg9[%c0_20, %c0_21] : memref<1x128xf32, #tpu.memory_space<vmem>>, vector<1x128xf32>
    %cst_22 = arith.constant dense<0.000000e+00> : vector<128x128xf32>
    %27 = tpu.matmul %24, %25, %cst_22 {dimension_numbers = #tpu.dot_dimension_numbers<[1], [0], [0], [1], [0, 0, 1, 1], [], []>} : vector<128x256xbf16>, vector<256x128xbf16>, vector<128x128xf32> -> vector<128x128xf32>
    %28 = vector.broadcast %26 : vector<1x128xf32> to vector<128x128xf32>
    %29 = arith.addf %27, %28 : vector<128x128xf32>
    %30 = arith.truncf %29 : vector<128x128xf32> to vector<128x128xbf16>
    %c0_23 = arith.constant 0 : index
    %c0_24 = arith.constant 0 : index
    %31 = vector.load %arg10[%c0_23, %c0_24] : memref<128x256xbf16, #tpu.memory_space<vmem>>, vector<128x256xbf16>
    %c0_25 = arith.constant 0 : index
    %c0_26 = arith.constant 0 : index
    %32 = vector.load %arg11[%c0_25, %c0_26] : memref<1x256xf32, #tpu.memory_space<vmem>>, vector<1x256xf32>
    %cst_27 = arith.constant dense<0.000000e+00> : vector<128x256xf32>
    %33 = tpu.matmul %30, %31, %cst_27 {dimension_numbers = #tpu.dot_dimension_numbers<[1], [0], [0], [1], [0, 0, 1, 1], [], []>} : vector<128x128xbf16>, vector<128x256xbf16>, vector<128x256xf32> -> vector<128x256xf32>
    %34 = vector.broadcast %32 : vector<1x256xf32> to vector<128x256xf32>
    %35 = arith.addf %33, %34 : vector<128x256xf32>
    %cst_28 = arith.constant 0.000000e+00 : f32
    %36 = vector.broadcast %cst_28 : f32 to vector<128x256xf32>
    %37 = arith.maximumf %35, %36 : vector<128x256xf32>
    %38 = arith.truncf %37 : vector<128x256xf32> to vector<128x256xbf16>
    %c0_29 = arith.constant 0 : index
    %c0_30 = arith.constant 0 : index
    %39 = vector.load %arg12[%c0_29, %c0_30] : memref<256x384xbf16, #tpu.memory_space<vmem>>, vector<256x384xbf16>
    %c0_31 = arith.constant 0 : index
    %c0_32 = arith.constant 0 : index
    %40 = vector.load %arg13[%c0_31, %c0_32] : memref<1x384xf32, #tpu.memory_space<vmem>>, vector<1x384xf32>
    %cst_33 = arith.constant dense<0.000000e+00> : vector<128x384xf32>
    %41 = tpu.matmul %38, %39, %cst_33 {dimension_numbers = #tpu.dot_dimension_numbers<[1], [0], [0], [1], [0, 0, 1, 1], [], []>} : vector<128x256xbf16>, vector<256x384xbf16>, vector<128x384xf32> -> vector<128x384xf32>
    %42 = vector.broadcast %40 : vector<1x384xf32> to vector<128x384xf32>
    %43 = arith.addf %41, %42 : vector<128x384xf32>
    %cst_34 = arith.constant 0.000000e+00 : f32
    %44 = vector.broadcast %cst_34 : f32 to vector<128x384xf32>
    %45 = arith.maximumf %43, %44 : vector<128x384xf32>
    %46 = arith.truncf %45 : vector<128x384xf32> to vector<128x384xbf16>
    %c0_35 = arith.constant 0 : index
    %c0_36 = arith.constant 0 : index
    %47 = vector.load %arg14[%c0_35, %c0_36] : memref<384x768xbf16, #tpu.memory_space<vmem>>, vector<384x768xbf16>
    %c0_37 = arith.constant 0 : index
    %c0_38 = arith.constant 0 : index
    %48 = vector.load %arg15[%c0_37, %c0_38] : memref<1x768xf32, #tpu.memory_space<vmem>>, vector<1x768xf32>
    %cst_39 = arith.constant dense<0.000000e+00> : vector<128x768xf32>
    %49 = tpu.matmul %46, %47, %cst_39 {dimension_numbers = #tpu.dot_dimension_numbers<[1], [0], [0], [1], [0, 0, 1, 1], [], []>} : vector<128x384xbf16>, vector<384x768xbf16>, vector<128x768xf32> -> vector<128x768xf32>
    %50 = vector.broadcast %48 : vector<1x768xf32> to vector<128x768xf32>
    %51 = arith.addf %49, %50 : vector<128x768xf32>
    %cst_40 = arith.constant 0.000000e+00 : f32
    %52 = vector.broadcast %cst_40 : f32 to vector<128x768xf32>
    %53 = arith.maximumf %51, %52 : vector<128x768xf32>
    %54 = arith.truncf %53 : vector<128x768xf32> to vector<128x768xbf16>
    %c0_41 = arith.constant 0 : index
    %c0_42 = arith.constant 0 : index
    %55 = vector.load %arg16[%c0_41, %c0_42] : memref<768x1024xbf16, #tpu.memory_space<vmem>>, vector<768x1024xbf16>
    %c0_43 = arith.constant 0 : index
    %c0_44 = arith.constant 0 : index
    %56 = vector.load %arg17[%c0_43, %c0_44] : memref<1x1024xf32, #tpu.memory_space<vmem>>, vector<1x1024xf32>
    %cst_45 = arith.constant dense<0.000000e+00> : vector<128x1024xf32>
    %57 = tpu.matmul %54, %55, %cst_45 {dimension_numbers = #tpu.dot_dimension_numbers<[1], [0], [0], [1], [0, 0, 1, 1], [], []>} : vector<128x768xbf16>, vector<768x1024xbf16>, vector<128x1024xf32> -> vector<128x1024xf32>
    %58 = vector.broadcast %56 : vector<1x1024xf32> to vector<128x1024xf32>
    %59 = arith.addf %57, %58 : vector<128x1024xf32>
    %c0_46 = arith.constant 0 : index
    %c0_47 = arith.constant 0 : index
    %60 = vector.load %arg18[%c0_46, %c0_47] : memref<128x1024xf32, #tpu.memory_space<vmem>>, vector<128x1024xf32>
    tpu.vector_store %arg18[%c0_46, %c0_47], %59 {strides = array<i32>} : memref<128x1024xf32, #tpu.memory_space<vmem>>, vector<128x1024xf32>,
    return
  }
  func.func @transform_0(%arg0: i32) -> (i32, i32) {
    %c0_i32 = arith.constant 0 : i32
    %c0_i32_0 = arith.constant 0 : i32
    return %arg0, %c0_i32 : i32, i32
  }
  func.func @transform_1(%arg0: i32) -> (i32, i32) {
    %c0_i32 = arith.constant 0 : i32
    %c0_i32_0 = arith.constant 0 : i32
    %c0_i32_1 = arith.constant 0 : i32
    return %c0_i32, %c0_i32_0 : i32, i32
  }
  func.func @transform_2(%arg0: i32) -> (i32, i32) {
    %c0_i32 = arith.constant 0 : i32
    %c0_i32_0 = arith.constant 0 : i32
    %c0_i32_1 = arith.constant 0 : i32
    return %c0_i32, %c0_i32_0 : i32, i32
  }
  func.func @transform_3(%arg0: i32) -> (i32, i32) {
    %c0_i32 = arith.constant 0 : i32
    %c0_i32_0 = arith.constant 0 : i32
    %c0_i32_1 = arith.constant 0 : i32
    return %c0_i32, %c0_i32_0 : i32, i32
  }
  func.func @transform_4(%arg0: i32) -> (i32, i32) {
    %c0_i32 = arith.constant 0 : i32
    %c0_i32_0 = arith.constant 0 : i32
    %c0_i32_1 = arith.constant 0 : i32
    return %c0_i32, %c0_i32_0 : i32, i32
  }
  func.func @transform_5(%arg0: i32) -> (i32, i32) {
    %c0_i32 = arith.constant 0 : i32
    %c0_i32_0 = arith.constant 0 : i32
    %c0_i32_1 = arith.constant 0 : i32
    return %c0_i32, %c0_i32_0 : i32, i32
  }
  func.func @transform_6(%arg0: i32) -> (i32, i32) {
    %c0_i32 = arith.constant 0 : i32
    %c0_i32_0 = arith.constant 0 : i32
    %c0_i32_1 = arith.constant 0 : i32
    return %c0_i32, %c0_i32_0 : i32, i32
  }
  func.func @transform_7(%arg0: i32) -> (i32, i32) {
    %c0_i32 = arith.constant 0 : i32
    %c0_i32_0 = arith.constant 0 : i32
    %c0_i32_1 = arith.constant 0 : i32
    return %c0_i32, %c0_i32_0 : i32, i32
  }
  func.func @transform_8(%arg0: i32) -> (i32, i32) {
    %c0_i32 = arith.constant 0 : i32
    %c0_i32_0 = arith.constant 0 : i32
    %c0_i32_1 = arith.constant 0 : i32
    return %c0_i32, %c0_i32_0 : i32, i32
  }
  func.func @transform_9(%arg0: i32) -> (i32, i32) {
    %c0_i32 = arith.constant 0 : i32
    %c0_i32_0 = arith.constant 0 : i32
    %c0_i32_1 = arith.constant 0 : i32
    return %c0_i32, %c0_i32_0 : i32, i32
  }
  func.func @transform_10(%arg0: i32) -> (i32, i32) {
    %c0_i32 = arith.constant 0 : i32
    %c0_i32_0 = arith.constant 0 : i32
    %c0_i32_1 = arith.constant 0 : i32
    return %c0_i32, %c0_i32_0 : i32, i32
  }
  func.func @transform_11(%arg0: i32) -> (i32, i32) {
    %c0_i32 = arith.constant 0 : i32
    %c0_i32_0 = arith.constant 0 : i32
    %c0_i32_1 = arith.constant 0 : i32
    return %c0_i32, %c0_i32_0 : i32, i32
  }
  func.func @transform_12(%arg0: i32) -> (i32, i32) {
    %c0_i32 = arith.constant 0 : i32
    %c0_i32_0 = arith.constant 0 : i32
    %c0_i32_1 = arith.constant 0 : i32
    return %c0_i32, %c0_i32_0 : i32, i32
  }
  func.func @transform_13(%arg0: i32) -> (i32, i32) {
    %c0_i32 = arith.constant 0 : i32
    %c0_i32_0 = arith.constant 0 : i32
    %c0_i32_1 = arith.constant 0 : i32
    return %c0_i32, %c0_i32_0 : i32, i32
  }
  func.func @transform_14(%arg0: i32) -> (i32, i32) {
    %c0_i32 = arith.constant 0 : i32
    %c0_i32_0 = arith.constant 0 : i32
    %c0_i32_1 = arith.constant 0 : i32
    return %c0_i32, %c0_i32_0 : i32, i32
  }
  func.func @transform_15(%arg0: i32) -> (i32, i32) {
    %c0_i32 = arith.constant 0 : i32
    %c0_i32_0 = arith.constant 0 : i32
    %c0_i32_1 = arith.constant 0 : i32
    return %c0_i32, %c0_i32_0 : i32, i32
  }
  func.func @transform_16(%arg0: i32) -> (i32, i32) {
    %c0_i32 = arith.constant 0 : i32
    %c0_i32_0 = arith.constant 0 : i32
    %c0_i32_1 = arith.constant 0 : i32
    return %c0_i32, %c0_i32_0 : i32, i32
  }
  func.func @transform_17(%arg0: i32) -> (i32, i32) {
    %c0_i32 = arith.constant 0 : i32
    %c0_i32_0 = arith.constant 0 : i32
    return %arg0, %c0_i32 : i32, i32
  }
}

</mosaic_0001>

<llo_original>
// kernel: tpu_custom_call.1
$region0: #{tpu_custom_call.1}
  #allocation0 [shape = 'u32[]', space=smem, size = 0x4, offset = 0x4, fixed_abs, tag = 'smem constant byte address 0x4 - core index']
  #allocation1 [shape = 'u32[144,128]{1,0:T(1,128)}', space=vmem, size = 0x12000, scoped, tag = 'internal scratch']
  %s0 = inlined_call_operand.hbm [shape: bf16[128,1024], index: 0, kind: input, shape index: {}]
  %s1 = inlined_call_operand.hbm [shape: bf16[1024,768], index: 1, kind: input, shape index: {}]
  %s2 = inlined_call_operand.hbm [shape: f32[1,768], index: 2, kind: input, shape index: {}]
  %s3 = inlined_call_operand.hbm [shape: bf16[768,384], index: 3, kind: input, shape index: {}]
  %s4 = inlined_call_operand.hbm [shape: f32[1,384], index: 4, kind: input, shape index: {}]
  %s5 = inlined_call_operand.hbm [shape: bf16[384,256], index: 5, kind: input, shape index: {}]
  %s6 = inlined_call_operand.hbm [shape: f32[1,256], index: 6, kind: input, shape index: {}]
  %s7 = inlined_call_operand.hbm [shape: bf16[256,128], index: 7, kind: input, shape index: {}]
  %s8 = inlined_call_operand.hbm [shape: f32[1,128], index: 8, kind: input, shape index: {}]
  %s9 = inlined_call_operand.hbm [shape: bf16[128,256], index: 9, kind: input, shape index: {}]
  %s10 = inlined_call_operand.hbm [shape: f32[1,256], index: 10, kind: input, shape index: {}]
  %s11 = inlined_call_operand.hbm [shape: bf16[256,384], index: 11, kind: input, shape index: {}]
  %s12 = inlined_call_operand.hbm [shape: f32[1,384], index: 12, kind: input, shape index: {}]
  %s13 = inlined_call_operand.hbm [shape: bf16[384,768], index: 13, kind: input, shape index: {}]
  %s14 = inlined_call_operand.hbm [shape: f32[1,768], index: 14, kind: input, shape index: {}]
  %s15 = inlined_call_operand.hbm [shape: bf16[768,1024], index: 15, kind: input, shape index: {}]
  %s16 = inlined_call_operand.hbm [shape: f32[1,1024], index: 16, kind: input, shape index: {}]
  %s17 = inlined_call_operand.hbm [shape: f32[128,1024], index: 17, kind: output, shape index: {}]
  %s18 = sld [smem:[#allocation0]]
  $region146: #{tpu_custom_call.1} parent=0
    _
  %s20 = ssub.s32 1, %s18
  %s21 = scalar_select 0, %s20, %s18
  $region1: #{tpu_custom_call.1} parent=0
    #allocation2 [shape = 'u8[262144]{0}', space=vmem, size = 0x40000, scoped, tag = 'input window, operand 0, single buffered']
    #allocation3 [shape = 's32[1]{0}', space=sflag, size = 0x4, scoped, tag = 'scoped memory for tpu_custom_call.1']
    #allocation4 [shape = 's32[1]{0}', space=sflag, size = 0x4, scoped, tag = 'scoped memory for tpu_custom_call.1']
    #allocation5 [shape = 'u8[1572864]{0}', space=vmem, size = 0x180000, scoped, tag = 'input window, operand 1, single buffered']
    #allocation6 [shape = 's32[1]{0}', space=sflag, size = 0x4, scoped, tag = 'scoped memory for tpu_custom_call.1']
    #allocation7 [shape = 'u8[3072]{0}', space=vmem, size = 0xc00, scoped, tag = 'input window, operand 2, single buffered']
    #allocation8 [shape = 'u8[589824]{0}', space=vmem, size = 0x90000, scoped, tag = 'input window, operand 3, single buffered']
    #allocation9 [shape = 's32[1]{0}', space=sflag, size = 0x4, scoped, tag = 'scoped memory for tpu_custom_call.1']
    #allocation10 [shape = 'u8[1536]{0}', space=vmem, size = 0x800, scoped, tag = 'input window, operand 4, single buffered']
    #allocation11 [shape = 'u8[196608]{0}', space=vmem, size = 0x30000, scoped, tag = 'input window, operand 5, single buffered']
    #allocation12 [shape = 's32[1]{0}', space=sflag, size = 0x4, scoped, tag = 'scoped memory for tpu_custom_call.1']
    #allocation13 [shape = 'u8[1024]{0}', space=vmem, size = 0x400, scoped, tag = 'input window, operand 6, single buffered']
    #allocation14 [shape = 'u8[65536]{0}', space=vmem, size = 0x10000, scoped, tag = 'input window, operand 7, single buffered']
    #allocation15 [shape = 's32[1]{0}', space=sflag, size = 0x4, scoped, tag = 'scoped memory for tpu_custom_call.1']
    #allocation16 [shape = 'u8[512]{0}', space=vmem, size = 0x400, scoped, tag = 'input window, operand 8, single buffered']
    #allocation17 [shape = 'u8[65536]{0}', space=vmem, size = 0x10000, scoped, tag = 'input window, operand 9, single buffered']
    #allocation18 [shape = 's32[1]{0}', space=sflag, size = 0x4, scoped, tag = 'scoped memory for tpu_custom_call.1']
    #allocation19 [shape = 'u8[1024]{0}', space=vmem, size = 0x400, scoped, tag = 'input window, operand 10, single buffered']
    #allocation20 [shape = 'u8[196608]{0}', space=vmem, size = 0x30000, scoped, tag = 'input window, operand 11, single buffered']
    #allocation21 [shape = 's32[1]{0}', space=sflag, size = 0x4, scoped, tag = 'scoped memory for tpu_custom_call.1']
    #allocation22 [shape = 'u8[1536]{0}', space=vmem, size = 0x800, scoped, tag = 'input window, operand 12, single buffered']
    #allocation23 [shape = 'u8[589824]{0}', space=vmem, size = 0x90000, scoped, tag = 'input window, operand 13, single buffered']
    #allocation24 [shape = 's32[1]{0}', space=sflag, size = 0x4, scoped, tag = 'scoped memory for tpu_custom_call.1']
    #allocation25 [shape = 'u8[3072]{0}', space=vmem, size = 0xc00, scoped, tag = 'input window, operand 14, single buffered']
    #allocation26 [shape = 'u8[1572864]{0}', space=vmem, size = 0x180000, scoped, tag = 'input window, operand 15, single buffered']
    #allocation27 [shape = 's32[1]{0}', space=sflag, size = 0x4, scoped, tag = 'scoped memory for tpu_custom_call.1']
    #allocation28 [shape = 'u8[4096]{0}', space=vmem, size = 0x1000, scoped, tag = 'input window, operand 16, single buffered']
    #allocation29 [shape = 'u8[524288]{0}', space=vmem, size = 0x80000, scoped, tag = 'output window, operand 0, single buffered']
    %22 = vsyncpa [#allocation3], 0
    %23 = vsyncpa [#allocation6], 0
    %24 = vsyncpa [#allocation9], 0
    %25 = vsyncpa [#allocation12], 0
    %26 = vsyncpa [#allocation15], 0
    %27 = vsyncpa [#allocation18], 0
    %28 = vsyncpa [#allocation21], 0
    %29 = vsyncpa [#allocation24], 0
    %30 = vsyncpa [#allocation27], 0
    %31 = vsyncpa [#allocation4], 0
    // Predicated region
    $region2: #{tpu_custom_call.1} parent=1 // pred_check
      _
    $region3: #{tpu_custom_call.1} parent=1 // pred_check_branch
      %33 = sbr.rel (0) target = $region5
    $region4: #{tpu_custom_call.1} parent=1 // pred_region
      %s35 = ssub.s32 8192, 8192
      %36 = vsyncadd [#allocation3], %s35
      %s37 = sshll.u32 [#allocation2], 4
      %s38 = int_to_ptr.vmem [resolvable:$true] %s37
      %43 = dma.hbm_to_vmem [thread:$0]  %s0, 8192, %s38, [#allocation3], 512, 512, 32
    $region5: #{tpu_custom_call.1} parent=1 // pred_fallthru
      _
    // Predicated region
    $region6: #{tpu_custom_call.1} parent=1 // pred_check
      _
    $region7: #{tpu_custom_call.1} parent=1 // pred_check_branch
      %45 = sbr.rel (0) target = $region9
    $region8: #{tpu_custom_call.1} parent=1 // pred_region
      %s47 = ssub.s32 49152, 49152
      %48 = vsyncadd [#allocation6], %s47
      %s49 = sshll.u32 [#allocation5], 4
      %s50 = int_to_ptr.vmem [resolvable:$true] %s49
      %55 = dma.hbm_to_vmem [thread:$0]  %s1, 49152, %s50, [#allocation6], 384, 384, 24
    $region9: #{tpu_custom_call.1} parent=1 // pred_fallthru
      _
    // Predicated region
    $region10: #{tpu_custom_call.1} parent=1 // pred_check
      _
    $region11: #{tpu_custom_call.1} parent=1 // pred_check_branch
      %57 = sbr.rel (0) target = $region13
    $region12: #{tpu_custom_call.1} parent=1 // pred_region
      %s59 = ssub.s32 96, 96
      %60 = vsyncadd [#allocation6], %s59
      %s62 = sshll.u32 [#allocation7], 4
      %s63 = int_to_ptr.vmem [resolvable:$true] %s62
      %65 = dma.hbm_to_vmem [thread:$0]  %s2, 96, %s63, [#allocation6]
    $region13: #{tpu_custom_call.1} parent=1 // pred_fallthru
      _
    // Predicated region
    $region14: #{tpu_custom_call.1} parent=1 // pred_check
      _
    $region15: #{tpu_custom_call.1} parent=1 // pred_check_branch
      %67 = sbr.rel (0) target = $region17
    $region16: #{tpu_custom_call.1} parent=1 // pred_region
      %s69 = ssub.s32 18432, 18432
      %70 = vsyncadd [#allocation9], %s69
      %s71 = sshll.u32 [#allocation8], 4
      %s72 = int_to_ptr.vmem [resolvable:$true] %s71
      %77 = dma.hbm_to_vmem [thread:$0]  %s3, 18432, %s72, [#allocation9], 192, 192, 12
    $region17: #{tpu_custom_call.1} parent=1 // pred_fallthru
      _
    // Predicated region
    $region18: #{tpu_custom_call.1} parent=1 // pred_check
      _
    $region19: #{tpu_custom_call.1} parent=1 // pred_check_branch
      %79 = sbr.rel (0) target = $region21
    $region20: #{tpu_custom_call.1} parent=1 // pred_region
      %s81 = ssub.s32 48, 48
      %82 = vsyncadd [#allocation9], %s81
      %s84 = sshll.u32 [#allocation10], 4
      %s85 = int_to_ptr.vmem [resolvable:$true] %s84
      %87 = dma.hbm_to_vmem [thread:$0]  %s4, 48, %s85, [#allocation9]
    $region21: #{tpu_custom_call.1} parent=1 // pred_fallthru
      _
    // Predicated region
    $region22: #{tpu_custom_call.1} parent=1 // pred_check
      _
    $region23: #{tpu_custom_call.1} parent=1 // pred_check_branch
      %89 = sbr.rel (0) target = $region25
    $region24: #{tpu_custom_call.1} parent=1 // pred_region
      %s91 = ssub.s32 6144, 6144
      %92 = vsyncadd [#allocation12], %s91
      %s93 = sshll.u32 [#allocation11], 4
      %s94 = int_to_ptr.vmem [resolvable:$true] %s93
      %99 = dma.hbm_to_vmem [thread:$0]  %s5, 6144, %s94, [#allocation12], 128, 128, 8
    $region25: #{tpu_custom_call.1} parent=1 // pred_fallthru
      _
    // Predicated region
    $region26: #{tpu_custom_call.1} parent=1 // pred_check
      _
    $region27: #{tpu_custom_call.1} parent=1 // pred_check_branch
      %101 = sbr.rel (0) target = $region29
    $region28: #{tpu_custom_call.1} parent=1 // pred_region
      %s103 = ssub.s32 32, 32
      %104 = vsyncadd [#allocation12], %s103
      %s106 = sshll.u32 [#allocation13], 4
      %s107 = int_to_ptr.vmem [resolvable:$true] %s106
      %109 = dma.hbm_to_vmem [thread:$0]  %s6, 32, %s107, [#allocation12]
    $region29: #{tpu_custom_call.1} parent=1 // pred_fallthru
      _
    // Predicated region
    $region30: #{tpu_custom_call.1} parent=1 // pred_check
      _
    $region31: #{tpu_custom_call.1} parent=1 // pred_check_branch
      %111 = sbr.rel (0) target = $region33
    $region32: #{tpu_custom_call.1} parent=1 // pred_region
      %s113 = ssub.s32 2048, 2048
      %114 = vsyncadd [#allocation15], %s113
      %s115 = sshll.u32 [#allocation14], 4
      %s116 = int_to_ptr.vmem [resolvable:$true] %s115
      %121 = dma.hbm_to_vmem [thread:$0]  %s7, 2048, %s116, [#allocation15], 64, 64, 4
    $region33: #{tpu_custom_call.1} parent=1 // pred_fallthru
      _
    // Predicated region
    $region34: #{tpu_custom_call.1} parent=1 // pred_check
      _
    $region35: #{tpu_custom_call.1} parent=1 // pred_check_branch
      %123 = sbr.rel (0) target = $region37
    $region36: #{tpu_custom_call.1} parent=1 // pred_region
      %s125 = ssub.s32 16, 16
      %126 = vsyncadd [#allocation15], %s125
      %s128 = sshll.u32 [#allocation16], 4
      %s129 = int_to_ptr.vmem [resolvable:$true] %s128
      %131 = dma.hbm_to_vmem [thread:$0]  %s8, 16, %s129, [#allocation15]
    $region37: #{tpu_custom_call.1} parent=1 // pred_fallthru
      _
    // Predicated region
    $region38: #{tpu_custom_call.1} parent=1 // pred_check
      _
    $region39: #{tpu_custom_call.1} parent=1 // pred_check_branch
      %133 = sbr.rel (0) target = $region41
    $region40: #{tpu_custom_call.1} parent=1 // pred_region
      %s135 = ssub.s32 2048, 2048
      %136 = vsyncadd [#allocation18], %s135
      %s137 = sshll.u32 [#allocation17], 4
      %s138 = int_to_ptr.vmem [resolvable:$true] %s137
      %143 = dma.hbm_to_vmem [thread:$0]  %s9, 2048, %s138, [#allocation18], 128, 128, 8
    $region41: #{tpu_custom_call.1} parent=1 // pred_fallthru
      _
    // Predicated region
    $region42: #{tpu_custom_call.1} parent=1 // pred_check
      _
    $region43: #{tpu_custom_call.1} parent=1 // pred_check_branch
      %145 = sbr.rel (0) target = $region45
    $region44: #{tpu_custom_call.1} parent=1 // pred_region
      %s147 = ssub.s32 32, 32
      %148 = vsyncadd [#allocation18], %s147
      %s150 = sshll.u32 [#allocation19], 4
      %s151 = int_to_ptr.vmem [resolvable:$true] %s150
      %153 = dma.hbm_to_vmem [thread:$0]  %s10, 32, %s151, [#allocation18]
    $region45: #{tpu_custom_call.1} parent=1 // pred_fallthru
      _
    // Predicated region
    $region46: #{tpu_custom_call.1} parent=1 // pred_check
      _
    $region47: #{tpu_custom_call.1} parent=1 // pred_check_branch
      %155 = sbr.rel (0) target = $region49
    $region48: #{tpu_custom_call.1} parent=1 // pred_region
      %s157 = ssub.s32 6144, 6144
      %158 = vsyncadd [#allocation21], %s157
      %s159 = sshll.u32 [#allocation20], 4
      %s160 = int_to_ptr.vmem [resolvable:$true] %s159
      %165 = dma.hbm_to_vmem [thread:$0]  %s11, 6144, %s160, [#allocation21], 192, 192, 12
    $region49: #{tpu_custom_call.1} parent=1 // pred_fallthru
      _
    // Predicated region
    $region50: #{tpu_custom_call.1} parent=1 // pred_check
      _
    $region51: #{tpu_custom_call.1} parent=1 // pred_check_branch
      %167 = sbr.rel (0) target = $region53
    $region52: #{tpu_custom_call.1} parent=1 // pred_region
      %s169 = ssub.s32 48, 48
      %170 = vsyncadd [#allocation21], %s169
      %s172 = sshll.u32 [#allocation22], 4
      %s173 = int_to_ptr.vmem [resolvable:$true] %s172
      %175 = dma.hbm_to_vmem [thread:$0]  %s12, 48, %s173, [#allocation21]
    $region53: #{tpu_custom_call.1} parent=1 // pred_fallthru
      _
    // Predicated region
    $region54: #{tpu_custom_call.1} parent=1 // pred_check
      _
    $region55: #{tpu_custom_call.1} parent=1 // pred_check_branch
      %177 = sbr.rel (0) target = $region57
    $region56: #{tpu_custom_call.1} parent=1 // pred_region
      %s179 = ssub.s32 18432, 18432
      %180 = vsyncadd [#allocation24], %s179
      %s181 = sshll.u32 [#allocation23], 4
      %s182 = int_to_ptr.vmem [resolvable:$true] %s181
      %187 = dma.hbm_to_vmem [thread:$0]  %s13, 18432, %s182, [#allocation24], 384, 384, 24
    $region57: #{tpu_custom_call.1} parent=1 // pred_fallthru
      _
    // Predicated region
    $region58: #{tpu_custom_call.1} parent=1 // pred_check
      _
    $region59: #{tpu_custom_call.1} parent=1 // pred_check_branch
      %189 = sbr.rel (0) target = $region61
    $region60: #{tpu_custom_call.1} parent=1 // pred_region
      %s191 = ssub.s32 96, 96
      %192 = vsyncadd [#allocation24], %s191
      %s194 = sshll.u32 [#allocation25], 4
      %s195 = int_to_ptr.vmem [resolvable:$true] %s194
      %197 = dma.hbm_to_vmem [thread:$0]  %s14, 96, %s195, [#allocation24]
    $region61: #{tpu_custom_call.1} parent=1 // pred_fallthru
      _
    // Predicated region
    $region62: #{tpu_custom_call.1} parent=1 // pred_check
      _
    $region63: #{tpu_custom_call.1} parent=1 // pred_check_branch
      %199 = sbr.rel (0) target = $region65
    $region64: #{tpu_custom_call.1} parent=1 // pred_region
      %s201 = ssub.s32 49152, 49152
      %202 = vsyncadd [#allocation27], %s201
      %s203 = sshll.u32 [#allocation26], 4
      %s204 = int_to_ptr.vmem [resolvable:$true] %s203
      %209 = dma.hbm_to_vmem [thread:$0]  %s15, 49152, %s204, [#allocation27], 512, 512, 32
    $region65: #{tpu_custom_call.1} parent=1 // pred_fallthru
      _
    // Predicated region
    $region66: #{tpu_custom_call.1} parent=1 // pred_check
      _
    $region67: #{tpu_custom_call.1} parent=1 // pred_check_branch
      %211 = sbr.rel (0) target = $region69
    $region68: #{tpu_custom_call.1} parent=1 // pred_region
      %s213 = ssub.s32 128, 128
      %214 = vsyncadd [#allocation27], %s213
      %s216 = sshll.u32 [#allocation28], 4
      %s217 = int_to_ptr.vmem [resolvable:$true] %s216
      %219 = dma.hbm_to_vmem [thread:$0]  %s16, 128, %s217, [#allocation27]
    $region69: #{tpu_custom_call.1} parent=1 // pred_fallthru
      _
    // Predicated region
    $region70: #{tpu_custom_call.1} parent=1 // pred_check
      _
    $region71: #{tpu_custom_call.1} parent=1 // pred_check_branch
      %221 = sbr.rel (0) target = $region73
    $region72: #{tpu_custom_call.1} parent=1 // pred_region
      %222 = dma.done [#allocation3], 8192
    $region73: #{tpu_custom_call.1} parent=1 // pred_fallthru
      _
    // Predicated region
    $region74: #{tpu_custom_call.1} parent=1 // pred_check
      _
    $region75: #{tpu_custom_call.1} parent=1 // pred_check_branch
      %224 = sbr.rel (0) target = $region77
    $region76: #{tpu_custom_call.1} parent=1 // pred_region
      %225 = dma.done [#allocation6], 49152
    $region77: #{tpu_custom_call.1} parent=1 // pred_fallthru
      _
    // Predicated region
    $region78: #{tpu_custom_call.1} parent=1 // pred_check
      _
    $region79: #{tpu_custom_call.1} parent=1 // pred_check_branch
      %227 = sbr.rel (0) target = $region81
    $region80: #{tpu_custom_call.1} parent=1 // pred_region
      %228 = dma.done [#allocation6], 96
    $region81: #{tpu_custom_call.1} parent=1 // pred_fallthru
      _
    // Predicated region
    $region82: #{tpu_custom_call.1} parent=1 // pred_check
      _
    $region83: #{tpu_custom_call.1} parent=1 // pred_check_branch
      %230 = sbr.rel (0) target = $region85
    $region84: #{tpu_custom_call.1} parent=1 // pred_region
      %231 = dma.done [#allocation9], 18432
    $region85: #{tpu_custom_call.1} parent=1 // pred_fallthru
      _
    // Predicated region
    $region86: #{tpu_custom_call.1} parent=1 // pred_check
      _
    $region87: #{tpu_custom_call.1} parent=1 // pred_check_branch
      %233 = sbr.rel (0) target = $region89
    $region88: #{tpu_custom_call.1} parent=1 // pred_region
      %234 = dma.done [#allocation9], 48
    $region89: #{tpu_custom_call.1} parent=1 // pred_fallthru
      _
    // Predicated region
    $region90: #{tpu_custom_call.1} parent=1 // pred_check
      _
    $region91: #{tpu_custom_call.1} parent=1 // pred_check_branch
      %236 = sbr.rel (0) target = $region93
    $region92: #{tpu_custom_call.1} parent=1 // pred_region
      %237 = dma.done [#allocation12], 6144
    $region93: #{tpu_custom_call.1} parent=1 // pred_fallthru
      _
    // Predicated region
    $region94: #{tpu_custom_call.1} parent=1 // pred_check
      _
    $region95: #{tpu_custom_call.1} parent=1 // pred_check_branch
      %239 = sbr.rel (0) target = $region97
    $region96: #{tpu_custom_call.1} parent=1 // pred_region
      %240 = dma.done [#allocation12], 32
    $region97: #{tpu_custom_call.1} parent=1 // pred_fallthru
      _
    // Predicated region
    $region98: #{tpu_custom_call.1} parent=1 // pred_check
      _
    $region99: #{tpu_custom_call.1} parent=1 // pred_check_branch
      %242 = sbr.rel (0) target = $region101
    $region100: #{tpu_custom_call.1} parent=1 // pred_region
      %243 = dma.done [#allocation15], 2048
    $region101: #{tpu_custom_call.1} parent=1 // pred_fallthru
      _
    // Predicated region
    $region102: #{tpu_custom_call.1} parent=1 // pred_check
      _
    $region103: #{tpu_custom_call.1} parent=1 // pred_check_branch
      %245 = sbr.rel (0) target = $region105
    $region104: #{tpu_custom_call.1} parent=1 // pred_region
      %246 = dma.done [#allocation15], 16
    $region105: #{tpu_custom_call.1} parent=1 // pred_fallthru
      _
    // Predicated region
    $region106: #{tpu_custom_call.1} parent=1 // pred_check
      _
    $region107: #{tpu_custom_call.1} parent=1 // pred_check_branch
      %248 = sbr.rel (0) target = $region109
    $region108: #{tpu_custom_call.1} parent=1 // pred_region
      %249 = dma.done [#allocation18], 2048
    $region109: #{tpu_custom_call.1} parent=1 // pred_fallthru
      _
    // Predicated region
    $region110: #{tpu_custom_call.1} parent=1 // pred_check
      _
    $region111: #{tpu_custom_call.1} parent=1 // pred_check_branch
      %251 = sbr.rel (0) target = $region113
    $region112: #{tpu_custom_call.1} parent=1 // pred_region
      %252 = dma.done [#allocation18], 32
    $region113: #{tpu_custom_call.1} parent=1 // pred_fallthru
      _
    // Predicated region
    $region114: #{tpu_custom_call.1} parent=1 // pred_check
      _
    $region115: #{tpu_custom_call.1} parent=1 // pred_check_branch
      %254 = sbr.rel (0) target = $region117
    $region116: #{tpu_custom_call.1} parent=1 // pred_region
      %255 = dma.done [#allocation21], 6144
    $region117: #{tpu_custom_call.1} parent=1 // pred_fallthru
      _
    // Predicated region
    $region118: #{tpu_custom_call.1} parent=1 // pred_check
      _
    $region119: #{tpu_custom_call.1} parent=1 // pred_check_branch
      %257 = sbr.rel (0) target = $region121
    $region120: #{tpu_custom_call.1} parent=1 // pred_region
      %258 = dma.done [#allocation21], 48
    $region121: #{tpu_custom_call.1} parent=1 // pred_fallthru
      _
    // Predicated region
    $region122: #{tpu_custom_call.1} parent=1 // pred_check
      _
    $region123: #{tpu_custom_call.1} parent=1 // pred_check_branch
      %260 = sbr.rel (0) target = $region125
    $region124: #{tpu_custom_call.1} parent=1 // pred_region
      %261 = dma.done [#allocation24], 18432
    $region125: #{tpu_custom_call.1} parent=1 // pred_fallthru
      _
    // Predicated region
    $region126: #{tpu_custom_call.1} parent=1 // pred_check
      _
    $region127: #{tpu_custom_call.1} parent=1 // pred_check_branch
      %263 = sbr.rel (0) target = $region129
    $region128: #{tpu_custom_call.1} parent=1 // pred_region
      %264 = dma.done [#allocation24], 96
    $region129: #{tpu_custom_call.1} parent=1 // pred_fallthru
      _
    // Predicated region
    $region130: #{tpu_custom_call.1} parent=1 // pred_check
      _
    $region131: #{tpu_custom_call.1} parent=1 // pred_check_branch
      %266 = sbr.rel (0) target = $region133
    $region132: #{tpu_custom_call.1} parent=1 // pred_region
      %267 = dma.done [#allocation27], 49152
    $region133: #{tpu_custom_call.1} parent=1 // pred_fallthru
      _
    // Predicated region
    $region134: #{tpu_custom_call.1} parent=1 // pred_check
      _
    $region135: #{tpu_custom_call.1} parent=1 // pred_check_branch
      %269 = sbr.rel (0) target = $region137
    $region136: #{tpu_custom_call.1} parent=1 // pred_region
      %270 = dma.done [#allocation27], 128
    $region137: #{tpu_custom_call.1} parent=1 // pred_fallthru
      _
    %v272 = vld [vmem:[#allocation2] sm:$0xff]
    %v273 = vld [vmem:[#allocation2 + $0x8] sm:$0xff]
    %v274 = vld [vmem:[#allocation2 + $0x10] sm:$0xff]
    %v275 = vld [vmem:[#allocation2 + $0x18] sm:$0xff]
    %v276 = vld [vmem:[#allocation2 + $0x20] sm:$0xff]
    %v277 = vld [vmem:[#allocation2 + $0x28] sm:$0xff]
    %v278 = vld [vmem:[#allocation2 + $0x30] sm:$0xff]
    %v279 = vld [vmem:[#allocation2 + $0x38] sm:$0xff]
    %v280 = vld [vmem:[#allocation2 + $0x40] sm:$0xff]
    %v281 = vld [vmem:[#allocation2 + $0x48] sm:$0xff]
    %v282 = vld [vmem:[#allocation2 + $0x50] sm:$0xff]
    %v283 = vld [vmem:[#allocation2 + $0x58] sm:$0xff]
    %v284 = vld [vmem:[#allocation2 + $0x60] sm:$0xff]
    %v285 = vld [vmem:[#allocation2 + $0x68] sm:$0xff]
    %v286 = vld [vmem:[#allocation2 + $0x70] sm:$0xff]
    %v287 = vld [vmem:[#allocation2 + $0x78] sm:$0xff]
    %v288 = vld [vmem:[#allocation2 + $0x80] sm:$0xff]
    %v289 = vld [vmem:[#allocation2 + $0x88] sm:$0xff]
    %v290 = vld [vmem:[#allocation2 + $0x90] sm:$0xff]
    %v291 = vld [vmem:[#allocation2 + $0x98] sm:$0xff]
    %v292 = vld [vmem:[#allocation2 + $0xa0] sm:$0xff]
    %v293 = vld [vmem:[#allocation2 + $0xa8] sm:$0xff]
    %v294 = vld [vmem:[#allocation2 + $0xb0] sm:$0xff]
    %v295 = vld [vmem:[#allocation2 + $0xb8] sm:$0xff]
    %v296 = vld [vmem:[#allocation2 + $0xc0] sm:$0xff]
    %v297 = vld [vmem:[#allocation2 + $0xc8] sm:$0xff]
    %v298 = vld [vmem:[#allocation2 + $0xd0] sm:$0xff]
    %v299 = vld [vmem:[#allocation2 + $0xd8] sm:$0xff]
    %v300 = vld [vmem:[#allocation2 + $0xe0] sm:$0xff]
    %v301 = vld [vmem:[#allocation2 + $0xe8] sm:$0xff]
    %v302 = vld [vmem:[#allocation2 + $0xf0] sm:$0xff]
    %v303 = vld [vmem:[#allocation2 + $0xf8] sm:$0xff]
    %v304 = vld [vmem:[#allocation2 + $0x100] sm:$0xff]
    %v305 = vld [vmem:[#allocation2 + $0x108] sm:$0xff]
    %v306 = vld [vmem:[#allocation2 + $0x110] sm:$0xff]
    %v307 = vld [vmem:[#allocation2 + $0x118] sm:$0xff]
    %v308 = vld [vmem:[#allocation2 + $0x120] sm:$0xff]
    %v309 = vld [vmem:[#allocation2 + $0x128] sm:$0xff]
    %v310 = vld [vmem:[#allocation2 + $0x130] sm:$0xff]
    %v311 = vld [vmem:[#allocation2 + $0x138] sm:$0xff]
    %v312 = vld [vmem:[#allocation2 + $0x140] sm:$0xff]
    %v313 = vld [vmem:[#allocation2 + $0x148] sm:$0xff]
    %v314 = vld [vmem:[#allocation2 + $0x150] sm:$0xff]
    %v315 = vld [vmem:[#allocation2 + $0x158] sm:$0xff]
    %v316 = vld [vmem:[#allocation2 + $0x160] sm:$0xff]
    %v317 = vld [vmem:[#allocation2 + $0x168] sm:$0xff]
    %v318 = vld [vmem:[#allocation2 + $0x170] sm:$0xff]
    %v319 = vld [vmem:[#allocation2 + $0x178] sm:$0xff]
    %v320 = vld [vmem:[#allocation2 + $0x180] sm:$0xff]
    %v321 = vld [vmem:[#allocation2 + $0x188] sm:$0xff]
    %v322 = vld [vmem:[#allocation2 + $0x190] sm:$0xff]
    %v323 = vld [vmem:[#allocation2 + $0x198] sm:$0xff]
    %v324 = vld [vmem:[#allocation2 + $0x1a0] sm:$0xff]
    %v325 = vld [vmem:[#allocation2 + $0x1a8] sm:$0xff]
    %v326 = vld [vmem:[#allocation2 + $0x1b0] sm:$0xff]
    %v327 = vld [vmem:[#allocation2 + $0x1b8] sm:$0xff]
    %v328 = vld [vmem:[#allocation2 + $0x1c0] sm:$0xff]
    %v329 = vld [vmem:[#allocation2 + $0x1c8] sm:$0xff]
    %v330 = vld [vmem:[#allocation2 + $0x1d0] sm:$0xff]
    %v331 = vld [vmem:[#allocation2 + $0x1d8] sm:$0xff]
    %v332 = vld [vmem:[#allocation2 + $0x1e0] sm:$0xff]
    %v333 = vld [vmem:[#allocation2 + $0x1e8] sm:$0xff]
    %v334 = vld [vmem:[#allocation2 + $0x1f0] sm:$0xff]
    %v335 = vld [vmem:[#allocation2 + $0x1f8] sm:$0xff]
    %v336 = vld [vmem:[#allocation5] sm:$0xff]
    %v337 = vld [vmem:[#allocation5 + $0x8] sm:$0xff]
    %v338 = vld [vmem:[#allocation5 + $0x10] sm:$0xff]
    %v339 = vld [vmem:[#allocation5 + $0x18] sm:$0xff]
    %v340 = vld [vmem:[#allocation5 + $0x20] sm:$0xff]
    %v341 = vld [vmem:[#allocation5 + $0x28] sm:$0xff]
    %v342 = vld [vmem:[#allocation5 + $0x30] sm:$0xff]
    %v343 = vld [vmem:[#allocation5 + $0x38] sm:$0xff]
    %v344 = vld [vmem:[#allocation5 + $0x40] sm:$0xff]
    %v345 = vld [vmem:[#allocation5 + $0x48] sm:$0xff]
    %v346 = vld [vmem:[#allocation5 + $0x50] sm:$0xff]
    %v347 = vld [vmem:[#allocation5 + $0x58] sm:$0xff]
    %v348 = vld [vmem:[#allocation5 + $0x60] sm:$0xff]
    %v349 = vld [vmem:[#allocation5 + $0x68] sm:$0xff]
    %v350 = vld [vmem:[#allocation5 + $0x70] sm:$0xff]
    %v351 = vld [vmem:[#allocation5 + $0x78] sm:$0xff]
    %v352 = vld [vmem:[#allocation5 + $0x80] sm:$0xff]
    %v353 = vld [vmem:[#allocation5 + $0x88] sm:$0xff]
    %v354 = vld [vmem:[#allocation5 + $0x90] sm:$0xff]
    %v355 = vld [vmem:[#allocation5 + $0x98] sm:$0xff]
    %v356 = vld [vmem:[#allocation5 + $0xa0] sm:$0xff]
    %v357 = vld [vmem:[#allocation5 + $0xa8] sm:$0xff]
    %v358 = vld [vmem:[#allocation5 + $0xb0] sm:$0xff]
    %v359 = vld [vmem:[#allocation5 + $0xb8] sm:$0xff]
    %v360 = vld [vmem:[#allocation5 + $0xc0] sm:$0xff]
    %v361 = vld [vmem:[#allocation5 + $0xc8] sm:$0xff]
    %v362 = vld [vmem:[#allocation5 + $0xd0] sm:$0xff]
    %v363 = vld [vmem:[#allocation5 + $0xd8] sm:$0xff]
    %v364 = vld [vmem:[#allocation5 + $0xe0] sm:$0xff]
    %v365 = vld [vmem:[#allocation5 + $0xe8] sm:$0xff]
    %v366 = vld [vmem:[#allocation5 + $0xf0] sm:$0xff]
    %v367 = vld [vmem:[#allocation5 + $0xf8] sm:$0xff]
    %v368 = vld [vmem:[#allocation5 + $0x100] sm:$0xff]
    %v369 = vld [vmem:[#allocation5 + $0x108] sm:$0xff]
    %v370 = vld [vmem:[#allocation5 + $0x110] sm:$0xff]
    %v371 = vld [vmem:[#allocation5 + $0x118] sm:$0xff]
    %v372 = vld [vmem:[#allocation5 + $0x120] sm:$0xff]
    %v373 = vld [vmem:[#allocation5 + $0x128] sm:$0xff]
    %v374 = vld [vmem:[#allocation5 + $0x130] sm:$0xff]
    %v375 = vld [vmem:[#allocation5 + $0x138] sm:$0xff]
    %v376 = vld [vmem:[#allocation5 + $0x140] sm:$0xff]
    %v377 = vld [vmem:[#allocation5 + $0x148] sm:$0xff]
    %v378 = vld [vmem:[#allocation5 + $0x150] sm:$0xff]
    %v379 = vld [vmem:[#allocation5 + $0x158] sm:$0xff]
    %v380 = vld [vmem:[#allocation5 + $0x160] sm:$0xff]
    %v381 = vld [vmem:[#allocation5 + $0x168] sm:$0xff]
    %v382 = vld [vmem:[#allocation5 + $0x170] sm:$0xff]
    %v383 = vld [vmem:[#allocation5 + $0x178] sm:$0xff]
    %v384 = vld [vmem:[#allocation5 + $0x180] sm:$0xff]
    %v385 = vld [vmem:[#allocation5 + $0x188] sm:$0xff]
    %v386 = vld [vmem:[#allocation5 + $0x190] sm:$0xff]
    %v387 = vld [vmem:[#allocation5 + $0x198] sm:$0xff]
    %v388 = vld [vmem:[#allocation5 + $0x1a0] sm:$0xff]
    %v389 = vld [vmem:[#allocation5 + $0x1a8] sm:$0xff]
    %v390 = vld [vmem:[#allocation5 + $0x1b0] sm:$0xff]
    %v391 = vld [vmem:[#allocation5 + $0x1b8] sm:$0xff]
    %v392 = vld [vmem:[#allocation5 + $0x1c0] sm:$0xff]
    %v393 = vld [vmem:[#allocation5 + $0x1c8] sm:$0xff]
    %v394 = vld [vmem:[#allocation5 + $0x1d0] sm:$0xff]
    %v395 = vld [vmem:[#allocation5 + $0x1d8] sm:$0xff]
    %v396 = vld [vmem:[#allocation5 + $0x1e0] sm:$0xff]
    %v397 = vld [vmem:[#allocation5 + $0x1e8] sm:$0xff]
    %v398 = vld [vmem:[#allocation5 + $0x1f0] sm:$0xff]
    %v399 = vld [vmem:[#allocation5 + $0x1f8] sm:$0xff]
    %v400 = vld [vmem:[#allocation5 + $0x200] sm:$0xff]
    %v401 = vld [vmem:[#allocation5 + $0x208] sm:$0xff]
    %v402 = vld [vmem:[#allocation5 + $0x210] sm:$0xff]
    %v403 = vld [vmem:[#allocation5 + $0x218] sm:$0xff]
    %v404 = vld [vmem:[#allocation5 + $0x220] sm:$0xff]
    %v405 = vld [vmem:[#allocation5 + $0x228] sm:$0xff]
    %v406 = vld [vmem:[#allocation5 + $0x230] sm:$0xff]
    %v407 = vld [vmem:[#allocation5 + $0x238] sm:$0xff]
    %v408 = vld [vmem:[#allocation5 + $0x240] sm:$0xff]
    %v409 = vld [vmem:[#allocation5 + $0x248] sm:$0xff]
    %v410 = vld [vmem:[#allocation5 + $0x250] sm:$0xff]
    %v411 = vld [vmem:[#allocation5 + $0x258] sm:$0xff]
    %v412 = vld [vmem:[#allocation5 + $0x260] sm:$0xff]
    %v413 = vld [vmem:[#allocation5 + $0x268] sm:$0xff]
    %v414 = vld [vmem:[#allocation5 + $0x270] sm:$0xff]
    %v415 = vld [vmem:[#allocation5 + $0x278] sm:$0xff]
    %v416 = vld [vmem:[#allocation5 + $0x280] sm:$0xff]
    %v417 = vld [vmem:[#allocation5 + $0x288] sm:$0xff]
    %v418 = vld [vmem:[#allocation5 + $0x290] sm:$0xff]
    %v419 = vld [vmem:[#allocation5 + $0x298] sm:$0xff]
    %v420 = vld [vmem:[#allocation5 + $0x2a0] sm:$0xff]
    %v421 = vld [vmem:[#allocation5 + $0x2a8] sm:$0xff]
    %v422 = vld [vmem:[#allocation5 + $0x2b0] sm:$0xff]
    %v423 = vld [vmem:[#allocation5 + $0x2b8] sm:$0xff]
    %v424 = vld [vmem:[#allocation5 + $0x2c0] sm:$0xff]
    %v425 = vld [vmem:[#allocation5 + $0x2c8] sm:$0xff]
    %v426 = vld [vmem:[#allocation5 + $0x2d0] sm:$0xff]
    %v427 = vld [vmem:[#allocation5 + $0x2d8] sm:$0xff]
    %v428 = vld [vmem:[#allocation5 + $0x2e0] sm:$0xff]
    %v429 = vld [vmem:[#allocation5 + $0x2e8] sm:$0xff]
    %v430 = vld [vmem:[#allocation5 + $0x2f0] sm:$0xff]
    %v431 = vld [vmem:[#allocation5 + $0x2f8] sm:$0xff]
    %v432 = vld [vmem:[#allocation5 + $0x300] sm:$0xff]
    %v433 = vld [vmem:[#allocation5 + $0x308] sm:$0xff]
    %v434 = vld [vmem:[#allocation5 + $0x310] sm:$0xff]
    %v435 = vld [vmem:[#allocation5 + $0x318] sm:$0xff]
    %v436 = vld [vmem:[#allocation5 + $0x320] sm:$0xff]
    %v437 = vld [vmem:[#allocation5 + $0x328] sm:$0xff]
    %v438 = vld [vmem:[#allocation5 + $0x330] sm:$0xff]
    %v439 = vld [vmem:[#allocation5 + $0x338] sm:$0xff]
    %v440 = vld [vmem:[#allocation5 + $0x340] sm:$0xff]
    %v441 = vld [vmem:[#allocation5 + $0x348] sm:$0xff]
    %v442 = vld [vmem:[#allocation5 + $0x350] sm:$0xff]
    %v443 = vld [vmem:[#allocation5 + $0x358] sm:$0xff]
    %v444 = vld [vmem:[#allocation5 + $0x360] sm:$0xff]
    %v445 = vld [vmem:[#allocation5 + $0x368] sm:$0xff]
    %v446 = vld [vmem:[#allocation5 + $0x370] sm:$0xff]
    %v447 = vld [vmem:[#allocation5 + $0x378] sm:$0xff]
    %v448 = vld [vmem:[#allocation5 + $0x380] sm:$0xff]
    %v449 = vld [vmem:[#allocation5 + $0x388] sm:$0xff]
    %v450 = vld [vmem:[#allocation5 + $0x390] sm:$0xff]
    %v451 = vld [vmem:[#allocation5 + $0x398] sm:$0xff]
    %v452 = vld [vmem:[#allocation5 + $0x3a0] sm:$0xff]
    %v453 = vld [vmem:[#allocation5 + $0x3a8] sm:$0xff]
    %v454 = vld [vmem:[#allocation5 + $0x3b0] sm:$0xff]
    %v455 = vld [vmem:[#allocation5 + $0x3b8] sm:$0xff]
    %v456 = vld [vmem:[#allocation5 + $0x3c0] sm:$0xff]
    %v457 = vld [vmem:[#allocation5 + $0x3c8] sm:$0xff]
    %v458 = vld [vmem:[#allocation5 + $0x3d0] sm:$0xff]
    %v459 = vld [vmem:[#allocation5 + $0x3d8] sm:$0xff]
    %v460 = vld [vmem:[#allocation5 + $0x3e0] sm:$0xff]
    %v461 = vld [vmem:[#allocation5 + $0x3e8] sm:$0xff]
    %v462 = vld [vmem:[#allocation5 + $0x3f0] sm:$0xff]
    %v463 = vld [vmem:[#allocation5 + $0x3f8] sm:$0xff]
    %v464 = vld [vmem:[#allocation5 + $0x400] sm:$0xff]
    %v465 = vld [vmem:[#allocation5 + $0x408] sm:$0xff]
    %v466 = vld [vmem:[#allocation5 + $0x410] sm:$0xff]
    %v467 = vld [vmem:[#allocation5 + $0x418] sm:$0xff]
    %v468 = vld [vmem:[#allocation5 + $0x420] sm:$0xff]
    %v469 = vld [vmem:[#allocation5 + $0x428] sm:$0xff]
    %v470 = vld [vmem:[#allocation5 + $0x430] sm:$0xff]
    %v471 = vld [vmem:[#allocation5 + $0x438] sm:$0xff]
    %v472 = vld [vmem:[#allocation5 + $0x440] sm:$0xff]
    %v473 = vld [vmem:[#allocation5 + $0x448] sm:$0xff]
    %v474 = vld [vmem:[#allocation5 + $0x450] sm:$0xff]
    %v475 = vld [vmem:[#allocation5 + $0x458] sm:$0xff]
    %v476 = vld [vmem:[#allocation5 + $0x460] sm:$0xff]
    %v477 = vld [vmem:[#allocation5 + $0x468] sm:$0xff]
    %v478 = vld [vmem:[#allocation5 + $0x470] sm:$0xff]
    %v479 = vld [vmem:[#allocation5 + $0x478] sm:$0xff]
    %v480 = vld [vmem:[#allocation5 + $0x480] sm:$0xff]
    %v481 = vld [vmem:[#allocation5 + $0x488] sm:$0xff]
    %v482 = vld [vmem:[#allocation5 + $0x490] sm:$0xff]
    %v483 = vld [vmem:[#allocation5 + $0x498] sm:$0xff]
    %v484 = vld [vmem:[#allocation5 + $0x4a0] sm:$0xff]
    %v485 = vld [vmem:[#allocation5 + $0x4a8] sm:$0xff]
    %v486 = vld [vmem:[#allocation5 + $0x4b0] sm:$0xff]
    %v487 = vld [vmem:[#allocation5 + $0x4b8] sm:$0xff]
    %v488 = vld [vmem:[#allocation5 + $0x4c0] sm:$0xff]
    %v489 = vld [vmem:[#allocation5 + $0x4c8] sm:$0xff]
    %v490 = vld [vmem:[#allocation5 + $0x4d0] sm:$0xff]
    %v491 = vld [vmem:[#allocation5 + $0x4d8] sm:$0xff]
    %v492 = vld [vmem:[#allocation5 + $0x4e0] sm:$0xff]
    %v493 = vld [vmem:[#allocation5 + $0x4e8] sm:$0xff]
    %v494 = vld [vmem:[#allocation5 + $0x4f0] sm:$0xff]
    %v495 = vld [vmem:[#allocation5 + $0x4f8] sm:$0xff]
    %v496 = vld [vmem:[#allocation5 + $0x500] sm:$0xff]
    %v497 = vld [vmem:[#allocation5 + $0x508] sm:$0xff]
    %v498 = vld [vmem:[#allocation5 + $0x510] sm:$0xff]
    %v499 = vld [vmem:[#allocation5 + $0x518] sm:$0xff]
    %v500 = vld [vmem:[#allocation5 + $0x520] sm:$0xff]
    %v501 = vld [vmem:[#allocation5 + $0x528] sm:$0xff]
    %v502 = vld [vmem:[#allocation5 + $0x530] sm:$0xff]
    %v503 = vld [vmem:[#allocation5 + $0x538] sm:$0xff]
    %v504 = vld [vmem:[#allocation5 + $0x540] sm:$0xff]
    %v505 = vld [vmem:[#allocation5 + $0x548] sm:$0xff]
    %v506 = vld [vmem:[#allocation5 + $0x550] sm:$0xff]
    %v507 = vld [vmem:[#allocation5 + $0x558] sm:$0xff]
    %v508 = vld [vmem:[#allocation5 + $0x560] sm:$0xff]
    %v509 = vld [vmem:[#allocation5 + $0x568] sm:$0xff]
    %v510 = vld [vmem:[#allocation5 + $0x570] sm:$0xff]
    %v511 = vld [vmem:[#allocation5 + $0x578] sm:$0xff]
    %v512 = vld [vmem:[#allocation5 + $0x580] sm:$0xff]
    %v513 = vld [vmem:[#allocation5 + $0x588] sm:$0xff]
    %v514 = vld [vmem:[#allocation5 + $0x590] sm:$0xff]
    %v515 = vld [vmem:[#allocation5 + $0x598] sm:$0xff]
    %v516 = vld [vmem:[#allocation5 + $0x5a0] sm:$0xff]
    %v517 = vld [vmem:[#allocation5 + $0x5a8] sm:$0xff]
    %v518 = vld [vmem:[#allocation5 + $0x5b0] sm:$0xff]
    %v519 = vld [vmem:[#allocation5 + $0x5b8] sm:$0xff]
    %v520 = vld [vmem:[#allocation5 + $0x5c0] sm:$0xff]
    %v521 = vld [vmem:[#allocation5 + $0x5c8] sm:$0xff]
    %v522 = vld [vmem:[#allocation5 + $0x5d0] sm:$0xff]
    %v523 = vld [vmem:[#allocation5 + $0x5d8] sm:$0xff]
    %v524 = vld [vmem:[#allocation5 + $0x5e0] sm:$0xff]
    %v525 = vld [vmem:[#allocation5 + $0x5e8] sm:$0xff]
    %v526 = vld [vmem:[#allocation5 + $0x5f0] sm:$0xff]
    %v527 = vld [vmem:[#allocation5 + $0x5f8] sm:$0xff]
    %v528 = vld [vmem:[#allocation5 + $0x600] sm:$0xff]
    %v529 = vld [vmem:[#allocation5 + $0x608] sm:$0xff]
    %v530 = vld [vmem:[#allocation5 + $0x610] sm:$0xff]
    %v531 = vld [vmem:[#allocation5 + $0x618] sm:$0xff]
    %v532 = vld [vmem:[#allocation5 + $0x620] sm:$0xff]
    %v533 = vld [vmem:[#allocation5 + $0x628] sm:$0xff]
    %v534 = vld [vmem:[#allocation5 + $0x630] sm:$0xff]
    %v535 = vld [vmem:[#allocation5 + $0x638] sm:$0xff]
    %v536 = vld [vmem:[#allocation5 + $0x640] sm:$0xff]
    %v537 = vld [vmem:[#allocation5 + $0x648] sm:$0xff]
    %v538 = vld [vmem:[#allocation5 + $0x650] sm:$0xff]
    %v539 = vld [vmem:[#allocation5 + $0x658] sm:$0xff]
    %v540 = vld [vmem:[#allocation5 + $0x660] sm:$0xff]
    %v541 = vld [vmem:[#allocation5 + $0x668] sm:$0xff]
    %v542 = vld [vmem:[#allocation5 + $0x670] sm:$0xff]
    %v543 = vld [vmem:[#allocation5 + $0x678] sm:$0xff]
    %v544 = vld [vmem:[#allocation5 + $0x680] sm:$0xff]
    %v545 = vld [vmem:[#allocation5 + $0x688] sm:$0xff]
    %v546 = vld [vmem:[#allocation5 + $0x690] sm:$0xff]
    %v547 = vld [vmem:[#allocation5 + $0x698] sm:$0xff]
    %v548 = vld [vmem:[#allocation5 + $0x6a0] sm:$0xff]
    %v549 = vld [vmem:[#allocation5 + $0x6a8] sm:$0xff]
    %v550 = vld [vmem:[#allocation5 + $0x6b0] sm:$0xff]
    %v551 = vld [vmem:[#allocation5 + $0x6b8] sm:$0xff]
    %v552 = vld [vmem:[#allocation5 + $0x6c0] sm:$0xff]
    %v553 = vld [vmem:[#allocation5 + $0x6c8] sm:$0xff]
    %v554 = vld [vmem:[#allocation5 + $0x6d0] sm:$0xff]
    %v555 = vld [vmem:[#allocation5 + $0x6d8] sm:$0xff]
    %v556 = vld [vmem:[#allocation5 + $0x6e0] sm:$0xff]
    %v557 = vld [vmem:[#allocation5 + $0x6e8] sm:$0xff]
    %v558 = vld [vmem:[#allocation5 + $0x6f0] sm:$0xff]
    %v559 = vld [vmem:[#allocation5 + $0x6f8] sm:$0xff]
    %v560 = vld [vmem:[#allocation5 + $0x700] sm:$0xff]
    %v561 = vld [vmem:[#allocation5 + $0x708] sm:$0xff]
    %v562 = vld [vmem:[#allocation5 + $0x710] sm:$0xff]
    %v563 = vld [vmem:[#allocation5 + $0x718] sm:$0xff]
    %v564 = vld [vmem:[#allocation5 + $0x720] sm:$0xff]
    %v565 = vld [vmem:[#allocation5 + $0x728] sm:$0xff]
    %v566 = vld [vmem:[#allocation5 + $0x730] sm:$0xff]
    %v567 = vld [vmem:[#allocation5 + $0x738] sm:$0xff]
    %v568 = vld [vmem:[#allocation5 + $0x740] sm:$0xff]
    %v569 = vld [vmem:[#allocation5 + $0x748] sm:$0xff]
    %v570 = vld [vmem:[#allocation5 + $0x750] sm:$0xff]
    %v571 = vld [vmem:[#allocation5 + $0x758] sm:$0xff]
    %v572 = vld [vmem:[#allocation5 + $0x760] sm:$0xff]
    %v573 = vld [vmem:[#allocation5 + $0x768] sm:$0xff]
    %v574 = vld [vmem:[#allocation5 + $0x770] sm:$0xff]
    %v575 = vld [vmem:[#allocation5 + $0x778] sm:$0xff]
    %v576 = vld [vmem:[#allocation5 + $0x780] sm:$0xff]
    %v577 = vld [vmem:[#allocation5 + $0x788] sm:$0xff]
    %v578 = vld [vmem:[#allocation5 + $0x790] sm:$0xff]
    %v579 = vld [vmem:[#allocation5 + $0x798] sm:$0xff]
    %v580 = vld [vmem:[#allocation5 + $0x7a0] sm:$0xff]
    %v581 = vld [vmem:[#allocation5 + $0x7a8] sm:$0xff]
    %v582 = vld [vmem:[#allocation5 + $0x7b0] sm:$0xff]
    %v583 = vld [vmem:[#allocation5 + $0x7b8] sm:$0xff]
    %v584 = vld [vmem:[#allocation5 + $0x7c0] sm:$0xff]
    %v585 = vld [vmem:[#allocation5 + $0x7c8] sm:$0xff]
    %v586 = vld [vmem:[#allocation5 + $0x7d0] sm:$0xff]
    %v587 = vld [vmem:[#allocation5 + $0x7d8] sm:$0xff]
    %v588 = vld [vmem:[#allocation5 + $0x7e0] sm:$0xff]
    %v589 = vld [vmem:[#allocation5 + $0x7e8] sm:$0xff]
    %v590 = vld [vmem:[#allocation5 + $0x7f0] sm:$0xff]
    %v591 = vld [vmem:[#allocation5 + $0x7f8] sm:$0xff]
    %v592 = vld [vmem:[#allocation5 + $0x800] sm:$0xff]
    %v593 = vld [vmem:[#allocation5 + $0x808] sm:$0xff]
    %v594 = vld [vmem:[#allocation5 + $0x810] sm:$0xff]
    %v595 = vld [vmem:[#allocation5 + $0x818] sm:$0xff]
    %v596 = vld [vmem:[#allocation5 + $0x820] sm:$0xff]
    %v597 = vld [vmem:[#allocation5 + $0x828] sm:$0xff]
    %v598 = vld [vmem:[#allocation5 + $0x830] sm:$0xff]
    %v599 = vld [vmem:[#allocation5 + $0x838] sm:$0xff]
    %v600 = vld [vmem:[#allocation5 + $0x840] sm:$0xff]
    %v601 = vld [vmem:[#allocation5 + $0x848] sm:$0xff]
    %v602 = vld [vmem:[#allocation5 + $0x850] sm:$0xff]
    %v603 = vld [vmem:[#allocation5 + $0x858] sm:$0xff]
    %v604 = vld [vmem:[#allocation5 + $0x860] sm:$0xff]
    %v605 = vld [vmem:[#allocation5 + $0x868] sm:$0xff]
    %v606 = vld [vmem:[#allocation5 + $0x870] sm:$0xff]
    %v607 = vld [vmem:[#allocation5 + $0x878] sm:$0xff]
    %v608 = vld [vmem:[#allocation5 + $0x880] sm:$0xff]
    %v609 = vld [vmem:[#allocation5 + $0x888] sm:$0xff]
    %v610 = vld [vmem:[#allocation5 + $0x890] sm:$0xff]
    %v611 = vld [vmem:[#allocation5 + $0x898] sm:$0xff]
    %v612 = vld [vmem:[#allocation5 + $0x8a0] sm:$0xff]
    %v613 = vld [vmem:[#allocation5 + $0x8a8] sm:$0xff]
    %v614 = vld [vmem:[#allocation5 + $0x8b0] sm:$0xff]
    %v615 = vld [vmem:[#allocation5 + $0x8b8] sm:$0xff]
    %v616 = vld [vmem:[#allocation5 + $0x8c0] sm:$0xff]
    %v617 = vld [vmem:[#allocation5 + $0x8c8] sm:$0xff]
    %v618 = vld [vmem:[#allocation5 + $0x8d0] sm:$0xff]
    %v619 = vld [vmem:[#allocation5 + $0x8d8] sm:$0xff]
    %v620 = vld [vmem:[#allocation5 + $0x8e0] sm:$0xff]
    %v621 = vld [vmem:[#allocation5 + $0x8e8] sm:$0xff]
    %v622 = vld [vmem:[#allocation5 + $0x8f0] sm:$0xff]
    %v623 = vld [vmem:[#allocation5 + $0x8f8] sm:$0xff]
    %v624 = vld [vmem:[#allocation5 + $0x900] sm:$0xff]
    %v625 = vld [vmem:[#allocation5 + $0x908] sm:$0xff]
    %v626 = vld [vmem:[#allocation5 + $0x910] sm:$0xff]
    %v627 = vld [vmem:[#allocation5 + $0x918] sm:$0xff]
    %v628 = vld [vmem:[#allocation5 + $0x920] sm:$0xff]
    %v629 = vld [vmem:[#allocation5 + $0x928] sm:$0xff]
    %v630 = vld [vmem:[#allocation5 + $0x930] sm:$0xff]
    %v631 = vld [vmem:[#allocation5 + $0x938] sm:$0xff]
    %v632 = vld [vmem:[#allocation5 + $0x940] sm:$0xff]
    %v633 = vld [vmem:[#allocation5 + $0x948] sm:$0xff]
    %v634 = vld [vmem:[#allocation5 + $0x950] sm:$0xff]
    %v635 = vld [vmem:[#allocation5 + $0x958] sm:$0xff]
    %v636 = vld [vmem:[#allocation5 + $0x960] sm:$0xff]
    %v637 = vld [vmem:[#allocation5 + $0x968] sm:$0xff]
    %v638 = vld [vmem:[#allocation5 + $0x970] sm:$0xff]
    %v639 = vld [vmem:[#allocation5 + $0x978] sm:$0xff]
    %v640 = vld [vmem:[#allocation5 + $0x980] sm:$0xff]
    %v641 = vld [vmem:[#allocation5 + $0x988] sm:$0xff]
    %v642 = vld [vmem:[#allocation5 + $0x990] sm:$0xff]
    %v643 = vld [vmem:[#allocation5 + $0x998] sm:$0xff]
    %v644 = vld [vmem:[#allocation5 + $0x9a0] sm:$0xff]
    %v645 = vld [vmem:[#allocation5 + $0x9a8] sm:$0xff]
    %v646 = vld [vmem:[#allocation5 + $0x9b0] sm:$0xff]
    %v647 = vld [vmem:[#allocation5 + $0x9b8] sm:$0xff]
    %v648 = vld [vmem:[#allocation5 + $0x9c0] sm:$0xff]
    %v649 = vld [vmem:[#allocation5 + $0x9c8] sm:$0xff]
    %v650 = vld [vmem:[#allocation5 + $0x9d0] sm:$0xff]
    %v651 = vld [vmem:[#allocation5 + $0x9d8] sm:$0xff]
    %v652 = vld [vmem:[#allocation5 + $0x9e0] sm:$0xff]
    %v653 = vld [vmem:[#allocation5 + $0x9e8] sm:$0xff]
    %v654 = vld [vmem:[#allocation5 + $0x9f0] sm:$0xff]
    %v655 = vld [vmem:[#allocation5 + $0x9f8] sm:$0xff]
    %v656 = vld [vmem:[#allocation5 + $0xa00] sm:$0xff]
    %v657 = vld [vmem:[#allocation5 + $0xa08] sm:$0xff]
    %v658 = vld [vmem:[#allocation5 + $0xa10] sm:$0xff]
    %v659 = vld [vmem:[#allocation5 + $0xa18] sm:$0xff]
    %v660 = vld [vmem:[#allocation5 + $0xa20] sm:$0xff]
    %v661 = vld [vmem:[#allocation5 + $0xa28] sm:$0xff]
    %v662 = vld [vmem:[#allocation5 + $0xa30] sm:$0xff]
    %v663 = vld [vmem:[#allocation5 + $0xa38] sm:$0xff]
    %v664 = vld [vmem:[#allocation5 + $0xa40] sm:$0xff]
    %v665 = vld [vmem:[#allocation5 + $0xa48] sm:$0xff]
    %v666 = vld [vmem:[#allocation5 + $0xa50] sm:$0xff]
    %v667 = vld [vmem:[#allocation5 + $0xa58] sm:$0xff]
    %v668 = vld [vmem:[#allocation5 + $0xa60] sm:$0xff]
    %v669 = vld [vmem:[#allocation5 + $0xa68] sm:$0xff]
    %v670 = vld [vmem:[#allocation5 + $0xa70] sm:$0xff]
    %v671 = vld [vmem:[#allocation5 + $0xa78] sm:$0xff]
    %v672 = vld [vmem:[#allocation5 + $0xa80] sm:$0xff]
    %v673 = vld [vmem:[#allocation5 + $0xa88] sm:$0xff]
    %v674 = vld [vmem:[#allocation5 + $0xa90] sm:$0xff]
    %v675 = vld [vmem:[#allocation5 + $0xa98] sm:$0xff]
    %v676 = vld [vmem:[#allocation5 + $0xaa0] sm:$0xff]
    %v677 = vld [vmem:[#allocation5 + $0xaa8] sm:$0xff]
    %v678 = vld [vmem:[#allocation5 + $0xab0] sm:$0xff]
    %v679 = vld [vmem:[#allocation5 + $0xab8] sm:$0xff]
    %v680 = vld [vmem:[#allocation5 + $0xac0] sm:$0xff]
    %v681 = vld [vmem:[#allocation5 + $0xac8] sm:$0xff]
    %v682 = vld [vmem:[#allocation5 + $0xad0] sm:$0xff]
    %v683 = vld [vmem:[#allocation5 + $0xad8] sm:$0xff]
    %v684 = vld [vmem:[#allocation5 + $0xae0] sm:$0xff]
    %v685 = vld [vmem:[#allocation5 + $0xae8] sm:$0xff]
    %v686 = vld [vmem:[#allocation5 + $0xaf0] sm:$0xff]
    %v687 = vld [vmem:[#allocation5 + $0xaf8] sm:$0xff]
    %v688 = vld [vmem:[#allocation5 + $0xb00] sm:$0xff]
    %v689 = vld [vmem:[#allocation5 + $0xb08] sm:$0xff]
    %v690 = vld [vmem:[#allocation5 + $0xb10] sm:$0xff]
    %v691 = vld [vmem:[#allocation5 + $0xb18] sm:$0xff]
    %v692 = vld [vmem:[#allocation5 + $0xb20] sm:$0xff]
    %v693 = vld [vmem:[#allocation5 + $0xb28] sm:$0xff]
    %v694 = vld [vmem:[#allocation5 + $0xb30] sm:$0xff]
    %v695 = vld [vmem:[#allocation5 + $0xb38] sm:$0xff]
    %v696 = vld [vmem:[#allocation5 + $0xb40] sm:$0xff]
    %v697 = vld [vmem:[#allocation5 + $0xb48] sm:$0xff]
    %v698 = vld [vmem:[#allocation5 + $0xb50] sm:$0xff]
    %v699 = vld [vmem:[#allocation5 + $0xb58] sm:$0xff]
    %v700 = vld [vmem:[#allocation5 + $0xb60] sm:$0xff]
    %v701 = vld [vmem:[#allocation5 + $0xb68] sm:$0xff]
    %v702 = vld [vmem:[#allocation5 + $0xb70] sm:$0xff]
    %v703 = vld [vmem:[#allocation5 + $0xb78] sm:$0xff]
    %v704 = vld [vmem:[#allocation5 + $0xb80] sm:$0xff]
    %v705 = vld [vmem:[#allocation5 + $0xb88] sm:$0xff]
    %v706 = vld [vmem:[#allocation5 + $0xb90] sm:$0xff]
    %v707 = vld [vmem:[#allocation5 + $0xb98] sm:$0xff]
    %v708 = vld [vmem:[#allocation5 + $0xba0] sm:$0xff]
    %v709 = vld [vmem:[#allocation5 + $0xba8] sm:$0xff]
    %v710 = vld [vmem:[#allocation5 + $0xbb0] sm:$0xff]
    %v711 = vld [vmem:[#allocation5 + $0xbb8] sm:$0xff]
    %v712 = vld [vmem:[#allocation5 + $0xbc0] sm:$0xff]
    %v713 = vld [vmem:[#allocation5 + $0xbc8] sm:$0xff]
    %v714 = vld [vmem:[#allocation5 + $0xbd0] sm:$0xff]
    %v715 = vld [vmem:[#allocation5 + $0xbd8] sm:$0xff]
    %v716 = vld [vmem:[#allocation5 + $0xbe0] sm:$0xff]
    %v717 = vld [vmem:[#allocation5 + $0xbe8] sm:$0xff]
    %v718 = vld [vmem:[#allocation5 + $0xbf0] sm:$0xff]
    %v719 = vld [vmem:[#allocation5 + $0xbf8] sm:$0xff]
    %v720 = vld [vmem:[#allocation7] sm:$0x3f]
    %v722 = vlaneseq
    %v723 = vshrl.u32 %v722, 7
    %v724 = vsub.s32 0, %v723
    %v725 = vrot.slane %v720, %v724
    %v726 = vlaneseq
    %v727 = vshrl.u32 %v726, 7
    %v728 = vsub.s32 1, %v727
    %v729 = vrot.slane %v720, %v728
    %v730 = vlaneseq
    %v731 = vshrl.u32 %v730, 7
    %v732 = vsub.s32 2, %v731
    %v733 = vrot.slane %v720, %v732
    %v734 = vlaneseq
    %v735 = vshrl.u32 %v734, 7
    %v736 = vsub.s32 3, %v735
    %v737 = vrot.slane %v720, %v736
    %v738 = vlaneseq
    %v739 = vshrl.u32 %v738, 7
    %v740 = vsub.s32 4, %v739
    %v741 = vrot.slane %v720, %v740
    %v742 = vlaneseq
    %v743 = vshrl.u32 %v742, 7
    %v744 = vsub.s32 5, %v743
    %v745 = vrot.slane %v720, %v744
    %v816 = vunpack.c.l.b16 %v272
    %v817 = vunpack.c.h.b16 %v272
    %v818 = vunpack.c.l.b16 %v273
    %v819 = vunpack.c.h.b16 %v273
    %v820 = vunpack.c.l.b16 %v274
    %v821 = vunpack.c.h.b16 %v274
    %v822 = vunpack.c.l.b16 %v275
    %v823 = vunpack.c.h.b16 %v275
    %v824 = vunpack.c.l.b16 %v276
    %v825 = vunpack.c.h.b16 %v276
    %v826 = vunpack.c.l.b16 %v277
    %v827 = vunpack.c.h.b16 %v277
    %v828 = vunpack.c.l.b16 %v278
    %v829 = vunpack.c.h.b16 %v278
    %v830 = vunpack.c.l.b16 %v279
    %v831 = vunpack.c.h.b16 %v279
    %v832 = vunpack.c.l.b16 %v280
    %v833 = vunpack.c.h.b16 %v280
    %v834 = vunpack.c.l.b16 %v281
    %v835 = vunpack.c.h.b16 %v281
    %v836 = vunpack.c.l.b16 %v282
    %v837 = vunpack.c.h.b16 %v282
    %v838 = vunpack.c.l.b16 %v283
    %v839 = vunpack.c.h.b16 %v283
    %v840 = vunpack.c.l.b16 %v284
    %v841 = vunpack.c.h.b16 %v284
    %v842 = vunpack.c.l.b16 %v285
    %v843 = vunpack.c.h.b16 %v285
    %v844 = vunpack.c.l.b16 %v286
    %v845 = vunpack.c.h.b16 %v286
    %v846 = vunpack.c.l.b16 %v287
    %v847 = vunpack.c.h.b16 %v287
    %v848 = vunpack.c.l.b16 %v288
    %v849 = vunpack.c.h.b16 %v288
    %v850 = vunpack.c.l.b16 %v289
    %v851 = vunpack.c.h.b16 %v289
    %v852 = vunpack.c.l.b16 %v290
    %v853 = vunpack.c.h.b16 %v290
    %v854 = vunpack.c.l.b16 %v291
    %v855 = vunpack.c.h.b16 %v291
    %v856 = vunpack.c.l.b16 %v292
    %v857 = vunpack.c.h.b16 %v292
    %v858 = vunpack.c.l.b16 %v293
    %v859 = vunpack.c.h.b16 %v293
    %v860 = vunpack.c.l.b16 %v294
    %v861 = vunpack.c.h.b16 %v294
    %v862 = vunpack.c.l.b16 %v295
    %v863 = vunpack.c.h.b16 %v295
    %v864 = vunpack.c.l.b16 %v296
    %v865 = vunpack.c.h.b16 %v296
    %v866 = vunpack.c.l.b16 %v297
    %v867 = vunpack.c.h.b16 %v297
    %v868 = vunpack.c.l.b16 %v298
    %v869 = vunpack.c.h.b16 %v298
    %v870 = vunpack.c.l.b16 %v299
    %v871 = vunpack.c.h.b16 %v299
    %v872 = vunpack.c.l.b16 %v300
    %v873 = vunpack.c.h.b16 %v300
    %v874 = vunpack.c.l.b16 %v301
    %v875 = vunpack.c.h.b16 %v301
    %v876 = vunpack.c.l.b16 %v302
    %v877 = vunpack.c.h.b16 %v302
    %v878 = vunpack.c.l.b16 %v303
    %v879 = vunpack.c.h.b16 %v303
    %v880 = vunpack.c.l.b16 %v304
    %v881 = vunpack.c.h.b16 %v304
    %v882 = vunpack.c.l.b16 %v305
    %v883 = vunpack.c.h.b16 %v305
    %v884 = vunpack.c.l.b16 %v306
    %v885 = vunpack.c.h.b16 %v306
    %v886 = vunpack.c.l.b16 %v307
    %v887 = vunpack.c.h.b16 %v307
    %v888 = vunpack.c.l.b16 %v308
    %v889 = vunpack.c.h.b16 %v308
    %v890 = vunpack.c.l.b16 %v309
    %v891 = vunpack.c.h.b16 %v309
    %v892 = vunpack.c.l.b16 %v310
    %v893 = vunpack.c.h.b16 %v310
    %v894 = vunpack.c.l.b16 %v311
    %v895 = vunpack.c.h.b16 %v311
    %v896 = vunpack.c.l.b16 %v312
    %v897 = vunpack.c.h.b16 %v312
    %v898 = vunpack.c.l.b16 %v313
    %v899 = vunpack.c.h.b16 %v313
    %v900 = vunpack.c.l.b16 %v314
    %v901 = vunpack.c.h.b16 %v314
    %v902 = vunpack.c.l.b16 %v315
    %v903 = vunpack.c.h.b16 %v315
    %v904 = vunpack.c.l.b16 %v316
    %v905 = vunpack.c.h.b16 %v316
    %v906 = vunpack.c.l.b16 %v317
    %v907 = vunpack.c.h.b16 %v317
    %v908 = vunpack.c.l.b16 %v318
    %v909 = vunpack.c.h.b16 %v318
    %v910 = vunpack.c.l.b16 %v319
    %v911 = vunpack.c.h.b16 %v319
    %v912 = vunpack.c.l.b16 %v320
    %v913 = vunpack.c.h.b16 %v320
    %v914 = vunpack.c.l.b16 %v321
    %v915 = vunpack.c.h.b16 %v321
    %v916 = vunpack.c.l.b16 %v322
    %v917 = vunpack.c.h.b16 %v322
    %v918 = vunpack.c.l.b16 %v323
    %v919 = vunpack.c.h.b16 %v323
    %v920 = vunpack.c.l.b16 %v324
    %v921 = vunpack.c.h.b16 %v324
    %v922 = vunpack.c.l.b16 %v325
    %v923 = vunpack.c.h.b16 %v325
    %v924 = vunpack.c.l.b16 %v326
    %v925 = vunpack.c.h.b16 %v326
    %v926 = vunpack.c.l.b16 %v327
    %v927 = vunpack.c.h.b16 %v327
    %v928 = vunpack.c.l.b16 %v328
    %v929 = vunpack.c.h.b16 %v328
    %v930 = vunpack.c.l.b16 %v329
    %v931 = vunpack.c.h.b16 %v329
    %v932 = vunpack.c.l.b16 %v330
    %v933 = vunpack.c.h.b16 %v330
    %v934 = vunpack.c.l.b16 %v331
    %v935 = vunpack.c.h.b16 %v331
    %v936 = vunpack.c.l.b16 %v332
    %v937 = vunpack.c.h.b16 %v332
    %v938 = vunpack.c.l.b16 %v333
    %v939 = vunpack.c.h.b16 %v333
    %v940 = vunpack.c.l.b16 %v334
    %v941 = vunpack.c.h.b16 %v334
    %v942 = vunpack.c.l.b16 %v335
    %v943 = vunpack.c.h.b16 %v335
    %v944 = vpack.c.b16 %v824, %v816
    %v945 = vpack.c.b16 %v825, %v817
    %v946 = vpack.c.b16 %v826, %v818
    %v947 = vpack.c.b16 %v827, %v819
    %v948 = vpack.c.b16 %v828, %v820
    %v949 = vpack.c.b16 %v829, %v821
    %v950 = vpack.c.b16 %v830, %v822
    %v951 = vpack.c.b16 %v831, %v823
    %v952 = vpack.c.b16 %v840, %v832
    %v953 = vpack.c.b16 %v841, %v833
    %v954 = vpack.c.b16 %v842, %v834
    %v955 = vpack.c.b16 %v843, %v835
    %v956 = vpack.c.b16 %v844, %v836
    %v957 = vpack.c.b16 %v845, %v837
    %v958 = vpack.c.b16 %v846, %v838
    %v959 = vpack.c.b16 %v847, %v839
    %v960 = vpack.c.b16 %v856, %v848
    %v961 = vpack.c.b16 %v857, %v849
    %v962 = vpack.c.b16 %v858, %v850
    %v963 = vpack.c.b16 %v859, %v851
    %v964 = vpack.c.b16 %v860, %v852
    %v965 = vpack.c.b16 %v861, %v853
    %v966 = vpack.c.b16 %v862, %v854
    %v967 = vpack.c.b16 %v863, %v855
    %v968 = vpack.c.b16 %v872, %v864
    %v969 = vpack.c.b16 %v873, %v865
    %v970 = vpack.c.b16 %v874, %v866
    %v971 = vpack.c.b16 %v875, %v867
    %v972 = vpack.c.b16 %v876, %v868
    %v973 = vpack.c.b16 %v877, %v869
    %v974 = vpack.c.b16 %v878, %v870
    %v975 = vpack.c.b16 %v879, %v871
    %v976 = vpack.c.b16 %v888, %v880
    %v977 = vpack.c.b16 %v889, %v881
    %v978 = vpack.c.b16 %v890, %v882
    %v979 = vpack.c.b16 %v891, %v883
    %v980 = vpack.c.b16 %v892, %v884
    %v981 = vpack.c.b16 %v893, %v885
    %v982 = vpack.c.b16 %v894, %v886
    %v983 = vpack.c.b16 %v895, %v887
    %v984 = vpack.c.b16 %v904, %v896
    %v985 = vpack.c.b16 %v905, %v897
    %v986 = vpack.c.b16 %v906, %v898
    %v987 = vpack.c.b16 %v907, %v899
    %v988 = vpack.c.b16 %v908, %v900
    %v989 = vpack.c.b16 %v909, %v901
    %v990 = vpack.c.b16 %v910, %v902
    %v991 = vpack.c.b16 %v911, %v903
    %v992 = vpack.c.b16 %v920, %v912
    %v993 = vpack.c.b16 %v921, %v913
    %v994 = vpack.c.b16 %v922, %v914
    %v995 = vpack.c.b16 %v923, %v915
    %v996 = vpack.c.b16 %v924, %v916
    %v997 = vpack.c.b16 %v925, %v917
    %v998 = vpack.c.b16 %v926, %v918
    %v999 = vpack.c.b16 %v927, %v919
    %v1000 = vpack.c.b16 %v936, %v928
    %v1001 = vpack.c.b16 %v937, %v929
    %v1002 = vpack.c.b16 %v938, %v930
    %v1003 = vpack.c.b16 %v939, %v931
    %v1004 = vpack.c.b16 %v940, %v932
    %v1005 = vpack.c.b16 %v941, %v933
    %v1006 = vpack.c.b16 %v942, %v934
    %v1007 = vpack.c.b16 %v943, %v935
    %v1456 = vunpack.c.l.b16 %v336
    %v1457 = vunpack.c.h.b16 %v336
    %v1458 = vunpack.c.l.b16 %v337
    %v1459 = vunpack.c.h.b16 %v337
    %v1460 = vunpack.c.l.b16 %v338
    %v1461 = vunpack.c.h.b16 %v338
    %v1462 = vunpack.c.l.b16 %v339
    %v1463 = vunpack.c.h.b16 %v339
    %v1464 = vunpack.c.l.b16 %v340
    %v1465 = vunpack.c.h.b16 %v340
    %v1466 = vunpack.c.l.b16 %v341
    %v1467 = vunpack.c.h.b16 %v341
    %v1468 = vunpack.c.l.b16 %v342
    %v1469 = vunpack.c.h.b16 %v342
    %v1470 = vunpack.c.l.b16 %v343
    %v1471 = vunpack.c.h.b16 %v343
    %v1472 = vunpack.c.l.b16 %v344
    %v1473 = vunpack.c.h.b16 %v344
    %v1474 = vunpack.c.l.b16 %v345
    %v1475 = vunpack.c.h.b16 %v345
    %v1476 = vunpack.c.l.b16 %v346
    %v1477 = vunpack.c.h.b16 %v346
    %v1478 = vunpack.c.l.b16 %v347
    %v1479 = vunpack.c.h.b16 %v347
    %v1480 = vunpack.c.l.b16 %v348
    %v1481 = vunpack.c.h.b16 %v348
    %v1482 = vunpack.c.l.b16 %v349
    %v1483 = vunpack.c.h.b16 %v349
    %v1484 = vunpack.c.l.b16 %v350
    %v1485 = vunpack.c.h.b16 %v350
    %v1486 = vunpack.c.l.b16 %v351
    %v1487 = vunpack.c.h.b16 %v351
    %v1488 = vunpack.c.l.b16 %v352
    %v1489 = vunpack.c.h.b16 %v352
    %v1490 = vunpack.c.l.b16 %v353
    %v1491 = vunpack.c.h.b16 %v353
    %v1492 = vunpack.c.l.b16 %v354
    %v1493 = vunpack.c.h.b16 %v354
    %v1494 = vunpack.c.l.b16 %v355
    %v1495 = vunpack.c.h.b16 %v355
    %v1496 = vunpack.c.l.b16 %v356
    %v1497 = vunpack.c.h.b16 %v356
    %v1498 = vunpack.c.l.b16 %v357
    %v1499 = vunpack.c.h.b16 %v357
    %v1500 = vunpack.c.l.b16 %v358
    %v1501 = vunpack.c.h.b16 %v358
    %v1502 = vunpack.c.l.b16 %v359
    %v1503 = vunpack.c.h.b16 %v359
    %v1504 = vunpack.c.l.b16 %v360
    %v1505 = vunpack.c.h.b16 %v360
    %v1506 = vunpack.c.l.b16 %v361
    %v1507 = vunpack.c.h.b16 %v361
    %v1508 = vunpack.c.l.b16 %v362
    %v1509 = vunpack.c.h.b16 %v362
    %v1510 = vunpack.c.l.b16 %v363
    %v1511 = vunpack.c.h.b16 %v363
    %v1512 = vunpack.c.l.b16 %v364
    %v1513 = vunpack.c.h.b16 %v364
    %v1514 = vunpack.c.l.b16 %v365
    %v1515 = vunpack.c.h.b16 %v365
    %v1516 = vunpack.c.l.b16 %v366
    %v1517 = vunpack.c.h.b16 %v366
    %v1518 = vunpack.c.l.b16 %v367
    %v1519 = vunpack.c.h.b16 %v367
    %v1520 = vunpack.c.l.b16 %v368
    %v1521 = vunpack.c.h.b16 %v368
    %v1522 = vunpack.c.l.b16 %v369
    %v1523 = vunpack.c.h.b16 %v369
    %v1524 = vunpack.c.l.b16 %v370
    %v1525 = vunpack.c.h.b16 %v370
    %v1526 = vunpack.c.l.b16 %v371
    %v1527 = vunpack.c.h.b16 %v371
    %v1528 = vunpack.c.l.b16 %v372
    %v1529 = vunpack.c.h.b16 %v372
    %v1530 = vunpack.c.l.b16 %v373
    %v1531 = vunpack.c.h.b16 %v373
    %v1532 = vunpack.c.l.b16 %v374
    %v1533 = vunpack.c.h.b16 %v374
    %v1534 = vunpack.c.l.b16 %v375
    %v1535 = vunpack.c.h.b16 %v375
    %v1536 = vunpack.c.l.b16 %v376
    %v1537 = vunpack.c.h.b16 %v376
    %v1538 = vunpack.c.l.b16 %v377
    %v1539 = vunpack.c.h.b16 %v377
    %v1540 = vunpack.c.l.b16 %v378
    %v1541 = vunpack.c.h.b16 %v378
    %v1542 = vunpack.c.l.b16 %v379
    %v1543 = vunpack.c.h.b16 %v379
    %v1544 = vunpack.c.l.b16 %v380
    %v1545 = vunpack.c.h.b16 %v380
    %v1546 = vunpack.c.l.b16 %v381
    %v1547 = vunpack.c.h.b16 %v381
    %v1548 = vunpack.c.l.b16 %v382
    %v1549 = vunpack.c.h.b16 %v382
    %v1550 = vunpack.c.l.b16 %v383
    %v1551 = vunpack.c.h.b16 %v383
    %v1552 = vunpack.c.l.b16 %v384
    %v1553 = vunpack.c.h.b16 %v384
    %v1554 = vunpack.c.l.b16 %v385
    %v1555 = vunpack.c.h.b16 %v385
    %v1556 = vunpack.c.l.b16 %v386
    %v1557 = vunpack.c.h.b16 %v386
    %v1558 = vunpack.c.l.b16 %v387
    %v1559 = vunpack.c.h.b16 %v387
    %v1560 = vunpack.c.l.b16 %v388
    %v1561 = vunpack.c.h.b16 %v388
    %v1562 = vunpack.c.l.b16 %v389
    %v1563 = vunpack.c.h.b16 %v389
    %v1564 = vunpack.c.l.b16 %v390
    %v1565 = vunpack.c.h.b16 %v390
    %v1566 = vunpack.c.l.b16 %v391
    %v1567 = vunpack.c.h.b16 %v391
    %v1568 = vunpack.c.l.b16 %v392
    %v1569 = vunpack.c.h.b16 %v392
    %v1570 = vunpack.c.l.b16 %v393
    %v1571 = vunpack.c.h.b16 %v393
    %v1572 = vunpack.c.l.b16 %v394
    %v1573 = vunpack.c.h.b16 %v394
    %v1574 = vunpack.c.l.b16 %v395
    %v1575 = vunpack.c.h.b16 %v395
    %v1576 = vunpack.c.l.b16 %v396
    %v1577 = vunpack.c.h.b16 %v396
    %v1578 = vunpack.c.l.b16 %v397
    %v1579 = vunpack.c.h.b16 %v397
    %v1580 = vunpack.c.l.b16 %v398
    %v1581 = vunpack.c.h.b16 %v398
    %v1582 = vunpack.c.l.b16 %v399
    %v1583 = vunpack.c.h.b16 %v399
    %v1584 = vunpack.c.l.b16 %v400
    %v1585 = vunpack.c.h.b16 %v400
    %v1586 = vunpack.c.l.b16 %v401
    %v1587 = vunpack.c.h.b16 %v401
    %v1588 = vunpack.c.l.b16 %v402
    %v1589 = vunpack.c.h.b16 %v402
    %v1590 = vunpack.c.l.b16 %v403
    %v1591 = vunpack.c.h.b16 %v403
    %v1592 = vunpack.c.l.b16 %v404
    %v1593 = vunpack.c.h.b16 %v404
    %v1594 = vunpack.c.l.b16 %v405
    %v1595 = vunpack.c.h.b16 %v405
    %v1596 = vunpack.c.l.b16 %v406
    %v1597 = vunpack.c.h.b16 %v406
    %v1598 = vunpack.c.l.b16 %v407
    %v1599 = vunpack.c.h.b16 %v407
    %v1600 = vunpack.c.l.b16 %v408
    %v1601 = vunpack.c.h.b16 %v408
    %v1602 = vunpack.c.l.b16 %v409
    %v1603 = vunpack.c.h.b16 %v409
    %v1604 = vunpack.c.l.b16 %v410
    %v1605 = vunpack.c.h.b16 %v410
    %v1606 = vunpack.c.l.b16 %v411
    %v1607 = vunpack.c.h.b16 %v411
    %v1608 = vunpack.c.l.b16 %v412
    %v1609 = vunpack.c.h.b16 %v412
    %v1610 = vunpack.c.l.b16 %v413
    %v1611 = vunpack.c.h.b16 %v413
    %v1612 = vunpack.c.l.b16 %v414
    %v1613 = vunpack.c.h.b16 %v414
    %v1614 = vunpack.c.l.b16 %v415
    %v1615 = vunpack.c.h.b16 %v415
    %v1616 = vunpack.c.l.b16 %v416
    %v1617 = vunpack.c.h.b16 %v416
    %v1618 = vunpack.c.l.b16 %v417
    %v1619 = vunpack.c.h.b16 %v417
    %v1620 = vunpack.c.l.b16 %v418
    %v1621 = vunpack.c.h.b16 %v418
    %v1622 = vunpack.c.l.b16 %v419
    %v1623 = vunpack.c.h.b16 %v419
    %v1624 = vunpack.c.l.b16 %v420
    %v1625 = vunpack.c.h.b16 %v420
    %v1626 = vunpack.c.l.b16 %v421
    %v1627 = vunpack.c.h.b16 %v421
    %v1628 = vunpack.c.l.b16 %v422
    %v1629 = vunpack.c.h.b16 %v422
    %v1630 = vunpack.c.l.b16 %v423
    %v1631 = vunpack.c.h.b16 %v423
    %v1632 = vunpack.c.l.b16 %v424
    %v1633 = vunpack.c.h.b16 %v424
    %v1634 = vunpack.c.l.b16 %v425
    %v1635 = vunpack.c.h.b16 %v425
    %v1636 = vunpack.c.l.b16 %v426
    %v1637 = vunpack.c.h.b16 %v426
    %v1638 = vunpack.c.l.b16 %v427
    %v1639 = vunpack.c.h.b16 %v427
    %v1640 = vunpack.c.l.b16 %v428
    %v1641 = vunpack.c.h.b16 %v428
    %v1642 = vunpack.c.l.b16 %v429
    %v1643 = vunpack.c.h.b16 %v429
    %v1644 = vunpack.c.l.b16 %v430
    %v1645 = vunpack.c.h.b16 %v430
    %v1646 = vunpack.c.l.b16 %v431
    %v1647 = vunpack.c.h.b16 %v431
    %v1648 = vunpack.c.l.b16 %v432
    %v1649 = vunpack.c.h.b16 %v432
    %v1650 = vunpack.c.l.b16 %v433
    %v1651 = vunpack.c.h.b16 %v433
    %v1652 = vunpack.c.l.b16 %v434
    %v1653 = vunpack.c.h.b16 %v434
    %v1654 = vunpack.c.l.b16 %v435
    %v1655 = vunpack.c.h.b16 %v435
    %v1656 = vunpack.c.l.b16 %v436
    %v1657 = vunpack.c.h.b16 %v436
    %v1658 = vunpack.c.l.b16 %v437
    %v1659 = vunpack.c.h.b16 %v437
    %v1660 = vunpack.c.l.b16 %v438
    %v1661 = vunpack.c.h.b16 %v438
    %v1662 = vunpack.c.l.b16 %v439
    %v1663 = vunpack.c.h.b16 %v439
    %v1664 = vunpack.c.l.b16 %v440
    %v1665 = vunpack.c.h.b16 %v440
    %v1666 = vunpack.c.l.b16 %v441
    %v1667 = vunpack.c.h.b16 %v441
    %v1668 = vunpack.c.l.b16 %v442
    %v1669 = vunpack.c.h.b16 %v442
    %v1670 = vunpack.c.l.b16 %v443
    %v1671 = vunpack.c.h.b16 %v443
    %v1672 = vunpack.c.l.b16 %v444
    %v1673 = vunpack.c.h.b16 %v444
    %v1674 = vunpack.c.l.b16 %v445
    %v1675 = vunpack.c.h.b16 %v445
    %v1676 = vunpack.c.l.b16 %v446
    %v1677 = vunpack.c.h.b16 %v446
    %v1678 = vunpack.c.l.b16 %v447
    %v1679 = vunpack.c.h.b16 %v447
    %v1680 = vunpack.c.l.b16 %v448
    %v1681 = vunpack.c.h.b16 %v448
    %v1682 = vunpack.c.l.b16 %v449
    %v1683 = vunpack.c.h.b16 %v449
    %v1684 = vunpack.c.l.b16 %v450
    %v1685 = vunpack.c.h.b16 %v450
    %v1686 = vunpack.c.l.b16 %v451
    %v1687 = vunpack.c.h.b16 %v451
    %v1688 = vunpack.c.l.b16 %v452
    %v1689 = vunpack.c.h.b16 %v452
    %v1690 = vunpack.c.l.b16 %v453
    %v1691 = vunpack.c.h.b16 %v453
    %v1692 = vunpack.c.l.b16 %v454
    %v1693 = vunpack.c.h.b16 %v454
    %v1694 = vunpack.c.l.b16 %v455
    %v1695 = vunpack.c.h.b16 %v455
    %v1696 = vunpack.c.l.b16 %v456
    %v1697 = vunpack.c.h.b16 %v456
    %v1698 = vunpack.c.l.b16 %v457
    %v1699 = vunpack.c.h.b16 %v457
    %v1700 = vunpack.c.l.b16 %v458
    %v1701 = vunpack.c.h.b16 %v458
    %v1702 = vunpack.c.l.b16 %v459
    %v1703 = vunpack.c.h.b16 %v459
    %v1704 = vunpack.c.l.b16 %v460
    %v1705 = vunpack.c.h.b16 %v460
    %v1706 = vunpack.c.l.b16 %v461
    %v1707 = vunpack.c.h.b16 %v461
    %v1708 = vunpack.c.l.b16 %v462
    %v1709 = vunpack.c.h.b16 %v462
    %v1710 = vunpack.c.l.b16 %v463
    %v1711 = vunpack.c.h.b16 %v463
    %v1712 = vunpack.c.l.b16 %v464
    %v1713 = vunpack.c.h.b16 %v464
    %v1714 = vunpack.c.l.b16 %v465
    %v1715 = vunpack.c.h.b16 %v465
    %v1716 = vunpack.c.l.b16 %v466
    %v1717 = vunpack.c.h.b16 %v466
    %v1718 = vunpack.c.l.b16 %v467
    %v1719 = vunpack.c.h.b16 %v467
    %v1720 = vunpack.c.l.b16 %v468
    %v1721 = vunpack.c.h.b16 %v468
    %v1722 = vunpack.c.l.b16 %v469
    %v1723 = vunpack.c.h.b16 %v469
    %v1724 = vunpack.c.l.b16 %v470
    %v1725 = vunpack.c.h.b16 %v470
    %v1726 = vunpack.c.l.b16 %v471
    %v1727 = vunpack.c.h.b16 %v471
    %v1728 = vunpack.c.l.b16 %v472
    %v1729 = vunpack.c.h.b16 %v472
    %v1730 = vunpack.c.l.b16 %v473
    %v1731 = vunpack.c.h.b16 %v473
    %v1732 = vunpack.c.l.b16 %v474
    %v1733 = vunpack.c.h.b16 %v474
    %v1734 = vunpack.c.l.b16 %v475
    %v1735 = vunpack.c.h.b16 %v475
    %v1736 = vunpack.c.l.b16 %v476
    %v1737 = vunpack.c.h.b16 %v476
    %v1738 = vunpack.c.l.b16 %v477
    %v1739 = vunpack.c.h.b16 %v477
    %v1740 = vunpack.c.l.b16 %v478
    %v1741 = vunpack.c.h.b16 %v478
    %v1742 = vunpack.c.l.b16 %v479
    %v1743 = vunpack.c.h.b16 %v479
    %v1744 = vunpack.c.l.b16 %v480
    %v1745 = vunpack.c.h.b16 %v480
    %v1746 = vunpack.c.l.b16 %v481
    %v1747 = vunpack.c.h.b16 %v481
    %v1748 = vunpack.c.l.b16 %v482
    %v1749 = vunpack.c.h.b16 %v482
    %v1750 = vunpack.c.l.b16 %v483
    %v1751 = vunpack.c.h.b16 %v483
    %v1752 = vunpack.c.l.b16 %v484
    %v1753 = vunpack.c.h.b16 %v484
    %v1754 = vunpack.c.l.b16 %v485
    %v1755 = vunpack.c.h.b16 %v485
    %v1756 = vunpack.c.l.b16 %v486
    %v1757 = vunpack.c.h.b16 %v486
    %v1758 = vunpack.c.l.b16 %v487
    %v1759 = vunpack.c.h.b16 %v487
    %v1760 = vunpack.c.l.b16 %v488
    %v1761 = vunpack.c.h.b16 %v488
    %v1762 = vunpack.c.l.b16 %v489
    %v1763 = vunpack.c.h.b16 %v489
    %v1764 = vunpack.c.l.b16 %v490
    %v1765 = vunpack.c.h.b16 %v490
    %v1766 = vunpack.c.l.b16 %v491
    %v1767 = vunpack.c.h.b16 %v491
    %v1768 = vunpack.c.l.b16 %v492
    %v1769 = vunpack.c.h.b16 %v492
    %v1770 = vunpack.c.l.b16 %v493
    %v1771 = vunpack.c.h.b16 %v493
    %v1772 = vunpack.c.l.b16 %v494
    %v1773 = vunpack.c.h.b16 %v494
    %v1774 = vunpack.c.l.b16 %v495
    %v1775 = vunpack.c.h.b16 %v495
    %v1776 = vunpack.c.l.b16 %v496
    %v1777 = vunpack.c.h.b16 %v496
    %v1778 = vunpack.c.l.b16 %v497
    %v1779 = vunpack.c.h.b16 %v497
    %v1780 = vunpack.c.l.b16 %v498
    %v1781 = vunpack.c.h.b16 %v498
    %v1782 = vunpack.c.l.b16 %v499
    %v1783 = vunpack.c.h.b16 %v499
    %v1784 = vunpack.c.l.b16 %v500
    %v1785 = vunpack.c.h.b16 %v500
    %v1786 = vunpack.c.l.b16 %v501
    %v1787 = vunpack.c.h.b16 %v501
    %v1788 = vunpack.c.l.b16 %v502
    %v1789 = vunpack.c.h.b16 %v502
    %v1790 = vunpack.c.l.b16 %v503
    %v1791 = vunpack.c.h.b16 %v503
    %v1792 = vunpack.c.l.b16 %v504
    %v1793 = vunpack.c.h.b16 %v504
    %v1794 = vunpack.c.l.b16 %v505
    %v1795 = vunpack.c.h.b16 %v505
    %v1796 = vunpack.c.l.b16 %v506
    %v1797 = vunpack.c.h.b16 %v506
    %v1798 = vunpack.c.l.b16 %v507
    %v1799 = vunpack.c.h.b16 %v507
    %v1800 = vunpack.c.l.b16 %v508
    %v1801 = vunpack.c.h.b16 %v508
    %v1802 = vunpack.c.l.b16 %v509
    %v1803 = vunpack.c.h.b16 %v509
    %v1804 = vunpack.c.l.b16 %v510
    %v1805 = vunpack.c.h.b16 %v510
    %v1806 = vunpack.c.l.b16 %v511
    %v1807 = vunpack.c.h.b16 %v511
    %v1808 = vunpack.c.l.b16 %v512
    %v1809 = vunpack.c.h.b16 %v512
    %v1810 = vunpack.c.l.b16 %v513
    %v1811 = vunpack.c.h.b16 %v513
    %v1812 = vunpack.c.l.b16 %v514
    %v1813 = vunpack.c.h.b16 %v514
    %v1814 = vunpack.c.l.b16 %v515
    %v1815 = vunpack.c.h.b16 %v515
    %v1816 = vunpack.c.l.b16 %v516
    %v1817 = vunpack.c.h.b16 %v516
    %v1818 = vunpack.c.l.b16 %v517
    %v1819 = vunpack.c.h.b16 %v517
    %v1820 = vunpack.c.l.b16 %v518
    %v1821 = vunpack.c.h.b16 %v518
    %v1822 = vunpack.c.l.b16 %v519
    %v1823 = vunpack.c.h.b16 %v519
    %v1824 = vunpack.c.l.b16 %v520
    %v1825 = vunpack.c.h.b16 %v520
    %v1826 = vunpack.c.l.b16 %v521
    %v1827 = vunpack.c.h.b16 %v521
    %v1828 = vunpack.c.l.b16 %v522
    %v1829 = vunpack.c.h.b16 %v522
    %v1830 = vunpack.c.l.b16 %v523
    %v1831 = vunpack.c.h.b16 %v523
    %v1832 = vunpack.c.l.b16 %v524
    %v1833 = vunpack.c.h.b16 %v524
    %v1834 = vunpack.c.l.b16 %v525
    %v1835 = vunpack.c.h.b16 %v525
    %v1836 = vunpack.c.l.b16 %v526
    %v1837 = vunpack.c.h.b16 %v526
    %v1838 = vunpack.c.l.b16 %v527
    %v1839 = vunpack.c.h.b16 %v527
    %v1840 = vunpack.c.l.b16 %v528
    %v1841 = vunpack.c.h.b16 %v528
    %v1842 = vunpack.c.l.b16 %v529
    %v1843 = vunpack.c.h.b16 %v529
    %v1844 = vunpack.c.l.b16 %v530
    %v1845 = vunpack.c.h.b16 %v530
    %v1846 = vunpack.c.l.b16 %v531
    %v1847 = vunpack.c.h.b16 %v531
    %v1848 = vunpack.c.l.b16 %v532
    %v1849 = vunpack.c.h.b16 %v532
    %v1850 = vunpack.c.l.b16 %v533
    %v1851 = vunpack.c.h.b16 %v533
    %v1852 = vunpack.c.l.b16 %v534
    %v1853 = vunpack.c.h.b16 %v534
    %v1854 = vunpack.c.l.b16 %v535
    %v1855 = vunpack.c.h.b16 %v535
    %v1856 = vunpack.c.l.b16 %v536
    %v1857 = vunpack.c.h.b16 %v536
    %v1858 = vunpack.c.l.b16 %v537
    %v1859 = vunpack.c.h.b16 %v537
    %v1860 = vunpack.c.l.b16 %v538
    %v1861 = vunpack.c.h.b16 %v538
    %v1862 = vunpack.c.l.b16 %v539
    %v1863 = vunpack.c.h.b16 %v539
    %v1864 = vunpack.c.l.b16 %v540
    %v1865 = vunpack.c.h.b16 %v540
    %v1866 = vunpack.c.l.b16 %v541
    %v1867 = vunpack.c.h.b16 %v541
    %v1868 = vunpack.c.l.b16 %v542
    %v1869 = vunpack.c.h.b16 %v542
    %v1870 = vunpack.c.l.b16 %v543
    %v1871 = vunpack.c.h.b16 %v543
    %v1872 = vunpack.c.l.b16 %v544
    %v1873 = vunpack.c.h.b16 %v544
    %v1874 = vunpack.c.l.b16 %v545
    %v1875 = vunpack.c.h.b16 %v545
    %v1876 = vunpack.c.l.b16 %v546
    %v1877 = vunpack.c.h.b16 %v546
    %v1878 = vunpack.c.l.b16 %v547
    %v1879 = vunpack.c.h.b16 %v547
    %v1880 = vunpack.c.l.b16 %v548
    %v1881 = vunpack.c.h.b16 %v548
    %v1882 = vunpack.c.l.b16 %v549
    %v1883 = vunpack.c.h.b16 %v549
    %v1884 = vunpack.c.l.b16 %v550
    %v1885 = vunpack.c.h.b16 %v550
    %v1886 = vunpack.c.l.b16 %v551
    %v1887 = vunpack.c.h.b16 %v551
    %v1888 = vunpack.c.l.b16 %v552
    %v1889 = vunpack.c.h.b16 %v552
    %v1890 = vunpack.c.l.b16 %v553
    %v1891 = vunpack.c.h.b16 %v553
    %v1892 = vunpack.c.l.b16 %v554
    %v1893 = vunpack.c.h.b16 %v554
    %v1894 = vunpack.c.l.b16 %v555
    %v1895 = vunpack.c.h.b16 %v555
    %v1896 = vunpack.c.l.b16 %v556
    %v1897 = vunpack.c.h.b16 %v556
    %v1898 = vunpack.c.l.b16 %v557
    %v1899 = vunpack.c.h.b16 %v557
    %v1900 = vunpack.c.l.b16 %v558
    %v1901 = vunpack.c.h.b16 %v558
    %v1902 = vunpack.c.l.b16 %v559
    %v1903 = vunpack.c.h.b16 %v559
    %v1904 = vunpack.c.l.b16 %v560
    %v1905 = vunpack.c.h.b16 %v560
    %v1906 = vunpack.c.l.b16 %v561
    %v1907 = vunpack.c.h.b16 %v561
    %v1908 = vunpack.c.l.b16 %v562
    %v1909 = vunpack.c.h.b16 %v562
    %v1910 = vunpack.c.l.b16 %v563
    %v1911 = vunpack.c.h.b16 %v563
    %v1912 = vunpack.c.l.b16 %v564
    %v1913 = vunpack.c.h.b16 %v564
    %v1914 = vunpack.c.l.b16 %v565
    %v1915 = vunpack.c.h.b16 %v565
    %v1916 = vunpack.c.l.b16 %v566
    %v1917 = vunpack.c.h.b16 %v566
    %v1918 = vunpack.c.l.b16 %v567
    %v1919 = vunpack.c.h.b16 %v567
    %v1920 = vunpack.c.l.b16 %v568
    %v1921 = vunpack.c.h.b16 %v568
    %v1922 = vunpack.c.l.b16 %v569
    %v1923 = vunpack.c.h.b16 %v569
    %v1924 = vunpack.c.l.b16 %v570
    %v1925 = vunpack.c.h.b16 %v570
    %v1926 = vunpack.c.l.b16 %v571
    %v1927 = vunpack.c.h.b16 %v571
    %v1928 = vunpack.c.l.b16 %v572
    %v1929 = vunpack.c.h.b16 %v572
    %v1930 = vunpack.c.l.b16 %v573
    %v1931 = vunpack.c.h.b16 %v573
    %v1932 = vunpack.c.l.b16 %v574
    %v1933 = vunpack.c.h.b16 %v574
    %v1934 = vunpack.c.l.b16 %v575
    %v1935 = vunpack.c.h.b16 %v575
    %v1936 = vunpack.c.l.b16 %v576
    %v1937 = vunpack.c.h.b16 %v576
    %v1938 = vunpack.c.l.b16 %v577
    %v1939 = vunpack.c.h.b16 %v577
    %v1940 = vunpack.c.l.b16 %v578
    %v1941 = vunpack.c.h.b16 %v578
    %v1942 = vunpack.c.l.b16 %v579
    %v1943 = vunpack.c.h.b16 %v579
    %v1944 = vunpack.c.l.b16 %v580
    %v1945 = vunpack.c.h.b16 %v580
    %v1946 = vunpack.c.l.b16 %v581
    %v1947 = vunpack.c.h.b16 %v581
    %v1948 = vunpack.c.l.b16 %v582
    %v1949 = vunpack.c.h.b16 %v582
    %v1950 = vunpack.c.l.b16 %v583
    %v1951 = vunpack.c.h.b16 %v583
    %v1952 = vunpack.c.l.b16 %v584
    %v1953 = vunpack.c.h.b16 %v584
    %v1954 = vunpack.c.l.b16 %v585
    %v1955 = vunpack.c.h.b16 %v585
    %v1956 = vunpack.c.l.b16 %v586
    %v1957 = vunpack.c.h.b16 %v586
    %v1958 = vunpack.c.l.b16 %v587
    %v1959 = vunpack.c.h.b16 %v587
    %v1960 = vunpack.c.l.b16 %v588
    %v1961 = vunpack.c.h.b16 %v588
    %v1962 = vunpack.c.l.b16 %v589
    %v1963 = vunpack.c.h.b16 %v589
    %v1964 = vunpack.c.l.b16 %v590
    %v1965 = vunpack.c.h.b16 %v590
    %v1966 = vunpack.c.l.b16 %v591
    %v1967 = vunpack.c.h.b16 %v591
    %v1968 = vunpack.c.l.b16 %v592
    %v1969 = vunpack.c.h.b16 %v592
    %v1970 = vunpack.c.l.b16 %v593
    %v1971 = vunpack.c.h.b16 %v593
    %v1972 = vunpack.c.l.b16 %v594
    %v1973 = vunpack.c.h.b16 %v594
    %v1974 = vunpack.c.l.b16 %v595
    %v1975 = vunpack.c.h.b16 %v595
    %v1976 = vunpack.c.l.b16 %v596
    %v1977 = vunpack.c.h.b16 %v596
    %v1978 = vunpack.c.l.b16 %v597
    %v1979 = vunpack.c.h.b16 %v597
    %v1980 = vunpack.c.l.b16 %v598
    %v1981 = vunpack.c.h.b16 %v598
    %v1982 = vunpack.c.l.b16 %v599
    %v1983 = vunpack.c.h.b16 %v599
    %v1984 = vunpack.c.l.b16 %v600
    %v1985 = vunpack.c.h.b16 %v600
    %v1986 = vunpack.c.l.b16 %v601
    %v1987 = vunpack.c.h.b16 %v601
    %v1988 = vunpack.c.l.b16 %v602
    %v1989 = vunpack.c.h.b16 %v602
    %v1990 = vunpack.c.l.b16 %v603
    %v1991 = vunpack.c.h.b16 %v603
    %v1992 = vunpack.c.l.b16 %v604
    %v1993 = vunpack.c.h.b16 %v604
    %v1994 = vunpack.c.l.b16 %v605
    %v1995 = vunpack.c.h.b16 %v605
    %v1996 = vunpack.c.l.b16 %v606
    %v1997 = vunpack.c.h.b16 %v606
    %v1998 = vunpack.c.l.b16 %v607
    %v1999 = vunpack.c.h.b16 %v607
    %v2000 = vunpack.c.l.b16 %v608
    %v2001 = vunpack.c.h.b16 %v608
    %v2002 = vunpack.c.l.b16 %v609
    %v2003 = vunpack.c.h.b16 %v609
    %v2004 = vunpack.c.l.b16 %v610
    %v2005 = vunpack.c.h.b16 %v610
    %v2006 = vunpack.c.l.b16 %v611
    %v2007 = vunpack.c.h.b16 %v611
    %v2008 = vunpack.c.l.b16 %v612
    %v2009 = vunpack.c.h.b16 %v612
    %v2010 = vunpack.c.l.b16 %v613
    %v2011 = vunpack.c.h.b16 %v613
    %v2012 = vunpack.c.l.b16 %v614
    %v2013 = vunpack.c.h.b16 %v614
    %v2014 = vunpack.c.l.b16 %v615
    %v2015 = vunpack.c.h.b16 %v615
    %v2016 = vunpack.c.l.b16 %v616
    %v2017 = vunpack.c.h.b16 %v616
    %v2018 = vunpack.c.l.b16 %v617
    %v2019 = vunpack.c.h.b16 %v617
    %v2020 = vunpack.c.l.b16 %v618
    %v2021 = vunpack.c.h.b16 %v618
    %v2022 = vunpack.c.l.b16 %v619
    %v2023 = vunpack.c.h.b16 %v619
    %v2024 = vunpack.c.l.b16 %v620
    %v2025 = vunpack.c.h.b16 %v620
    %v2026 = vunpack.c.l.b16 %v621
    %v2027 = vunpack.c.h.b16 %v621
    %v2028 = vunpack.c.l.b16 %v622
    %v2029 = vunpack.c.h.b16 %v622
    %v2030 = vunpack.c.l.b16 %v623
    %v2031 = vunpack.c.h.b16 %v623
    %v2032 = vunpack.c.l.b16 %v624
    %v2033 = vunpack.c.h.b16 %v624
    %v2034 = vunpack.c.l.b16 %v625
    %v2035 = vunpack.c.h.b16 %v625
    %v2036 = vunpack.c.l.b16 %v626
    %v2037 = vunpack.c.h.b16 %v626
    %v2038 = vunpack.c.l.b16 %v627
    %v2039 = vunpack.c.h.b16 %v627
    %v2040 = vunpack.c.l.b16 %v628
    %v2041 = vunpack.c.h.b16 %v628
    %v2042 = vunpack.c.l.b16 %v629
    %v2043 = vunpack.c.h.b16 %v629
    %v2044 = vunpack.c.l.b16 %v630
    %v2045 = vunpack.c.h.b16 %v630
    %v2046 = vunpack.c.l.b16 %v631
    %v2047 = vunpack.c.h.b16 %v631
    %v2048 = vunpack.c.l.b16 %v632
    %v2049 = vunpack.c.h.b16 %v632
    %v2050 = vunpack.c.l.b16 %v633
    %v2051 = vunpack.c.h.b16 %v633
    %v2052 = vunpack.c.l.b16 %v634
    %v2053 = vunpack.c.h.b16 %v634
    %v2054 = vunpack.c.l.b16 %v635
    %v2055 = vunpack.c.h.b16 %v635
    %v2056 = vunpack.c.l.b16 %v636
    %v2057 = vunpack.c.h.b16 %v636
    %v2058 = vunpack.c.l.b16 %v637
    %v2059 = vunpack.c.h.b16 %v637
    %v2060 = vunpack.c.l.b16 %v638
    %v2061 = vunpack.c.h.b16 %v638
    %v2062 = vunpack.c.l.b16 %v639
    %v2063 = vunpack.c.h.b16 %v639
    %v2064 = vunpack.c.l.b16 %v640
    %v2065 = vunpack.c.h.b16 %v640
    %v2066 = vunpack.c.l.b16 %v641
    %v2067 = vunpack.c.h.b16 %v641
    %v2068 = vunpack.c.l.b16 %v642
    %v2069 = vunpack.c.h.b16 %v642
    %v2070 = vunpack.c.l.b16 %v643
    %v2071 = vunpack.c.h.b16 %v643
    %v2072 = vunpack.c.l.b16 %v644
    %v2073 = vunpack.c.h.b16 %v644
    %v2074 = vunpack.c.l.b16 %v645
    %v2075 = vunpack.c.h.b16 %v645
    %v2076 = vunpack.c.l.b16 %v646
    %v2077 = vunpack.c.h.b16 %v646
    %v2078 = vunpack.c.l.b16 %v647
    %v2079 = vunpack.c.h.b16 %v647
    %v2080 = vunpack.c.l.b16 %v648
    %v2081 = vunpack.c.h.b16 %v648
    %v2082 = vunpack.c.l.b16 %v649
    %v2083 = vunpack.c.h.b16 %v649
    %v2084 = vunpack.c.l.b16 %v650
    %v2085 = vunpack.c.h.b16 %v650
    %v2086 = vunpack.c.l.b16 %v651
    %v2087 = vunpack.c.h.b16 %v651
    %v2088 = vunpack.c.l.b16 %v652
    %v2089 = vunpack.c.h.b16 %v652
    %v2090 = vunpack.c.l.b16 %v653
    %v2091 = vunpack.c.h.b16 %v653
    %v2092 = vunpack.c.l.b16 %v654
    %v2093 = vunpack.c.h.b16 %v654
    %v2094 = vunpack.c.l.b16 %v655
    %v2095 = vunpack.c.h.b16 %v655
    %v2096 = vunpack.c.l.b16 %v656
    %v2097 = vunpack.c.h.b16 %v656
    %v2098 = vunpack.c.l.b16 %v657
    %v2099 = vunpack.c.h.b16 %v657
    %v2100 = vunpack.c.l.b16 %v658
    %v2101 = vunpack.c.h.b16 %v658
    %v2102 = vunpack.c.l.b16 %v659
    %v2103 = vunpack.c.h.b16 %v659
    %v2104 = vunpack.c.l.b16 %v660
    %v2105 = vunpack.c.h.b16 %v660
    %v2106 = vunpack.c.l.b16 %v661
    %v2107 = vunpack.c.h.b16 %v661
    %v2108 = vunpack.c.l.b16 %v662
    %v2109 = vunpack.c.h.b16 %v662
    %v2110 = vunpack.c.l.b16 %v663
    %v2111 = vunpack.c.h.b16 %v663
    %v2112 = vunpack.c.l.b16 %v664
    %v2113 = vunpack.c.h.b16 %v664
    %v2114 = vunpack.c.l.b16 %v665
    %v2115 = vunpack.c.h.b16 %v665
    %v2116 = vunpack.c.l.b16 %v666
    %v2117 = vunpack.c.h.b16 %v666
    %v2118 = vunpack.c.l.b16 %v667
    %v2119 = vunpack.c.h.b16 %v667
    %v2120 = vunpack.c.l.b16 %v668
    %v2121 = vunpack.c.h.b16 %v668
    %v2122 = vunpack.c.l.b16 %v669
    %v2123 = vunpack.c.h.b16 %v669
    %v2124 = vunpack.c.l.b16 %v670
    %v2125 = vunpack.c.h.b16 %v670
    %v2126 = vunpack.c.l.b16 %v671
    %v2127 = vunpack.c.h.b16 %v671
    %v2128 = vunpack.c.l.b16 %v672
    %v2129 = vunpack.c.h.b16 %v672
    %v2130 = vunpack.c.l.b16 %v673
    %v2131 = vunpack.c.h.b16 %v673
    %v2132 = vunpack.c.l.b16 %v674
    %v2133 = vunpack.c.h.b16 %v674
    %v2134 = vunpack.c.l.b16 %v675
    %v2135 = vunpack.c.h.b16 %v675
    %v2136 = vunpack.c.l.b16 %v676
    %v2137 = vunpack.c.h.b16 %v676
    %v2138 = vunpack.c.l.b16 %v677
    %v2139 = vunpack.c.h.b16 %v677
    %v2140 = vunpack.c.l.b16 %v678
    %v2141 = vunpack.c.h.b16 %v678
    %v2142 = vunpack.c.l.b16 %v679
    %v2143 = vunpack.c.h.b16 %v679
    %v2144 = vunpack.c.l.b16 %v680
    %v2145 = vunpack.c.h.b16 %v680
    %v2146 = vunpack.c.l.b16 %v681
    %v2147 = vunpack.c.h.b16 %v681
    %v2148 = vunpack.c.l.b16 %v682
    %v2149 = vunpack.c.h.b16 %v682
    %v2150 = vunpack.c.l.b16 %v683
    %v2151 = vunpack.c.h.b16 %v683
    %v2152 = vunpack.c.l.b16 %v684
    %v2153 = vunpack.c.h.b16 %v684
    %v2154 = vunpack.c.l.b16 %v685
    %v2155 = vunpack.c.h.b16 %v685
    %v2156 = vunpack.c.l.b16 %v686
    %v2157 = vunpack.c.h.b16 %v686
    %v2158 = vunpack.c.l.b16 %v687
    %v2159 = vunpack.c.h.b16 %v687
    %v2160 = vunpack.c.l.b16 %v688
    %v2161 = vunpack.c.h.b16 %v688
    %v2162 = vunpack.c.l.b16 %v689
    %v2163 = vunpack.c.h.b16 %v689
    %v2164 = vunpack.c.l.b16 %v690
    %v2165 = vunpack.c.h.b16 %v690
    %v2166 = vunpack.c.l.b16 %v691
    %v2167 = vunpack.c.h.b16 %v691
    %v2168 = vunpack.c.l.b16 %v692
    %v2169 = vunpack.c.h.b16 %v692
    %v2170 = vunpack.c.l.b16 %v693
    %v2171 = vunpack.c.h.b16 %v693
    %v2172 = vunpack.c.l.b16 %v694
    %v2173 = vunpack.c.h.b16 %v694
    %v2174 = vunpack.c.l.b16 %v695
    %v2175 = vunpack.c.h.b16 %v695
    %v2176 = vunpack.c.l.b16 %v696
    %v2177 = vunpack.c.h.b16 %v696
    %v2178 = vunpack.c.l.b16 %v697
    %v2179 = vunpack.c.h.b16 %v697
    %v2180 = vunpack.c.l.b16 %v698
    %v2181 = vunpack.c.h.b16 %v698
    %v2182 = vunpack.c.l.b16 %v699
    %v2183 = vunpack.c.h.b16 %v699
    %v2184 = vunpack.c.l.b16 %v700
    %v2185 = vunpack.c.h.b16 %v700
    %v2186 = vunpack.c.l.b16 %v701
    %v2187 = vunpack.c.h.b16 %v701
    %v2188 = vunpack.c.l.b16 %v702
    %v2189 = vunpack.c.h.b16 %v702
    %v2190 = vunpack.c.l.b16 %v703
    %v2191 = vunpack.c.h.b16 %v703
    %v2192 = vunpack.c.l.b16 %v704
    %v2193 = vunpack.c.h.b16 %v704
    %v2194 = vunpack.c.l.b16 %v705
    %v2195 = vunpack.c.h.b16 %v705
    %v2196 = vunpack.c.l.b16 %v706
    %v2197 = vunpack.c.h.b16 %v706
    %v2198 = vunpack.c.l.b16 %v707
    %v2199 = vunpack.c.h.b16 %v707
    %v2200 = vunpack.c.l.b16 %v708
    %v2201 = vunpack.c.h.b16 %v708
    %v2202 = vunpack.c.l.b16 %v709
    %v2203 = vunpack.c.h.b16 %v709
    %v2204 = vunpack.c.l.b16 %v710
    %v2205 = vunpack.c.h.b16 %v710
    %v2206 = vunpack.c.l.b16 %v711
    %v2207 = vunpack.c.h.b16 %v711
    %v2208 = vunpack.c.l.b16 %v712
    %v2209 = vunpack.c.h.b16 %v712
    %v2210 = vunpack.c.l.b16 %v713
    %v2211 = vunpack.c.h.b16 %v713
    %v2212 = vunpack.c.l.b16 %v714
    %v2213 = vunpack.c.h.b16 %v714
    %v2214 = vunpack.c.l.b16 %v715
    %v2215 = vunpack.c.h.b16 %v715
    %v2216 = vunpack.c.l.b16 %v716
    %v2217 = vunpack.c.h.b16 %v716
    %v2218 = vunpack.c.l.b16 %v717
    %v2219 = vunpack.c.h.b16 %v717
    %v2220 = vunpack.c.l.b16 %v718
    %v2221 = vunpack.c.h.b16 %v718
    %v2222 = vunpack.c.l.b16 %v719
    %v2223 = vunpack.c.h.b16 %v719
    %v2224 = vpack.c.b16 %v1462, %v1456
    %v2225 = vpack.c.b16 %v1463, %v1457
    %v2226 = vpack.c.b16 %v1464, %v1458
    %v2227 = vpack.c.b16 %v1465, %v1459
    %v2228 = vpack.c.b16 %v1466, %v1460
    %v2229 = vpack.c.b16 %v1467, %v1461
    %v2230 = vpack.c.b16 %v1474, %v1468
    %v2231 = vpack.c.b16 %v1475, %v1469
    %v2232 = vpack.c.b16 %v1476, %v1470
    %v2233 = vpack.c.b16 %v1477, %v1471
    %v2234 = vpack.c.b16 %v1478, %v1472
    %v2235 = vpack.c.b16 %v1479, %v1473
    %v2236 = vpack.c.b16 %v1486, %v1480
    %v2237 = vpack.c.b16 %v1487, %v1481
    %v2238 = vpack.c.b16 %v1488, %v1482
    %v2239 = vpack.c.b16 %v1489, %v1483
    %v2240 = vpack.c.b16 %v1490, %v1484
    %v2241 = vpack.c.b16 %v1491, %v1485
    %v2242 = vpack.c.b16 %v1498, %v1492
    %v2243 = vpack.c.b16 %v1499, %v1493
    %v2244 = vpack.c.b16 %v1500, %v1494
    %v2245 = vpack.c.b16 %v1501, %v1495
    %v2246 = vpack.c.b16 %v1502, %v1496
    %v2247 = vpack.c.b16 %v1503, %v1497
    %v2248 = vpack.c.b16 %v1510, %v1504
    %v2249 = vpack.c.b16 %v1511, %v1505
    %v2250 = vpack.c.b16 %v1512, %v1506
    %v2251 = vpack.c.b16 %v1513, %v1507
    %v2252 = vpack.c.b16 %v1514, %v1508
    %v2253 = vpack.c.b16 %v1515, %v1509
    %v2254 = vpack.c.b16 %v1522, %v1516
    %v2255 = vpack.c.b16 %v1523, %v1517
    %v2256 = vpack.c.b16 %v1524, %v1518
    %v2257 = vpack.c.b16 %v1525, %v1519
    %v2258 = vpack.c.b16 %v1526, %v1520
    %v2259 = vpack.c.b16 %v1527, %v1521
    %v2260 = vpack.c.b16 %v1534, %v1528
    %v2261 = vpack.c.b16 %v1535, %v1529
    %v2262 = vpack.c.b16 %v1536, %v1530
    %v2263 = vpack.c.b16 %v1537, %v1531
    %v2264 = vpack.c.b16 %v1538, %v1532
    %v2265 = vpack.c.b16 %v1539, %v1533
    %v2266 = vpack.c.b16 %v1546, %v1540
    %v2267 = vpack.c.b16 %v1547, %v1541
    %v2268 = vpack.c.b16 %v1548, %v1542
    %v2269 = vpack.c.b16 %v1549, %v1543
    %v2270 = vpack.c.b16 %v1550, %v1544
    %v2271 = vpack.c.b16 %v1551, %v1545
    %v2272 = vpack.c.b16 %v1558, %v1552
    %v2273 = vpack.c.b16 %v1559, %v1553
    %v2274 = vpack.c.b16 %v1560, %v1554
    %v2275 = vpack.c.b16 %v1561, %v1555
    %v2276 = vpack.c.b16 %v1562, %v1556
    %v2277 = vpack.c.b16 %v1563, %v1557
    %v2278 = vpack.c.b16 %v1570, %v1564
    %v2279 = vpack.c.b16 %v1571, %v1565
    %v2280 = vpack.c.b16 %v1572, %v1566
    %v2281 = vpack.c.b16 %v1573, %v1567
    %v2282 = vpack.c.b16 %v1574, %v1568
    %v2283 = vpack.c.b16 %v1575, %v1569
    %v2284 = vpack.c.b16 %v1582, %v1576
    %v2285 = vpack.c.b16 %v1583, %v1577
    %v2286 = vpack.c.b16 %v1584, %v1578
    %v2287 = vpack.c.b16 %v1585, %v1579
    %v2288 = vpack.c.b16 %v1586, %v1580
    %v2289 = vpack.c.b16 %v1587, %v1581
    %v2290 = vpack.c.b16 %v1594, %v1588
    %v2291 = vpack.c.b16 %v1595, %v1589
    %v2292 = vpack.c.b16 %v1596, %v1590
    %v2293 = vpack.c.b16 %v1597, %v1591
    %v2294 = vpack.c.b16 %v1598, %v1592
    %v2295 = vpack.c.b16 %v1599, %v1593
    %v2296 = vpack.c.b16 %v1606, %v1600
    %v2297 = vpack.c.b16 %v1607, %v1601
    %v2298 = vpack.c.b16 %v1608, %v1602
    %v2299 = vpack.c.b16 %v1609, %v1603
    %v2300 = vpack.c.b16 %v1610, %v1604
    %v2301 = vpack.c.b16 %v1611, %v1605
    %v2302 = vpack.c.b16 %v1618, %v1612
    %v2303 = vpack.c.b16 %v1619, %v1613
    %v2304 = vpack.c.b16 %v1620, %v1614
    %v2305 = vpack.c.b16 %v1621, %v1615
    %v2306 = vpack.c.b16 %v1622, %v1616
    %v2307 = vpack.c.b16 %v1623, %v1617
    %v2308 = vpack.c.b16 %v1630, %v1624
    %v2309 = vpack.c.b16 %v1631, %v1625
    %v2310 = vpack.c.b16 %v1632, %v1626
    %v2311 = vpack.c.b16 %v1633, %v1627
    %v2312 = vpack.c.b16 %v1634, %v1628
    %v2313 = vpack.c.b16 %v1635, %v1629
    %v2314 = vpack.c.b16 %v1642, %v1636
    %v2315 = vpack.c.b16 %v1643, %v1637
    %v2316 = vpack.c.b16 %v1644, %v1638
    %v2317 = vpack.c.b16 %v1645, %v1639
    %v2318 = vpack.c.b16 %v1646, %v1640
    %v2319 = vpack.c.b16 %v1647, %v1641
    %v2320 = vpack.c.b16 %v1654, %v1648
    %v2321 = vpack.c.b16 %v1655, %v1649
    %v2322 = vpack.c.b16 %v1656, %v1650
    %v2323 = vpack.c.b16 %v1657, %v1651
    %v2324 = vpack.c.b16 %v1658, %v1652
    %v2325 = vpack.c.b16 %v1659, %v1653
    %v2326 = vpack.c.b16 %v1666, %v1660
    %v2327 = vpack.c.b16 %v1667, %v1661
    %v2328 = vpack.c.b16 %v1668, %v1662
    %v2329 = vpack.c.b16 %v1669, %v1663
    %v2330 = vpack.c.b16 %v1670, %v1664
    %v2331 = vpack.c.b16 %v1671, %v1665
    %v2332 = vpack.c.b16 %v1678, %v1672
    %v2333 = vpack.c.b16 %v1679, %v1673
    %v2334 = vpack.c.b16 %v1680, %v1674
    %v2335 = vpack.c.b16 %v1681, %v1675
    %v2336 = vpack.c.b16 %v1682, %v1676
    %v2337 = vpack.c.b16 %v1683, %v1677
    %v2338 = vpack.c.b16 %v1690, %v1684
    %v2339 = vpack.c.b16 %v1691, %v1685
    %v2340 = vpack.c.b16 %v1692, %v1686
    %v2341 = vpack.c.b16 %v1693, %v1687
    %v2342 = vpack.c.b16 %v1694, %v1688
    %v2343 = vpack.c.b16 %v1695, %v1689
    %v2344 = vpack.c.b16 %v1702, %v1696
    %v2345 = vpack.c.b16 %v1703, %v1697
    %v2346 = vpack.c.b16 %v1704, %v1698
    %v2347 = vpack.c.b16 %v1705, %v1699
    %v2348 = vpack.c.b16 %v1706, %v1700
    %v2349 = vpack.c.b16 %v1707, %v1701
    %v2350 = vpack.c.b16 %v1714, %v1708
    %v2351 = vpack.c.b16 %v1715, %v1709
    %v2352 = vpack.c.b16 %v1716, %v1710
    %v2353 = vpack.c.b16 %v1717, %v1711
    %v2354 = vpack.c.b16 %v1718, %v1712
    %v2355 = vpack.c.b16 %v1719, %v1713
    %v2356 = vpack.c.b16 %v1726, %v1720
    %v2357 = vpack.c.b16 %v1727, %v1721
    %v2358 = vpack.c.b16 %v1728, %v1722
    %v2359 = vpack.c.b16 %v1729, %v1723
    %v2360 = vpack.c.b16 %v1730, %v1724
    %v2361 = vpack.c.b16 %v1731, %v1725
    %v2362 = vpack.c.b16 %v1738, %v1732
    %v2363 = vpack.c.b16 %v1739, %v1733
    %v2364 = vpack.c.b16 %v1740, %v1734
    %v2365 = vpack.c.b16 %v1741, %v1735
    %v2366 = vpack.c.b16 %v1742, %v1736
    %v2367 = vpack.c.b16 %v1743, %v1737
    %v2368 = vpack.c.b16 %v1750, %v1744
    %v2369 = vpack.c.b16 %v1751, %v1745
    %v2370 = vpack.c.b16 %v1752, %v1746
    %v2371 = vpack.c.b16 %v1753, %v1747
    %v2372 = vpack.c.b16 %v1754, %v1748
    %v2373 = vpack.c.b16 %v1755, %v1749
    %v2374 = vpack.c.b16 %v1762, %v1756
    %v2375 = vpack.c.b16 %v1763, %v1757
    %v2376 = vpack.c.b16 %v1764, %v1758
    %v2377 = vpack.c.b16 %v1765, %v1759
    %v2378 = vpack.c.b16 %v1766, %v1760
    %v2379 = vpack.c.b16 %v1767, %v1761
    %v2380 = vpack.c.b16 %v1774, %v1768
    %v2381 = vpack.c.b16 %v1775, %v1769
    %v2382 = vpack.c.b16 %v1776, %v1770
    %v2383 = vpack.c.b16 %v1777, %v1771
    %v2384 = vpack.c.b16 %v1778, %v1772
    %v2385 = vpack.c.b16 %v1779, %v1773
    %v2386 = vpack.c.b16 %v1786, %v1780
    %v2387 = vpack.c.b16 %v1787, %v1781
    %v2388 = vpack.c.b16 %v1788, %v1782
    %v2389 = vpack.c.b16 %v1789, %v1783
    %v2390 = vpack.c.b16 %v1790, %v1784
    %v2391 = vpack.c.b16 %v1791, %v1785
    %v2392 = vpack.c.b16 %v1798, %v1792
    %v2393 = vpack.c.b16 %v1799, %v1793
    %v2394 = vpack.c.b16 %v1800, %v1794
    %v2395 = vpack.c.b16 %v1801, %v1795
    %v2396 = vpack.c.b16 %v1802, %v1796
    %v2397 = vpack.c.b16 %v1803, %v1797
    %v2398 = vpack.c.b16 %v1810, %v1804
    %v2399 = vpack.c.b16 %v1811, %v1805
    %v2400 = vpack.c.b16 %v1812, %v1806
    %v2401 = vpack.c.b16 %v1813, %v1807
    %v2402 = vpack.c.b16 %v1814, %v1808
    %v2403 = vpack.c.b16 %v1815, %v1809
    %v2404 = vpack.c.b16 %v1822, %v1816
    %v2405 = vpack.c.b16 %v1823, %v1817
    %v2406 = vpack.c.b16 %v1824, %v1818
    %v2407 = vpack.c.b16 %v1825, %v1819
    %v2408 = vpack.c.b16 %v1826, %v1820
    %v2409 = vpack.c.b16 %v1827, %v1821
    %v2410 = vpack.c.b16 %v1834, %v1828
    %v2411 = vpack.c.b16 %v1835, %v1829
    %v2412 = vpack.c.b16 %v1836, %v1830
    %v2413 = vpack.c.b16 %v1837, %v1831
    %v2414 = vpack.c.b16 %v1838, %v1832
    %v2415 = vpack.c.b16 %v1839, %v1833
    %v2416 = vpack.c.b16 %v1846, %v1840
    %v2417 = vpack.c.b16 %v1847, %v1841
    %v2418 = vpack.c.b16 %v1848, %v1842
    %v2419 = vpack.c.b16 %v1849, %v1843
    %v2420 = vpack.c.b16 %v1850, %v1844
    %v2421 = vpack.c.b16 %v1851, %v1845
    %v2422 = vpack.c.b16 %v1858, %v1852
    %v2423 = vpack.c.b16 %v1859, %v1853
    %v2424 = vpack.c.b16 %v1860, %v1854
    %v2425 = vpack.c.b16 %v1861, %v1855
    %v2426 = vpack.c.b16 %v1862, %v1856
    %v2427 = vpack.c.b16 %v1863, %v1857
    %v2428 = vpack.c.b16 %v1870, %v1864
    %v2429 = vpack.c.b16 %v1871, %v1865
    %v2430 = vpack.c.b16 %v1872, %v1866
    %v2431 = vpack.c.b16 %v1873, %v1867
    %v2432 = vpack.c.b16 %v1874, %v1868
    %v2433 = vpack.c.b16 %v1875, %v1869
    %v2434 = vpack.c.b16 %v1882, %v1876
    %v2435 = vpack.c.b16 %v1883, %v1877
    %v2436 = vpack.c.b16 %v1884, %v1878
    %v2437 = vpack.c.b16 %v1885, %v1879
    %v2438 = vpack.c.b16 %v1886, %v1880
    %v2439 = vpack.c.b16 %v1887, %v1881
    %v2440 = vpack.c.b16 %v1894, %v1888
    %v2441 = vpack.c.b16 %v1895, %v1889
    %v2442 = vpack.c.b16 %v1896, %v1890
    %v2443 = vpack.c.b16 %v1897, %v1891
    %v2444 = vpack.c.b16 %v1898, %v1892
    %v2445 = vpack.c.b16 %v1899, %v1893
    %v2446 = vpack.c.b16 %v1906, %v1900
    %v2447 = vpack.c.b16 %v1907, %v1901
    %v2448 = vpack.c.b16 %v1908, %v1902
    %v2449 = vpack.c.b16 %v1909, %v1903
    %v2450 = vpack.c.b16 %v1910, %v1904
    %v2451 = vpack.c.b16 %v1911, %v1905
    %v2452 = vpack.c.b16 %v1918, %v1912
    %v2453 = vpack.c.b16 %v1919, %v1913
    %v2454 = vpack.c.b16 %v1920, %v1914
    %v2455 = vpack.c.b16 %v1921, %v1915
    %v2456 = vpack.c.b16 %v1922, %v1916
    %v2457 = vpack.c.b16 %v1923, %v1917
    %v2458 = vpack.c.b16 %v1930, %v1924
    %v2459 = vpack.c.b16 %v1931, %v1925
    %v2460 = vpack.c.b16 %v1932, %v1926
    %v2461 = vpack.c.b16 %v1933, %v1927
    %v2462 = vpack.c.b16 %v1934, %v1928
    %v2463 = vpack.c.b16 %v1935, %v1929
    %v2464 = vpack.c.b16 %v1942, %v1936
    %v2465 = vpack.c.b16 %v1943, %v1937
    %v2466 = vpack.c.b16 %v1944, %v1938
    %v2467 = vpack.c.b16 %v1945, %v1939
    %v2468 = vpack.c.b16 %v1946, %v1940
    %v2469 = vpack.c.b16 %v1947, %v1941
    %v2470 = vpack.c.b16 %v1954, %v1948
    %v2471 = vpack.c.b16 %v1955, %v1949
    %v2472 = vpack.c.b16 %v1956, %v1950
    %v2473 = vpack.c.b16 %v1957, %v1951
    %v2474 = vpack.c.b16 %v1958, %v1952
    %v2475 = vpack.c.b16 %v1959, %v1953
    %v2476 = vpack.c.b16 %v1966, %v1960
    %v2477 = vpack.c.b16 %v1967, %v1961
    %v2478 = vpack.c.b16 %v1968, %v1962
    %v2479 = vpack.c.b16 %v1969, %v1963
    %v2480 = vpack.c.b16 %v1970, %v1964
    %v2481 = vpack.c.b16 %v1971, %v1965
    %v2482 = vpack.c.b16 %v1978, %v1972
    %v2483 = vpack.c.b16 %v1979, %v1973
    %v2484 = vpack.c.b16 %v1980, %v1974
    %v2485 = vpack.c.b16 %v1981, %v1975
    %v2486 = vpack.c.b16 %v1982, %v1976
    %v2487 = vpack.c.b16 %v1983, %v1977
    %v2488 = vpack.c.b16 %v1990, %v1984
    %v2489 = vpack.c.b16 %v1991, %v1985
    %v2490 = vpack.c.b16 %v1992, %v1986
    %v2491 = vpack.c.b16 %v1993, %v1987
    %v2492 = vpack.c.b16 %v1994, %v1988
    %v2493 = vpack.c.b16 %v1995, %v1989
    %v2494 = vpack.c.b16 %v2002, %v1996
    %v2495 = vpack.c.b16 %v2003, %v1997
    %v2496 = vpack.c.b16 %v2004, %v1998
    %v2497 = vpack.c.b16 %v2005, %v1999
    %v2498 = vpack.c.b16 %v2006, %v2000
    %v2499 = vpack.c.b16 %v2007, %v2001
    %v2500 = vpack.c.b16 %v2014, %v2008
    %v2501 = vpack.c.b16 %v2015, %v2009
    %v2502 = vpack.c.b16 %v2016, %v2010
    %v2503 = vpack.c.b16 %v2017, %v2011
    %v2504 = vpack.c.b16 %v2018, %v2012
    %v2505 = vpack.c.b16 %v2019, %v2013
    %v2506 = vpack.c.b16 %v2026, %v2020
    %v2507 = vpack.c.b16 %v2027, %v2021
    %v2508 = vpack.c.b16 %v2028, %v2022
    %v2509 = vpack.c.b16 %v2029, %v2023
    %v2510 = vpack.c.b16 %v2030, %v2024
    %v2511 = vpack.c.b16 %v2031, %v2025
    %v2512 = vpack.c.b16 %v2038, %v2032
    %v2513 = vpack.c.b16 %v2039, %v2033
    %v2514 = vpack.c.b16 %v2040, %v2034
    %v2515 = vpack.c.b16 %v2041, %v2035
    %v2516 = vpack.c.b16 %v2042, %v2036
    %v2517 = vpack.c.b16 %v2043, %v2037
    %v2518 = vpack.c.b16 %v2050, %v2044
    %v2519 = vpack.c.b16 %v2051, %v2045
    %v2520 = vpack.c.b16 %v2052, %v2046
    %v2521 = vpack.c.b16 %v2053, %v2047
    %v2522 = vpack.c.b16 %v2054, %v2048
    %v2523 = vpack.c.b16 %v2055, %v2049
    %v2524 = vpack.c.b16 %v2062, %v2056
    %v2525 = vpack.c.b16 %v2063, %v2057
    %v2526 = vpack.c.b16 %v2064, %v2058
    %v2527 = vpack.c.b16 %v2065, %v2059
    %v2528 = vpack.c.b16 %v2066, %v2060
    %v2529 = vpack.c.b16 %v2067, %v2061
    %v2530 = vpack.c.b16 %v2074, %v2068
    %v2531 = vpack.c.b16 %v2075, %v2069
    %v2532 = vpack.c.b16 %v2076, %v2070
    %v2533 = vpack.c.b16 %v2077, %v2071
    %v2534 = vpack.c.b16 %v2078, %v2072
    %v2535 = vpack.c.b16 %v2079, %v2073
    %v2536 = vpack.c.b16 %v2086, %v2080
    %v2537 = vpack.c.b16 %v2087, %v2081
    %v2538 = vpack.c.b16 %v2088, %v2082
    %v2539 = vpack.c.b16 %v2089, %v2083
    %v2540 = vpack.c.b16 %v2090, %v2084
    %v2541 = vpack.c.b16 %v2091, %v2085
    %v2542 = vpack.c.b16 %v2098, %v2092
    %v2543 = vpack.c.b16 %v2099, %v2093
    %v2544 = vpack.c.b16 %v2100, %v2094
    %v2545 = vpack.c.b16 %v2101, %v2095
    %v2546 = vpack.c.b16 %v2102, %v2096
    %v2547 = vpack.c.b16 %v2103, %v2097
    %v2548 = vpack.c.b16 %v2110, %v2104
    %v2549 = vpack.c.b16 %v2111, %v2105
    %v2550 = vpack.c.b16 %v2112, %v2106
    %v2551 = vpack.c.b16 %v2113, %v2107
    %v2552 = vpack.c.b16 %v2114, %v2108
    %v2553 = vpack.c.b16 %v2115, %v2109
    %v2554 = vpack.c.b16 %v2122, %v2116
    %v2555 = vpack.c.b16 %v2123, %v2117
    %v2556 = vpack.c.b16 %v2124, %v2118
    %v2557 = vpack.c.b16 %v2125, %v2119
    %v2558 = vpack.c.b16 %v2126, %v2120
    %v2559 = vpack.c.b16 %v2127, %v2121
    %v2560 = vpack.c.b16 %v2134, %v2128
    %v2561 = vpack.c.b16 %v2135, %v2129
    %v2562 = vpack.c.b16 %v2136, %v2130
    %v2563 = vpack.c.b16 %v2137, %v2131
    %v2564 = vpack.c.b16 %v2138, %v2132
    %v2565 = vpack.c.b16 %v2139, %v2133
    %v2566 = vpack.c.b16 %v2146, %v2140
    %v2567 = vpack.c.b16 %v2147, %v2141
    %v2568 = vpack.c.b16 %v2148, %v2142
    %v2569 = vpack.c.b16 %v2149, %v2143
    %v2570 = vpack.c.b16 %v2150, %v2144
    %v2571 = vpack.c.b16 %v2151, %v2145
    %v2572 = vpack.c.b16 %v2158, %v2152
    %v2573 = vpack.c.b16 %v2159, %v2153
    %v2574 = vpack.c.b16 %v2160, %v2154
    %v2575 = vpack.c.b16 %v2161, %v2155
    %v2576 = vpack.c.b16 %v2162, %v2156
    %v2577 = vpack.c.b16 %v2163, %v2157
    %v2578 = vpack.c.b16 %v2170, %v2164
    %v2579 = vpack.c.b16 %v2171, %v2165
    %v2580 = vpack.c.b16 %v2172, %v2166
    %v2581 = vpack.c.b16 %v2173, %v2167
    %v2582 = vpack.c.b16 %v2174, %v2168
    %v2583 = vpack.c.b16 %v2175, %v2169
    %v2584 = vpack.c.b16 %v2182, %v2176
    %v2585 = vpack.c.b16 %v2183, %v2177
    %v2586 = vpack.c.b16 %v2184, %v2178
    %v2587 = vpack.c.b16 %v2185, %v2179
    %v2588 = vpack.c.b16 %v2186, %v2180
    %v2589 = vpack.c.b16 %v2187, %v2181
    %v2590 = vpack.c.b16 %v2194, %v2188
    %v2591 = vpack.c.b16 %v2195, %v2189
    %v2592 = vpack.c.b16 %v2196, %v2190
    %v2593 = vpack.c.b16 %v2197, %v2191
    %v2594 = vpack.c.b16 %v2198, %v2192
    %v2595 = vpack.c.b16 %v2199, %v2193
    %v2596 = vpack.c.b16 %v2206, %v2200
    %v2597 = vpack.c.b16 %v2207, %v2201
    %v2598 = vpack.c.b16 %v2208, %v2202
    %v2599 = vpack.c.b16 %v2209, %v2203
    %v2600 = vpack.c.b16 %v2210, %v2204
    %v2601 = vpack.c.b16 %v2211, %v2205
    %v2602 = vpack.c.b16 %v2218, %v2212
    %v2603 = vpack.c.b16 %v2219, %v2213
    %v2604 = vpack.c.b16 %v2220, %v2214
    %v2605 = vpack.c.b16 %v2221, %v2215
    %v2606 = vpack.c.b16 %v2222, %v2216
    %v2607 = vpack.c.b16 %v2223, %v2217
    %2992 = vmatprep.subr.bf16.mxu0 %v2225
    %2993 = vmatpush1.bf16.msra.mxu0 %v2224
    %2994 = vmatprep.subr.bf16.mxu0 %v2231
    %2995 = vmatpush1.bf16.msra.mxu0 %v2230
    %2996 = vmatprep.subr.bf16.mxu0 %v2237
    %2997 = vmatpush1.bf16.msra.mxu0 %v2236
    %2998 = vmatprep.subr.bf16.mxu0 %v2243
    %2999 = vmatpush1.bf16.msra.mxu0 %v2242
    %3000 = vmatprep.subr.bf16.mxu0 %v2249
    %3001 = vmatpush1.bf16.msra.mxu0 %v2248
    %3002 = vmatprep.subr.bf16.mxu0 %v2255
    %3003 = vmatpush1.bf16.msra.mxu0 %v2254
    %3004 = vmatprep.subr.bf16.mxu0 %v2261
    %3005 = vmatpush1.bf16.msra.mxu0 %v2260
    %3006 = vmatprep.subr.bf16.mxu0 %v2267
    %3007 = vmatpush1.bf16.msra.mxu0 %v2266
    %3008 = vmatprep.subr.bf16.mxu0 %v2273
    %3009 = vmatpush1.bf16.msra.mxu0 %v2272
    %3010 = vmatprep.subr.bf16.mxu0 %v2279
    %3011 = vmatpush1.bf16.msra.mxu0 %v2278
    %3012 = vmatprep.subr.bf16.mxu0 %v2285
    %3013 = vmatpush1.bf16.msra.mxu0 %v2284
    %3014 = vmatprep.subr.bf16.mxu0 %v2291
    %3015 = vmatpush1.bf16.msra.mxu0 %v2290
    %3016 = vmatprep.subr.bf16.mxu0 %v2297
    %3017 = vmatpush1.bf16.msra.mxu0 %v2296
    %3018 = vmatprep.subr.bf16.mxu0 %v2303
    %3019 = vmatpush1.bf16.msra.mxu0 %v2302
    %3020 = vmatprep.subr.bf16.mxu0 %v2309
    %3021 = vmatpush1.bf16.msra.mxu0 %v2308
    %3022 = vmatprep.subr.bf16.mxu0 %v2315
    %3023 = vmatpush1.bf16.msra.mxu0 %v2314
    %3024 = vmatprep.mubr.bf16.mxu0 %v945
    %3025 = vmatmul.mubr.bf16.gmra.mrb[0].mxu0 %v944
    %v3026 = vpop.f32.mrb[0].mxu0
    %v3027 = vadd.f32 %v725, %v3026
    %v3028 = vpop.f32.mrb[0].mxu0
    %v3029 = vadd.f32 %v729, %v3028
    %v3030 = vpop.f32.mrb[0].mxu0
    %v3031 = vadd.f32 %v725, %v3030
    %v3032 = vpop.f32.mrb[0].mxu0
    %v3033 = vadd.f32 %v729, %v3032
    %3034 = vmatprep.mubr.bf16.mxu0 %v953
    %3035 = vmatmul.mubr.bf16.gmra.mrb[0].mxu0 %v952
    %v3036 = vpop.f32.mrb[0].mxu0
    %v3037 = vadd.f32 %v725, %v3036
    %v3038 = vpop.f32.mrb[0].mxu0
    %v3039 = vadd.f32 %v729, %v3038
    %v3040 = vpop.f32.mrb[0].mxu0
    %v3041 = vadd.f32 %v725, %v3040
    %v3042 = vpop.f32.mrb[0].mxu0
    %v3043 = vadd.f32 %v729, %v3042
    %3044 = vmatprep.mubr.bf16.mxu0 %v961
    %3045 = vmatmul.mubr.bf16.gmra.mrb[0].mxu0 %v960
    %v3046 = vpop.f32.mrb[0].mxu0
    %v3047 = vadd.f32 %v725, %v3046
    %v3048 = vpop.f32.mrb[0].mxu0
    %v3049 = vadd.f32 %v729, %v3048
    %v3050 = vpop.f32.mrb[0].mxu0
    %v3051 = vadd.f32 %v725, %v3050
    %v3052 = vpop.f32.mrb[0].mxu0
    %v3053 = vadd.f32 %v729, %v3052
    %3054 = vmatprep.mubr.bf16.mxu0 %v969
    %3055 = vmatmul.mubr.bf16.gmra.mrb[0].mxu0 %v968
    %v3056 = vpop.f32.mrb[0].mxu0
    %v3057 = vadd.f32 %v725, %v3056
    %v3058 = vpop.f32.mrb[0].mxu0
    %v3059 = vadd.f32 %v729, %v3058
    %v3060 = vpop.f32.mrb[0].mxu0
    %v3061 = vadd.f32 %v725, %v3060
    %v3062 = vpop.f32.mrb[0].mxu0
    %v3063 = vadd.f32 %v729, %v3062
    %3064 = vmatprep.mubr.bf16.mxu0 %v977
    %3065 = vmatmul.mubr.bf16.gmra.mrb[0].mxu0 %v976
    %v3066 = vpop.f32.mrb[0].mxu0
    %v3067 = vadd.f32 %v725, %v3066
    %v3068 = vpop.f32.mrb[0].mxu0
    %v3069 = vadd.f32 %v729, %v3068
    %v3070 = vpop.f32.mrb[0].mxu0
    %v3071 = vadd.f32 %v725, %v3070
    %v3072 = vpop.f32.mrb[0].mxu0
    %v3073 = vadd.f32 %v729, %v3072
    %3074 = vmatprep.mubr.bf16.mxu0 %v985
    %3075 = vmatmul.mubr.bf16.gmra.mrb[0].mxu0 %v984
    %v3076 = vpop.f32.mrb[0].mxu0
    %v3077 = vadd.f32 %v725, %v3076
    %v3078 = vpop.f32.mrb[0].mxu0
    %v3079 = vadd.f32 %v729, %v3078
    %v3080 = vpop.f32.mrb[0].mxu0
    %v3081 = vadd.f32 %v725, %v3080
    %v3082 = vpop.f32.mrb[0].mxu0
    %v3083 = vadd.f32 %v729, %v3082
    %3084 = vmatprep.mubr.bf16.mxu0 %v993
    %3085 = vmatmul.mubr.bf16.gmra.mrb[0].mxu0 %v992
    %v3086 = vpop.f32.mrb[0].mxu0
    %v3087 = vadd.f32 %v725, %v3086
    %v3088 = vpop.f32.mrb[0].mxu0
    %v3089 = vadd.f32 %v729, %v3088
    %v3090 = vpop.f32.mrb[0].mxu0
    %v3091 = vadd.f32 %v725, %v3090
    %v3092 = vpop.f32.mrb[0].mxu0
    %v3093 = vadd.f32 %v729, %v3092
    %3094 = vmatprep.mubr.bf16.mxu0 %v1001
    %3095 = vmatmul.mubr.bf16.gmra.mrb[0].mxu0 %v1000
    %v3096 = vpop.f32.mrb[0].mxu0
    %v3097 = vadd.f32 %v725, %v3096
    %v3098 = vpop.f32.mrb[0].mxu0
    %v3099 = vadd.f32 %v729, %v3098
    %v3100 = vpop.f32.mrb[0].mxu0
    %v3101 = vadd.f32 %v725, %v3100
    %v3102 = vpop.f32.mrb[0].mxu0
    %v3103 = vadd.f32 %v729, %v3102
    %3104 = vdwg.mxu0
    %3105 = vmatprep.subr.bf16.mxu0 %v2321
    %3106 = vmatpush1.bf16.msra.mxu0 %v2320
    %3107 = vmatprep.subr.bf16.mxu0 %v2327
    %3108 = vmatpush1.bf16.msra.mxu0 %v2326
    %3109 = vmatprep.subr.bf16.mxu0 %v2333
    %3110 = vmatpush1.bf16.msra.mxu0 %v2332
    %3111 = vmatprep.subr.bf16.mxu0 %v2339
    %3112 = vmatpush1.bf16.msra.mxu0 %v2338
    %3113 = vmatprep.subr.bf16.mxu0 %v2345
    %3114 = vmatpush1.bf16.msra.mxu0 %v2344
    %3115 = vmatprep.subr.bf16.mxu0 %v2351
    %3116 = vmatpush1.bf16.msra.mxu0 %v2350
    %3117 = vmatprep.subr.bf16.mxu0 %v2357
    %3118 = vmatpush1.bf16.msra.mxu0 %v2356
    %3119 = vmatprep.subr.bf16.mxu0 %v2363
    %3120 = vmatpush1.bf16.msra.mxu0 %v2362
    %3121 = vmatprep.subr.bf16.mxu0 %v2369
    %3122 = vmatpush1.bf16.msra.mxu0 %v2368
    %3123 = vmatprep.subr.bf16.mxu0 %v2375
    %3124 = vmatpush1.bf16.msra.mxu0 %v2374
    %3125 = vmatprep.subr.bf16.mxu0 %v2381
    %3126 = vmatpush1.bf16.msra.mxu0 %v2380
    %3127 = vmatprep.subr.bf16.mxu0 %v2387
    %3128 = vmatpush1.bf16.msra.mxu0 %v2386
    %3129 = vmatprep.subr.bf16.mxu0 %v2393
    %3130 = vmatpush1.bf16.msra.mxu0 %v2392
    %3131 = vmatprep.subr.bf16.mxu0 %v2399
    %3132 = vmatpush1.bf16.msra.mxu0 %v2398
    %3133 = vmatprep.subr.bf16.mxu0 %v2405
    %3134 = vmatpush1.bf16.msra.mxu0 %v2404
    %3135 = vmatprep.subr.bf16.mxu0 %v2411
    %3136 = vmatpush1.bf16.msra.mxu0 %v2410
    %3137 = vmatprep.mubr.bf16.mxu0 %v947
    %3138 = vmatmul.mubr.bf16.gmra.mrb[0].mxu0 %v946
    %v3139 = vpop.f32.mrb[0].mxu0
    %v3140 = vadd.f32 %v3027, %v3139
    %v3141 = vpop.f32.mrb[0].mxu0
    %v3142 = vadd.f32 %v3029, %v3141
    %v3143 = vpop.f32.mrb[0].mxu0
    %v3144 = vadd.f32 %v3031, %v3143
    %v3145 = vpop.f32.mrb[0].mxu0
    %v3146 = vadd.f32 %v3033, %v3145
    %3147 = vmatprep.mubr.bf16.mxu0 %v955
    %3148 = vmatmul.mubr.bf16.gmra.mrb[0].mxu0 %v954
    %v3149 = vpop.f32.mrb[0].mxu0
    %v3150 = vadd.f32 %v3037, %v3149
    %v3151 = vpop.f32.mrb[0].mxu0
    %v3152 = vadd.f32 %v3039, %v3151
    %v3153 = vpop.f32.mrb[0].mxu0
    %v3154 = vadd.f32 %v3041, %v3153
    %v3155 = vpop.f32.mrb[0].mxu0
    %v3156 = vadd.f32 %v3043, %v3155
    %3157 = vmatprep.mubr.bf16.mxu0 %v963
    %3158 = vmatmul.mubr.bf16.gmra.mrb[0].mxu0 %v962
    %v3159 = vpop.f32.mrb[0].mxu0
    %v3160 = vadd.f32 %v3047, %v3159
    %v3161 = vpop.f32.mrb[0].mxu0
    %v3162 = vadd.f32 %v3049, %v3161
    %v3163 = vpop.f32.mrb[0].mxu0
    %v3164 = vadd.f32 %v3051, %v3163
    %v3165 = vpop.f32.mrb[0].mxu0
    %v3166 = vadd.f32 %v3053, %v3165
    %3167 = vmatprep.mubr.bf16.mxu0 %v971
    %3168 = vmatmul.mubr.bf16.gmra.mrb[0].mxu0 %v970
    %v3169 = vpop.f32.mrb[0].mxu0
    %v3170 = vadd.f32 %v3057, %v3169
    %v3171 = vpop.f32.mrb[0].mxu0
    %v3172 = vadd.f32 %v3059, %v3171
    %v3173 = vpop.f32.mrb[0].mxu0
    %v3174 = vadd.f32 %v3061, %v3173
    %v3175 = vpop.f32.mrb[0].mxu0
    %v3176 = vadd.f32 %v3063, %v3175
    %3177 = vmatprep.mubr.bf16.mxu0 %v979
    %3178 = vmatmul.mubr.bf16.gmra.mrb[0].mxu0 %v978
    %v3179 = vpop.f32.mrb[0].mxu0
    %v3180 = vadd.f32 %v3067, %v3179
    %v3181 = vpop.f32.mrb[0].mxu0
    %v3182 = vadd.f32 %v3069, %v3181
    %v3183 = vpop.f32.mrb[0].mxu0
    %v3184 = vadd.f32 %v3071, %v3183
    %v3185 = vpop.f32.mrb[0].mxu0
    %v3186 = vadd.f32 %v3073, %v3185
    %3187 = vmatprep.mubr.bf16.mxu0 %v987
    %3188 = vmatmul.mubr.bf16.gmra.mrb[0].mxu0 %v986
    %v3189 = vpop.f32.mrb[0].mxu0
    %v3190 = vadd.f32 %v3077, %v3189
    %v3191 = vpop.f32.mrb[0].mxu0
    %v3192 = vadd.f32 %v3079, %v3191
    %v3193 = vpop.f32.mrb[0].mxu0
    %v3194 = vadd.f32 %v3081, %v3193
    %v3195 = vpop.f32.mrb[0].mxu0
    %v3196 = vadd.f32 %v3083, %v3195
    %3197 = vmatprep.mubr.bf16.mxu0 %v995
    %3198 = vmatmul.mubr.bf16.gmra.mrb[0].mxu0 %v994
    %v3199 = vpop.f32.mrb[0].mxu0
    %v3200 = vadd.f32 %v3087, %v3199
    %v3201 = vpop.f32.mrb[0].mxu0
    %v3202 = vadd.f32 %v3089, %v3201
    %v3203 = vpop.f32.mrb[0].mxu0
    %v3204 = vadd.f32 %v3091, %v3203
    %v3205 = vpop.f32.mrb[0].mxu0
    %v3206 = vadd.f32 %v3093, %v3205
    %3207 = vmatprep.mubr.bf16.mxu0 %v1003
    %3208 = vmatmul.mubr.bf16.gmra.mrb[0].mxu0 %v1002
    %v3209 = vpop.f32.mrb[0].mxu0
    %v3210 = vadd.f32 %v3097, %v3209
    %v3211 = vpop.f32.mrb[0].mxu0
    %v3212 = vadd.f32 %v3099, %v3211
    %v3213 = vpop.f32.mrb[0].mxu0
    %v3214 = vadd.f32 %v3101, %v3213
    %v3215 = vpop.f32.mrb[0].mxu0
    %v3216 = vadd.f32 %v3103, %v3215
    %3217 = vdwg.mxu0
    %3218 = vmatprep.subr.bf16.mxu0 %v2417
    %3219 = vmatpush1.bf16.msra.mxu0 %v2416
    %3220 = vmatprep.subr.bf16.mxu0 %v2423
    %3221 = vmatpush1.bf16.msra.mxu0 %v2422
    %3222 = vmatprep.subr.bf16.mxu0 %v2429
    %3223 = vmatpush1.bf16.msra.mxu0 %v2428
    %3224 = vmatprep.subr.bf16.mxu0 %v2435
    %3225 = vmatpush1.bf16.msra.mxu0 %v2434
    %3226 = vmatprep.subr.bf16.mxu0 %v2441
    %3227 = vmatpush1.bf16.msra.mxu0 %v2440
    %3228 = vmatprep.subr.bf16.mxu0 %v2447
    %3229 = vmatpush1.bf16.msra.mxu0 %v2446
    %3230 = vmatprep.subr.bf16.mxu0 %v2453
    %3231 = vmatpush1.bf16.msra.mxu0 %v2452
    %3232 = vmatprep.subr.bf16.mxu0 %v2459
    %3233 = vmatpush1.bf16.msra.mxu0 %v2458
    %3234 = vmatprep.subr.bf16.mxu0 %v2465
    %3235 = vmatpush1.bf16.msra.mxu0 %v2464
    %3236 = vmatprep.subr.bf16.mxu0 %v2471
    %3237 = vmatpush1.bf16.msra.mxu0 %v2470
    %3238 = vmatprep.subr.bf16.mxu0 %v2477
    %3239 = vmatpush1.bf16.msra.mxu0 %v2476
    %3240 = vmatprep.subr.bf16.mxu0 %v2483
    %3241 = vmatpush1.bf16.msra.mxu0 %v2482
    %3242 = vmatprep.subr.bf16.mxu0 %v2489
    %3243 = vmatpush1.bf16.msra.mxu0 %v2488
    %3244 = vmatprep.subr.bf16.mxu0 %v2495
    %3245 = vmatpush1.bf16.msra.mxu0 %v2494
    %3246 = vmatprep.subr.bf16.mxu0 %v2501
    %3247 = vmatpush1.bf16.msra.mxu0 %v2500
    %3248 = vmatprep.subr.bf16.mxu0 %v2507
    %3249 = vmatpush1.bf16.msra.mxu0 %v2506
    %3250 = vmatprep.mubr.bf16.mxu0 %v949
    %3251 = vmatmul.mubr.bf16.gmra.mrb[0].mxu0 %v948
    %v3252 = vpop.f32.mrb[0].mxu0
    %v3253 = vadd.f32 %v3140, %v3252
    %v3254 = vpop.f32.mrb[0].mxu0
    %v3255 = vadd.f32 %v3142, %v3254
    %v3256 = vpop.f32.mrb[0].mxu0
    %v3257 = vadd.f32 %v3144, %v3256
    %v3258 = vpop.f32.mrb[0].mxu0
    %v3259 = vadd.f32 %v3146, %v3258
    %3260 = vmatprep.mubr.bf16.mxu0 %v957
    %3261 = vmatmul.mubr.bf16.gmra.mrb[0].mxu0 %v956
    %v3262 = vpop.f32.mrb[0].mxu0
    %v3263 = vadd.f32 %v3150, %v3262
    %v3264 = vpop.f32.mrb[0].mxu0
    %v3265 = vadd.f32 %v3152, %v3264
    %v3266 = vpop.f32.mrb[0].mxu0
    %v3267 = vadd.f32 %v3154, %v3266
    %v3268 = vpop.f32.mrb[0].mxu0
    %v3269 = vadd.f32 %v3156, %v3268
    %3270 = vmatprep.mubr.bf16.mxu0 %v965
    %3271 = vmatmul.mubr.bf16.gmra.mrb[0].mxu0 %v964
    %v3272 = vpop.f32.mrb[0].mxu0
    %v3273 = vadd.f32 %v3160, %v3272
    %v3274 = vpop.f32.mrb[0].mxu0
    %v3275 = vadd.f32 %v3162, %v3274
    %v3276 = vpop.f32.mrb[0].mxu0
    %v3277 = vadd.f32 %v3164, %v3276
    %v3278 = vpop.f32.mrb[0].mxu0
    %v3279 = vadd.f32 %v3166, %v3278
    %3280 = vmatprep.mubr.bf16.mxu0 %v973
    %3281 = vmatmul.mubr.bf16.gmra.mrb[0].mxu0 %v972
    %v3282 = vpop.f32.mrb[0].mxu0
    %v3283 = vadd.f32 %v3170, %v3282
    %v3284 = vpop.f32.mrb[0].mxu0
    %v3285 = vadd.f32 %v3172, %v3284
    %v3286 = vpop.f32.mrb[0].mxu0
    %v3287 = vadd.f32 %v3174, %v3286
    %v3288 = vpop.f32.mrb[0].mxu0
    %v3289 = vadd.f32 %v3176, %v3288
    %3290 = vmatprep.mubr.bf16.mxu0 %v981
    %3291 = vmatmul.mubr.bf16.gmra.mrb[0].mxu0 %v980
    %v3292 = vpop.f32.mrb[0].mxu0
    %v3293 = vadd.f32 %v3180, %v3292
    %v3294 = vpop.f32.mrb[0].mxu0
    %v3295 = vadd.f32 %v3182, %v3294
    %v3296 = vpop.f32.mrb[0].mxu0
    %v3297 = vadd.f32 %v3184, %v3296
    %v3298 = vpop.f32.mrb[0].mxu0
    %v3299 = vadd.f32 %v3186, %v3298
    %3300 = vmatprep.mubr.bf16.mxu0 %v989
    %3301 = vmatmul.mubr.bf16.gmra.mrb[0].mxu0 %v988
    %v3302 = vpop.f32.mrb[0].mxu0
    %v3303 = vadd.f32 %v3190, %v3302
    %v3304 = vpop.f32.mrb[0].mxu0
    %v3305 = vadd.f32 %v3192, %v3304
    %v3306 = vpop.f32.mrb[0].mxu0
    %v3307 = vadd.f32 %v3194, %v3306
    %v3308 = vpop.f32.mrb[0].mxu0
    %v3309 = vadd.f32 %v3196, %v3308
    %3310 = vmatprep.mubr.bf16.mxu0 %v997
    %3311 = vmatmul.mubr.bf16.gmra.mrb[0].mxu0 %v996
    %v3312 = vpop.f32.mrb[0].mxu0
    %v3313 = vadd.f32 %v3200, %v3312
    %v3314 = vpop.f32.mrb[0].mxu0
    %v3315 = vadd.f32 %v3202, %v3314
    %v3316 = vpop.f32.mrb[0].mxu0
    %v3317 = vadd.f32 %v3204, %v3316
    %v3318 = vpop.f32.mrb[0].mxu0
    %v3319 = vadd.f32 %v3206, %v3318
    %3320 = vmatprep.mubr.bf16.mxu0 %v1005
    %3321 = vmatmul.mubr.bf16.gmra.mrb[0].mxu0 %v1004
    %v3322 = vpop.f32.mrb[0].mxu0
    %v3323 = vadd.f32 %v3210, %v3322
    %v3324 = vpop.f32.mrb[0].mxu0
    %v3325 = vadd.f32 %v3212, %v3324
    %v3326 = vpop.f32.mrb[0].mxu0
    %v3327 = vadd.f32 %v3214, %v3326
    %v3328 = vpop.f32.mrb[0].mxu0
    %v3329 = vadd.f32 %v3216, %v3328
    %3330 = vdwg.mxu0
    %3331 = vmatprep.subr.bf16.mxu0 %v2513
    %3332 = vmatpush1.bf16.msra.mxu0 %v2512
    %3333 = vmatprep.subr.bf16.mxu0 %v2519
    %3334 = vmatpush1.bf16.msra.mxu0 %v2518
    %3335 = vmatprep.subr.bf16.mxu0 %v2525
    %3336 = vmatpush1.bf16.msra.mxu0 %v2524
    %3337 = vmatprep.subr.bf16.mxu0 %v2531
    %3338 = vmatpush1.bf16.msra.mxu0 %v2530
    %3339 = vmatprep.subr.bf16.mxu0 %v2537
    %3340 = vmatpush1.bf16.msra.mxu0 %v2536
    %3341 = vmatprep.subr.bf16.mxu0 %v2543
    %3342 = vmatpush1.bf16.msra.mxu0 %v2542
    %3343 = vmatprep.subr.bf16.mxu0 %v2549
    %3344 = vmatpush1.bf16.msra.mxu0 %v2548
    %3345 = vmatprep.subr.bf16.mxu0 %v2555
    %3346 = vmatpush1.bf16.msra.mxu0 %v2554
    %3347 = vmatprep.subr.bf16.mxu0 %v2561
    %3348 = vmatpush1.bf16.msra.mxu0 %v2560
    %3349 = vmatprep.subr.bf16.mxu0 %v2567
    %3350 = vmatpush1.bf16.msra.mxu0 %v2566
    %3351 = vmatprep.subr.bf16.mxu0 %v2573
    %3352 = vmatpush1.bf16.msra.mxu0 %v2572
    %3353 = vmatprep.subr.bf16.mxu0 %v2579
    %3354 = vmatpush1.bf16.msra.mxu0 %v2578
    %3355 = vmatprep.subr.bf16.mxu0 %v2585
    %3356 = vmatpush1.bf16.msra.mxu0 %v2584
    %3357 = vmatprep.subr.bf16.mxu0 %v2591
    %3358 = vmatpush1.bf16.msra.mxu0 %v2590
    %3359 = vmatprep.subr.bf16.mxu0 %v2597
    %3360 = vmatpush1.bf16.msra.mxu0 %v2596
    %3361 = vmatprep.subr.bf16.mxu0 %v2603
    %3362 = vmatpush1.bf16.msra.mxu0 %v2602
    %3363 = vmatprep.mubr.bf16.mxu0 %v951
    %3364 = vmatmul.mubr.bf16.gmra.mrb[0].mxu0 %v950
    %v3365 = vpop.f32.mrb[0].mxu0
    %v3366 = vadd.f32 %v3253, %v3365
    %v3367 = vpop.f32.mrb[0].mxu0
    %v3368 = vadd.f32 %v3255, %v3367
    %v3369 = vpop.f32.mrb[0].mxu0
    %v3370 = vadd.f32 %v3257, %v3369
    %v3371 = vpop.f32.mrb[0].mxu0
    %v3372 = vadd.f32 %v3259, %v3371
    %3373 = vmatprep.mubr.bf16.mxu0 %v959
    %3374 = vmatmul.mubr.bf16.gmra.mrb[0].mxu0 %v958
    %v3375 = vpop.f32.mrb[0].mxu0
    %v3376 = vadd.f32 %v3263, %v3375
    %v3377 = vpop.f32.mrb[0].mxu0
    %v3378 = vadd.f32 %v3265, %v3377
    %v3379 = vpop.f32.mrb[0].mxu0
    %v3380 = vadd.f32 %v3267, %v3379
    %v3381 = vpop.f32.mrb[0].mxu0
    %v3382 = vadd.f32 %v3269, %v3381
    %3383 = vmatprep.mubr.bf16.mxu0 %v967
    %3384 = vmatmul.mubr.bf16.gmra.mrb[0].mxu0 %v966
    %v3385 = vpop.f32.mrb[0].mxu0
    %v3386 = vadd.f32 %v3273, %v3385
    %v3387 = vpop.f32.mrb[0].mxu0
    %v3388 = vadd.f32 %v3275, %v3387
    %v3389 = vpop.f32.mrb[0].mxu0
    %v3390 = vadd.f32 %v3277, %v3389
    %v3391 = vpop.f32.mrb[0].mxu0
    %v3392 = vadd.f32 %v3279, %v3391
    %3393 = vmatprep.mubr.bf16.mxu0 %v975
    %3394 = vmatmul.mubr.bf16.gmra.mrb[0].mxu0 %v974
    %v3395 = vpop.f32.mrb[0].mxu0
    %v3396 = vadd.f32 %v3283, %v3395
    %v3397 = vpop.f32.mrb[0].mxu0
    %v3398 = vadd.f32 %v3285, %v3397
    %v3399 = vpop.f32.mrb[0].mxu0
    %v3400 = vadd.f32 %v3287, %v3399
    %v3401 = vpop.f32.mrb[0].mxu0
    %v3402 = vadd.f32 %v3289, %v3401
    %3403 = vmatprep.mubr.bf16.mxu0 %v983
    %3404 = vmatmul.mubr.bf16.gmra.mrb[0].mxu0 %v982
    %v3405 = vpop.f32.mrb[0].mxu0
    %v3406 = vadd.f32 %v3293, %v3405
    %v3407 = vpop.f32.mrb[0].mxu0
    %v3408 = vadd.f32 %v3295, %v3407
    %v3409 = vpop.f32.mrb[0].mxu0
    %v3410 = vadd.f32 %v3297, %v3409
    %v3411 = vpop.f32.mrb[0].mxu0
    %v3412 = vadd.f32 %v3299, %v3411
    %3413 = vmatprep.mubr.bf16.mxu0 %v991
    %3414 = vmatmul.mubr.bf16.gmra.mrb[0].mxu0 %v990
    %v3415 = vpop.f32.mrb[0].mxu0
    %v3416 = vadd.f32 %v3303, %v3415
    %v3417 = vpop.f32.mrb[0].mxu0
    %v3418 = vadd.f32 %v3305, %v3417
    %v3419 = vpop.f32.mrb[0].mxu0
    %v3420 = vadd.f32 %v3307, %v3419
    %v3421 = vpop.f32.mrb[0].mxu0
    %v3422 = vadd.f32 %v3309, %v3421
    %3423 = vmatprep.mubr.bf16.mxu0 %v999
    %3424 = vmatmul.mubr.bf16.gmra.mrb[0].mxu0 %v998
    %v3425 = vpop.f32.mrb[0].mxu0
    %v3426 = vadd.f32 %v3313, %v3425
    %v3427 = vpop.f32.mrb[0].mxu0
    %v3428 = vadd.f32 %v3315, %v3427
    %v3429 = vpop.f32.mrb[0].mxu0
    %v3430 = vadd.f32 %v3317, %v3429
    %v3431 = vpop.f32.mrb[0].mxu0
    %v3432 = vadd.f32 %v3319, %v3431
    %3433 = vmatprep.mubr.bf16.mxu0 %v1007
    %3434 = vmatmul.mubr.bf16.gmra.mrb[0].mxu0 %v1006
    %v3435 = vpop.f32.mrb[0].mxu0
    %v3436 = vadd.f32 %v3323, %v3435
    %v3437 = vpop.f32.mrb[0].mxu0
    %v3438 = vadd.f32 %v3325, %v3437
    %v3439 = vpop.f32.mrb[0].mxu0
    %v3440 = vadd.f32 %v3327, %v3439
    %v3441 = vpop.f32.mrb[0].mxu0
    %v3442 = vadd.f32 %v3329, %v3441
    %3443 = vdwg.mxu0
    %3444 = vmatprep.subr.bf16.mxu0 %v2227
    %3445 = vmatpush1.bf16.msra.mxu0 %v2226
    %3446 = vmatprep.subr.bf16.mxu0 %v2233
    %3447 = vmatpush1.bf16.msra.mxu0 %v2232
    %3448 = vmatprep.subr.bf16.mxu0 %v2239
    %3449 = vmatpush1.bf16.msra.mxu0 %v2238
    %3450 = vmatprep.subr.bf16.mxu0 %v2245
    %3451 = vmatpush1.bf16.msra.mxu0 %v2244
    %3452 = vmatprep.subr.bf16.mxu0 %v2251
    %3453 = vmatpush1.bf16.msra.mxu0 %v2250
    %3454 = vmatprep.subr.bf16.mxu0 %v2257
    %3455 = vmatpush1.bf16.msra.mxu0 %v2256
    %3456 = vmatprep.subr.bf16.mxu0 %v2263
    %3457 = vmatpush1.bf16.msra.mxu0 %v2262
    %3458 = vmatprep.subr.bf16.mxu0 %v2269
    %3459 = vmatpush1.bf16.msra.mxu0 %v2268
    %3460 = vmatprep.subr.bf16.mxu0 %v2275
    %3461 = vmatpush1.bf16.msra.mxu0 %v2274
    %3462 = vmatprep.subr.bf16.mxu0 %v2281
    %3463 = vmatpush1.bf16.msra.mxu0 %v2280
    %3464 = vmatprep.subr.bf16.mxu0 %v2287
    %3465 = vmatpush1.bf16.msra.mxu0 %v2286
    %3466 = vmatprep.subr.bf16.mxu0 %v2293
    %3467 = vmatpush1.bf16.msra.mxu0 %v2292
    %3468 = vmatprep.subr.bf16.mxu0 %v2299
    %3469 = vmatpush1.bf16.msra.mxu0 %v2298
    %3470 = vmatprep.subr.bf16.mxu0 %v2305
    %3471 = vmatpush1.bf16.msra.mxu0 %v2304
    %3472 = vmatprep.subr.bf16.mxu0 %v2311
    %3473 = vmatpush1.bf16.msra.mxu0 %v2310
    %3474 = vmatprep.subr.bf16.mxu0 %v2317
    %3475 = vmatpush1.bf16.msra.mxu0 %v2316
    %3476 = vmatprep.mubr.bf16.mxu0 %v945
    %3477 = vmatmul.mubr.bf16.gmra.mrb[0].mxu0 %v944
    %v3478 = vpop.f32.mrb[0].mxu0
    %v3479 = vadd.f32 %v733, %v3478
    %v3480 = vpop.f32.mrb[0].mxu0
    %v3481 = vadd.f32 %v737, %v3480
    %v3482 = vpop.f32.mrb[0].mxu0
    %v3483 = vadd.f32 %v733, %v3482
    %v3484 = vpop.f32.mrb[0].mxu0
    %v3485 = vadd.f32 %v737, %v3484
    %3486 = vmatprep.mubr.bf16.mxu0 %v953
    %3487 = vmatmul.mubr.bf16.gmra.mrb[0].mxu0 %v952
    %v3488 = vpop.f32.mrb[0].mxu0
    %v3489 = vadd.f32 %v733, %v3488
    %v3490 = vpop.f32.mrb[0].mxu0
    %v3491 = vadd.f32 %v737, %v3490
    %v3492 = vpop.f32.mrb[0].mxu0
    %v3493 = vadd.f32 %v733, %v3492
    %v3494 = vpop.f32.mrb[0].mxu0
    %v3495 = vadd.f32 %v737, %v3494
    %3496 = vmatprep.mubr.bf16.mxu0 %v961
    %3497 = vmatmul.mubr.bf16.gmra.mrb[0].mxu0 %v960
    %v3498 = vpop.f32.mrb[0].mxu0
    %v3499 = vadd.f32 %v733, %v3498
    %v3500 = vpop.f32.mrb[0].mxu0
    %v3501 = vadd.f32 %v737, %v3500
    %v3502 = vpop.f32.mrb[0].mxu0
    %v3503 = vadd.f32 %v733, %v3502
    %v3504 = vpop.f32.mrb[0].mxu0
    %v3505 = vadd.f32 %v737, %v3504
    %3506 = vmatprep.mubr.bf16.mxu0 %v969
    %3507 = vmatmul.mubr.bf16.gmra.mrb[0].mxu0 %v968
    %v3508 = vpop.f32.mrb[0].mxu0
    %v3509 = vadd.f32 %v733, %v3508
    %v3510 = vpop.f32.mrb[0].mxu0
    %v3511 = vadd.f32 %v737, %v3510
    %v3512 = vpop.f32.mrb[0].mxu0
    %v3513 = vadd.f32 %v733, %v3512
    %v3514 = vpop.f32.mrb[0].mxu0
    %v3515 = vadd.f32 %v737, %v3514
    %3516 = vmatprep.mubr.bf16.mxu0 %v977
    %3517 = vmatmul.mubr.bf16.gmra.mrb[0].mxu0 %v976
    %v3518 = vpop.f32.mrb[0].mxu0
    %v3519 = vadd.f32 %v733, %v3518
    %v3520 = vpop.f32.mrb[0].mxu0
    %v3521 = vadd.f32 %v737, %v3520
    %v3522 = vpop.f32.mrb[0].mxu0
    %v3523 = vadd.f32 %v733, %v3522
    %v3524 = vpop.f32.mrb[0].mxu0
    %v3525 = vadd.f32 %v737, %v3524
    %3526 = vmatprep.mubr.bf16.mxu0 %v985
    %3527 = vmatmul.mubr.bf16.gmra.mrb[0].mxu0 %v984
    %v3528 = vpop.f32.mrb[0].mxu0
    %v3529 = vadd.f32 %v733, %v3528
    %v3530 = vpop.f32.mrb[0].mxu0
    %v3531 = vadd.f32 %v737, %v3530
    %v3532 = vpop.f32.mrb[0].mxu0
    %v3533 = vadd.f32 %v733, %v3532
    %v3534 = vpop.f32.mrb[0].mxu0
    %v3535 = vadd.f32 %v737, %v3534
    %3536 = vmatprep.mubr.bf16.mxu0 %v993
    %3537 = vmatmul.mubr.bf16.gmra.mrb[0].mxu0 %v992
    %v3538 = vpop.f32.mrb[0].mxu0
    %v3539 = vadd.f32 %v733, %v3538
    %v3540 = vpop.f32.mrb[0].mxu0
    %v3541 = vadd.f32 %v737, %v3540
    %v3542 = vpop.f32.mrb[0].mxu0
    %v3543 = vadd.f32 %v733, %v3542
    %v3544 = vpop.f32.mrb[0].mxu0
    %v3545 = vadd.f32 %v737, %v3544
    %3546 = vmatprep.mubr.bf16.mxu0 %v1001
    %3547 = vmatmul.mubr.bf16.gmra.mrb[0].mxu0 %v1000
    %v3548 = vpop.f32.mrb[0].mxu0
    %v3549 = vadd.f32 %v733, %v3548
    %v3550 = vpop.f32.mrb[0].mxu0
    %v3551 = vadd.f32 %v737, %v3550
    %v3552 = vpop.f32.mrb[0].mxu0
    %v3553 = vadd.f32 %v733, %v3552
    %v3554 = vpop.f32.mrb[0].mxu0
    %v3555 = vadd.f32 %v737, %v3554
    %3556 = vdwg.mxu0
    %3557 = vmatprep.subr.bf16.mxu0 %v2323
    %3558 = vmatpush1.bf16.msra.mxu0 %v2322
    %3559 = vmatprep.subr.bf16.mxu0 %v2329
    %3560 = vmatpush1.bf16.msra.mxu0 %v2328
    %3561 = vmatprep.subr.bf16.mxu0 %v2335
    %3562 = vmatpush1.bf16.msra.mxu0 %v2334
    %3563 = vmatprep.subr.bf16.mxu0 %v2341
    %3564 = vmatpush1.bf16.msra.mxu0 %v2340
    %3565 = vmatprep.subr.bf16.mxu0 %v2347
    %3566 = vmatpush1.bf16.msra.mxu0 %v2346
    %3567 = vmatprep.subr.bf16.mxu0 %v2353
    %3568 = vmatpush1.bf16.msra.mxu0 %v2352
    %3569 = vmatprep.subr.bf16.mxu0 %v2359
    %3570 = vmatpush1.bf16.msra.mxu0 %v2358
    %3571 = vmatprep.subr.bf16.mxu0 %v2365
    %3572 = vmatpush1.bf16.msra.mxu0 %v2364
    %3573 = vmatprep.subr.bf16.mxu0 %v2371
    %3574 = vmatpush1.bf16.msra.mxu0 %v2370
    %3575 = vmatprep.subr.bf16.mxu0 %v2377
    %3576 = vmatpush1.bf16.msra.mxu0 %v2376
    %3577 = vmatprep.subr.bf16.mxu0 %v2383
    %3578 = vmatpush1.bf16.msra.mxu0 %v2382
    %3579 = vmatprep.subr.bf16.mxu0 %v2389
    %3580 = vmatpush1.bf16.msra.mxu0 %v2388
    %3581 = vmatprep.subr.bf16.mxu0 %v2395
    %3582 = vmatpush1.bf16.msra.mxu0 %v2394
    %3583 = vmatprep.subr.bf16.mxu0 %v2401
    %3584 = vmatpush1.bf16.msra.mxu0 %v2400
    %3585 = vmatprep.subr.bf16.mxu0 %v2407
    %3586 = vmatpush1.bf16.msra.mxu0 %v2406
    %3587 = vmatprep.subr.bf16.mxu0 %v2413
    %3588 = vmatpush1.bf16.msra.mxu0 %v2412
    %3589 = vmatprep.mubr.bf16.mxu0 %v947
    %3590 = vmatmul.mubr.bf16.gmra.mrb[0].mxu0 %v946
    %v3591 = vpop.f32.mrb[0].mxu0
    %v3592 = vadd.f32 %v3479, %v3591
    %v3593 = vpop.f32.mrb[0].mxu0
    %v3594 = vadd.f32 %v3481, %v3593
    %v3595 = vpop.f32.mrb[0].mxu0
    %v3596 = vadd.f32 %v3483, %v3595
    %v3597 = vpop.f32.mrb[0].mxu0
    %v3598 = vadd.f32 %v3485, %v3597
    %3599 = vmatprep.mubr.bf16.mxu0 %v955
    %3600 = vmatmul.mubr.bf16.gmra.mrb[0].mxu0 %v954
    %v3601 = vpop.f32.mrb[0].mxu0
    %v3602 = vadd.f32 %v3489, %v3601
    %v3603 = vpop.f32.mrb[0].mxu0
    %v3604 = vadd.f32 %v3491, %v3603
    %v3605 = vpop.f32.mrb[0].mxu0
    %v3606 = vadd.f32 %v3493, %v3605
    %v3607 = vpop.f32.mrb[0].mxu0
    %v3608 = vadd.f32 %v3495, %v3607
    %3609 = vmatprep.mubr.bf16.mxu0 %v963
    %3610 = vmatmul.mubr.bf16.gmra.mrb[0].mxu0 %v962
    %v3611 = vpop.f32.mrb[0].mxu0
    %v3612 = vadd.f32 %v3499, %v3611
    %v3613 = vpop.f32.mrb[0].mxu0
    %v3614 = vadd.f32 %v3501, %v3613
    %v3615 = vpop.f32.mrb[0].mxu0
    %v3616 = vadd.f32 %v3503, %v3615
    %v3617 = vpop.f32.mrb[0].mxu0
    %v3618 = vadd.f32 %v3505, %v3617
    %3619 = vmatprep.mubr.bf16.mxu0 %v971
    %3620 = vmatmul.mubr.bf16.gmra.mrb[0].mxu0 %v970
    %v3621 = vpop.f32.mrb[0].mxu0
    %v3622 = vadd.f32 %v3509, %v3621
    %v3623 = vpop.f32.mrb[0].mxu0
    %v3624 = vadd.f32 %v3511, %v3623
    %v3625 = vpop.f32.mrb[0].mxu0
    %v3626 = vadd.f32 %v3513, %v3625
    %v3627 = vpop.f32.mrb[0].mxu0
    %v3628 = vadd.f32 %v3515, %v3627
    %3629 = vmatprep.mubr.bf16.mxu0 %v979
    %3630 = vmatmul.mubr.bf16.gmra.mrb[0].mxu0 %v978
    %v3631 = vpop.f32.mrb[0].mxu0
    %v3632 = vadd.f32 %v3519, %v3631
    %v3633 = vpop.f32.mrb[0].mxu0
    %v3634 = vadd.f32 %v3521, %v3633
    %v3635 = vpop.f32.mrb[0].mxu0
    %v3636 = vadd.f32 %v3523, %v3635
    %v3637 = vpop.f32.mrb[0].mxu0
    %v3638 = vadd.f32 %v3525, %v3637
    %3639 = vmatprep.mubr.bf16.mxu0 %v987
    %3640 = vmatmul.mubr.bf16.gmra.mrb[0].mxu0 %v986
    %v3641 = vpop.f32.mrb[0].mxu0
    %v3642 = vadd.f32 %v3529, %v3641
    %v3643 = vpop.f32.mrb[0].mxu0
    %v3644 = vadd.f32 %v3531, %v3643
    %v3645 = vpop.f32.mrb[0].mxu0
    %v3646 = vadd.f32 %v3533, %v3645
    %v3647 = vpop.f32.mrb[0].mxu0
    %v3648 = vadd.f32 %v3535, %v3647
    %3649 = vmatprep.mubr.bf16.mxu0 %v995
    %3650 = vmatmul.mubr.bf16.gmra.mrb[0].mxu0 %v994
    %v3651 = vpop.f32.mrb[0].mxu0
    %v3652 = vadd.f32 %v3539, %v3651
    %v3653 = vpop.f32.mrb[0].mxu0
    %v3654 = vadd.f32 %v3541, %v3653
    %v3655 = vpop.f32.mrb[0].mxu0
    %v3656 = vadd.f32 %v3543, %v3655
    %v3657 = vpop.f32.mrb[0].mxu0
    %v3658 = vadd.f32 %v3545, %v3657
    %3659 = vmatprep.mubr.bf16.mxu0 %v1003
    %3660 = vmatmul.mubr.bf16.gmra.mrb[0].mxu0 %v1002
    %v3661 = vpop.f32.mrb[0].mxu0
    %v3662 = vadd.f32 %v3549, %v3661
    %v3663 = vpop.f32.mrb[0].mxu0
    %v3664 = vadd.f32 %v3551, %v3663
    %v3665 = vpop.f32.mrb[0].mxu0
    %v3666 = vadd.f32 %v3553, %v3665
    %v3667 = vpop.f32.mrb[0].mxu0
    %v3668 = vadd.f32 %v3555, %v3667
    %3669 = vdwg.mxu0
    %3670 = vmatprep.subr.bf16.mxu0 %v2419
    %3671 = vmatpush1.bf16.msra.mxu0 %v2418
    %3672 = vmatprep.subr.bf16.mxu0 %v2425
    %3673 = vmatpush1.bf16.msra.mxu0 %v2424
    %3674 = vmatprep.subr.bf16.mxu0 %v2431
    %3675 = vmatpush1.bf16.msra.mxu0 %v2430
    %3676 = vmatprep.subr.bf16.mxu0 %v2437
    %3677 = vmatpush1.bf16.msra.mxu0 %v2436
    %3678 = vmatprep.subr.bf16.mxu0 %v2443
    %3679 = vmatpush1.bf16.msra.mxu0 %v2442
    %3680 = vmatprep.subr.bf16.mxu0 %v2449
    %3681 = vmatpush1.bf16.msra.mxu0 %v2448
    %3682 = vmatprep.subr.bf16.mxu0 %v2455
    %3683 = vmatpush1.bf16.msra.mxu0 %v2454
    %3684 = vmatprep.subr.bf16.mxu0 %v2461
    %3685 = vmatpush1.bf16.msra.mxu0 %v2460
    %3686 = vmatprep.subr.bf16.mxu0 %v2467
    %3687 = vmatpush1.bf16.msra.mxu0 %v2466
    %3688 = vmatprep.subr.bf16.mxu0 %v2473
    %3689 = vmatpush1.bf16.msra.mxu0 %v2472
    %3690 = vmatprep.subr.bf16.mxu0 %v2479
    %3691 = vmatpush1.bf16.msra.mxu0 %v2478
    %3692 = vmatprep.subr.bf16.mxu0 %v2485
    %3693 = vmatpush1.bf16.msra.mxu0 %v2484
    %3694 = vmatprep.subr.bf16.mxu0 %v2491
    %3695 = vmatpush1.bf16.msra.mxu0 %v2490
    %3696 = vmatprep.subr.bf16.mxu0 %v2497
    %3697 = vmatpush1.bf16.msra.mxu0 %v2496
    %3698 = vmatprep.subr.bf16.mxu0 %v2503
    %3699 = vmatpush1.bf16.msra.mxu0 %v2502
    %3700 = vmatprep.subr.bf16.mxu0 %v2509
    %3701 = vmatpush1.bf16.msra.mxu0 %v2508
    %3702 = vmatprep.mubr.bf16.mxu0 %v949
    %3703 = vmatmul.mubr.bf16.gmra.mrb[0].mxu0 %v948
    %v3704 = vpop.f32.mrb[0].mxu0
    %v3705 = vadd.f32 %v3592, %v3704
    %v3706 = vpop.f32.mrb[0].mxu0
    %v3707 = vadd.f32 %v3594, %v3706
    %v3708 = vpop.f32.mrb[0].mxu0
    %v3709 = vadd.f32 %v3596, %v3708
    %v3710 = vpop.f32.mrb[0].mxu0
    %v3711 = vadd.f32 %v3598, %v3710
    %3712 = vmatprep.mubr.bf16.mxu0 %v957
    %3713 = vmatmul.mubr.bf16.gmra.mrb[0].mxu0 %v956
    %v3714 = vpop.f32.mrb[0].mxu0
    %v3715 = vadd.f32 %v3602, %v3714
    %v3716 = vpop.f32.mrb[0].mxu0
    %v3717 = vadd.f32 %v3604, %v3716
    %v3718 = vpop.f32.mrb[0].mxu0
    %v3719 = vadd.f32 %v3606, %v3718
    %v3720 = vpop.f32.mrb[0].mxu0
    %v3721 = vadd.f32 %v3608, %v3720
    %3722 = vmatprep.mubr.bf16.mxu0 %v965
    %3723 = vmatmul.mubr.bf16.gmra.mrb[0].mxu0 %v964
    %v3724 = vpop.f32.mrb[0].mxu0
    %v3725 = vadd.f32 %v3612, %v3724
    %v3726 = vpop.f32.mrb[0].mxu0
    %v3727 = vadd.f32 %v3614, %v3726
    %v3728 = vpop.f32.mrb[0].mxu0
    %v3729 = vadd.f32 %v3616, %v3728
    %v3730 = vpop.f32.mrb[0].mxu0
    %v3731 = vadd.f32 %v3618, %v3730
    %3732 = vmatprep.mubr.bf16.mxu0 %v973
    %3733 = vmatmul.mubr.bf16.gmra.mrb[0].mxu0 %v972
    %v3734 = vpop.f32.mrb[0].mxu0
    %v3735 = vadd.f32 %v3622, %v3734
    %v3736 = vpop.f32.mrb[0].mxu0
    %v3737 = vadd.f32 %v3624, %v3736
    %v3738 = vpop.f32.mrb[0].mxu0
    %v3739 = vadd.f32 %v3626, %v3738
    %v3740 = vpop.f32.mrb[0].mxu0
    %v3741 = vadd.f32 %v3628, %v3740
    %3742 = vmatprep.mubr.bf16.mxu0 %v981
    %3743 = vmatmul.mubr.bf16.gmra.mrb[0].mxu0 %v980
    %v3744 = vpop.f32.mrb[0].mxu0
    %v3745 = vadd.f32 %v3632, %v3744
    %v3746 = vpop.f32.mrb[0].mxu0
    %v3747 = vadd.f32 %v3634, %v3746
    %v3748 = vpop.f32.mrb[0].mxu0
    %v3749 = vadd.f32 %v3636, %v3748
    %v3750 = vpop.f32.mrb[0].mxu0
    %v3751 = vadd.f32 %v3638, %v3750
    %3752 = vmatprep.mubr.bf16.mxu0 %v989
    %3753 = vmatmul.mubr.bf16.gmra.mrb[0].mxu0 %v988
    %v3754 = vpop.f32.mrb[0].mxu0
    %v3755 = vadd.f32 %v3642, %v3754
    %v3756 = vpop.f32.mrb[0].mxu0
    %v3757 = vadd.f32 %v3644, %v3756
    %v3758 = vpop.f32.mrb[0].mxu0
    %v3759 = vadd.f32 %v3646, %v3758
    %v3760 = vpop.f32.mrb[0].mxu0
    %v3761 = vadd.f32 %v3648, %v3760
    %3762 = vmatprep.mubr.bf16.mxu0 %v997
    %3763 = vmatmul.mubr.bf16.gmra.mrb[0].mxu0 %v996
    %v3764 = vpop.f32.mrb[0].mxu0
    %v3765 = vadd.f32 %v3652, %v3764
    %v3766 = vpop.f32.mrb[0].mxu0
    %v3767 = vadd.f32 %v3654, %v3766
    %v3768 = vpop.f32.mrb[0].mxu0
    %v3769 = vadd.f32 %v3656, %v3768
    %v3770 = vpop.f32.mrb[0].mxu0
    %v3771 = vadd.f32 %v3658, %v3770
    %3772 = vmatprep.mubr.bf16.mxu0 %v1005
    %3773 = vmatmul.mubr.bf16.gmra.mrb[0].mxu0 %v1004
    %v3774 = vpop.f32.mrb[0].mxu0
    %v3775 = vadd.f32 %v3662, %v3774
    %v3776 = vpop.f32.mrb[0].mxu0
    %v3777 = vadd.f32 %v3664, %v3776
    %v3778 = vpop.f32.mrb[0].mxu0
    %v3779 = vadd.f32 %v3666, %v3778
    %v3780 = vpop.f32.mrb[0].mxu0
    %v3781 = vadd.f32 %v3668, %v3780
    %3782 = vdwg.mxu0
    %3783 = vmatprep.subr.bf16.mxu0 %v2515
    %3784 = vmatpush1.bf16.msra.mxu0 %v2514
    %3785 = vmatprep.subr.bf16.mxu0 %v2521
    %3786 = vmatpush1.bf16.msra.mxu0 %v2520
    %3787 = vmatprep.subr.bf16.mxu0 %v2527
    %3788 = vmatpush1.bf16.msra.mxu0 %v2526
    %3789 = vmatprep.subr.bf16.mxu0 %v2533
    %3790 = vmatpush1.bf16.msra.mxu0 %v2532
    %3791 = vmatprep.subr.bf16.mxu0 %v2539
    %3792 = vmatpush1.bf16.msra.mxu0 %v2538
    %3793 = vmatprep.subr.bf16.mxu0 %v2545
    %3794 = vmatpush1.bf16.msra.mxu0 %v2544
    %3795 = vmatprep.subr.bf16.mxu0 %v2551
    %3796 = vmatpush1.bf16.msra.mxu0 %v2550
    %3797 = vmatprep.subr.bf16.mxu0 %v2557
    %3798 = vmatpush1.bf16.msra.mxu0 %v2556
    %3799 = vmatprep.subr.bf16.mxu0 %v2563
    %3800 = vmatpush1.bf16.msra.mxu0 %v2562
    %3801 = vmatprep.subr.bf16.mxu0 %v2569
    %3802 = vmatpush1.bf16.msra.mxu0 %v2568
    %3803 = vmatprep.subr.bf16.mxu0 %v2575
    %3804 = vmatpush1.bf16.msra.mxu0 %v2574
    %3805 = vmatprep.subr.bf16.mxu0 %v2581
    %3806 = vmatpush1.bf16.msra.mxu0 %v2580
    %3807 = vmatprep.subr.bf16.mxu0 %v2587
    %3808 = vmatpush1.bf16.msra.mxu0 %v2586
    %3809 = vmatprep.subr.bf16.mxu0 %v2593
    %3810 = vmatpush1.bf16.msra.mxu0 %v2592
    %3811 = vmatprep.subr.bf16.mxu0 %v2599
    %3812 = vmatpush1.bf16.msra.mxu0 %v2598
    %3813 = vmatprep.subr.bf16.mxu0 %v2605
    %3814 = vmatpush1.bf16.msra.mxu0 %v2604
    %3815 = vmatprep.mubr.bf16.mxu0 %v951
    %3816 = vmatmul.mubr.bf16.gmra.mrb[0].mxu0 %v950
    %v3817 = vpop.f32.mrb[0].mxu0
    %v3818 = vadd.f32 %v3705, %v3817
    %v3819 = vpop.f32.mrb[0].mxu0
    %v3820 = vadd.f32 %v3707, %v3819
    %v3821 = vpop.f32.mrb[0].mxu0
    %v3822 = vadd.f32 %v3709, %v3821
    %v3823 = vpop.f32.mrb[0].mxu0
    %v3824 = vadd.f32 %v3711, %v3823
    %3825 = vmatprep.mubr.bf16.mxu0 %v959
    %3826 = vmatmul.mubr.bf16.gmra.mrb[0].mxu0 %v958
    %v3827 = vpop.f32.mrb[0].mxu0
    %v3828 = vadd.f32 %v3715, %v3827
    %v3829 = vpop.f32.mrb[0].mxu0
    %v3830 = vadd.f32 %v3717, %v3829
    %v3831 = vpop.f32.mrb[0].mxu0
    %v3832 = vadd.f32 %v3719, %v3831
    %v3833 = vpop.f32.mrb[0].mxu0
    %v3834 = vadd.f32 %v3721, %v3833
    %3835 = vmatprep.mubr.bf16.mxu0 %v967
    %3836 = vmatmul.mubr.bf16.gmra.mrb[0].mxu0 %v966
    %v3837 = vpop.f32.mrb[0].mxu0
    %v3838 = vadd.f32 %v3725, %v3837
    %v3839 = vpop.f32.mrb[0].mxu0
    %v3840 = vadd.f32 %v3727, %v3839
    %v3841 = vpop.f32.mrb[0].mxu0
    %v3842 = vadd.f32 %v3729, %v3841
    %v3843 = vpop.f32.mrb[0].mxu0
    %v3844 = vadd.f32 %v3731, %v3843
    %3845 = vmatprep.mubr.bf16.mxu0 %v975
    %3846 = vmatmul.mubr.bf16.gmra.mrb[0].mxu0 %v974
    %v3847 = vpop.f32.mrb[0].mxu0
    %v3848 = vadd.f32 %v3735, %v3847
    %v3849 = vpop.f32.mrb[0].mxu0
    %v3850 = vadd.f32 %v3737, %v3849
    %v3851 = vpop.f32.mrb[0].mxu0
    %v3852 = vadd.f32 %v3739, %v3851
    %v3853 = vpop.f32.mrb[0].mxu0
    %v3854 = vadd.f32 %v3741, %v3853
    %3855 = vmatprep.mubr.bf16.mxu0 %v983
    %3856 = vmatmul.mubr.bf16.gmra.mrb[0].mxu0 %v982
    %v3857 = vpop.f32.mrb[0].mxu0
    %v3858 = vadd.f32 %v3745, %v3857
    %v3859 = vpop.f32.mrb[0].mxu0
    %v3860 = vadd.f32 %v3747, %v3859
    %v3861 = vpop.f32.mrb[0].mxu0
    %v3862 = vadd.f32 %v3749, %v3861
    %v3863 = vpop.f32.mrb[0].mxu0
    %v3864 = vadd.f32 %v3751, %v3863
    %3865 = vmatprep.mubr.bf16.mxu0 %v991
    %3866 = vmatmul.mubr.bf16.gmra.mrb[0].mxu0 %v990
    %v3867 = vpop.f32.mrb[0].mxu0
    %v3868 = vadd.f32 %v3755, %v3867
    %v3869 = vpop.f32.mrb[0].mxu0
    %v3870 = vadd.f32 %v3757, %v3869
    %v3871 = vpop.f32.mrb[0].mxu0
    %v3872 = vadd.f32 %v3759, %v3871
    %v3873 = vpop.f32.mrb[0].mxu0
    %v3874 = vadd.f32 %v3761, %v3873
    %3875 = vmatprep.mubr.bf16.mxu0 %v999
    %3876 = vmatmul.mubr.bf16.gmra.mrb[0].mxu0 %v998
    %v3877 = vpop.f32.mrb[0].mxu0
    %v3878 = vadd.f32 %v3765, %v3877
    %v3879 = vpop.f32.mrb[0].mxu0
    %v3880 = vadd.f32 %v3767, %v3879
    %v3881 = vpop.f32.mrb[0].mxu0
    %v3882 = vadd.f32 %v3769, %v3881
    %v3883 = vpop.f32.mrb[0].mxu0
    %v3884 = vadd.f32 %v3771, %v3883
    %3885 = vmatprep.mubr.bf16.mxu0 %v1007
    %3886 = vmatmul.mubr.bf16.gmra.mrb[0].mxu0 %v1006
    %v3887 = vpop.f32.mrb[0].mxu0
    %v3888 = vadd.f32 %v3775, %v3887
    %v3889 = vpop.f32.mrb[0].mxu0
    %v3890 = vadd.f32 %v3777, %v3889
    %v3891 = vpop.f32.mrb[0].mxu0
    %v3892 = vadd.f32 %v3779, %v3891
    %v3893 = vpop.f32.mrb[0].mxu0
    %v3894 = vadd.f32 %v3781, %v3893
    %3895 = vdwg.mxu0
    %3896 = vmatprep.subr.bf16.mxu0 %v2229
    %3897 = vmatpush1.bf16.msra.mxu0 %v2228
    %3898 = vmatprep.subr.bf16.mxu0 %v2235
    %3899 = vmatpush1.bf16.msra.mxu0 %v2234
    %3900 = vmatprep.subr.bf16.mxu0 %v2241
    %3901 = vmatpush1.bf16.msra.mxu0 %v2240
    %3902 = vmatprep.subr.bf16.mxu0 %v2247
    %3903 = vmatpush1.bf16.msra.mxu0 %v2246
    %3904 = vmatprep.subr.bf16.mxu0 %v2253
    %3905 = vmatpush1.bf16.msra.mxu0 %v2252
    %3906 = vmatprep.subr.bf16.mxu0 %v2259
    %3907 = vmatpush1.bf16.msra.mxu0 %v2258
    %3908 = vmatprep.subr.bf16.mxu0 %v2265
    %3909 = vmatpush1.bf16.msra.mxu0 %v2264
    %3910 = vmatprep.subr.bf16.mxu0 %v2271
    %3911 = vmatpush1.bf16.msra.mxu0 %v2270
    %3912 = vmatprep.subr.bf16.mxu0 %v2277
    %3913 = vmatpush1.bf16.msra.mxu0 %v2276
    %3914 = vmatprep.subr.bf16.mxu0 %v2283
    %3915 = vmatpush1.bf16.msra.mxu0 %v2282
    %3916 = vmatprep.subr.bf16.mxu0 %v2289
    %3917 = vmatpush1.bf16.msra.mxu0 %v2288
    %3918 = vmatprep.subr.bf16.mxu0 %v2295
    %3919 = vmatpush1.bf16.msra.mxu0 %v2294
    %3920 = vmatprep.subr.bf16.mxu0 %v2301
    %3921 = vmatpush1.bf16.msra.mxu0 %v2300
    %3922 = vmatprep.subr.bf16.mxu0 %v2307
    %3923 = vmatpush1.bf16.msra.mxu0 %v2306
    %3924 = vmatprep.subr.bf16.mxu0 %v2313
    %3925 = vmatpush1.bf16.msra.mxu0 %v2312
    %3926 = vmatprep.subr.bf16.mxu0 %v2319
    %3927 = vmatpush1.bf16.msra.mxu0 %v2318
    %3928 = vmatprep.mubr.bf16.mxu0 %v945
    %3929 = vmatmul.mubr.bf16.gmra.mrb[0].mxu0 %v944
    %v3930 = vpop.f32.mrb[0].mxu0
    %v3931 = vadd.f32 %v741, %v3930
    %v3932 = vpop.f32.mrb[0].mxu0
    %v3933 = vadd.f32 %v745, %v3932
    %v3934 = vpop.f32.mrb[0].mxu0
    %v3935 = vadd.f32 %v741, %v3934
    %v3936 = vpop.f32.mrb[0].mxu0
    %v3937 = vadd.f32 %v745, %v3936
    %3938 = vmatprep.mubr.bf16.mxu0 %v953
    %3939 = vmatmul.mubr.bf16.gmra.mrb[0].mxu0 %v952
    %v3940 = vpop.f32.mrb[0].mxu0
    %v3941 = vadd.f32 %v741, %v3940
    %v3942 = vpop.f32.mrb[0].mxu0
    %v3943 = vadd.f32 %v745, %v3942
    %v3944 = vpop.f32.mrb[0].mxu0
    %v3945 = vadd.f32 %v741, %v3944
    %v3946 = vpop.f32.mrb[0].mxu0
    %v3947 = vadd.f32 %v745, %v3946
    %3948 = vmatprep.mubr.bf16.mxu0 %v961
    %3949 = vmatmul.mubr.bf16.gmra.mrb[0].mxu0 %v960
    %v3950 = vpop.f32.mrb[0].mxu0
    %v3951 = vadd.f32 %v741, %v3950
    %v3952 = vpop.f32.mrb[0].mxu0
    %v3953 = vadd.f32 %v745, %v3952
    %v3954 = vpop.f32.mrb[0].mxu0
    %v3955 = vadd.f32 %v741, %v3954
    %v3956 = vpop.f32.mrb[0].mxu0
    %v3957 = vadd.f32 %v745, %v3956
    %3958 = vmatprep.mubr.bf16.mxu0 %v969
    %3959 = vmatmul.mubr.bf16.gmra.mrb[0].mxu0 %v968
    %v3960 = vpop.f32.mrb[0].mxu0
    %v3961 = vadd.f32 %v741, %v3960
    %v3962 = vpop.f32.mrb[0].mxu0
    %v3963 = vadd.f32 %v745, %v3962
    %v3964 = vpop.f32.mrb[0].mxu0
    %v3965 = vadd.f32 %v741, %v3964
    %v3966 = vpop.f32.mrb[0].mxu0
    %v3967 = vadd.f32 %v745, %v3966
    %3968 = vmatprep.mubr.bf16.mxu0 %v977
    %3969 = vmatmul.mubr.bf16.gmra.mrb[0].mxu0 %v976
    %v3970 = vpop.f32.mrb[0].mxu0
    %v3971 = vadd.f32 %v741, %v3970
    %v3972 = vpop.f32.mrb[0].mxu0
    %v3973 = vadd.f32 %v745, %v3972
    %v3974 = vpop.f32.mrb[0].mxu0
    %v3975 = vadd.f32 %v741, %v3974
    %v3976 = vpop.f32.mrb[0].mxu0
    %v3977 = vadd.f32 %v745, %v3976
    %3978 = vmatprep.mubr.bf16.mxu0 %v985
    %3979 = vmatmul.mubr.bf16.gmra.mrb[0].mxu0 %v984
    %v3980 = vpop.f32.mrb[0].mxu0
    %v3981 = vadd.f32 %v741, %v3980
    %v3982 = vpop.f32.mrb[0].mxu0
    %v3983 = vadd.f32 %v745, %v3982
    %v3984 = vpop.f32.mrb[0].mxu0
    %v3985 = vadd.f32 %v741, %v3984
    %v3986 = vpop.f32.mrb[0].mxu0
    %v3987 = vadd.f32 %v745, %v3986
    %3988 = vmatprep.mubr.bf16.mxu0 %v993
    %3989 = vmatmul.mubr.bf16.gmra.mrb[0].mxu0 %v992
    %v3990 = vpop.f32.mrb[0].mxu0
    %v3991 = vadd.f32 %v741, %v3990
    %v3992 = vpop.f32.mrb[0].mxu0
    %v3993 = vadd.f32 %v745, %v3992
    %v3994 = vpop.f32.mrb[0].mxu0
    %v3995 = vadd.f32 %v741, %v3994
    %v3996 = vpop.f32.mrb[0].mxu0
    %v3997 = vadd.f32 %v745, %v3996
    %3998 = vmatprep.mubr.bf16.mxu0 %v1001
    %3999 = vmatmul.mubr.bf16.gmra.mrb[0].mxu0 %v1000
    %v4000 = vpop.f32.mrb[0].mxu0
    %v4001 = vadd.f32 %v741, %v4000
    %v4002 = vpop.f32.mrb[0].mxu0
    %v4003 = vadd.f32 %v745, %v4002
    %v4004 = vpop.f32.mrb[0].mxu0
    %v4005 = vadd.f32 %v741, %v4004
    %v4006 = vpop.f32.mrb[0].mxu0
    %v4007 = vadd.f32 %v745, %v4006
    %4008 = vdwg.mxu0
    %4009 = vmatprep.subr.bf16.mxu0 %v2325
    %4010 = vmatpush1.bf16.msra.mxu0 %v2324
    %4011 = vmatprep.subr.bf16.mxu0 %v2331
    %4012 = vmatpush1.bf16.msra.mxu0 %v2330
    %4013 = vmatprep.subr.bf16.mxu0 %v2337
    %4014 = vmatpush1.bf16.msra.mxu0 %v2336
    %4015 = vmatprep.subr.bf16.mxu0 %v2343
    %4016 = vmatpush1.bf16.msra.mxu0 %v2342
    %4017 = vmatprep.subr.bf16.mxu0 %v2349
    %4018 = vmatpush1.bf16.msra.mxu0 %v2348
    %4019 = vmatprep.subr.bf16.mxu0 %v2355
    %4020 = vmatpush1.bf16.msra.mxu0 %v2354
    %4021 = vmatprep.subr.bf16.mxu0 %v2361
    %4022 = vmatpush1.bf16.msra.mxu0 %v2360
    %4023 = vmatprep.subr.bf16.mxu0 %v2367
    %4024 = vmatpush1.bf16.msra.mxu0 %v2366
    %4025 = vmatprep.subr.bf16.mxu0 %v2373
    %4026 = vmatpush1.bf16.msra.mxu0 %v2372
    %4027 = vmatprep.subr.bf16.mxu0 %v2379
    %4028 = vmatpush1.bf16.msra.mxu0 %v2378
    %4029 = vmatprep.subr.bf16.mxu0 %v2385
    %4030 = vmatpush1.bf16.msra.mxu0 %v2384
    %4031 = vmatprep.subr.bf16.mxu0 %v2391
    %4032 = vmatpush1.bf16.msra.mxu0 %v2390
    %4033 = vmatprep.subr.bf16.mxu0 %v2397
    %4034 = vmatpush1.bf16.msra.mxu0 %v2396
    %4035 = vmatprep.subr.bf16.mxu0 %v2403
    %4036 = vmatpush1.bf16.msra.mxu0 %v2402
    %4037 = vmatprep.subr.bf16.mxu0 %v2409
    %4038 = vmatpush1.bf16.msra.mxu0 %v2408
    %4039 = vmatprep.subr.bf16.mxu0 %v2415
    %4040 = vmatpush1.bf16.msra.mxu0 %v2414
    %4041 = vmatprep.mubr.bf16.mxu0 %v947
    %4042 = vmatmul.mubr.bf16.gmra.mrb[0].mxu0 %v946
    %v4043 = vpop.f32.mrb[0].mxu0
    %v4044 = vadd.f32 %v3931, %v4043
    %v4045 = vpop.f32.mrb[0].mxu0
    %v4046 = vadd.f32 %v3933, %v4045
    %v4047 = vpop.f32.mrb[0].mxu0
    %v4048 = vadd.f32 %v3935, %v4047
    %v4049 = vpop.f32.mrb[0].mxu0
    %v4050 = vadd.f32 %v3937, %v4049
    %4051 = vmatprep.mubr.bf16.mxu0 %v955
    %4052 = vmatmul.mubr.bf16.gmra.mrb[0].mxu0 %v954
    %v4053 = vpop.f32.mrb[0].mxu0
    %v4054 = vadd.f32 %v3941, %v4053
    %v4055 = vpop.f32.mrb[0].mxu0
    %v4056 = vadd.f32 %v3943, %v4055
    %v4057 = vpop.f32.mrb[0].mxu0
    %v4058 = vadd.f32 %v3945, %v4057
    %v4059 = vpop.f32.mrb[0].mxu0
    %v4060 = vadd.f32 %v3947, %v4059
    %4061 = vmatprep.mubr.bf16.mxu0 %v963
    %4062 = vmatmul.mubr.bf16.gmra.mrb[0].mxu0 %v962
    %v4063 = vpop.f32.mrb[0].mxu0
    %v4064 = vadd.f32 %v3951, %v4063
    %v4065 = vpop.f32.mrb[0].mxu0
    %v4066 = vadd.f32 %v3953, %v4065
    %v4067 = vpop.f32.mrb[0].mxu0
    %v4068 = vadd.f32 %v3955, %v4067
    %v4069 = vpop.f32.mrb[0].mxu0
    %v4070 = vadd.f32 %v3957, %v4069
    %4071 = vmatprep.mubr.bf16.mxu0 %v971
    %4072 = vmatmul.mubr.bf16.gmra.mrb[0].mxu0 %v970
    %v4073 = vpop.f32.mrb[0].mxu0
    %v4074 = vadd.f32 %v3961, %v4073
    %v4075 = vpop.f32.mrb[0].mxu0
    %v4076 = vadd.f32 %v3963, %v4075
    %v4077 = vpop.f32.mrb[0].mxu0
    %v4078 = vadd.f32 %v3965, %v4077
    %v4079 = vpop.f32.mrb[0].mxu0
    %v4080 = vadd.f32 %v3967, %v4079
    %4081 = vmatprep.mubr.bf16.mxu0 %v979
    %4082 = vmatmul.mubr.bf16.gmra.mrb[0].mxu0 %v978
    %v4083 = vpop.f32.mrb[0].mxu0
    %v4084 = vadd.f32 %v3971, %v4083
    %v4085 = vpop.f32.mrb[0].mxu0
    %v4086 = vadd.f32 %v3973, %v4085
    %v4087 = vpop.f32.mrb[0].mxu0
    %v4088 = vadd.f32 %v3975, %v4087
    %v4089 = vpop.f32.mrb[0].mxu0
    %v4090 = vadd.f32 %v3977, %v4089
    %4091 = vmatprep.mubr.bf16.mxu0 %v987
    %4092 = vmatmul.mubr.bf16.gmra.mrb[0].mxu0 %v986
    %v4093 = vpop.f32.mrb[0].mxu0
    %v4094 = vadd.f32 %v3981, %v4093
    %v4095 = vpop.f32.mrb[0].mxu0
    %v4096 = vadd.f32 %v3983, %v4095
    %v4097 = vpop.f32.mrb[0].mxu0
    %v4098 = vadd.f32 %v3985, %v4097
    %v4099 = vpop.f32.mrb[0].mxu0
    %v4100 = vadd.f32 %v3987, %v4099
    %4101 = vmatprep.mubr.bf16.mxu0 %v995
    %4102 = vmatmul.mubr.bf16.gmra.mrb[0].mxu0 %v994
    %v4103 = vpop.f32.mrb[0].mxu0
    %v4104 = vadd.f32 %v3991, %v4103
    %v4105 = vpop.f32.mrb[0].mxu0
    %v4106 = vadd.f32 %v3993, %v4105
    %v4107 = vpop.f32.mrb[0].mxu0
    %v4108 = vadd.f32 %v3995, %v4107
    %v4109 = vpop.f32.mrb[0].mxu0
    %v4110 = vadd.f32 %v3997, %v4109
    %4111 = vmatprep.mubr.bf16.mxu0 %v1003
    %4112 = vmatmul.mubr.bf16.gmra.mrb[0].mxu0 %v1002
    %v4113 = vpop.f32.mrb[0].mxu0
    %v4114 = vadd.f32 %v4001, %v4113
    %v4115 = vpop.f32.mrb[0].mxu0
    %v4116 = vadd.f32 %v4003, %v4115
    %v4117 = vpop.f32.mrb[0].mxu0
    %v4118 = vadd.f32 %v4005, %v4117
    %v4119 = vpop.f32.mrb[0].mxu0
    %v4120 = vadd.f32 %v4007, %v4119
    %4121 = vdwg.mxu0
    %4122 = vmatprep.subr.bf16.mxu0 %v2421
    %4123 = vmatpush1.bf16.msra.mxu0 %v2420
    %4124 = vmatprep.subr.bf16.mxu0 %v2427
    %4125 = vmatpush1.bf16.msra.mxu0 %v2426
    %4126 = vmatprep.subr.bf16.mxu0 %v2433
    %4127 = vmatpush1.bf16.msra.mxu0 %v2432
    %4128 = vmatprep.subr.bf16.mxu0 %v2439
    %4129 = vmatpush1.bf16.msra.mxu0 %v2438
    %4130 = vmatprep.subr.bf16.mxu0 %v2445
    %4131 = vmatpush1.bf16.msra.mxu0 %v2444
    %4132 = vmatprep.subr.bf16.mxu0 %v2451
    %4133 = vmatpush1.bf16.msra.mxu0 %v2450
    %4134 = vmatprep.subr.bf16.mxu0 %v2457
    %4135 = vmatpush1.bf16.msra.mxu0 %v2456
    %4136 = vmatprep.subr.bf16.mxu0 %v2463
    %4137 = vmatpush1.bf16.msra.mxu0 %v2462
    %4138 = vmatprep.subr.bf16.mxu0 %v2469
    %4139 = vmatpush1.bf16.msra.mxu0 %v2468
    %4140 = vmatprep.subr.bf16.mxu0 %v2475
    %4141 = vmatpush1.bf16.msra.mxu0 %v2474
    %4142 = vmatprep.subr.bf16.mxu0 %v2481
    %4143 = vmatpush1.bf16.msra.mxu0 %v2480
    %4144 = vmatprep.subr.bf16.mxu0 %v2487
    %4145 = vmatpush1.bf16.msra.mxu0 %v2486
    %4146 = vmatprep.subr.bf16.mxu0 %v2493
    %4147 = vmatpush1.bf16.msra.mxu0 %v2492
    %4148 = vmatprep.subr.bf16.mxu0 %v2499
    %4149 = vmatpush1.bf16.msra.mxu0 %v2498
    %4150 = vmatprep.subr.bf16.mxu0 %v2505
    %4151 = vmatpush1.bf16.msra.mxu0 %v2504
    %4152 = vmatprep.subr.bf16.mxu0 %v2511
    %4153 = vmatpush1.bf16.msra.mxu0 %v2510
    %4154 = vmatprep.mubr.bf16.mxu0 %v949
    %4155 = vmatmul.mubr.bf16.gmra.mrb[0].mxu0 %v948
    %v4156 = vpop.f32.mrb[0].mxu0
    %v4157 = vadd.f32 %v4044, %v4156
    %v4158 = vpop.f32.mrb[0].mxu0
    %v4159 = vadd.f32 %v4046, %v4158
    %v4160 = vpop.f32.mrb[0].mxu0
    %v4161 = vadd.f32 %v4048, %v4160
    %v4162 = vpop.f32.mrb[0].mxu0
    %v4163 = vadd.f32 %v4050, %v4162
    %4164 = vmatprep.mubr.bf16.mxu0 %v957
    %4165 = vmatmul.mubr.bf16.gmra.mrb[0].mxu0 %v956
    %v4166 = vpop.f32.mrb[0].mxu0
    %v4167 = vadd.f32 %v4054, %v4166
    %v4168 = vpop.f32.mrb[0].mxu0
    %v4169 = vadd.f32 %v4056, %v4168
    %v4170 = vpop.f32.mrb[0].mxu0
    %v4171 = vadd.f32 %v4058, %v4170
    %v4172 = vpop.f32.mrb[0].mxu0
    %v4173 = vadd.f32 %v4060, %v4172
    %4174 = vmatprep.mubr.bf16.mxu0 %v965
    %4175 = vmatmul.mubr.bf16.gmra.mrb[0].mxu0 %v964
    %v4176 = vpop.f32.mrb[0].mxu0
    %v4177 = vadd.f32 %v4064, %v4176
    %v4178 = vpop.f32.mrb[0].mxu0
    %v4179 = vadd.f32 %v4066, %v4178
    %v4180 = vpop.f32.mrb[0].mxu0
    %v4181 = vadd.f32 %v4068, %v4180
    %v4182 = vpop.f32.mrb[0].mxu0
    %v4183 = vadd.f32 %v4070, %v4182
    %4184 = vmatprep.mubr.bf16.mxu0 %v973
    %4185 = vmatmul.mubr.bf16.gmra.mrb[0].mxu0 %v972
    %v4186 = vpop.f32.mrb[0].mxu0
    %v4187 = vadd.f32 %v4074, %v4186
    %v4188 = vpop.f32.mrb[0].mxu0
    %v4189 = vadd.f32 %v4076, %v4188
    %v4190 = vpop.f32.mrb[0].mxu0
    %v4191 = vadd.f32 %v4078, %v4190
    %v4192 = vpop.f32.mrb[0].mxu0
    %v4193 = vadd.f32 %v4080, %v4192
    %4194 = vmatprep.mubr.bf16.mxu0 %v981
    %4195 = vmatmul.mubr.bf16.gmra.mrb[0].mxu0 %v980
    %v4196 = vpop.f32.mrb[0].mxu0
    %v4197 = vadd.f32 %v4084, %v4196
    %v4198 = vpop.f32.mrb[0].mxu0
    %v4199 = vadd.f32 %v4086, %v4198
    %v4200 = vpop.f32.mrb[0].mxu0
    %v4201 = vadd.f32 %v4088, %v4200
    %v4202 = vpop.f32.mrb[0].mxu0
    %v4203 = vadd.f32 %v4090, %v4202
    %4204 = vmatprep.mubr.bf16.mxu0 %v989
    %4205 = vmatmul.mubr.bf16.gmra.mrb[0].mxu0 %v988
    %v4206 = vpop.f32.mrb[0].mxu0
    %v4207 = vadd.f32 %v4094, %v4206
    %v4208 = vpop.f32.mrb[0].mxu0
    %v4209 = vadd.f32 %v4096, %v4208
    %v4210 = vpop.f32.mrb[0].mxu0
    %v4211 = vadd.f32 %v4098, %v4210
    %v4212 = vpop.f32.mrb[0].mxu0
    %v4213 = vadd.f32 %v4100, %v4212
    %4214 = vmatprep.mubr.bf16.mxu0 %v997
    %4215 = vmatmul.mubr.bf16.gmra.mrb[0].mxu0 %v996
    %v4216 = vpop.f32.mrb[0].mxu0
    %v4217 = vadd.f32 %v4104, %v4216
    %v4218 = vpop.f32.mrb[0].mxu0
    %v4219 = vadd.f32 %v4106, %v4218
    %v4220 = vpop.f32.mrb[0].mxu0
    %v4221 = vadd.f32 %v4108, %v4220
    %v4222 = vpop.f32.mrb[0].mxu0
    %v4223 = vadd.f32 %v4110, %v4222
    %4224 = vmatprep.mubr.bf16.mxu0 %v1005
    %4225 = vmatmul.mubr.bf16.gmra.mrb[0].mxu0 %v1004
    %v4226 = vpop.f32.mrb[0].mxu0
    %v4227 = vadd.f32 %v4114, %v4226
    %v4228 = vpop.f32.mrb[0].mxu0
    %v4229 = vadd.f32 %v4116, %v4228
    %v4230 = vpop.f32.mrb[0].mxu0
    %v4231 = vadd.f32 %v4118, %v4230
    %v4232 = vpop.f32.mrb[0].mxu0
    %v4233 = vadd.f32 %v4120, %v4232
    %4234 = vdwg.mxu0
    %4235 = vmatprep.subr.bf16.mxu0 %v2517
    %4236 = vmatpush1.bf16.msra.mxu0 %v2516
    %4237 = vmatprep.subr.bf16.mxu0 %v2523
    %4238 = vmatpush1.bf16.msra.mxu0 %v2522
    %4239 = vmatprep.subr.bf16.mxu0 %v2529
    %4240 = vmatpush1.bf16.msra.mxu0 %v2528
    %4241 = vmatprep.subr.bf16.mxu0 %v2535
    %4242 = vmatpush1.bf16.msra.mxu0 %v2534
    %4243 = vmatprep.subr.bf16.mxu0 %v2541
    %4244 = vmatpush1.bf16.msra.mxu0 %v2540
    %4245 = vmatprep.subr.bf16.mxu0 %v2547
    %4246 = vmatpush1.bf16.msra.mxu0 %v2546
    %4247 = vmatprep.subr.bf16.mxu0 %v2553
    %4248 = vmatpush1.bf16.msra.mxu0 %v2552
    %4249 = vmatprep.subr.bf16.mxu0 %v2559
    %4250 = vmatpush1.bf16.msra.mxu0 %v2558
    %4251 = vmatprep.subr.bf16.mxu0 %v2565
    %4252 = vmatpush1.bf16.msra.mxu0 %v2564
    %4253 = vmatprep.subr.bf16.mxu0 %v2571
    %4254 = vmatpush1.bf16.msra.mxu0 %v2570
    %4255 = vmatprep.subr.bf16.mxu0 %v2577
    %4256 = vmatpush1.bf16.msra.mxu0 %v2576
    %4257 = vmatprep.subr.bf16.mxu0 %v2583
    %4258 = vmatpush1.bf16.msra.mxu0 %v2582
    %4259 = vmatprep.subr.bf16.mxu0 %v2589
    %4260 = vmatpush1.bf16.msra.mxu0 %v2588
    %4261 = vmatprep.subr.bf16.mxu0 %v2595
    %4262 = vmatpush1.bf16.msra.mxu0 %v2594
    %4263 = vmatprep.subr.bf16.mxu0 %v2601
    %4264 = vmatpush1.bf16.msra.mxu0 %v2600
    %4265 = vmatprep.subr.bf16.mxu0 %v2607
    %4266 = vmatpush1.bf16.msra.mxu0 %v2606
    %4267 = vmatprep.mubr.bf16.mxu0 %v951
    %4268 = vmatmul.mubr.bf16.gmra.mrb[0].mxu0 %v950
    %v4269 = vpop.f32.mrb[0].mxu0
    %v4270 = vadd.f32 %v4157, %v4269
    %v4271 = vpop.f32.mrb[0].mxu0
    %v4272 = vadd.f32 %v4159, %v4271
    %v4273 = vpop.f32.mrb[0].mxu0
    %v4274 = vadd.f32 %v4161, %v4273
    %v4275 = vpop.f32.mrb[0].mxu0
    %v4276 = vadd.f32 %v4163, %v4275
    %4277 = vmatprep.mubr.bf16.mxu0 %v959
    %4278 = vmatmul.mubr.bf16.gmra.mrb[0].mxu0 %v958
    %v4279 = vpop.f32.mrb[0].mxu0
    %v4280 = vadd.f32 %v4167, %v4279
    %v4281 = vpop.f32.mrb[0].mxu0
    %v4282 = vadd.f32 %v4169, %v4281
    %v4283 = vpop.f32.mrb[0].mxu0
    %v4284 = vadd.f32 %v4171, %v4283
    %v4285 = vpop.f32.mrb[0].mxu0
    %v4286 = vadd.f32 %v4173, %v4285
    %4287 = vmatprep.mubr.bf16.mxu0 %v967
    %4288 = vmatmul.mubr.bf16.gmra.mrb[0].mxu0 %v966
    %v4289 = vpop.f32.mrb[0].mxu0
    %v4290 = vadd.f32 %v4177, %v4289
    %v4291 = vpop.f32.mrb[0].mxu0
    %v4292 = vadd.f32 %v4179, %v4291
    %v4293 = vpop.f32.mrb[0].mxu0
    %v4294 = vadd.f32 %v4181, %v4293
    %v4295 = vpop.f32.mrb[0].mxu0
    %v4296 = vadd.f32 %v4183, %v4295
    %4297 = vmatprep.mubr.bf16.mxu0 %v975
    %4298 = vmatmul.mubr.bf16.gmra.mrb[0].mxu0 %v974
    %v4299 = vpop.f32.mrb[0].mxu0
    %v4300 = vadd.f32 %v4187, %v4299
    %v4301 = vpop.f32.mrb[0].mxu0
    %v4302 = vadd.f32 %v4189, %v4301
    %v4303 = vpop.f32.mrb[0].mxu0
    %v4304 = vadd.f32 %v4191, %v4303
    %v4305 = vpop.f32.mrb[0].mxu0
    %v4306 = vadd.f32 %v4193, %v4305
    %4307 = vmatprep.mubr.bf16.mxu0 %v983
    %4308 = vmatmul.mubr.bf16.gmra.mrb[0].mxu0 %v982
    %v4309 = vpop.f32.mrb[0].mxu0
    %v4310 = vadd.f32 %v4197, %v4309
    %v4311 = vpop.f32.mrb[0].mxu0
    %v4312 = vadd.f32 %v4199, %v4311
    %v4313 = vpop.f32.mrb[0].mxu0
    %v4314 = vadd.f32 %v4201, %v4313
    %v4315 = vpop.f32.mrb[0].mxu0
    %v4316 = vadd.f32 %v4203, %v4315
    %4317 = vmatprep.mubr.bf16.mxu0 %v991
    %4318 = vmatmul.mubr.bf16.gmra.mrb[0].mxu0 %v990
    %v4319 = vpop.f32.mrb[0].mxu0
    %v4320 = vadd.f32 %v4207, %v4319
    %v4321 = vpop.f32.mrb[0].mxu0
    %v4322 = vadd.f32 %v4209, %v4321
    %v4323 = vpop.f32.mrb[0].mxu0
    %v4324 = vadd.f32 %v4211, %v4323
    %v4325 = vpop.f32.mrb[0].mxu0
    %v4326 = vadd.f32 %v4213, %v4325
    %4327 = vmatprep.mubr.bf16.mxu0 %v999
    %4328 = vmatmul.mubr.bf16.gmra.mrb[0].mxu0 %v998
    %v4329 = vpop.f32.mrb[0].mxu0
    %v4330 = vadd.f32 %v4217, %v4329
    %v4331 = vpop.f32.mrb[0].mxu0
    %v4332 = vadd.f32 %v4219, %v4331
    %v4333 = vpop.f32.mrb[0].mxu0
    %v4334 = vadd.f32 %v4221, %v4333
    %v4335 = vpop.f32.mrb[0].mxu0
    %v4336 = vadd.f32 %v4223, %v4335
    %4337 = vmatprep.mubr.bf16.mxu0 %v1007
    %4338 = vmatmul.mubr.bf16.gmra.mrb[0].mxu0 %v1006
    %v4339 = vpop.f32.mrb[0].mxu0
    %v4340 = vadd.f32 %v4227, %v4339
    %v4341 = vpop.f32.mrb[0].mxu0
    %v4342 = vadd.f32 %v4229, %v4341
    %v4343 = vpop.f32.mrb[0].mxu0
    %v4344 = vadd.f32 %v4231, %v4343
    %v4345 = vpop.f32.mrb[0].mxu0
    %v4346 = vadd.f32 %v4233, %v4345
    %4347 = vdwg.mxu0
    %v4348 = vmax.f32 %v3366, 0.0
    %v4349 = vmax.f32 %v3368, 0.0
    %v4350 = vmax.f32 %v3818, 0.0
    %v4351 = vmax.f32 %v3820, 0.0
    %v4352 = vmax.f32 %v4270, 0.0
    %v4353 = vmax.f32 %v4272, 0.0
    %v4354 = vmax.f32 %v3370, 0.0
    %v4355 = vmax.f32 %v3372, 0.0
    %v4356 = vmax.f32 %v3822, 0.0
    %v4357 = vmax.f32 %v3824, 0.0
    %v4358 = vmax.f32 %v4274, 0.0
    %v4359 = vmax.f32 %v4276, 0.0
    %v4360 = vmax.f32 %v3376, 0.0
    %v4361 = vmax.f32 %v3378, 0.0
    %v4362 = vmax.f32 %v3828, 0.0
    %v4363 = vmax.f32 %v3830, 0.0
    %v4364 = vmax.f32 %v4280, 0.0
    %v4365 = vmax.f32 %v4282, 0.0
    %v4366 = vmax.f32 %v3380, 0.0
    %v4367 = vmax.f32 %v3382, 0.0
    %v4368 = vmax.f32 %v3832, 0.0
    %v4369 = vmax.f32 %v3834, 0.0
    %v4370 = vmax.f32 %v4284, 0.0
    %v4371 = vmax.f32 %v4286, 0.0
    %v4372 = vmax.f32 %v3386, 0.0
    %v4373 = vmax.f32 %v3388, 0.0
    %v4374 = vmax.f32 %v3838, 0.0
    %v4375 = vmax.f32 %v3840, 0.0
    %v4376 = vmax.f32 %v4290, 0.0
    %v4377 = vmax.f32 %v4292, 0.0
    %v4378 = vmax.f32 %v3390, 0.0
    %v4379 = vmax.f32 %v3392, 0.0
    %v4380 = vmax.f32 %v3842, 0.0
    %v4381 = vmax.f32 %v3844, 0.0
    %v4382 = vmax.f32 %v4294, 0.0
    %v4383 = vmax.f32 %v4296, 0.0
    %v4384 = vmax.f32 %v3396, 0.0
    %v4385 = vmax.f32 %v3398, 0.0
    %v4386 = vmax.f32 %v3848, 0.0
    %v4387 = vmax.f32 %v3850, 0.0
    %v4388 = vmax.f32 %v4300, 0.0
    %v4389 = vmax.f32 %v4302, 0.0
    %v4390 = vmax.f32 %v3400, 0.0
    %v4391 = vmax.f32 %v3402, 0.0
    %v4392 = vmax.f32 %v3852, 0.0
    %v4393 = vmax.f32 %v3854, 0.0
    %v4394 = vmax.f32 %v4304, 0.0
    %v4395 = vmax.f32 %v4306, 0.0
    %v4396 = vmax.f32 %v3406, 0.0
    %v4397 = vmax.f32 %v3408, 0.0
    %v4398 = vmax.f32 %v3858, 0.0
    %v4399 = vmax.f32 %v3860, 0.0
    %v4400 = vmax.f32 %v4310, 0.0
    %v4401 = vmax.f32 %v4312, 0.0
    %v4402 = vmax.f32 %v3410, 0.0
    %v4403 = vmax.f32 %v3412, 0.0
    %v4404 = vmax.f32 %v3862, 0.0
    %v4405 = vmax.f32 %v3864, 0.0
    %v4406 = vmax.f32 %v4314, 0.0
    %v4407 = vmax.f32 %v4316, 0.0
    %v4408 = vmax.f32 %v3416, 0.0
    %v4409 = vmax.f32 %v3418, 0.0
    %v4410 = vmax.f32 %v3868, 0.0
    %v4411 = vmax.f32 %v3870, 0.0
    %v4412 = vmax.f32 %v4320, 0.0
    %v4413 = vmax.f32 %v4322, 0.0
    %v4414 = vmax.f32 %v3420, 0.0
    %v4415 = vmax.f32 %v3422, 0.0
    %v4416 = vmax.f32 %v3872, 0.0
    %v4417 = vmax.f32 %v3874, 0.0
    %v4418 = vmax.f32 %v4324, 0.0
    %v4419 = vmax.f32 %v4326, 0.0
    %v4420 = vmax.f32 %v3426, 0.0
    %v4421 = vmax.f32 %v3428, 0.0
    %v4422 = vmax.f32 %v3878, 0.0
    %v4423 = vmax.f32 %v3880, 0.0
    %v4424 = vmax.f32 %v4330, 0.0
    %v4425 = vmax.f32 %v4332, 0.0
    %v4426 = vmax.f32 %v3430, 0.0
    %v4427 = vmax.f32 %v3432, 0.0
    %v4428 = vmax.f32 %v3882, 0.0
    %v4429 = vmax.f32 %v3884, 0.0
    %v4430 = vmax.f32 %v4334, 0.0
    %v4431 = vmax.f32 %v4336, 0.0
    %v4432 = vmax.f32 %v3436, 0.0
    %v4433 = vmax.f32 %v3438, 0.0
    %v4434 = vmax.f32 %v3888, 0.0
    %v4435 = vmax.f32 %v3890, 0.0
    %v4436 = vmax.f32 %v4340, 0.0
    %v4437 = vmax.f32 %v4342, 0.0
    %v4438 = vmax.f32 %v3440, 0.0
    %v4439 = vmax.f32 %v3442, 0.0
    %v4440 = vmax.f32 %v3892, 0.0
    %v4441 = vmax.f32 %v3894, 0.0
    %v4442 = vmax.f32 %v4344, 0.0
    %v4443 = vmax.f32 %v4346, 0.0
    %v4444 = vpack.c.bf16 %v4354, %v4348
    %v4445 = vpack.c.bf16 %v4355, %v4349
    %v4446 = vpack.c.bf16 %v4356, %v4350
    %v4447 = vpack.c.bf16 %v4357, %v4351
    %v4448 = vpack.c.bf16 %v4358, %v4352
    %v4449 = vpack.c.bf16 %v4359, %v4353
    %v4450 = vpack.c.bf16 %v4366, %v4360
    %v4451 = vpack.c.bf16 %v4367, %v4361
    %v4452 = vpack.c.bf16 %v4368, %v4362
    %v4453 = vpack.c.bf16 %v4369, %v4363
    %v4454 = vpack.c.bf16 %v4370, %v4364
    %v4455 = vpack.c.bf16 %v4371, %v4365
    %v4456 = vpack.c.bf16 %v4378, %v4372
    %v4457 = vpack.c.bf16 %v4379, %v4373
    %v4458 = vpack.c.bf16 %v4380, %v4374
    %v4459 = vpack.c.bf16 %v4381, %v4375
    %v4460 = vpack.c.bf16 %v4382, %v4376
    %v4461 = vpack.c.bf16 %v4383, %v4377
    %v4462 = vpack.c.bf16 %v4390, %v4384
    %v4463 = vpack.c.bf16 %v4391, %v4385
    %v4464 = vpack.c.bf16 %v4392, %v4386
    %v4465 = vpack.c.bf16 %v4393, %v4387
    %v4466 = vpack.c.bf16 %v4394, %v4388
    %v4467 = vpack.c.bf16 %v4395, %v4389
    %v4468 = vpack.c.bf16 %v4402, %v4396
    %v4469 = vpack.c.bf16 %v4403, %v4397
    %v4470 = vpack.c.bf16 %v4404, %v4398
    %v4471 = vpack.c.bf16 %v4405, %v4399
    %v4472 = vpack.c.bf16 %v4406, %v4400
    %v4473 = vpack.c.bf16 %v4407, %v4401
    %v4474 = vpack.c.bf16 %v4414, %v4408
    %v4475 = vpack.c.bf16 %v4415, %v4409
    %v4476 = vpack.c.bf16 %v4416, %v4410
    %v4477 = vpack.c.bf16 %v4417, %v4411
    %v4478 = vpack.c.bf16 %v4418, %v4412
    %v4479 = vpack.c.bf16 %v4419, %v4413
    %v4480 = vpack.c.bf16 %v4426, %v4420
    %v4481 = vpack.c.bf16 %v4427, %v4421
    %v4482 = vpack.c.bf16 %v4428, %v4422
    %v4483 = vpack.c.bf16 %v4429, %v4423
    %v4484 = vpack.c.bf16 %v4430, %v4424
    %v4485 = vpack.c.bf16 %v4431, %v4425
    %v4486 = vpack.c.bf16 %v4438, %v4432
    %v4487 = vpack.c.bf16 %v4439, %v4433
    %v4488 = vpack.c.bf16 %v4440, %v4434
    %v4489 = vpack.c.bf16 %v4441, %v4435
    %v4490 = vpack.c.bf16 %v4442, %v4436
    %v4491 = vpack.c.bf16 %v4443, %v4437
    %v4492 = vld [vmem:[#allocation8] sm:$0xff]
    %v4493 = vld [vmem:[#allocation8 + $0x8] sm:$0xf]
    %v4494 = vld [vmem:[#allocation8 + $0xc] sm:$0xff]
    %v4495 = vld [vmem:[#allocation8 + $0x14] sm:$0xf]
    %v4496 = vld [vmem:[#allocation8 + $0x18] sm:$0xff]
    %v4497 = vld [vmem:[#allocation8 + $0x20] sm:$0xf]
    %v4498 = vld [vmem:[#allocation8 + $0x24] sm:$0xff]
    %v4499 = vld [vmem:[#allocation8 + $0x2c] sm:$0xf]
    %v4500 = vld [vmem:[#allocation8 + $0x30] sm:$0xff]
    %v4501 = vld [vmem:[#allocation8 + $0x38] sm:$0xf]
    %v4502 = vld [vmem:[#allocation8 + $0x3c] sm:$0xff]
    %v4503 = vld [vmem:[#allocation8 + $0x44] sm:$0xf]
    %v4504 = vld [vmem:[#allocation8 + $0x48] sm:$0xff]
    %v4505 = vld [vmem:[#allocation8 + $0x50] sm:$0xf]
    %v4506 = vld [vmem:[#allocation8 + $0x54] sm:$0xff]
    %v4507 = vld [vmem:[#allocation8 + $0x5c] sm:$0xf]
    %v4508 = vld [vmem:[#allocation8 + $0x60] sm:$0xff]
    %v4509 = vld [vmem:[#allocation8 + $0x68] sm:$0xf]
    %v4510 = vld [vmem:[#allocation8 + $0x6c] sm:$0xff]
    %v4511 = vld [vmem:[#allocation8 + $0x74] sm:$0xf]
    %v4512 = vld [vmem:[#allocation8 + $0x78] sm:$0xff]
    %v4513 = vld [vmem:[#allocation8 + $0x80] sm:$0xf]
    %v4514 = vld [vmem:[#allocation8 + $0x84] sm:$0xff]
    %v4515 = vld [vmem:[#allocation8 + $0x8c] sm:$0xf]
    %v4516 = vld [vmem:[#allocation8 + $0x90] sm:$0xff]
    %v4517 = vld [vmem:[#allocation8 + $0x98] sm:$0xf]
    %v4518 = vld [vmem:[#allocation8 + $0x9c] sm:$0xff]
    %v4519 = vld [vmem:[#allocation8 + $0xa4] sm:$0xf]
    %v4520 = vld [vmem:[#allocation8 + $0xa8] sm:$0xff]
    %v4521 = vld [vmem:[#allocation8 + $0xb0] sm:$0xf]
    %v4522 = vld [vmem:[#allocation8 + $0xb4] sm:$0xff]
    %v4523 = vld [vmem:[#allocation8 + $0xbc] sm:$0xf]
    %v4524 = vld [vmem:[#allocation8 + $0xc0] sm:$0xff]
    %v4525 = vld [vmem:[#allocation8 + $0xc8] sm:$0xf]
    %v4526 = vld [vmem:[#allocation8 + $0xcc] sm:$0xff]
    %v4527 = vld [vmem:[#allocation8 + $0xd4] sm:$0xf]
    %v4528 = vld [vmem:[#allocation8 + $0xd8] sm:$0xff]
    %v4529 = vld [vmem:[#allocation8 + $0xe0] sm:$0xf]
    %v4530 = vld [vmem:[#allocation8 + $0xe4] sm:$0xff]
    %v4531 = vld [vmem:[#allocation8 + $0xec] sm:$0xf]
    %v4532 = vld [vmem:[#allocation8 + $0xf0] sm:$0xff]
    %v4533 = vld [vmem:[#allocation8 + $0xf8] sm:$0xf]
    %v4534 = vld [vmem:[#allocation8 + $0xfc] sm:$0xff]
    %v4535 = vld [vmem:[#allocation8 + $0x104] sm:$0xf]
    %v4536 = vld [vmem:[#allocation8 + $0x108] sm:$0xff]
    %v4537 = vld [vmem:[#allocation8 + $0x110] sm:$0xf]
    %v4538 = vld [vmem:[#allocation8 + $0x114] sm:$0xff]
    %v4539 = vld [vmem:[#allocation8 + $0x11c] sm:$0xf]
    %v4540 = vld [vmem:[#allocation8 + $0x120] sm:$0xff]
    %v4541 = vld [vmem:[#allocation8 + $0x128] sm:$0xf]
    %v4542 = vld [vmem:[#allocation8 + $0x12c] sm:$0xff]
    %v4543 = vld [vmem:[#allocation8 + $0x134] sm:$0xf]
    %v4544 = vld [vmem:[#allocation8 + $0x138] sm:$0xff]
    %v4545 = vld [vmem:[#allocation8 + $0x140] sm:$0xf]
    %v4546 = vld [vmem:[#allocation8 + $0x144] sm:$0xff]
    %v4547 = vld [vmem:[#allocation8 + $0x14c] sm:$0xf]
    %v4548 = vld [vmem:[#allocation8 + $0x150] sm:$0xff]
    %v4549 = vld [vmem:[#allocation8 + $0x158] sm:$0xf]
    %v4550 = vld [vmem:[#allocation8 + $0x15c] sm:$0xff]
    %v4551 = vld [vmem:[#allocation8 + $0x164] sm:$0xf]
    %v4552 = vld [vmem:[#allocation8 + $0x168] sm:$0xff]
    %v4553 = vld [vmem:[#allocation8 + $0x170] sm:$0xf]
    %v4554 = vld [vmem:[#allocation8 + $0x174] sm:$0xff]
    %v4555 = vld [vmem:[#allocation8 + $0x17c] sm:$0xf]
    %v4556 = vld [vmem:[#allocation8 + $0x180] sm:$0xff]
    %v4557 = vld [vmem:[#allocation8 + $0x188] sm:$0xf]
    %v4558 = vld [vmem:[#allocation8 + $0x18c] sm:$0xff]
    %v4559 = vld [vmem:[#allocation8 + $0x194] sm:$0xf]
    %v4560 = vld [vmem:[#allocation8 + $0x198] sm:$0xff]
    %v4561 = vld [vmem:[#allocation8 + $0x1a0] sm:$0xf]
    %v4562 = vld [vmem:[#allocation8 + $0x1a4] sm:$0xff]
    %v4563 = vld [vmem:[#allocation8 + $0x1ac] sm:$0xf]
    %v4564 = vld [vmem:[#allocation8 + $0x1b0] sm:$0xff]
    %v4565 = vld [vmem:[#allocation8 + $0x1b8] sm:$0xf]
    %v4566 = vld [vmem:[#allocation8 + $0x1bc] sm:$0xff]
    %v4567 = vld [vmem:[#allocation8 + $0x1c4] sm:$0xf]
    %v4568 = vld [vmem:[#allocation8 + $0x1c8] sm:$0xff]
    %v4569 = vld [vmem:[#allocation8 + $0x1d0] sm:$0xf]
    %v4570 = vld [vmem:[#allocation8 + $0x1d4] sm:$0xff]
    %v4571 = vld [vmem:[#allocation8 + $0x1dc] sm:$0xf]
    %v4572 = vld [vmem:[#allocation8 + $0x1e0] sm:$0xff]
    %v4573 = vld [vmem:[#allocation8 + $0x1e8] sm:$0xf]
    %v4574 = vld [vmem:[#allocation8 + $0x1ec] sm:$0xff]
    %v4575 = vld [vmem:[#allocation8 + $0x1f4] sm:$0xf]
    %v4576 = vld [vmem:[#allocation8 + $0x1f8] sm:$0xff]
    %v4577 = vld [vmem:[#allocation8 + $0x200] sm:$0xf]
    %v4578 = vld [vmem:[#allocation8 + $0x204] sm:$0xff]
    %v4579 = vld [vmem:[#allocation8 + $0x20c] sm:$0xf]
    %v4580 = vld [vmem:[#allocation8 + $0x210] sm:$0xff]
    %v4581 = vld [vmem:[#allocation8 + $0x218] sm:$0xf]
    %v4582 = vld [vmem:[#allocation8 + $0x21c] sm:$0xff]
    %v4583 = vld [vmem:[#allocation8 + $0x224] sm:$0xf]
    %v4584 = vld [vmem:[#allocation8 + $0x228] sm:$0xff]
    %v4585 = vld [vmem:[#allocation8 + $0x230] sm:$0xf]
    %v4586 = vld [vmem:[#allocation8 + $0x234] sm:$0xff]
    %v4587 = vld [vmem:[#allocation8 + $0x23c] sm:$0xf]
    %v4588 = vld [vmem:[#allocation8 + $0x240] sm:$0xff]
    %v4589 = vld [vmem:[#allocation8 + $0x248] sm:$0xf]
    %v4590 = vld [vmem:[#allocation8 + $0x24c] sm:$0xff]
    %v4591 = vld [vmem:[#allocation8 + $0x254] sm:$0xf]
    %v4592 = vld [vmem:[#allocation8 + $0x258] sm:$0xff]
    %v4593 = vld [vmem:[#allocation8 + $0x260] sm:$0xf]
    %v4594 = vld [vmem:[#allocation8 + $0x264] sm:$0xff]
    %v4595 = vld [vmem:[#allocation8 + $0x26c] sm:$0xf]
    %v4596 = vld [vmem:[#allocation8 + $0x270] sm:$0xff]
    %v4597 = vld [vmem:[#allocation8 + $0x278] sm:$0xf]
    %v4598 = vld [vmem:[#allocation8 + $0x27c] sm:$0xff]
    %v4599 = vld [vmem:[#allocation8 + $0x284] sm:$0xf]
    %v4600 = vld [vmem:[#allocation8 + $0x288] sm:$0xff]
    %v4601 = vld [vmem:[#allocation8 + $0x290] sm:$0xf]
    %v4602 = vld [vmem:[#allocation8 + $0x294] sm:$0xff]
    %v4603 = vld [vmem:[#allocation8 + $0x29c] sm:$0xf]
    %v4604 = vld [vmem:[#allocation8 + $0x2a0] sm:$0xff]
    %v4605 = vld [vmem:[#allocation8 + $0x2a8] sm:$0xf]
    %v4606 = vld [vmem:[#allocation8 + $0x2ac] sm:$0xff]
    %v4607 = vld [vmem:[#allocation8 + $0x2b4] sm:$0xf]
    %v4608 = vld [vmem:[#allocation8 + $0x2b8] sm:$0xff]
    %v4609 = vld [vmem:[#allocation8 + $0x2c0] sm:$0xf]
    %v4610 = vld [vmem:[#allocation8 + $0x2c4] sm:$0xff]
    %v4611 = vld [vmem:[#allocation8 + $0x2cc] sm:$0xf]
    %v4612 = vld [vmem:[#allocation8 + $0x2d0] sm:$0xff]
    %v4613 = vld [vmem:[#allocation8 + $0x2d8] sm:$0xf]
    %v4614 = vld [vmem:[#allocation8 + $0x2dc] sm:$0xff]
    %v4615 = vld [vmem:[#allocation8 + $0x2e4] sm:$0xf]
    %v4616 = vld [vmem:[#allocation8 + $0x2e8] sm:$0xff]
    %v4617 = vld [vmem:[#allocation8 + $0x2f0] sm:$0xf]
    %v4618 = vld [vmem:[#allocation8 + $0x2f4] sm:$0xff]
    %v4619 = vld [vmem:[#allocation8 + $0x2fc] sm:$0xf]
    %v4620 = vld [vmem:[#allocation8 + $0x300] sm:$0xff]
    %v4621 = vld [vmem:[#allocation8 + $0x308] sm:$0xf]
    %v4622 = vld [vmem:[#allocation8 + $0x30c] sm:$0xff]
    %v4623 = vld [vmem:[#allocation8 + $0x314] sm:$0xf]
    %v4624 = vld [vmem:[#allocation8 + $0x318] sm:$0xff]
    %v4625 = vld [vmem:[#allocation8 + $0x320] sm:$0xf]
    %v4626 = vld [vmem:[#allocation8 + $0x324] sm:$0xff]
    %v4627 = vld [vmem:[#allocation8 + $0x32c] sm:$0xf]
    %v4628 = vld [vmem:[#allocation8 + $0x330] sm:$0xff]
    %v4629 = vld [vmem:[#allocation8 + $0x338] sm:$0xf]
    %v4630 = vld [vmem:[#allocation8 + $0x33c] sm:$0xff]
    %v4631 = vld [vmem:[#allocation8 + $0x344] sm:$0xf]
    %v4632 = vld [vmem:[#allocation8 + $0x348] sm:$0xff]
    %v4633 = vld [vmem:[#allocation8 + $0x350] sm:$0xf]
    %v4634 = vld [vmem:[#allocation8 + $0x354] sm:$0xff]
    %v4635 = vld [vmem:[#allocation8 + $0x35c] sm:$0xf]
    %v4636 = vld [vmem:[#allocation8 + $0x360] sm:$0xff]
    %v4637 = vld [vmem:[#allocation8 + $0x368] sm:$0xf]
    %v4638 = vld [vmem:[#allocation8 + $0x36c] sm:$0xff]
    %v4639 = vld [vmem:[#allocation8 + $0x374] sm:$0xf]
    %v4640 = vld [vmem:[#allocation8 + $0x378] sm:$0xff]
    %v4641 = vld [vmem:[#allocation8 + $0x380] sm:$0xf]
    %v4642 = vld [vmem:[#allocation8 + $0x384] sm:$0xff]
    %v4643 = vld [vmem:[#allocation8 + $0x38c] sm:$0xf]
    %v4644 = vld [vmem:[#allocation8 + $0x390] sm:$0xff]
    %v4645 = vld [vmem:[#allocation8 + $0x398] sm:$0xf]
    %v4646 = vld [vmem:[#allocation8 + $0x39c] sm:$0xff]
    %v4647 = vld [vmem:[#allocation8 + $0x3a4] sm:$0xf]
    %v4648 = vld [vmem:[#allocation8 + $0x3a8] sm:$0xff]
    %v4649 = vld [vmem:[#allocation8 + $0x3b0] sm:$0xf]
    %v4650 = vld [vmem:[#allocation8 + $0x3b4] sm:$0xff]
    %v4651 = vld [vmem:[#allocation8 + $0x3bc] sm:$0xf]
    %v4652 = vld [vmem:[#allocation8 + $0x3c0] sm:$0xff]
    %v4653 = vld [vmem:[#allocation8 + $0x3c8] sm:$0xf]
    %v4654 = vld [vmem:[#allocation8 + $0x3cc] sm:$0xff]
    %v4655 = vld [vmem:[#allocation8 + $0x3d4] sm:$0xf]
    %v4656 = vld [vmem:[#allocation8 + $0x3d8] sm:$0xff]
    %v4657 = vld [vmem:[#allocation8 + $0x3e0] sm:$0xf]
    %v4658 = vld [vmem:[#allocation8 + $0x3e4] sm:$0xff]
    %v4659 = vld [vmem:[#allocation8 + $0x3ec] sm:$0xf]
    %v4660 = vld [vmem:[#allocation8 + $0x3f0] sm:$0xff]
    %v4661 = vld [vmem:[#allocation8 + $0x3f8] sm:$0xf]
    %v4662 = vld [vmem:[#allocation8 + $0x3fc] sm:$0xff]
    %v4663 = vld [vmem:[#allocation8 + $0x404] sm:$0xf]
    %v4664 = vld [vmem:[#allocation8 + $0x408] sm:$0xff]
    %v4665 = vld [vmem:[#allocation8 + $0x410] sm:$0xf]
    %v4666 = vld [vmem:[#allocation8 + $0x414] sm:$0xff]
    %v4667 = vld [vmem:[#allocation8 + $0x41c] sm:$0xf]
    %v4668 = vld [vmem:[#allocation8 + $0x420] sm:$0xff]
    %v4669 = vld [vmem:[#allocation8 + $0x428] sm:$0xf]
    %v4670 = vld [vmem:[#allocation8 + $0x42c] sm:$0xff]
    %v4671 = vld [vmem:[#allocation8 + $0x434] sm:$0xf]
    %v4672 = vld [vmem:[#allocation8 + $0x438] sm:$0xff]
    %v4673 = vld [vmem:[#allocation8 + $0x440] sm:$0xf]
    %v4674 = vld [vmem:[#allocation8 + $0x444] sm:$0xff]
    %v4675 = vld [vmem:[#allocation8 + $0x44c] sm:$0xf]
    %v4676 = vld [vmem:[#allocation8 + $0x450] sm:$0xff]
    %v4677 = vld [vmem:[#allocation8 + $0x458] sm:$0xf]
    %v4678 = vld [vmem:[#allocation8 + $0x45c] sm:$0xff]
    %v4679 = vld [vmem:[#allocation8 + $0x464] sm:$0xf]
    %v4680 = vld [vmem:[#allocation8 + $0x468] sm:$0xff]
    %v4681 = vld [vmem:[#allocation8 + $0x470] sm:$0xf]
    %v4682 = vld [vmem:[#allocation8 + $0x474] sm:$0xff]
    %v4683 = vld [vmem:[#allocation8 + $0x47c] sm:$0xf]
    %v4684 = vld [vmem:[#allocation10] sm:$0x7]
    %v4686 = vlaneseq
    %v4687 = vshrl.u32 %v4686, 7
    %v4688 = vsub.s32 0, %v4687
    %v4689 = vrot.slane %v4684, %v4688
    %v4690 = vlaneseq
    %v4691 = vshrl.u32 %v4690, 7
    %v4692 = vsub.s32 1, %v4691
    %v4693 = vrot.slane %v4684, %v4692
    %v4694 = vlaneseq
    %v4695 = vshrl.u32 %v4694, 7
    %v4696 = vsub.s32 2, %v4695
    %v4697 = vrot.slane %v4684, %v4696
    %v4893 = vunpack.c.l.b16 %v4492
    %v4894 = vunpack.c.h.b16 %v4492
    %v4895 = vunpack.c.l.b16 %v4493
    %v4896 = vunpack.c.l.b16 %v4494
    %v4897 = vunpack.c.h.b16 %v4494
    %v4898 = vunpack.c.l.b16 %v4495
    %v4899 = vunpack.c.l.b16 %v4496
    %v4900 = vunpack.c.h.b16 %v4496
    %v4901 = vunpack.c.l.b16 %v4497
    %v4902 = vunpack.c.l.b16 %v4498
    %v4903 = vunpack.c.h.b16 %v4498
    %v4904 = vunpack.c.l.b16 %v4499
    %v4905 = vunpack.c.l.b16 %v4500
    %v4906 = vunpack.c.h.b16 %v4500
    %v4907 = vunpack.c.l.b16 %v4501
    %v4908 = vunpack.c.l.b16 %v4502
    %v4909 = vunpack.c.h.b16 %v4502
    %v4910 = vunpack.c.l.b16 %v4503
    %v4911 = vunpack.c.l.b16 %v4504
    %v4912 = vunpack.c.h.b16 %v4504
    %v4913 = vunpack.c.l.b16 %v4505
    %v4914 = vunpack.c.l.b16 %v4506
    %v4915 = vunpack.c.h.b16 %v4506
    %v4916 = vunpack.c.l.b16 %v4507
    %v4917 = vunpack.c.l.b16 %v4508
    %v4918 = vunpack.c.h.b16 %v4508
    %v4919 = vunpack.c.l.b16 %v4509
    %v4920 = vunpack.c.l.b16 %v4510
    %v4921 = vunpack.c.h.b16 %v4510
    %v4922 = vunpack.c.l.b16 %v4511
    %v4923 = vunpack.c.l.b16 %v4512
    %v4924 = vunpack.c.h.b16 %v4512
    %v4925 = vunpack.c.l.b16 %v4513
    %v4926 = vunpack.c.l.b16 %v4514
    %v4927 = vunpack.c.h.b16 %v4514
    %v4928 = vunpack.c.l.b16 %v4515
    %v4929 = vunpack.c.l.b16 %v4516
    %v4930 = vunpack.c.h.b16 %v4516
    %v4931 = vunpack.c.l.b16 %v4517
    %v4932 = vunpack.c.l.b16 %v4518
    %v4933 = vunpack.c.h.b16 %v4518
    %v4934 = vunpack.c.l.b16 %v4519
    %v4935 = vunpack.c.l.b16 %v4520
    %v4936 = vunpack.c.h.b16 %v4520
    %v4937 = vunpack.c.l.b16 %v4521
    %v4938 = vunpack.c.l.b16 %v4522
    %v4939 = vunpack.c.h.b16 %v4522
    %v4940 = vunpack.c.l.b16 %v4523
    %v4941 = vunpack.c.l.b16 %v4524
    %v4942 = vunpack.c.h.b16 %v4524
    %v4943 = vunpack.c.l.b16 %v4525
    %v4944 = vunpack.c.l.b16 %v4526
    %v4945 = vunpack.c.h.b16 %v4526
    %v4946 = vunpack.c.l.b16 %v4527
    %v4947 = vunpack.c.l.b16 %v4528
    %v4948 = vunpack.c.h.b16 %v4528
    %v4949 = vunpack.c.l.b16 %v4529
    %v4950 = vunpack.c.l.b16 %v4530
    %v4951 = vunpack.c.h.b16 %v4530
    %v4952 = vunpack.c.l.b16 %v4531
    %v4953 = vunpack.c.l.b16 %v4532
    %v4954 = vunpack.c.h.b16 %v4532
    %v4955 = vunpack.c.l.b16 %v4533
    %v4956 = vunpack.c.l.b16 %v4534
    %v4957 = vunpack.c.h.b16 %v4534
    %v4958 = vunpack.c.l.b16 %v4535
    %v4959 = vunpack.c.l.b16 %v4536
    %v4960 = vunpack.c.h.b16 %v4536
    %v4961 = vunpack.c.l.b16 %v4537
    %v4962 = vunpack.c.l.b16 %v4538
    %v4963 = vunpack.c.h.b16 %v4538
    %v4964 = vunpack.c.l.b16 %v4539
    %v4965 = vunpack.c.l.b16 %v4540
    %v4966 = vunpack.c.h.b16 %v4540
    %v4967 = vunpack.c.l.b16 %v4541
    %v4968 = vunpack.c.l.b16 %v4542
    %v4969 = vunpack.c.h.b16 %v4542
    %v4970 = vunpack.c.l.b16 %v4543
    %v4971 = vunpack.c.l.b16 %v4544
    %v4972 = vunpack.c.h.b16 %v4544
    %v4973 = vunpack.c.l.b16 %v4545
    %v4974 = vunpack.c.l.b16 %v4546
    %v4975 = vunpack.c.h.b16 %v4546
    %v4976 = vunpack.c.l.b16 %v4547
    %v4977 = vunpack.c.l.b16 %v4548
    %v4978 = vunpack.c.h.b16 %v4548
    %v4979 = vunpack.c.l.b16 %v4549
    %v4980 = vunpack.c.l.b16 %v4550
    %v4981 = vunpack.c.h.b16 %v4550
    %v4982 = vunpack.c.l.b16 %v4551
    %v4983 = vunpack.c.l.b16 %v4552
    %v4984 = vunpack.c.h.b16 %v4552
    %v4985 = vunpack.c.l.b16 %v4553
    %v4986 = vunpack.c.l.b16 %v4554
    %v4987 = vunpack.c.h.b16 %v4554
    %v4988 = vunpack.c.l.b16 %v4555
    %v4989 = vunpack.c.l.b16 %v4556
    %v4990 = vunpack.c.h.b16 %v4556
    %v4991 = vunpack.c.l.b16 %v4557
    %v4992 = vunpack.c.l.b16 %v4558
    %v4993 = vunpack.c.h.b16 %v4558
    %v4994 = vunpack.c.l.b16 %v4559
    %v4995 = vunpack.c.l.b16 %v4560
    %v4996 = vunpack.c.h.b16 %v4560
    %v4997 = vunpack.c.l.b16 %v4561
    %v4998 = vunpack.c.l.b16 %v4562
    %v4999 = vunpack.c.h.b16 %v4562
    %v5000 = vunpack.c.l.b16 %v4563
    %v5001 = vunpack.c.l.b16 %v4564
    %v5002 = vunpack.c.h.b16 %v4564
    %v5003 = vunpack.c.l.b16 %v4565
    %v5004 = vunpack.c.l.b16 %v4566
    %v5005 = vunpack.c.h.b16 %v4566
    %v5006 = vunpack.c.l.b16 %v4567
    %v5007 = vunpack.c.l.b16 %v4568
    %v5008 = vunpack.c.h.b16 %v4568
    %v5009 = vunpack.c.l.b16 %v4569
    %v5010 = vunpack.c.l.b16 %v4570
    %v5011 = vunpack.c.h.b16 %v4570
    %v5012 = vunpack.c.l.b16 %v4571
    %v5013 = vunpack.c.l.b16 %v4572
    %v5014 = vunpack.c.h.b16 %v4572
    %v5015 = vunpack.c.l.b16 %v4573
    %v5016 = vunpack.c.l.b16 %v4574
    %v5017 = vunpack.c.h.b16 %v4574
    %v5018 = vunpack.c.l.b16 %v4575
    %v5019 = vunpack.c.l.b16 %v4576
    %v5020 = vunpack.c.h.b16 %v4576
    %v5021 = vunpack.c.l.b16 %v4577
    %v5022 = vunpack.c.l.b16 %v4578
    %v5023 = vunpack.c.h.b16 %v4578
    %v5024 = vunpack.c.l.b16 %v4579
    %v5025 = vunpack.c.l.b16 %v4580
    %v5026 = vunpack.c.h.b16 %v4580
    %v5027 = vunpack.c.l.b16 %v4581
    %v5028 = vunpack.c.l.b16 %v4582
    %v5029 = vunpack.c.h.b16 %v4582
    %v5030 = vunpack.c.l.b16 %v4583
    %v5031 = vunpack.c.l.b16 %v4584
    %v5032 = vunpack.c.h.b16 %v4584
    %v5033 = vunpack.c.l.b16 %v4585
    %v5034 = vunpack.c.l.b16 %v4586
    %v5035 = vunpack.c.h.b16 %v4586
    %v5036 = vunpack.c.l.b16 %v4587
    %v5037 = vunpack.c.l.b16 %v4588
    %v5038 = vunpack.c.h.b16 %v4588
    %v5039 = vunpack.c.l.b16 %v4589
    %v5040 = vunpack.c.l.b16 %v4590
    %v5041 = vunpack.c.h.b16 %v4590
    %v5042 = vunpack.c.l.b16 %v4591
    %v5043 = vunpack.c.l.b16 %v4592
    %v5044 = vunpack.c.h.b16 %v4592
    %v5045 = vunpack.c.l.b16 %v4593
    %v5046 = vunpack.c.l.b16 %v4594
    %v5047 = vunpack.c.h.b16 %v4594
    %v5048 = vunpack.c.l.b16 %v4595
    %v5049 = vunpack.c.l.b16 %v4596
    %v5050 = vunpack.c.h.b16 %v4596
    %v5051 = vunpack.c.l.b16 %v4597
    %v5052 = vunpack.c.l.b16 %v4598
    %v5053 = vunpack.c.h.b16 %v4598
    %v5054 = vunpack.c.l.b16 %v4599
    %v5055 = vunpack.c.l.b16 %v4600
    %v5056 = vunpack.c.h.b16 %v4600
    %v5057 = vunpack.c.l.b16 %v4601
    %v5058 = vunpack.c.l.b16 %v4602
    %v5059 = vunpack.c.h.b16 %v4602
    %v5060 = vunpack.c.l.b16 %v4603
    %v5061 = vunpack.c.l.b16 %v4604
    %v5062 = vunpack.c.h.b16 %v4604
    %v5063 = vunpack.c.l.b16 %v4605
    %v5064 = vunpack.c.l.b16 %v4606
    %v5065 = vunpack.c.h.b16 %v4606
    %v5066 = vunpack.c.l.b16 %v4607
    %v5067 = vunpack.c.l.b16 %v4608
    %v5068 = vunpack.c.h.b16 %v4608
    %v5069 = vunpack.c.l.b16 %v4609
    %v5070 = vunpack.c.l.b16 %v4610
    %v5071 = vunpack.c.h.b16 %v4610
    %v5072 = vunpack.c.l.b16 %v4611
    %v5073 = vunpack.c.l.b16 %v4612
    %v5074 = vunpack.c.h.b16 %v4612
    %v5075 = vunpack.c.l.b16 %v4613
    %v5076 = vunpack.c.l.b16 %v4614
    %v5077 = vunpack.c.h.b16 %v4614
    %v5078 = vunpack.c.l.b16 %v4615
    %v5079 = vunpack.c.l.b16 %v4616
    %v5080 = vunpack.c.h.b16 %v4616
    %v5081 = vunpack.c.l.b16 %v4617
    %v5082 = vunpack.c.l.b16 %v4618
    %v5083 = vunpack.c.h.b16 %v4618
    %v5084 = vunpack.c.l.b16 %v4619
    %v5085 = vunpack.c.l.b16 %v4620
    %v5086 = vunpack.c.h.b16 %v4620
    %v5087 = vunpack.c.l.b16 %v4621
    %v5088 = vunpack.c.l.b16 %v4622
    %v5089 = vunpack.c.h.b16 %v4622
    %v5090 = vunpack.c.l.b16 %v4623
    %v5091 = vunpack.c.l.b16 %v4624
    %v5092 = vunpack.c.h.b16 %v4624
    %v5093 = vunpack.c.l.b16 %v4625
    %v5094 = vunpack.c.l.b16 %v4626
    %v5095 = vunpack.c.h.b16 %v4626
    %v5096 = vunpack.c.l.b16 %v4627
    %v5097 = vunpack.c.l.b16 %v4628
    %v5098 = vunpack.c.h.b16 %v4628
    %v5099 = vunpack.c.l.b16 %v4629
    %v5100 = vunpack.c.l.b16 %v4630
    %v5101 = vunpack.c.h.b16 %v4630
    %v5102 = vunpack.c.l.b16 %v4631
    %v5103 = vunpack.c.l.b16 %v4632
    %v5104 = vunpack.c.h.b16 %v4632
    %v5105 = vunpack.c.l.b16 %v4633
    %v5106 = vunpack.c.l.b16 %v4634
    %v5107 = vunpack.c.h.b16 %v4634
    %v5108 = vunpack.c.l.b16 %v4635
    %v5109 = vunpack.c.l.b16 %v4636
    %v5110 = vunpack.c.h.b16 %v4636
    %v5111 = vunpack.c.l.b16 %v4637
    %v5112 = vunpack.c.l.b16 %v4638
    %v5113 = vunpack.c.h.b16 %v4638
    %v5114 = vunpack.c.l.b16 %v4639
    %v5115 = vunpack.c.l.b16 %v4640
    %v5116 = vunpack.c.h.b16 %v4640
    %v5117 = vunpack.c.l.b16 %v4641
    %v5118 = vunpack.c.l.b16 %v4642
    %v5119 = vunpack.c.h.b16 %v4642
    %v5120 = vunpack.c.l.b16 %v4643
    %v5121 = vunpack.c.l.b16 %v4644
    %v5122 = vunpack.c.h.b16 %v4644
    %v5123 = vunpack.c.l.b16 %v4645
    %v5124 = vunpack.c.l.b16 %v4646
    %v5125 = vunpack.c.h.b16 %v4646
    %v5126 = vunpack.c.l.b16 %v4647
    %v5127 = vunpack.c.l.b16 %v4648
    %v5128 = vunpack.c.h.b16 %v4648
    %v5129 = vunpack.c.l.b16 %v4649
    %v5130 = vunpack.c.l.b16 %v4650
    %v5131 = vunpack.c.h.b16 %v4650
    %v5132 = vunpack.c.l.b16 %v4651
    %v5133 = vunpack.c.l.b16 %v4652
    %v5134 = vunpack.c.h.b16 %v4652
    %v5135 = vunpack.c.l.b16 %v4653
    %v5136 = vunpack.c.l.b16 %v4654
    %v5137 = vunpack.c.h.b16 %v4654
    %v5138 = vunpack.c.l.b16 %v4655
    %v5139 = vunpack.c.l.b16 %v4656
    %v5140 = vunpack.c.h.b16 %v4656
    %v5141 = vunpack.c.l.b16 %v4657
    %v5142 = vunpack.c.l.b16 %v4658
    %v5143 = vunpack.c.h.b16 %v4658
    %v5144 = vunpack.c.l.b16 %v4659
    %v5145 = vunpack.c.l.b16 %v4660
    %v5146 = vunpack.c.h.b16 %v4660
    %v5147 = vunpack.c.l.b16 %v4661
    %v5148 = vunpack.c.l.b16 %v4662
    %v5149 = vunpack.c.h.b16 %v4662
    %v5150 = vunpack.c.l.b16 %v4663
    %v5151 = vunpack.c.l.b16 %v4664
    %v5152 = vunpack.c.h.b16 %v4664
    %v5153 = vunpack.c.l.b16 %v4665
    %v5154 = vunpack.c.l.b16 %v4666
    %v5155 = vunpack.c.h.b16 %v4666
    %v5156 = vunpack.c.l.b16 %v4667
    %v5157 = vunpack.c.l.b16 %v4668
    %v5158 = vunpack.c.h.b16 %v4668
    %v5159 = vunpack.c.l.b16 %v4669
    %v5160 = vunpack.c.l.b16 %v4670
    %v5161 = vunpack.c.h.b16 %v4670
    %v5162 = vunpack.c.l.b16 %v4671
    %v5163 = vunpack.c.l.b16 %v4672
    %v5164 = vunpack.c.h.b16 %v4672
    %v5165 = vunpack.c.l.b16 %v4673
    %v5166 = vunpack.c.l.b16 %v4674
    %v5167 = vunpack.c.h.b16 %v4674
    %v5168 = vunpack.c.l.b16 %v4675
    %v5169 = vunpack.c.l.b16 %v4676
    %v5170 = vunpack.c.h.b16 %v4676
    %v5171 = vunpack.c.l.b16 %v4677
    %v5172 = vunpack.c.l.b16 %v4678
    %v5173 = vunpack.c.h.b16 %v4678
    %v5174 = vunpack.c.l.b16 %v4679
    %v5175 = vunpack.c.l.b16 %v4680
    %v5176 = vunpack.c.h.b16 %v4680
    %v5177 = vunpack.c.l.b16 %v4681
    %v5178 = vunpack.c.l.b16 %v4682
    %v5179 = vunpack.c.h.b16 %v4682
    %v5180 = vunpack.c.l.b16 %v4683
    %v5181 = vpack.c.b16 %v4896, %v4893
    %v5182 = vpack.c.b16 %v4897, %v4894
    %v5183 = vpack.c.b16 %v4898, %v4895
    %v5184 = vpack.c.b16 %v4902, %v4899
    %v5185 = vpack.c.b16 %v4903, %v4900
    %v5186 = vpack.c.b16 %v4904, %v4901
    %v5187 = vpack.c.b16 %v4908, %v4905
    %v5188 = vpack.c.b16 %v4909, %v4906
    %v5189 = vpack.c.b16 %v4910, %v4907
    %v5190 = vpack.c.b16 %v4914, %v4911
    %v5191 = vpack.c.b16 %v4915, %v4912
    %v5192 = vpack.c.b16 %v4916, %v4913
    %v5193 = vpack.c.b16 %v4920, %v4917
    %v5194 = vpack.c.b16 %v4921, %v4918
    %v5195 = vpack.c.b16 %v4922, %v4919
    %v5196 = vpack.c.b16 %v4926, %v4923
    %v5197 = vpack.c.b16 %v4927, %v4924
    %v5198 = vpack.c.b16 %v4928, %v4925
    %v5199 = vpack.c.b16 %v4932, %v4929
    %v5200 = vpack.c.b16 %v4933, %v4930
    %v5201 = vpack.c.b16 %v4934, %v4931
    %v5202 = vpack.c.b16 %v4938, %v4935
    %v5203 = vpack.c.b16 %v4939, %v4936
    %v5204 = vpack.c.b16 %v4940, %v4937
    %v5205 = vpack.c.b16 %v4944, %v4941
    %v5206 = vpack.c.b16 %v4945, %v4942
    %v5207 = vpack.c.b16 %v4946, %v4943
    %v5208 = vpack.c.b16 %v4950, %v4947
    %v5209 = vpack.c.b16 %v4951, %v4948
    %v5210 = vpack.c.b16 %v4952, %v4949
    %v5211 = vpack.c.b16 %v4956, %v4953
    %v5212 = vpack.c.b16 %v4957, %v4954
    %v5213 = vpack.c.b16 %v4958, %v4955
    %v5214 = vpack.c.b16 %v4962, %v4959
    %v5215 = vpack.c.b16 %v4963, %v4960
    %v5216 = vpack.c.b16 %v4964, %v4961
    %v5217 = vpack.c.b16 %v4968, %v4965
    %v5218 = vpack.c.b16 %v4969, %v4966
    %v5219 = vpack.c.b16 %v4970, %v4967
    %v5220 = vpack.c.b16 %v4974, %v4971
    %v5221 = vpack.c.b16 %v4975, %v4972
    %v5222 = vpack.c.b16 %v4976, %v4973
    %v5223 = vpack.c.b16 %v4980, %v4977
    %v5224 = vpack.c.b16 %v4981, %v4978
    %v5225 = vpack.c.b16 %v4982, %v4979
    %v5226 = vpack.c.b16 %v4986, %v4983
    %v5227 = vpack.c.b16 %v4987, %v4984
    %v5228 = vpack.c.b16 %v4988, %v4985
    %v5229 = vpack.c.b16 %v4992, %v4989
    %v5230 = vpack.c.b16 %v4993, %v4990
    %v5231 = vpack.c.b16 %v4994, %v4991
    %v5232 = vpack.c.b16 %v4998, %v4995
    %v5233 = vpack.c.b16 %v4999, %v4996
    %v5234 = vpack.c.b16 %v5000, %v4997
    %v5235 = vpack.c.b16 %v5004, %v5001
    %v5236 = vpack.c.b16 %v5005, %v5002
    %v5237 = vpack.c.b16 %v5006, %v5003
    %v5238 = vpack.c.b16 %v5010, %v5007
    %v5239 = vpack.c.b16 %v5011, %v5008
    %v5240 = vpack.c.b16 %v5012, %v5009
    %v5241 = vpack.c.b16 %v5016, %v5013
    %v5242 = vpack.c.b16 %v5017, %v5014
    %v5243 = vpack.c.b16 %v5018, %v5015
    %v5244 = vpack.c.b16 %v5022, %v5019
    %v5245 = vpack.c.b16 %v5023, %v5020
    %v5246 = vpack.c.b16 %v5024, %v5021
    %v5247 = vpack.c.b16 %v5028, %v5025
    %v5248 = vpack.c.b16 %v5029, %v5026
    %v5249 = vpack.c.b16 %v5030, %v5027
    %v5250 = vpack.c.b16 %v5034, %v5031
    %v5251 = vpack.c.b16 %v5035, %v5032
    %v5252 = vpack.c.b16 %v5036, %v5033
    %v5253 = vpack.c.b16 %v5040, %v5037
    %v5254 = vpack.c.b16 %v5041, %v5038
    %v5255 = vpack.c.b16 %v5042, %v5039
    %v5256 = vpack.c.b16 %v5046, %v5043
    %v5257 = vpack.c.b16 %v5047, %v5044
    %v5258 = vpack.c.b16 %v5048, %v5045
    %v5259 = vpack.c.b16 %v5052, %v5049
    %v5260 = vpack.c.b16 %v5053, %v5050
    %v5261 = vpack.c.b16 %v5054, %v5051
    %v5262 = vpack.c.b16 %v5058, %v5055
    %v5263 = vpack.c.b16 %v5059, %v5056
    %v5264 = vpack.c.b16 %v5060, %v5057
    %v5265 = vpack.c.b16 %v5064, %v5061
    %v5266 = vpack.c.b16 %v5065, %v5062
    %v5267 = vpack.c.b16 %v5066, %v5063
    %v5268 = vpack.c.b16 %v5070, %v5067
    %v5269 = vpack.c.b16 %v5071, %v5068
    %v5270 = vpack.c.b16 %v5072, %v5069
    %v5271 = vpack.c.b16 %v5076, %v5073
    %v5272 = vpack.c.b16 %v5077, %v5074
    %v5273 = vpack.c.b16 %v5078, %v5075
    %v5274 = vpack.c.b16 %v5082, %v5079
    %v5275 = vpack.c.b16 %v5083, %v5080
    %v5276 = vpack.c.b16 %v5084, %v5081
    %v5277 = vpack.c.b16 %v5088, %v5085
    %v5278 = vpack.c.b16 %v5089, %v5086
    %v5279 = vpack.c.b16 %v5090, %v5087
    %v5280 = vpack.c.b16 %v5094, %v5091
    %v5281 = vpack.c.b16 %v5095, %v5092
    %v5282 = vpack.c.b16 %v5096, %v5093
    %v5283 = vpack.c.b16 %v5100, %v5097
    %v5284 = vpack.c.b16 %v5101, %v5098
    %v5285 = vpack.c.b16 %v5102, %v5099
    %v5286 = vpack.c.b16 %v5106, %v5103
    %v5287 = vpack.c.b16 %v5107, %v5104
    %v5288 = vpack.c.b16 %v5108, %v5105
    %v5289 = vpack.c.b16 %v5112, %v5109
    %v5290 = vpack.c.b16 %v5113, %v5110
    %v5291 = vpack.c.b16 %v5114, %v5111
    %v5292 = vpack.c.b16 %v5118, %v5115
    %v5293 = vpack.c.b16 %v5119, %v5116
    %v5294 = vpack.c.b16 %v5120, %v5117
    %v5295 = vpack.c.b16 %v5124, %v5121
    %v5296 = vpack.c.b16 %v5125, %v5122
    %v5297 = vpack.c.b16 %v5126, %v5123
    %v5298 = vpack.c.b16 %v5130, %v5127
    %v5299 = vpack.c.b16 %v5131, %v5128
    %v5300 = vpack.c.b16 %v5132, %v5129
    %v5301 = vpack.c.b16 %v5136, %v5133
    %v5302 = vpack.c.b16 %v5137, %v5134
    %v5303 = vpack.c.b16 %v5138, %v5135
    %v5304 = vpack.c.b16 %v5142, %v5139
    %v5305 = vpack.c.b16 %v5143, %v5140
    %v5306 = vpack.c.b16 %v5144, %v5141
    %v5307 = vpack.c.b16 %v5148, %v5145
    %v5308 = vpack.c.b16 %v5149, %v5146
    %v5309 = vpack.c.b16 %v5150, %v5147
    %v5310 = vpack.c.b16 %v5154, %v5151
    %v5311 = vpack.c.b16 %v5155, %v5152
    %v5312 = vpack.c.b16 %v5156, %v5153
    %v5313 = vpack.c.b16 %v5160, %v5157
    %v5314 = vpack.c.b16 %v5161, %v5158
    %v5315 = vpack.c.b16 %v5162, %v5159
    %v5316 = vpack.c.b16 %v5166, %v5163
    %v5317 = vpack.c.b16 %v5167, %v5164
    %v5318 = vpack.c.b16 %v5168, %v5165
    %v5319 = vpack.c.b16 %v5172, %v5169
    %v5320 = vpack.c.b16 %v5173, %v5170
    %v5321 = vpack.c.b16 %v5174, %v5171
    %v5322 = vpack.c.b16 %v5178, %v5175
    %v5323 = vpack.c.b16 %v5179, %v5176
    %v5324 = vpack.c.b16 %v5180, %v5177
    %5469 = vmatprep.subr.bf16.mxu0 %v5182
    %5470 = vmatpush1.bf16.msra.mxu0 %v5181
    %5471 = vmatprep.subr.bf16.mxu0 %v5185
    %5472 = vmatpush1.bf16.msra.mxu0 %v5184
    %5473 = vmatprep.subr.bf16.mxu0 %v5188
    %5474 = vmatpush1.bf16.msra.mxu0 %v5187
    %5475 = vmatprep.subr.bf16.mxu0 %v5191
    %5476 = vmatpush1.bf16.msra.mxu0 %v5190
    %5477 = vmatprep.subr.bf16.mxu0 %v5194
    %5478 = vmatpush1.bf16.msra.mxu0 %v5193
    %5479 = vmatprep.subr.bf16.mxu0 %v5197
    %5480 = vmatpush1.bf16.msra.mxu0 %v5196
    %5481 = vmatprep.subr.bf16.mxu0 %v5200
    %5482 = vmatpush1.bf16.msra.mxu0 %v5199
    %5483 = vmatprep.subr.bf16.mxu0 %v5203
    %5484 = vmatpush1.bf16.msra.mxu0 %v5202
    %5485 = vmatprep.subr.bf16.mxu0 %v5206
    %5486 = vmatpush1.bf16.msra.mxu0 %v5205
    %5487 = vmatprep.subr.bf16.mxu0 %v5209
    %5488 = vmatpush1.bf16.msra.mxu0 %v5208
    %5489 = vmatprep.subr.bf16.mxu0 %v5212
    %5490 = vmatpush1.bf16.msra.mxu0 %v5211
    %5491 = vmatprep.subr.bf16.mxu0 %v5215
    %5492 = vmatpush1.bf16.msra.mxu0 %v5214
    %5493 = vmatprep.subr.bf16.mxu0 %v5218
    %5494 = vmatpush1.bf16.msra.mxu0 %v5217
    %5495 = vmatprep.subr.bf16.mxu0 %v5221
    %5496 = vmatpush1.bf16.msra.mxu0 %v5220
    %5497 = vmatprep.subr.bf16.mxu0 %v5224
    %5498 = vmatpush1.bf16.msra.mxu0 %v5223
    %5499 = vmatprep.subr.bf16.mxu0 %v5227
    %5500 = vmatpush1.bf16.msra.mxu0 %v5226
    %5501 = vmatprep.mubr.bf16.mxu0 %v4445
    %5502 = vmatmul.mubr.bf16.gmra.mrb[0].mxu0 %v4444
    %v5503 = vpop.f32.mrb[0].mxu0
    %v5504 = vadd.f32 %v4689, %v5503
    %v5505 = vpop.f32.mrb[0].mxu0
    %v5506 = vadd.f32 %v4693, %v5505
    %v5507 = vpop.f32.mrb[0].mxu0
    %v5508 = vadd.f32 %v4689, %v5507
    %v5509 = vpop.f32.mrb[0].mxu0
    %v5510 = vadd.f32 %v4693, %v5509
    %5511 = vmatprep.mubr.bf16.mxu0 %v4451
    %5512 = vmatmul.mubr.bf16.gmra.mrb[0].mxu0 %v4450
    %v5513 = vpop.f32.mrb[0].mxu0
    %v5514 = vadd.f32 %v4689, %v5513
    %v5515 = vpop.f32.mrb[0].mxu0
    %v5516 = vadd.f32 %v4693, %v5515
    %v5517 = vpop.f32.mrb[0].mxu0
    %v5518 = vadd.f32 %v4689, %v5517
    %v5519 = vpop.f32.mrb[0].mxu0
    %v5520 = vadd.f32 %v4693, %v5519
    %5521 = vmatprep.mubr.bf16.mxu0 %v4457
    %5522 = vmatmul.mubr.bf16.gmra.mrb[0].mxu0 %v4456
    %v5523 = vpop.f32.mrb[0].mxu0
    %v5524 = vadd.f32 %v4689, %v5523
    %v5525 = vpop.f32.mrb[0].mxu0
    %v5526 = vadd.f32 %v4693, %v5525
    %v5527 = vpop.f32.mrb[0].mxu0
    %v5528 = vadd.f32 %v4689, %v5527
    %v5529 = vpop.f32.mrb[0].mxu0
    %v5530 = vadd.f32 %v4693, %v5529
    %5531 = vmatprep.mubr.bf16.mxu0 %v4463
    %5532 = vmatmul.mubr.bf16.gmra.mrb[0].mxu0 %v4462
    %v5533 = vpop.f32.mrb[0].mxu0
    %v5534 = vadd.f32 %v4689, %v5533
    %v5535 = vpop.f32.mrb[0].mxu0
    %v5536 = vadd.f32 %v4693, %v5535
    %v5537 = vpop.f32.mrb[0].mxu0
    %v5538 = vadd.f32 %v4689, %v5537
    %v5539 = vpop.f32.mrb[0].mxu0
    %v5540 = vadd.f32 %v4693, %v5539
    %5541 = vmatprep.mubr.bf16.mxu0 %v4469
    %5542 = vmatmul.mubr.bf16.gmra.mrb[0].mxu0 %v4468
    %v5543 = vpop.f32.mrb[0].mxu0
    %v5544 = vadd.f32 %v4689, %v5543
    %v5545 = vpop.f32.mrb[0].mxu0
    %v5546 = vadd.f32 %v4693, %v5545
    %v5547 = vpop.f32.mrb[0].mxu0
    %v5548 = vadd.f32 %v4689, %v5547
    %v5549 = vpop.f32.mrb[0].mxu0
    %v5550 = vadd.f32 %v4693, %v5549
    %5551 = vmatprep.mubr.bf16.mxu0 %v4475
    %5552 = vmatmul.mubr.bf16.gmra.mrb[0].mxu0 %v4474
    %v5553 = vpop.f32.mrb[0].mxu0
    %v5554 = vadd.f32 %v4689, %v5553
    %v5555 = vpop.f32.mrb[0].mxu0
    %v5556 = vadd.f32 %v4693, %v5555
    %v5557 = vpop.f32.mrb[0].mxu0
    %v5558 = vadd.f32 %v4689, %v5557
    %v5559 = vpop.f32.mrb[0].mxu0
    %v5560 = vadd.f32 %v4693, %v5559
    %5561 = vmatprep.mubr.bf16.mxu0 %v4481
    %5562 = vmatmul.mubr.bf16.gmra.mrb[0].mxu0 %v4480
    %v5563 = vpop.f32.mrb[0].mxu0
    %v5564 = vadd.f32 %v4689, %v5563
    %v5565 = vpop.f32.mrb[0].mxu0
    %v5566 = vadd.f32 %v4693, %v5565
    %v5567 = vpop.f32.mrb[0].mxu0
    %v5568 = vadd.f32 %v4689, %v5567
    %v5569 = vpop.f32.mrb[0].mxu0
    %v5570 = vadd.f32 %v4693, %v5569
    %5571 = vmatprep.mubr.bf16.mxu0 %v4487
    %5572 = vmatmul.mubr.bf16.gmra.mrb[0].mxu0 %v4486
    %v5573 = vpop.f32.mrb[0].mxu0
    %v5574 = vadd.f32 %v4689, %v5573
    %v5575 = vpop.f32.mrb[0].mxu0
    %v5576 = vadd.f32 %v4693, %v5575
    %v5577 = vpop.f32.mrb[0].mxu0
    %v5578 = vadd.f32 %v4689, %v5577
    %v5579 = vpop.f32.mrb[0].mxu0
    %v5580 = vadd.f32 %v4693, %v5579
    %5581 = vdwg.mxu0
    %5582 = vmatprep.subr.bf16.mxu0 %v5230
    %5583 = vmatpush1.bf16.msra.mxu0 %v5229
    %5584 = vmatprep.subr.bf16.mxu0 %v5233
    %5585 = vmatpush1.bf16.msra.mxu0 %v5232
    %5586 = vmatprep.subr.bf16.mxu0 %v5236
    %5587 = vmatpush1.bf16.msra.mxu0 %v5235
    %5588 = vmatprep.subr.bf16.mxu0 %v5239
    %5589 = vmatpush1.bf16.msra.mxu0 %v5238
    %5590 = vmatprep.subr.bf16.mxu0 %v5242
    %5591 = vmatpush1.bf16.msra.mxu0 %v5241
    %5592 = vmatprep.subr.bf16.mxu0 %v5245
    %5593 = vmatpush1.bf16.msra.mxu0 %v5244
    %5594 = vmatprep.subr.bf16.mxu0 %v5248
    %5595 = vmatpush1.bf16.msra.mxu0 %v5247
    %5596 = vmatprep.subr.bf16.mxu0 %v5251
    %5597 = vmatpush1.bf16.msra.mxu0 %v5250
    %5598 = vmatprep.subr.bf16.mxu0 %v5254
    %5599 = vmatpush1.bf16.msra.mxu0 %v5253
    %5600 = vmatprep.subr.bf16.mxu0 %v5257
    %5601 = vmatpush1.bf16.msra.mxu0 %v5256
    %5602 = vmatprep.subr.bf16.mxu0 %v5260
    %5603 = vmatpush1.bf16.msra.mxu0 %v5259
    %5604 = vmatprep.subr.bf16.mxu0 %v5263
    %5605 = vmatpush1.bf16.msra.mxu0 %v5262
    %5606 = vmatprep.subr.bf16.mxu0 %v5266
    %5607 = vmatpush1.bf16.msra.mxu0 %v5265
    %5608 = vmatprep.subr.bf16.mxu0 %v5269
    %5609 = vmatpush1.bf16.msra.mxu0 %v5268
    %5610 = vmatprep.subr.bf16.mxu0 %v5272
    %5611 = vmatpush1.bf16.msra.mxu0 %v5271
    %5612 = vmatprep.subr.bf16.mxu0 %v5275
    %5613 = vmatpush1.bf16.msra.mxu0 %v5274
    %5614 = vmatprep.mubr.bf16.mxu0 %v4447
    %5615 = vmatmul.mubr.bf16.gmra.mrb[0].mxu0 %v4446
    %v5616 = vpop.f32.mrb[0].mxu0
    %v5617 = vadd.f32 %v5504, %v5616
    %v5618 = vpop.f32.mrb[0].mxu0
    %v5619 = vadd.f32 %v5506, %v5618
    %v5620 = vpop.f32.mrb[0].mxu0
    %v5621 = vadd.f32 %v5508, %v5620
    %v5622 = vpop.f32.mrb[0].mxu0
    %v5623 = vadd.f32 %v5510, %v5622
    %5624 = vmatprep.mubr.bf16.mxu0 %v4453
    %5625 = vmatmul.mubr.bf16.gmra.mrb[0].mxu0 %v4452
    %v5626 = vpop.f32.mrb[0].mxu0
    %v5627 = vadd.f32 %v5514, %v5626
    %v5628 = vpop.f32.mrb[0].mxu0
    %v5629 = vadd.f32 %v5516, %v5628
    %v5630 = vpop.f32.mrb[0].mxu0
    %v5631 = vadd.f32 %v5518, %v5630
    %v5632 = vpop.f32.mrb[0].mxu0
    %v5633 = vadd.f32 %v5520, %v5632
    %5634 = vmatprep.mubr.bf16.mxu0 %v4459
    %5635 = vmatmul.mubr.bf16.gmra.mrb[0].mxu0 %v4458
    %v5636 = vpop.f32.mrb[0].mxu0
    %v5637 = vadd.f32 %v5524, %v5636
    %v5638 = vpop.f32.mrb[0].mxu0
    %v5639 = vadd.f32 %v5526, %v5638
    %v5640 = vpop.f32.mrb[0].mxu0
    %v5641 = vadd.f32 %v5528, %v5640
    %v5642 = vpop.f32.mrb[0].mxu0
    %v5643 = vadd.f32 %v5530, %v5642
    %5644 = vmatprep.mubr.bf16.mxu0 %v4465
    %5645 = vmatmul.mubr.bf16.gmra.mrb[0].mxu0 %v4464
    %v5646 = vpop.f32.mrb[0].mxu0
    %v5647 = vadd.f32 %v5534, %v5646
    %v5648 = vpop.f32.mrb[0].mxu0
    %v5649 = vadd.f32 %v5536, %v5648
    %v5650 = vpop.f32.mrb[0].mxu0
    %v5651 = vadd.f32 %v5538, %v5650
    %v5652 = vpop.f32.mrb[0].mxu0
    %v5653 = vadd.f32 %v5540, %v5652
    %5654 = vmatprep.mubr.bf16.mxu0 %v4471
    %5655 = vmatmul.mubr.bf16.gmra.mrb[0].mxu0 %v4470
    %v5656 = vpop.f32.mrb[0].mxu0
    %v5657 = vadd.f32 %v5544, %v5656
    %v5658 = vpop.f32.mrb[0].mxu0
    %v5659 = vadd.f32 %v5546, %v5658
    %v5660 = vpop.f32.mrb[0].mxu0
    %v5661 = vadd.f32 %v5548, %v5660
    %v5662 = vpop.f32.mrb[0].mxu0
    %v5663 = vadd.f32 %v5550, %v5662
    %5664 = vmatprep.mubr.bf16.mxu0 %v4477
    %5665 = vmatmul.mubr.bf16.gmra.mrb[0].mxu0 %v4476
    %v5666 = vpop.f32.mrb[0].mxu0
    %v5667 = vadd.f32 %v5554, %v5666
    %v5668 = vpop.f32.mrb[0].mxu0
    %v5669 = vadd.f32 %v5556, %v5668
    %v5670 = vpop.f32.mrb[0].mxu0
    %v5671 = vadd.f32 %v5558, %v5670
    %v5672 = vpop.f32.mrb[0].mxu0
    %v5673 = vadd.f32 %v5560, %v5672
    %5674 = vmatprep.mubr.bf16.mxu0 %v4483
    %5675 = vmatmul.mubr.bf16.gmra.mrb[0].mxu0 %v4482
    %v5676 = vpop.f32.mrb[0].mxu0
    %v5677 = vadd.f32 %v5564, %v5676
    %v5678 = vpop.f32.mrb[0].mxu0
    %v5679 = vadd.f32 %v5566, %v5678
    %v5680 = vpop.f32.mrb[0].mxu0
    %v5681 = vadd.f32 %v5568, %v5680
    %v5682 = vpop.f32.mrb[0].mxu0
    %v5683 = vadd.f32 %v5570, %v5682
    %5684 = vmatprep.mubr.bf16.mxu0 %v4489
    %5685 = vmatmul.mubr.bf16.gmra.mrb[0].mxu0 %v4488
    %v5686 = vpop.f32.mrb[0].mxu0
    %v5687 = vadd.f32 %v5574, %v5686
    %v5688 = vpop.f32.mrb[0].mxu0
    %v5689 = vadd.f32 %v5576, %v5688
    %v5690 = vpop.f32.mrb[0].mxu0
    %v5691 = vadd.f32 %v5578, %v5690
    %v5692 = vpop.f32.mrb[0].mxu0
    %v5693 = vadd.f32 %v5580, %v5692
    %5694 = vdwg.mxu0
    %5695 = vmatprep.subr.bf16.mxu0 %v5278
    %5696 = vmatpush1.bf16.msra.mxu0 %v5277
    %5697 = vmatprep.subr.bf16.mxu0 %v5281
    %5698 = vmatpush1.bf16.msra.mxu0 %v5280
    %5699 = vmatprep.subr.bf16.mxu0 %v5284
    %5700 = vmatpush1.bf16.msra.mxu0 %v5283
    %5701 = vmatprep.subr.bf16.mxu0 %v5287
    %5702 = vmatpush1.bf16.msra.mxu0 %v5286
    %5703 = vmatprep.subr.bf16.mxu0 %v5290
    %5704 = vmatpush1.bf16.msra.mxu0 %v5289
    %5705 = vmatprep.subr.bf16.mxu0 %v5293
    %5706 = vmatpush1.bf16.msra.mxu0 %v5292
    %5707 = vmatprep.subr.bf16.mxu0 %v5296
    %5708 = vmatpush1.bf16.msra.mxu0 %v5295
    %5709 = vmatprep.subr.bf16.mxu0 %v5299
    %5710 = vmatpush1.bf16.msra.mxu0 %v5298
    %5711 = vmatprep.subr.bf16.mxu0 %v5302
    %5712 = vmatpush1.bf16.msra.mxu0 %v5301
    %5713 = vmatprep.subr.bf16.mxu0 %v5305
    %5714 = vmatpush1.bf16.msra.mxu0 %v5304
    %5715 = vmatprep.subr.bf16.mxu0 %v5308
    %5716 = vmatpush1.bf16.msra.mxu0 %v5307
    %5717 = vmatprep.subr.bf16.mxu0 %v5311
    %5718 = vmatpush1.bf16.msra.mxu0 %v5310
    %5719 = vmatprep.subr.bf16.mxu0 %v5314
    %5720 = vmatpush1.bf16.msra.mxu0 %v5313
    %5721 = vmatprep.subr.bf16.mxu0 %v5317
    %5722 = vmatpush1.bf16.msra.mxu0 %v5316
    %5723 = vmatprep.subr.bf16.mxu0 %v5320
    %5724 = vmatpush1.bf16.msra.mxu0 %v5319
    %5725 = vmatprep.subr.bf16.mxu0 %v5323
    %5726 = vmatpush1.bf16.msra.mxu0 %v5322
    %5727 = vmatprep.mubr.bf16.mxu0 %v4449
    %5728 = vmatmul.mubr.bf16.gmra.mrb[0].mxu0 %v4448
    %v5729 = vpop.f32.mrb[0].mxu0
    %v5730 = vadd.f32 %v5617, %v5729
    %v5731 = vpop.f32.mrb[0].mxu0
    %v5732 = vadd.f32 %v5619, %v5731
    %v5733 = vpop.f32.mrb[0].mxu0
    %v5734 = vadd.f32 %v5621, %v5733
    %v5735 = vpop.f32.mrb[0].mxu0
    %v5736 = vadd.f32 %v5623, %v5735
    %5737 = vmatprep.mubr.bf16.mxu0 %v4455
    %5738 = vmatmul.mubr.bf16.gmra.mrb[0].mxu0 %v4454
    %v5739 = vpop.f32.mrb[0].mxu0
    %v5740 = vadd.f32 %v5627, %v5739
    %v5741 = vpop.f32.mrb[0].mxu0
    %v5742 = vadd.f32 %v5629, %v5741
    %v5743 = vpop.f32.mrb[0].mxu0
    %v5744 = vadd.f32 %v5631, %v5743
    %v5745 = vpop.f32.mrb[0].mxu0
    %v5746 = vadd.f32 %v5633, %v5745
    %5747 = vmatprep.mubr.bf16.mxu0 %v4461
    %5748 = vmatmul.mubr.bf16.gmra.mrb[0].mxu0 %v4460
    %v5749 = vpop.f32.mrb[0].mxu0
    %v5750 = vadd.f32 %v5637, %v5749
    %v5751 = vpop.f32.mrb[0].mxu0
    %v5752 = vadd.f32 %v5639, %v5751
    %v5753 = vpop.f32.mrb[0].mxu0
    %v5754 = vadd.f32 %v5641, %v5753
    %v5755 = vpop.f32.mrb[0].mxu0
    %v5756 = vadd.f32 %v5643, %v5755
    %5757 = vmatprep.mubr.bf16.mxu0 %v4467
    %5758 = vmatmul.mubr.bf16.gmra.mrb[0].mxu0 %v4466
    %v5759 = vpop.f32.mrb[0].mxu0
    %v5760 = vadd.f32 %v5647, %v5759
    %v5761 = vpop.f32.mrb[0].mxu0
    %v5762 = vadd.f32 %v5649, %v5761
    %v5763 = vpop.f32.mrb[0].mxu0
    %v5764 = vadd.f32 %v5651, %v5763
    %v5765 = vpop.f32.mrb[0].mxu0
    %v5766 = vadd.f32 %v5653, %v5765
    %5767 = vmatprep.mubr.bf16.mxu0 %v4473
    %5768 = vmatmul.mubr.bf16.gmra.mrb[0].mxu0 %v4472
    %v5769 = vpop.f32.mrb[0].mxu0
    %v5770 = vadd.f32 %v5657, %v5769
    %v5771 = vpop.f32.mrb[0].mxu0
    %v5772 = vadd.f32 %v5659, %v5771
    %v5773 = vpop.f32.mrb[0].mxu0
    %v5774 = vadd.f32 %v5661, %v5773
    %v5775 = vpop.f32.mrb[0].mxu0
    %v5776 = vadd.f32 %v5663, %v5775
    %5777 = vmatprep.mubr.bf16.mxu0 %v4479
    %5778 = vmatmul.mubr.bf16.gmra.mrb[0].mxu0 %v4478
    %v5779 = vpop.f32.mrb[0].mxu0
    %v5780 = vadd.f32 %v5667, %v5779
    %v5781 = vpop.f32.mrb[0].mxu0
    %v5782 = vadd.f32 %v5669, %v5781
    %v5783 = vpop.f32.mrb[0].mxu0
    %v5784 = vadd.f32 %v5671, %v5783
    %v5785 = vpop.f32.mrb[0].mxu0
    %v5786 = vadd.f32 %v5673, %v5785
    %5787 = vmatprep.mubr.bf16.mxu0 %v4485
    %5788 = vmatmul.mubr.bf16.gmra.mrb[0].mxu0 %v4484
    %v5789 = vpop.f32.mrb[0].mxu0
    %v5790 = vadd.f32 %v5677, %v5789
    %v5791 = vpop.f32.mrb[0].mxu0
    %v5792 = vadd.f32 %v5679, %v5791
    %v5793 = vpop.f32.mrb[0].mxu0
    %v5794 = vadd.f32 %v5681, %v5793
    %v5795 = vpop.f32.mrb[0].mxu0
    %v5796 = vadd.f32 %v5683, %v5795
    %5797 = vmatprep.mubr.bf16.mxu0 %v4491
    %5798 = vmatmul.mubr.bf16.gmra.mrb[0].mxu0 %v4490
    %v5799 = vpop.f32.mrb[0].mxu0
    %v5800 = vadd.f32 %v5687, %v5799
    %v5801 = vpop.f32.mrb[0].mxu0
    %v5802 = vadd.f32 %v5689, %v5801
    %v5803 = vpop.f32.mrb[0].mxu0
    %v5804 = vadd.f32 %v5691, %v5803
    %v5805 = vpop.f32.mrb[0].mxu0
    %v5806 = vadd.f32 %v5693, %v5805
    %5807 = vdwg.mxu0
    %5808 = vmatprep.subr.bf16.mxu0 0
    %5809 = vmatpush1.bf16.msra.mxu0 %v5183
    %5810 = vmatprep.subr.bf16.mxu0 0
    %5811 = vmatpush1.bf16.msra.mxu0 %v5186
    %5812 = vmatprep.subr.bf16.mxu0 0
    %5813 = vmatpush1.bf16.msra.mxu0 %v5189
    %5814 = vmatprep.subr.bf16.mxu0 0
    %5815 = vmatpush1.bf16.msra.mxu0 %v5192
    %5816 = vmatprep.subr.bf16.mxu0 0
    %5817 = vmatpush1.bf16.msra.mxu0 %v5195
    %5818 = vmatprep.subr.bf16.mxu0 0
    %5819 = vmatpush1.bf16.msra.mxu0 %v5198
    %5820 = vmatprep.subr.bf16.mxu0 0
    %5821 = vmatpush1.bf16.msra.mxu0 %v5201
    %5822 = vmatprep.subr.bf16.mxu0 0
    %5823 = vmatpush1.bf16.msra.mxu0 %v5204
    %5824 = vmatprep.subr.bf16.mxu0 0
    %5825 = vmatpush1.bf16.msra.mxu0 %v5207
    %5826 = vmatprep.subr.bf16.mxu0 0
    %5827 = vmatpush1.bf16.msra.mxu0 %v5210
    %5828 = vmatprep.subr.bf16.mxu0 0
    %5829 = vmatpush1.bf16.msra.mxu0 %v5213
    %5830 = vmatprep.subr.bf16.mxu0 0
    %5831 = vmatpush1.bf16.msra.mxu0 %v5216
    %5832 = vmatprep.subr.bf16.mxu0 0
    %5833 = vmatpush1.bf16.msra.mxu0 %v5219
    %5834 = vmatprep.subr.bf16.mxu0 0
    %5835 = vmatpush1.bf16.msra.mxu0 %v5222
    %5836 = vmatprep.subr.bf16.mxu0 0
    %5837 = vmatpush1.bf16.msra.mxu0 %v5225
    %5838 = vmatprep.subr.bf16.mxu0 0
    %5839 = vmatpush1.bf16.msra.mxu0 %v5228
    %5840 = vmatprep.mubr.bf16.mxu0 %v4445
    %5841 = vmatmul.mubr.bf16.gmra.mrb[0].mxu0 %v4444
    %v5842 = vpop.f32.mrb[0].mxu0
    %v5843 = vadd.f32 %v4697, %v5842
    %v5844 = vpop.f32.mrb[0].mxu0
    %v5845 = vpop.f32.mrb[0].mxu0
    %v5846 = vadd.f32 %v4697, %v5845
    %v5847 = vpop.f32.mrb[0].mxu0
    %5848 = vmatprep.mubr.bf16.mxu0 %v4451
    %5849 = vmatmul.mubr.bf16.gmra.mrb[0].mxu0 %v4450
    %v5850 = vpop.f32.mrb[0].mxu0
    %v5851 = vadd.f32 %v4697, %v5850
    %v5852 = vpop.f32.mrb[0].mxu0
    %v5853 = vpop.f32.mrb[0].mxu0
    %v5854 = vadd.f32 %v4697, %v5853
    %v5855 = vpop.f32.mrb[0].mxu0
    %5856 = vmatprep.mubr.bf16.mxu0 %v4457
    %5857 = vmatmul.mubr.bf16.gmra.mrb[0].mxu0 %v4456
    %v5858 = vpop.f32.mrb[0].mxu0
    %v5859 = vadd.f32 %v4697, %v5858
    %v5860 = vpop.f32.mrb[0].mxu0
    %v5861 = vpop.f32.mrb[0].mxu0
    %v5862 = vadd.f32 %v4697, %v5861
    %v5863 = vpop.f32.mrb[0].mxu0
    %5864 = vmatprep.mubr.bf16.mxu0 %v4463
    %5865 = vmatmul.mubr.bf16.gmra.mrb[0].mxu0 %v4462
    %v5866 = vpop.f32.mrb[0].mxu0
    %v5867 = vadd.f32 %v4697, %v5866
    %v5868 = vpop.f32.mrb[0].mxu0
    %v5869 = vpop.f32.mrb[0].mxu0
    %v5870 = vadd.f32 %v4697, %v5869
    %v5871 = vpop.f32.mrb[0].mxu0
    %5872 = vmatprep.mubr.bf16.mxu0 %v4469
    %5873 = vmatmul.mubr.bf16.gmra.mrb[0].mxu0 %v4468
    %v5874 = vpop.f32.mrb[0].mxu0
    %v5875 = vadd.f32 %v4697, %v5874
    %v5876 = vpop.f32.mrb[0].mxu0
    %v5877 = vpop.f32.mrb[0].mxu0
    %v5878 = vadd.f32 %v4697, %v5877
    %v5879 = vpop.f32.mrb[0].mxu0
    %5880 = vmatprep.mubr.bf16.mxu0 %v4475
    %5881 = vmatmul.mubr.bf16.gmra.mrb[0].mxu0 %v4474
    %v5882 = vpop.f32.mrb[0].mxu0
    %v5883 = vadd.f32 %v4697, %v5882
    %v5884 = vpop.f32.mrb[0].mxu0
    %v5885 = vpop.f32.mrb[0].mxu0
    %v5886 = vadd.f32 %v4697, %v5885
    %v5887 = vpop.f32.mrb[0].mxu0
    %5888 = vmatprep.mubr.bf16.mxu0 %v4481
    %5889 = vmatmul.mubr.bf16.gmra.mrb[0].mxu0 %v4480
    %v5890 = vpop.f32.mrb[0].mxu0
    %v5891 = vadd.f32 %v4697, %v5890
    %v5892 = vpop.f32.mrb[0].mxu0
    %v5893 = vpop.f32.mrb[0].mxu0
    %v5894 = vadd.f32 %v4697, %v5893
    %v5895 = vpop.f32.mrb[0].mxu0
    %5896 = vmatprep.mubr.bf16.mxu0 %v4487
    %5897 = vmatmul.mubr.bf16.gmra.mrb[0].mxu0 %v4486
    %v5898 = vpop.f32.mrb[0].mxu0
    %v5899 = vadd.f32 %v4697, %v5898
    %v5900 = vpop.f32.mrb[0].mxu0
    %v5901 = vpop.f32.mrb[0].mxu0
    %v5902 = vadd.f32 %v4697, %v5901
    %v5903 = vpop.f32.mrb[0].mxu0
    %5904 = vdwg.mxu0
    %5905 = vmatprep.subr.bf16.mxu0 0
    %5906 = vmatpush1.bf16.msra.mxu0 %v5231
    %5907 = vmatprep.subr.bf16.mxu0 0
    %5908 = vmatpush1.bf16.msra.mxu0 %v5234
    %5909 = vmatprep.subr.bf16.mxu0 0
    %5910 = vmatpush1.bf16.msra.mxu0 %v5237
    %5911 = vmatprep.subr.bf16.mxu0 0
    %5912 = vmatpush1.bf16.msra.mxu0 %v5240
    %5913 = vmatprep.subr.bf16.mxu0 0
    %5914 = vmatpush1.bf16.msra.mxu0 %v5243
    %5915 = vmatprep.subr.bf16.mxu0 0
    %5916 = vmatpush1.bf16.msra.mxu0 %v5246
    %5917 = vmatprep.subr.bf16.mxu0 0
    %5918 = vmatpush1.bf16.msra.mxu0 %v5249
    %5919 = vmatprep.subr.bf16.mxu0 0
    %5920 = vmatpush1.bf16.msra.mxu0 %v5252
    %5921 = vmatprep.subr.bf16.mxu0 0
    %5922 = vmatpush1.bf16.msra.mxu0 %v5255
    %5923 = vmatprep.subr.bf16.mxu0 0
    %5924 = vmatpush1.bf16.msra.mxu0 %v5258
    %5925 = vmatprep.subr.bf16.mxu0 0
    %5926 = vmatpush1.bf16.msra.mxu0 %v5261
    %5927 = vmatprep.subr.bf16.mxu0 0
    %5928 = vmatpush1.bf16.msra.mxu0 %v5264
    %5929 = vmatprep.subr.bf16.mxu0 0
    %5930 = vmatpush1.bf16.msra.mxu0 %v5267
    %5931 = vmatprep.subr.bf16.mxu0 0
    %5932 = vmatpush1.bf16.msra.mxu0 %v5270
    %5933 = vmatprep.subr.bf16.mxu0 0
    %5934 = vmatpush1.bf16.msra.mxu0 %v5273
    %5935 = vmatprep.subr.bf16.mxu0 0
    %5936 = vmatpush1.bf16.msra.mxu0 %v5276
    %5937 = vmatprep.mubr.bf16.mxu0 %v4447
    %5938 = vmatmul.mubr.bf16.gmra.mrb[0].mxu0 %v4446
    %v5939 = vpop.f32.mrb[0].mxu0
    %v5940 = vadd.f32 %v5843, %v5939
    %v5941 = vpop.f32.mrb[0].mxu0
    %v5942 = vpop.f32.mrb[0].mxu0
    %v5943 = vadd.f32 %v5846, %v5942
    %v5944 = vpop.f32.mrb[0].mxu0
    %5945 = vmatprep.mubr.bf16.mxu0 %v4453
    %5946 = vmatmul.mubr.bf16.gmra.mrb[0].mxu0 %v4452
    %v5947 = vpop.f32.mrb[0].mxu0
    %v5948 = vadd.f32 %v5851, %v5947
    %v5949 = vpop.f32.mrb[0].mxu0
    %v5950 = vpop.f32.mrb[0].mxu0
    %v5951 = vadd.f32 %v5854, %v5950
    %v5952 = vpop.f32.mrb[0].mxu0
    %5953 = vmatprep.mubr.bf16.mxu0 %v4459
    %5954 = vmatmul.mubr.bf16.gmra.mrb[0].mxu0 %v4458
    %v5955 = vpop.f32.mrb[0].mxu0
    %v5956 = vadd.f32 %v5859, %v5955
    %v5957 = vpop.f32.mrb[0].mxu0
    %v5958 = vpop.f32.mrb[0].mxu0
    %v5959 = vadd.f32 %v5862, %v5958
    %v5960 = vpop.f32.mrb[0].mxu0
    %5961 = vmatprep.mubr.bf16.mxu0 %v4465
    %5962 = vmatmul.mubr.bf16.gmra.mrb[0].mxu0 %v4464
    %v5963 = vpop.f32.mrb[0].mxu0
    %v5964 = vadd.f32 %v5867, %v5963
    %v5965 = vpop.f32.mrb[0].mxu0
    %v5966 = vpop.f32.mrb[0].mxu0
    %v5967 = vadd.f32 %v5870, %v5966
    %v5968 = vpop.f32.mrb[0].mxu0
    %5969 = vmatprep.mubr.bf16.mxu0 %v4471
    %5970 = vmatmul.mubr.bf16.gmra.mrb[0].mxu0 %v4470
    %v5971 = vpop.f32.mrb[0].mxu0
    %v5972 = vadd.f32 %v5875, %v5971
    %v5973 = vpop.f32.mrb[0].mxu0
    %v5974 = vpop.f32.mrb[0].mxu0
    %v5975 = vadd.f32 %v5878, %v5974
    %v5976 = vpop.f32.mrb[0].mxu0
    %5977 = vmatprep.mubr.bf16.mxu0 %v4477
    %5978 = vmatmul.mubr.bf16.gmra.mrb[0].mxu0 %v4476
    %v5979 = vpop.f32.mrb[0].mxu0
    %v5980 = vadd.f32 %v5883, %v5979
    %v5981 = vpop.f32.mrb[0].mxu0
    %v5982 = vpop.f32.mrb[0].mxu0
    %v5983 = vadd.f32 %v5886, %v5982
    %v5984 = vpop.f32.mrb[0].mxu0
    %5985 = vmatprep.mubr.bf16.mxu0 %v4483
    %5986 = vmatmul.mubr.bf16.gmra.mrb[0].mxu0 %v4482
    %v5987 = vpop.f32.mrb[0].mxu0
    %v5988 = vadd.f32 %v5891, %v5987
    %v5989 = vpop.f32.mrb[0].mxu0
    %v5990 = vpop.f32.mrb[0].mxu0
    %v5991 = vadd.f32 %v5894, %v5990
    %v5992 = vpop.f32.mrb[0].mxu0
    %5993 = vmatprep.mubr.bf16.mxu0 %v4489
    %5994 = vmatmul.mubr.bf16.gmra.mrb[0].mxu0 %v4488
    %v5995 = vpop.f32.mrb[0].mxu0
    %v5996 = vadd.f32 %v5899, %v5995
    %v5997 = vpop.f32.mrb[0].mxu0
    %v5998 = vpop.f32.mrb[0].mxu0
    %v5999 = vadd.f32 %v5902, %v5998
    %v6000 = vpop.f32.mrb[0].mxu0
    %6001 = vdwg.mxu0
    %6002 = vmatprep.subr.bf16.mxu0 0
    %6003 = vmatpush1.bf16.msra.mxu0 %v5279
    %6004 = vmatprep.subr.bf16.mxu0 0
    %6005 = vmatpush1.bf16.msra.mxu0 %v5282
    %6006 = vmatprep.subr.bf16.mxu0 0
    %6007 = vmatpush1.bf16.msra.mxu0 %v5285
    %6008 = vmatprep.subr.bf16.mxu0 0
    %6009 = vmatpush1.bf16.msra.mxu0 %v5288
    %6010 = vmatprep.subr.bf16.mxu0 0
    %6011 = vmatpush1.bf16.msra.mxu0 %v5291
    %6012 = vmatprep.subr.bf16.mxu0 0
    %6013 = vmatpush1.bf16.msra.mxu0 %v5294
    %6014 = vmatprep.subr.bf16.mxu0 0
    %6015 = vmatpush1.bf16.msra.mxu0 %v5297
    %6016 = vmatprep.subr.bf16.mxu0 0
    %6017 = vmatpush1.bf16.msra.mxu0 %v5300
    %6018 = vmatprep.subr.bf16.mxu0 0
    %6019 = vmatpush1.bf16.msra.mxu0 %v5303
    %6020 = vmatprep.subr.bf16.mxu0 0
    %6021 = vmatpush1.bf16.msra.mxu0 %v5306
    %6022 = vmatprep.subr.bf16.mxu0 0
    %6023 = vmatpush1.bf16.msra.mxu0 %v5309
    %6024 = vmatprep.subr.bf16.mxu0 0
    %6025 = vmatpush1.bf16.msra.mxu0 %v5312
    %6026 = vmatprep.subr.bf16.mxu0 0
    %6027 = vmatpush1.bf16.msra.mxu0 %v5315
    %6028 = vmatprep.subr.bf16.mxu0 0
    %6029 = vmatpush1.bf16.msra.mxu0 %v5318
    %6030 = vmatprep.subr.bf16.mxu0 0
    %6031 = vmatpush1.bf16.msra.mxu0 %v5321
    %6032 = vmatprep.subr.bf16.mxu0 0
    %6033 = vmatpush1.bf16.msra.mxu0 %v5324
    %6034 = vmatprep.mubr.bf16.mxu0 %v4449
    %6035 = vmatmul.mubr.bf16.gmra.mrb[0].mxu0 %v4448
    %v6036 = vpop.f32.mrb[0].mxu0
    %v6037 = vadd.f32 %v5940, %v6036
    %v6038 = vpop.f32.mrb[0].mxu0
    %v6039 = vpop.f32.mrb[0].mxu0
    %v6040 = vadd.f32 %v5943, %v6039
    %v6041 = vpop.f32.mrb[0].mxu0
    %6042 = vmatprep.mubr.bf16.mxu0 %v4455
    %6043 = vmatmul.mubr.bf16.gmra.mrb[0].mxu0 %v4454
    %v6044 = vpop.f32.mrb[0].mxu0
    %v6045 = vadd.f32 %v5948, %v6044
    %v6046 = vpop.f32.mrb[0].mxu0
    %v6047 = vpop.f32.mrb[0].mxu0
    %v6048 = vadd.f32 %v5951, %v6047
    %v6049 = vpop.f32.mrb[0].mxu0
    %6050 = vmatprep.mubr.bf16.mxu0 %v4461
    %6051 = vmatmul.mubr.bf16.gmra.mrb[0].mxu0 %v4460
    %v6052 = vpop.f32.mrb[0].mxu0
    %v6053 = vadd.f32 %v5956, %v6052
    %v6054 = vpop.f32.mrb[0].mxu0
    %v6055 = vpop.f32.mrb[0].mxu0
    %v6056 = vadd.f32 %v5959, %v6055
    %v6057 = vpop.f32.mrb[0].mxu0
    %6058 = vmatprep.mubr.bf16.mxu0 %v4467
    %6059 = vmatmul.mubr.bf16.gmra.mrb[0].mxu0 %v4466
    %v6060 = vpop.f32.mrb[0].mxu0
    %v6061 = vadd.f32 %v5964, %v6060
    %v6062 = vpop.f32.mrb[0].mxu0
    %v6063 = vpop.f32.mrb[0].mxu0
    %v6064 = vadd.f32 %v5967, %v6063
    %v6065 = vpop.f32.mrb[0].mxu0
    %6066 = vmatprep.mubr.bf16.mxu0 %v4473
    %6067 = vmatmul.mubr.bf16.gmra.mrb[0].mxu0 %v4472
    %v6068 = vpop.f32.mrb[0].mxu0
    %v6069 = vadd.f32 %v5972, %v6068
    %v6070 = vpop.f32.mrb[0].mxu0
    %v6071 = vpop.f32.mrb[0].mxu0
    %v6072 = vadd.f32 %v5975, %v6071
    %v6073 = vpop.f32.mrb[0].mxu0
    %6074 = vmatprep.mubr.bf16.mxu0 %v4479
    %6075 = vmatmul.mubr.bf16.gmra.mrb[0].mxu0 %v4478
    %v6076 = vpop.f32.mrb[0].mxu0
    %v6077 = vadd.f32 %v5980, %v6076
    %v6078 = vpop.f32.mrb[0].mxu0
    %v6079 = vpop.f32.mrb[0].mxu0
    %v6080 = vadd.f32 %v5983, %v6079
    %v6081 = vpop.f32.mrb[0].mxu0
    %6082 = vmatprep.mubr.bf16.mxu0 %v4485
    %6083 = vmatmul.mubr.bf16.gmra.mrb[0].mxu0 %v4484
    %v6084 = vpop.f32.mrb[0].mxu0
    %v6085 = vadd.f32 %v5988, %v6084
    %v6086 = vpop.f32.mrb[0].mxu0
    %v6087 = vpop.f32.mrb[0].mxu0
    %v6088 = vadd.f32 %v5991, %v6087
    %v6089 = vpop.f32.mrb[0].mxu0
    %6090 = vmatprep.mubr.bf16.mxu0 %v4491
    %6091 = vmatmul.mubr.bf16.gmra.mrb[0].mxu0 %v4490
    %v6092 = vpop.f32.mrb[0].mxu0
    %v6093 = vadd.f32 %v5996, %v6092
    %v6094 = vpop.f32.mrb[0].mxu0
    %v6095 = vpop.f32.mrb[0].mxu0
    %v6096 = vadd.f32 %v5999, %v6095
    %v6097 = vpop.f32.mrb[0].mxu0
    %6098 = vdwg.mxu0
    %v6099 = vmax.f32 %v5730, 0.0
    %v6100 = vmax.f32 %v5732, 0.0
    %v6101 = vmax.f32 %v6037, 0.0
    %v6102 = vmax.f32 %v5734, 0.0
    %v6103 = vmax.f32 %v5736, 0.0
    %v6104 = vmax.f32 %v6040, 0.0
    %v6105 = vmax.f32 %v5740, 0.0
    %v6106 = vmax.f32 %v5742, 0.0
    %v6107 = vmax.f32 %v6045, 0.0
    %v6108 = vmax.f32 %v5744, 0.0
    %v6109 = vmax.f32 %v5746, 0.0
    %v6110 = vmax.f32 %v6048, 0.0
    %v6111 = vmax.f32 %v5750, 0.0
    %v6112 = vmax.f32 %v5752, 0.0
    %v6113 = vmax.f32 %v6053, 0.0
    %v6114 = vmax.f32 %v5754, 0.0
    %v6115 = vmax.f32 %v5756, 0.0
    %v6116 = vmax.f32 %v6056, 0.0
    %v6117 = vmax.f32 %v5760, 0.0
    %v6118 = vmax.f32 %v5762, 0.0
    %v6119 = vmax.f32 %v6061, 0.0
    %v6120 = vmax.f32 %v5764, 0.0
    %v6121 = vmax.f32 %v5766, 0.0
    %v6122 = vmax.f32 %v6064, 0.0
    %v6123 = vmax.f32 %v5770, 0.0
    %v6124 = vmax.f32 %v5772, 0.0
    %v6125 = vmax.f32 %v6069, 0.0
    %v6126 = vmax.f32 %v5774, 0.0
    %v6127 = vmax.f32 %v5776, 0.0
    %v6128 = vmax.f32 %v6072, 0.0
    %v6129 = vmax.f32 %v5780, 0.0
    %v6130 = vmax.f32 %v5782, 0.0
    %v6131 = vmax.f32 %v6077, 0.0
    %v6132 = vmax.f32 %v5784, 0.0
    %v6133 = vmax.f32 %v5786, 0.0
    %v6134 = vmax.f32 %v6080, 0.0
    %v6135 = vmax.f32 %v5790, 0.0
    %v6136 = vmax.f32 %v5792, 0.0
    %v6137 = vmax.f32 %v6085, 0.0
    %v6138 = vmax.f32 %v5794, 0.0
    %v6139 = vmax.f32 %v5796, 0.0
    %v6140 = vmax.f32 %v6088, 0.0
    %v6141 = vmax.f32 %v5800, 0.0
    %v6142 = vmax.f32 %v5802, 0.0
    %v6143 = vmax.f32 %v6093, 0.0
    %v6144 = vmax.f32 %v5804, 0.0
    %v6145 = vmax.f32 %v5806, 0.0
    %v6146 = vmax.f32 %v6096, 0.0
    %v6147 = vpack.c.bf16 %v6102, %v6099
    %v6148 = vpack.c.bf16 %v6103, %v6100
    %v6149 = vpack.c.bf16 %v6104, %v6101
    %v6150 = vpack.c.bf16 %v6108, %v6105
    %v6151 = vpack.c.bf16 %v6109, %v6106
    %v6152 = vpack.c.bf16 %v6110, %v6107
    %v6153 = vpack.c.bf16 %v6114, %v6111
    %v6154 = vpack.c.bf16 %v6115, %v6112
    %v6155 = vpack.c.bf16 %v6116, %v6113
    %v6156 = vpack.c.bf16 %v6120, %v6117
    %v6157 = vpack.c.bf16 %v6121, %v6118
    %v6158 = vpack.c.bf16 %v6122, %v6119
    %v6159 = vpack.c.bf16 %v6126, %v6123
    %v6160 = vpack.c.bf16 %v6127, %v6124
    %v6161 = vpack.c.bf16 %v6128, %v6125
    %v6162 = vpack.c.bf16 %v6132, %v6129
    %v6163 = vpack.c.bf16 %v6133, %v6130
    %v6164 = vpack.c.bf16 %v6134, %v6131
    %v6165 = vpack.c.bf16 %v6138, %v6135
    %v6166 = vpack.c.bf16 %v6139, %v6136
    %v6167 = vpack.c.bf16 %v6140, %v6137
    %v6168 = vpack.c.bf16 %v6144, %v6141
    %v6169 = vpack.c.bf16 %v6145, %v6142
    %v6170 = vpack.c.bf16 %v6146, %v6143
    %v6171 = vld [vmem:[#allocation11] sm:$0xff]
    %v6172 = vld [vmem:[#allocation11 + $0x8] sm:$0xff]
    %v6173 = vld [vmem:[#allocation11 + $0x10] sm:$0xff]
    %v6174 = vld [vmem:[#allocation11 + $0x18] sm:$0xff]
    %v6175 = vld [vmem:[#allocation11 + $0x20] sm:$0xff]
    %v6176 = vld [vmem:[#allocation11 + $0x28] sm:$0xff]
    %v6177 = vld [vmem:[#allocation11 + $0x30] sm:$0xff]
    %v6178 = vld [vmem:[#allocation11 + $0x38] sm:$0xff]
    %v6179 = vld [vmem:[#allocation11 + $0x40] sm:$0xff]
    %v6180 = vld [vmem:[#allocation11 + $0x48] sm:$0xff]
    %v6181 = vld [vmem:[#allocation11 + $0x50] sm:$0xff]
    %v6182 = vld [vmem:[#allocation11 + $0x58] sm:$0xff]
    %v6183 = vld [vmem:[#allocation11 + $0x60] sm:$0xff]
    %v6184 = vld [vmem:[#allocation11 + $0x68] sm:$0xff]
    %v6185 = vld [vmem:[#allocation11 + $0x70] sm:$0xff]
    %v6186 = vld [vmem:[#allocation11 + $0x78] sm:$0xff]
    %v6187 = vld [vmem:[#allocation11 + $0x80] sm:$0xff]
    %v6188 = vld [vmem:[#allocation11 + $0x88] sm:$0xff]
    %v6189 = vld [vmem:[#allocation11 + $0x90] sm:$0xff]
    %v6190 = vld [vmem:[#allocation11 + $0x98] sm:$0xff]
    %v6191 = vld [vmem:[#allocation11 + $0xa0] sm:$0xff]
    %v6192 = vld [vmem:[#allocation11 + $0xa8] sm:$0xff]
    %v6193 = vld [vmem:[#allocation11 + $0xb0] sm:$0xff]
    %v6194 = vld [vmem:[#allocation11 + $0xb8] sm:$0xff]
    %v6195 = vld [vmem:[#allocation11 + $0xc0] sm:$0xff]
    %v6196 = vld [vmem:[#allocation11 + $0xc8] sm:$0xff]
    %v6197 = vld [vmem:[#allocation11 + $0xd0] sm:$0xff]
    %v6198 = vld [vmem:[#allocation11 + $0xd8] sm:$0xff]
    %v6199 = vld [vmem:[#allocation11 + $0xe0] sm:$0xff]
    %v6200 = vld [vmem:[#allocation11 + $0xe8] sm:$0xff]
    %v6201 = vld [vmem:[#allocation11 + $0xf0] sm:$0xff]
    %v6202 = vld [vmem:[#allocation11 + $0xf8] sm:$0xff]
    %v6203 = vld [vmem:[#allocation11 + $0x100] sm:$0xff]
    %v6204 = vld [vmem:[#allocation11 + $0x108] sm:$0xff]
    %v6205 = vld [vmem:[#allocation11 + $0x110] sm:$0xff]
    %v6206 = vld [vmem:[#allocation11 + $0x118] sm:$0xff]
    %v6207 = vld [vmem:[#allocation11 + $0x120] sm:$0xff]
    %v6208 = vld [vmem:[#allocation11 + $0x128] sm:$0xff]
    %v6209 = vld [vmem:[#allocation11 + $0x130] sm:$0xff]
    %v6210 = vld [vmem:[#allocation11 + $0x138] sm:$0xff]
    %v6211 = vld [vmem:[#allocation11 + $0x140] sm:$0xff]
    %v6212 = vld [vmem:[#allocation11 + $0x148] sm:$0xff]
    %v6213 = vld [vmem:[#allocation11 + $0x150] sm:$0xff]
    %v6214 = vld [vmem:[#allocation11 + $0x158] sm:$0xff]
    %v6215 = vld [vmem:[#allocation11 + $0x160] sm:$0xff]
    %v6216 = vld [vmem:[#allocation11 + $0x168] sm:$0xff]
    %v6217 = vld [vmem:[#allocation11 + $0x170] sm:$0xff]
    %v6218 = vld [vmem:[#allocation11 + $0x178] sm:$0xff]
    %v6219 = vld [vmem:[#allocation13] sm:$0x3]
    %v6221 = vlaneseq
    %v6222 = vshrl.u32 %v6221, 7
    %v6223 = vsub.s32 0, %v6222
    %v6224 = vrot.slane %v6219, %v6223
    %v6225 = vlaneseq
    %v6226 = vshrl.u32 %v6225, 7
    %v6227 = vsub.s32 1, %v6226
    %v6228 = vrot.slane %v6219, %v6227
    %v6279 = vunpack.c.l.b16 %v6171
    %v6280 = vunpack.c.h.b16 %v6171
    %v6281 = vunpack.c.l.b16 %v6172
    %v6282 = vunpack.c.h.b16 %v6172
    %v6283 = vunpack.c.l.b16 %v6173
    %v6284 = vunpack.c.h.b16 %v6173
    %v6285 = vunpack.c.l.b16 %v6174
    %v6286 = vunpack.c.h.b16 %v6174
    %v6287 = vunpack.c.l.b16 %v6175
    %v6288 = vunpack.c.h.b16 %v6175
    %v6289 = vunpack.c.l.b16 %v6176
    %v6290 = vunpack.c.h.b16 %v6176
    %v6291 = vunpack.c.l.b16 %v6177
    %v6292 = vunpack.c.h.b16 %v6177
    %v6293 = vunpack.c.l.b16 %v6178
    %v6294 = vunpack.c.h.b16 %v6178
    %v6295 = vunpack.c.l.b16 %v6179
    %v6296 = vunpack.c.h.b16 %v6179
    %v6297 = vunpack.c.l.b16 %v6180
    %v6298 = vunpack.c.h.b16 %v6180
    %v6299 = vunpack.c.l.b16 %v6181
    %v6300 = vunpack.c.h.b16 %v6181
    %v6301 = vunpack.c.l.b16 %v6182
    %v6302 = vunpack.c.h.b16 %v6182
    %v6303 = vunpack.c.l.b16 %v6183
    %v6304 = vunpack.c.h.b16 %v6183
    %v6305 = vunpack.c.l.b16 %v6184
    %v6306 = vunpack.c.h.b16 %v6184
    %v6307 = vunpack.c.l.b16 %v6185
    %v6308 = vunpack.c.h.b16 %v6185
    %v6309 = vunpack.c.l.b16 %v6186
    %v6310 = vunpack.c.h.b16 %v6186
    %v6311 = vunpack.c.l.b16 %v6187
    %v6312 = vunpack.c.h.b16 %v6187
    %v6313 = vunpack.c.l.b16 %v6188
    %v6314 = vunpack.c.h.b16 %v6188
    %v6315 = vunpack.c.l.b16 %v6189
    %v6316 = vunpack.c.h.b16 %v6189
    %v6317 = vunpack.c.l.b16 %v6190
    %v6318 = vunpack.c.h.b16 %v6190
    %v6319 = vunpack.c.l.b16 %v6191
    %v6320 = vunpack.c.h.b16 %v6191
    %v6321 = vunpack.c.l.b16 %v6192
    %v6322 = vunpack.c.h.b16 %v6192
    %v6323 = vunpack.c.l.b16 %v6193
    %v6324 = vunpack.c.h.b16 %v6193
    %v6325 = vunpack.c.l.b16 %v6194
    %v6326 = vunpack.c.h.b16 %v6194
    %v6327 = vunpack.c.l.b16 %v6195
    %v6328 = vunpack.c.h.b16 %v6195
    %v6329 = vunpack.c.l.b16 %v6196
    %v6330 = vunpack.c.h.b16 %v6196
    %v6331 = vunpack.c.l.b16 %v6197
    %v6332 = vunpack.c.h.b16 %v6197
    %v6333 = vunpack.c.l.b16 %v6198
    %v6334 = vunpack.c.h.b16 %v6198
    %v6335 = vunpack.c.l.b16 %v6199
    %v6336 = vunpack.c.h.b16 %v6199
    %v6337 = vunpack.c.l.b16 %v6200
    %v6338 = vunpack.c.h.b16 %v6200
    %v6339 = vunpack.c.l.b16 %v6201
    %v6340 = vunpack.c.h.b16 %v6201
    %v6341 = vunpack.c.l.b16 %v6202
    %v6342 = vunpack.c.h.b16 %v6202
    %v6343 = vunpack.c.l.b16 %v6203
    %v6344 = vunpack.c.h.b16 %v6203
    %v6345 = vunpack.c.l.b16 %v6204
    %v6346 = vunpack.c.h.b16 %v6204
    %v6347 = vunpack.c.l.b16 %v6205
    %v6348 = vunpack.c.h.b16 %v6205
    %v6349 = vunpack.c.l.b16 %v6206
    %v6350 = vunpack.c.h.b16 %v6206
    %v6351 = vunpack.c.l.b16 %v6207
    %v6352 = vunpack.c.h.b16 %v6207
    %v6353 = vunpack.c.l.b16 %v6208
    %v6354 = vunpack.c.h.b16 %v6208
    %v6355 = vunpack.c.l.b16 %v6209
    %v6356 = vunpack.c.h.b16 %v6209
    %v6357 = vunpack.c.l.b16 %v6210
    %v6358 = vunpack.c.h.b16 %v6210
    %v6359 = vunpack.c.l.b16 %v6211
    %v6360 = vunpack.c.h.b16 %v6211
    %v6361 = vunpack.c.l.b16 %v6212
    %v6362 = vunpack.c.h.b16 %v6212
    %v6363 = vunpack.c.l.b16 %v6213
    %v6364 = vunpack.c.h.b16 %v6213
    %v6365 = vunpack.c.l.b16 %v6214
    %v6366 = vunpack.c.h.b16 %v6214
    %v6367 = vunpack.c.l.b16 %v6215
    %v6368 = vunpack.c.h.b16 %v6215
    %v6369 = vunpack.c.l.b16 %v6216
    %v6370 = vunpack.c.h.b16 %v6216
    %v6371 = vunpack.c.l.b16 %v6217
    %v6372 = vunpack.c.h.b16 %v6217
    %v6373 = vunpack.c.l.b16 %v6218
    %v6374 = vunpack.c.h.b16 %v6218
    %v6375 = vpack.c.b16 %v6281, %v6279
    %v6376 = vpack.c.b16 %v6282, %v6280
    %v6377 = vpack.c.b16 %v6285, %v6283
    %v6378 = vpack.c.b16 %v6286, %v6284
    %v6379 = vpack.c.b16 %v6289, %v6287
    %v6380 = vpack.c.b16 %v6290, %v6288
    %v6381 = vpack.c.b16 %v6293, %v6291
    %v6382 = vpack.c.b16 %v6294, %v6292
    %v6383 = vpack.c.b16 %v6297, %v6295
    %v6384 = vpack.c.b16 %v6298, %v6296
    %v6385 = vpack.c.b16 %v6301, %v6299
    %v6386 = vpack.c.b16 %v6302, %v6300
    %v6387 = vpack.c.b16 %v6305, %v6303
    %v6388 = vpack.c.b16 %v6306, %v6304
    %v6389 = vpack.c.b16 %v6309, %v6307
    %v6390 = vpack.c.b16 %v6310, %v6308
    %v6391 = vpack.c.b16 %v6313, %v6311
    %v6392 = vpack.c.b16 %v6314, %v6312
    %v6393 = vpack.c.b16 %v6317, %v6315
    %v6394 = vpack.c.b16 %v6318, %v6316
    %v6395 = vpack.c.b16 %v6321, %v6319
    %v6396 = vpack.c.b16 %v6322, %v6320
    %v6397 = vpack.c.b16 %v6325, %v6323
    %v6398 = vpack.c.b16 %v6326, %v6324
    %v6399 = vpack.c.b16 %v6329, %v6327
    %v6400 = vpack.c.b16 %v6330, %v6328
    %v6401 = vpack.c.b16 %v6333, %v6331
    %v6402 = vpack.c.b16 %v6334, %v6332
    %v6403 = vpack.c.b16 %v6337, %v6335
    %v6404 = vpack.c.b16 %v6338, %v6336
    %v6405 = vpack.c.b16 %v6341, %v6339
    %v6406 = vpack.c.b16 %v6342, %v6340
    %v6407 = vpack.c.b16 %v6345, %v6343
    %v6408 = vpack.c.b16 %v6346, %v6344
    %v6409 = vpack.c.b16 %v6349, %v6347
    %v6410 = vpack.c.b16 %v6350, %v6348
    %v6411 = vpack.c.b16 %v6353, %v6351
    %v6412 = vpack.c.b16 %v6354, %v6352
    %v6413 = vpack.c.b16 %v6357, %v6355
    %v6414 = vpack.c.b16 %v6358, %v6356
    %v6415 = vpack.c.b16 %v6361, %v6359
    %v6416 = vpack.c.b16 %v6362, %v6360
    %v6417 = vpack.c.b16 %v6365, %v6363
    %v6418 = vpack.c.b16 %v6366, %v6364
    %v6419 = vpack.c.b16 %v6369, %v6367
    %v6420 = vpack.c.b16 %v6370, %v6368
    %v6421 = vpack.c.b16 %v6373, %v6371
    %v6422 = vpack.c.b16 %v6374, %v6372
    %6471 = vmatprep.subr.bf16.mxu0 %v6376
    %6472 = vmatpush1.bf16.msra.mxu0 %v6375
    %6473 = vmatprep.subr.bf16.mxu0 %v6378
    %6474 = vmatpush1.bf16.msra.mxu0 %v6377
    %6475 = vmatprep.subr.bf16.mxu0 %v6380
    %6476 = vmatpush1.bf16.msra.mxu0 %v6379
    %6477 = vmatprep.subr.bf16.mxu0 %v6382
    %6478 = vmatpush1.bf16.msra.mxu0 %v6381
    %6479 = vmatprep.subr.bf16.mxu0 %v6384
    %6480 = vmatpush1.bf16.msra.mxu0 %v6383
    %6481 = vmatprep.subr.bf16.mxu0 %v6386
    %6482 = vmatpush1.bf16.msra.mxu0 %v6385
    %6483 = vmatprep.subr.bf16.mxu0 %v6388
    %6484 = vmatpush1.bf16.msra.mxu0 %v6387
    %6485 = vmatprep.subr.bf16.mxu0 %v6390
    %6486 = vmatpush1.bf16.msra.mxu0 %v6389
    %6487 = vmatprep.subr.bf16.mxu0 %v6392
    %6488 = vmatpush1.bf16.msra.mxu0 %v6391
    %6489 = vmatprep.subr.bf16.mxu0 %v6394
    %6490 = vmatpush1.bf16.msra.mxu0 %v6393
    %6491 = vmatprep.subr.bf16.mxu0 %v6396
    %6492 = vmatpush1.bf16.msra.mxu0 %v6395
    %6493 = vmatprep.subr.bf16.mxu0 %v6398
    %6494 = vmatpush1.bf16.msra.mxu0 %v6397
    %6495 = vmatprep.subr.bf16.mxu0 %v6400
    %6496 = vmatpush1.bf16.msra.mxu0 %v6399
    %6497 = vmatprep.subr.bf16.mxu0 %v6402
    %6498 = vmatpush1.bf16.msra.mxu0 %v6401
    %6499 = vmatprep.subr.bf16.mxu0 %v6404
    %6500 = vmatpush1.bf16.msra.mxu0 %v6403
    %6501 = vmatprep.subr.bf16.mxu0 %v6406
    %6502 = vmatpush1.bf16.msra.mxu0 %v6405
    %6503 = vmatprep.mubr.bf16.mxu0 %v6148
    %6504 = vmatmul.mubr.bf16.gmra.mrb[0].mxu0 %v6147
    %v6505 = vpop.f32.mrb[0].mxu0
    %v6506 = vadd.f32 %v6224, %v6505
    %v6507 = vpop.f32.mrb[0].mxu0
    %v6508 = vadd.f32 %v6228, %v6507
    %v6509 = vpop.f32.mrb[0].mxu0
    %v6510 = vadd.f32 %v6224, %v6509
    %v6511 = vpop.f32.mrb[0].mxu0
    %v6512 = vadd.f32 %v6228, %v6511
    %6513 = vmatprep.mubr.bf16.mxu0 %v6151
    %6514 = vmatmul.mubr.bf16.gmra.mrb[0].mxu0 %v6150
    %v6515 = vpop.f32.mrb[0].mxu0
    %v6516 = vadd.f32 %v6224, %v6515
    %v6517 = vpop.f32.mrb[0].mxu0
    %v6518 = vadd.f32 %v6228, %v6517
    %v6519 = vpop.f32.mrb[0].mxu0
    %v6520 = vadd.f32 %v6224, %v6519
    %v6521 = vpop.f32.mrb[0].mxu0
    %v6522 = vadd.f32 %v6228, %v6521
    %6523 = vmatprep.mubr.bf16.mxu0 %v6154
    %6524 = vmatmul.mubr.bf16.gmra.mrb[0].mxu0 %v6153
    %v6525 = vpop.f32.mrb[0].mxu0
    %v6526 = vadd.f32 %v6224, %v6525
    %v6527 = vpop.f32.mrb[0].mxu0
    %v6528 = vadd.f32 %v6228, %v6527
    %v6529 = vpop.f32.mrb[0].mxu0
    %v6530 = vadd.f32 %v6224, %v6529
    %v6531 = vpop.f32.mrb[0].mxu0
    %v6532 = vadd.f32 %v6228, %v6531
    %6533 = vmatprep.mubr.bf16.mxu0 %v6157
    %6534 = vmatmul.mubr.bf16.gmra.mrb[0].mxu0 %v6156
    %v6535 = vpop.f32.mrb[0].mxu0
    %v6536 = vadd.f32 %v6224, %v6535
    %v6537 = vpop.f32.mrb[0].mxu0
    %v6538 = vadd.f32 %v6228, %v6537
    %v6539 = vpop.f32.mrb[0].mxu0
    %v6540 = vadd.f32 %v6224, %v6539
    %v6541 = vpop.f32.mrb[0].mxu0
    %v6542 = vadd.f32 %v6228, %v6541
    %6543 = vmatprep.mubr.bf16.mxu0 %v6160
    %6544 = vmatmul.mubr.bf16.gmra.mrb[0].mxu0 %v6159
    %v6545 = vpop.f32.mrb[0].mxu0
    %v6546 = vadd.f32 %v6224, %v6545
    %v6547 = vpop.f32.mrb[0].mxu0
    %v6548 = vadd.f32 %v6228, %v6547
    %v6549 = vpop.f32.mrb[0].mxu0
    %v6550 = vadd.f32 %v6224, %v6549
    %v6551 = vpop.f32.mrb[0].mxu0
    %v6552 = vadd.f32 %v6228, %v6551
    %6553 = vmatprep.mubr.bf16.mxu0 %v6163
    %6554 = vmatmul.mubr.bf16.gmra.mrb[0].mxu0 %v6162
    %v6555 = vpop.f32.mrb[0].mxu0
    %v6556 = vadd.f32 %v6224, %v6555
    %v6557 = vpop.f32.mrb[0].mxu0
    %v6558 = vadd.f32 %v6228, %v6557
    %v6559 = vpop.f32.mrb[0].mxu0
    %v6560 = vadd.f32 %v6224, %v6559
    %v6561 = vpop.f32.mrb[0].mxu0
    %v6562 = vadd.f32 %v6228, %v6561
    %6563 = vmatprep.mubr.bf16.mxu0 %v6166
    %6564 = vmatmul.mubr.bf16.gmra.mrb[0].mxu0 %v6165
    %v6565 = vpop.f32.mrb[0].mxu0
    %v6566 = vadd.f32 %v6224, %v6565
    %v6567 = vpop.f32.mrb[0].mxu0
    %v6568 = vadd.f32 %v6228, %v6567
    %v6569 = vpop.f32.mrb[0].mxu0
    %v6570 = vadd.f32 %v6224, %v6569
    %v6571 = vpop.f32.mrb[0].mxu0
    %v6572 = vadd.f32 %v6228, %v6571
    %6573 = vmatprep.mubr.bf16.mxu0 %v6169
    %6574 = vmatmul.mubr.bf16.gmra.mrb[0].mxu0 %v6168
    %v6575 = vpop.f32.mrb[0].mxu0
    %v6576 = vadd.f32 %v6224, %v6575
    %v6577 = vpop.f32.mrb[0].mxu0
    %v6578 = vadd.f32 %v6228, %v6577
    %v6579 = vpop.f32.mrb[0].mxu0
    %v6580 = vadd.f32 %v6224, %v6579
    %v6581 = vpop.f32.mrb[0].mxu0
    %v6582 = vadd.f32 %v6228, %v6581
    %6583 = vdwg.mxu0
    %6584 = vmatprep.subr.bf16.mxu0 %v6408
    %6585 = vmatpush1.bf16.msra.mxu0 %v6407
    %6586 = vmatprep.subr.bf16.mxu0 %v6410
    %6587 = vmatpush1.bf16.msra.mxu0 %v6409
    %6588 = vmatprep.subr.bf16.mxu0 %v6412
    %6589 = vmatpush1.bf16.msra.mxu0 %v6411
    %6590 = vmatprep.subr.bf16.mxu0 %v6414
    %6591 = vmatpush1.bf16.msra.mxu0 %v6413
    %6592 = vmatprep.subr.bf16.mxu0 %v6416
    %6593 = vmatpush1.bf16.msra.mxu0 %v6415
    %6594 = vmatprep.subr.bf16.mxu0 %v6418
    %6595 = vmatpush1.bf16.msra.mxu0 %v6417
    %6596 = vmatprep.subr.bf16.mxu0 %v6420
    %6597 = vmatpush1.bf16.msra.mxu0 %v6419
    %6598 = vmatprep.subr.bf16.mxu0 %v6422
    %6599 = vmatpush1.bf16.msra.mxu0 %v6421
    %6600 = vmatprep.subr.bf16.mxu0 0
    %6601 = vmatpush1.bf16.msra.mxu0 0
    %6602 = vmatprep.subr.bf16.mxu0 0
    %6603 = vmatpush1.bf16.msra.mxu0 0
    %6604 = vmatprep.subr.bf16.mxu0 0
    %6605 = vmatpush1.bf16.msra.mxu0 0
    %6606 = vmatprep.subr.bf16.mxu0 0
    %6607 = vmatpush1.bf16.msra.mxu0 0
    %6608 = vmatprep.subr.bf16.mxu0 0
    %6609 = vmatpush1.bf16.msra.mxu0 0
    %6610 = vmatprep.subr.bf16.mxu0 0
    %6611 = vmatpush1.bf16.msra.mxu0 0
    %6612 = vmatprep.subr.bf16.mxu0 0
    %6613 = vmatpush1.bf16.msra.mxu0 0
    %6614 = vmatprep.subr.bf16.mxu0 0
    %6615 = vmatpush1.bf16.msra.mxu0 0
    %6616 = vmatprep.mubr.bf16.mxu0 0
    %6617 = vmatmul.mubr.bf16.gmra.mrb[0].mxu0 %v6149
    %v6618 = vpop.f32.mrb[0].mxu0
    %v6619 = vadd.f32 %v6506, %v6618
    %v6620 = vpop.f32.mrb[0].mxu0
    %v6621 = vadd.f32 %v6508, %v6620
    %v6622 = vpop.f32.mrb[0].mxu0
    %v6623 = vadd.f32 %v6510, %v6622
    %v6624 = vpop.f32.mrb[0].mxu0
    %v6625 = vadd.f32 %v6512, %v6624
    %6626 = vmatprep.mubr.bf16.mxu0 0
    %6627 = vmatmul.mubr.bf16.gmra.mrb[0].mxu0 %v6152
    %v6628 = vpop.f32.mrb[0].mxu0
    %v6629 = vadd.f32 %v6516, %v6628
    %v6630 = vpop.f32.mrb[0].mxu0
    %v6631 = vadd.f32 %v6518, %v6630
    %v6632 = vpop.f32.mrb[0].mxu0
    %v6633 = vadd.f32 %v6520, %v6632
    %v6634 = vpop.f32.mrb[0].mxu0
    %v6635 = vadd.f32 %v6522, %v6634
    %6636 = vmatprep.mubr.bf16.mxu0 0
    %6637 = vmatmul.mubr.bf16.gmra.mrb[0].mxu0 %v6155
    %v6638 = vpop.f32.mrb[0].mxu0
    %v6639 = vadd.f32 %v6526, %v6638
    %v6640 = vpop.f32.mrb[0].mxu0
    %v6641 = vadd.f32 %v6528, %v6640
    %v6642 = vpop.f32.mrb[0].mxu0
    %v6643 = vadd.f32 %v6530, %v6642
    %v6644 = vpop.f32.mrb[0].mxu0
    %v6645 = vadd.f32 %v6532, %v6644
    %6646 = vmatprep.mubr.bf16.mxu0 0
    %6647 = vmatmul.mubr.bf16.gmra.mrb[0].mxu0 %v6158
    %v6648 = vpop.f32.mrb[0].mxu0
    %v6649 = vadd.f32 %v6536, %v6648
    %v6650 = vpop.f32.mrb[0].mxu0
    %v6651 = vadd.f32 %v6538, %v6650
    %v6652 = vpop.f32.mrb[0].mxu0
    %v6653 = vadd.f32 %v6540, %v6652
    %v6654 = vpop.f32.mrb[0].mxu0
    %v6655 = vadd.f32 %v6542, %v6654
    %6656 = vmatprep.mubr.bf16.mxu0 0
    %6657 = vmatmul.mubr.bf16.gmra.mrb[0].mxu0 %v6161
    %v6658 = vpop.f32.mrb[0].mxu0
    %v6659 = vadd.f32 %v6546, %v6658
    %v6660 = vpop.f32.mrb[0].mxu0
    %v6661 = vadd.f32 %v6548, %v6660
    %v6662 = vpop.f32.mrb[0].mxu0
    %v6663 = vadd.f32 %v6550, %v6662
    %v6664 = vpop.f32.mrb[0].mxu0
    %v6665 = vadd.f32 %v6552, %v6664
    %6666 = vmatprep.mubr.bf16.mxu0 0
    %6667 = vmatmul.mubr.bf16.gmra.mrb[0].mxu0 %v6164
    %v6668 = vpop.f32.mrb[0].mxu0
    %v6669 = vadd.f32 %v6556, %v6668
    %v6670 = vpop.f32.mrb[0].mxu0
    %v6671 = vadd.f32 %v6558, %v6670
    %v6672 = vpop.f32.mrb[0].mxu0
    %v6673 = vadd.f32 %v6560, %v6672
    %v6674 = vpop.f32.mrb[0].mxu0
    %v6675 = vadd.f32 %v6562, %v6674
    %6676 = vmatprep.mubr.bf16.mxu0 0
    %6677 = vmatmul.mubr.bf16.gmra.mrb[0].mxu0 %v6167
    %v6678 = vpop.f32.mrb[0].mxu0
    %v6679 = vadd.f32 %v6566, %v6678
    %v6680 = vpop.f32.mrb[0].mxu0
    %v6681 = vadd.f32 %v6568, %v6680
    %v6682 = vpop.f32.mrb[0].mxu0
    %v6683 = vadd.f32 %v6570, %v6682
    %v6684 = vpop.f32.mrb[0].mxu0
    %v6685 = vadd.f32 %v6572, %v6684
    %6686 = vmatprep.mubr.bf16.mxu0 0
    %6687 = vmatmul.mubr.bf16.gmra.mrb[0].mxu0 %v6170
    %v6688 = vpop.f32.mrb[0].mxu0
    %v6689 = vadd.f32 %v6576, %v6688
    %v6690 = vpop.f32.mrb[0].mxu0
    %v6691 = vadd.f32 %v6578, %v6690
    %v6692 = vpop.f32.mrb[0].mxu0
    %v6693 = vadd.f32 %v6580, %v6692
    %v6694 = vpop.f32.mrb[0].mxu0
    %v6695 = vadd.f32 %v6582, %v6694
    %6696 = vdwg.mxu0
    %v6697 = vmax.f32 %v6619, 0.0
    %v6698 = vmax.f32 %v6621, 0.0
    %v6699 = vmax.f32 %v6623, 0.0
    %v6700 = vmax.f32 %v6625, 0.0
    %v6701 = vmax.f32 %v6629, 0.0
    %v6702 = vmax.f32 %v6631, 0.0
    %v6703 = vmax.f32 %v6633, 0.0
    %v6704 = vmax.f32 %v6635, 0.0
    %v6705 = vmax.f32 %v6639, 0.0
    %v6706 = vmax.f32 %v6641, 0.0
    %v6707 = vmax.f32 %v6643, 0.0
    %v6708 = vmax.f32 %v6645, 0.0
    %v6709 = vmax.f32 %v6649, 0.0
    %v6710 = vmax.f32 %v6651, 0.0
    %v6711 = vmax.f32 %v6653, 0.0
    %v6712 = vmax.f32 %v6655, 0.0
    %v6713 = vmax.f32 %v6659, 0.0
    %v6714 = vmax.f32 %v6661, 0.0
    %v6715 = vmax.f32 %v6663, 0.0
    %v6716 = vmax.f32 %v6665, 0.0
    %v6717 = vmax.f32 %v6669, 0.0
    %v6718 = vmax.f32 %v6671, 0.0
    %v6719 = vmax.f32 %v6673, 0.0
    %v6720 = vmax.f32 %v6675, 0.0
    %v6721 = vmax.f32 %v6679, 0.0
    %v6722 = vmax.f32 %v6681, 0.0
    %v6723 = vmax.f32 %v6683, 0.0
    %v6724 = vmax.f32 %v6685, 0.0
    %v6725 = vmax.f32 %v6689, 0.0
    %v6726 = vmax.f32 %v6691, 0.0
    %v6727 = vmax.f32 %v6693, 0.0
    %v6728 = vmax.f32 %v6695, 0.0
    %v6729 = vpack.c.bf16 %v6699, %v6697
    %v6730 = vpack.c.bf16 %v6700, %v6698
    %v6731 = vpack.c.bf16 %v6703, %v6701
    %v6732 = vpack.c.bf16 %v6704, %v6702
    %v6733 = vpack.c.bf16 %v6707, %v6705
    %v6734 = vpack.c.bf16 %v6708, %v6706
    %v6735 = vpack.c.bf16 %v6711, %v6709
    %v6736 = vpack.c.bf16 %v6712, %v6710
    %v6737 = vpack.c.bf16 %v6715, %v6713
    %v6738 = vpack.c.bf16 %v6716, %v6714
    %v6739 = vpack.c.bf16 %v6719, %v6717
    %v6740 = vpack.c.bf16 %v6720, %v6718
    %v6741 = vpack.c.bf16 %v6723, %v6721
    %v6742 = vpack.c.bf16 %v6724, %v6722
    %v6743 = vpack.c.bf16 %v6727, %v6725
    %v6744 = vpack.c.bf16 %v6728, %v6726
    %v6745 = vld [vmem:[#allocation14] sm:$0xf]
    %v6746 = vld [vmem:[#allocation14 + $0x4] sm:$0xf]
    %v6747 = vld [vmem:[#allocation14 + $0x8] sm:$0xf]
    %v6748 = vld [vmem:[#allocation14 + $0xc] sm:$0xf]
    %v6749 = vld [vmem:[#allocation14 + $0x10] sm:$0xf]
    %v6750 = vld [vmem:[#allocation14 + $0x14] sm:$0xf]
    %v6751 = vld [vmem:[#allocation14 + $0x18] sm:$0xf]
    %v6752 = vld [vmem:[#allocation14 + $0x1c] sm:$0xf]
    %v6753 = vld [vmem:[#allocation14 + $0x20] sm:$0xf]
    %v6754 = vld [vmem:[#allocation14 + $0x24] sm:$0xf]
    %v6755 = vld [vmem:[#allocation14 + $0x28] sm:$0xf]
    %v6756 = vld [vmem:[#allocation14 + $0x2c] sm:$0xf]
    %v6757 = vld [vmem:[#allocation14 + $0x30] sm:$0xf]
    %v6758 = vld [vmem:[#allocation14 + $0x34] sm:$0xf]
    %v6759 = vld [vmem:[#allocation14 + $0x38] sm:$0xf]
    %v6760 = vld [vmem:[#allocation14 + $0x3c] sm:$0xf]
    %v6761 = vld [vmem:[#allocation14 + $0x40] sm:$0xf]
    %v6762 = vld [vmem:[#allocation14 + $0x44] sm:$0xf]
    %v6763 = vld [vmem:[#allocation14 + $0x48] sm:$0xf]
    %v6764 = vld [vmem:[#allocation14 + $0x4c] sm:$0xf]
    %v6765 = vld [vmem:[#allocation14 + $0x50] sm:$0xf]
    %v6766 = vld [vmem:[#allocation14 + $0x54] sm:$0xf]
    %v6767 = vld [vmem:[#allocation14 + $0x58] sm:$0xf]
    %v6768 = vld [vmem:[#allocation14 + $0x5c] sm:$0xf]
    %v6769 = vld [vmem:[#allocation14 + $0x60] sm:$0xf]
    %v6770 = vld [vmem:[#allocation14 + $0x64] sm:$0xf]
    %v6771 = vld [vmem:[#allocation14 + $0x68] sm:$0xf]
    %v6772 = vld [vmem:[#allocation14 + $0x6c] sm:$0xf]
    %v6773 = vld [vmem:[#allocation14 + $0x70] sm:$0xf]
    %v6774 = vld [vmem:[#allocation14 + $0x74] sm:$0xf]
    %v6775 = vld [vmem:[#allocation14 + $0x78] sm:$0xf]
    %v6776 = vld [vmem:[#allocation14 + $0x7c] sm:$0xf]
    %v6777 = vld [vmem:[#allocation16] sm:$0x1]
    %v6779 = vlaneseq
    %v6780 = vshrl.u32 %v6779, 7
    %v6781 = vsub.s32 0, %v6780
    %v6782 = vrot.slane %v6777, %v6781
    %v6816 = vunpack.c.l.b16 %v6745
    %v6817 = vunpack.c.l.b16 %v6746
    %v6818 = vunpack.c.l.b16 %v6747
    %v6819 = vunpack.c.l.b16 %v6748
    %v6820 = vunpack.c.l.b16 %v6749
    %v6821 = vunpack.c.l.b16 %v6750
    %v6822 = vunpack.c.l.b16 %v6751
    %v6823 = vunpack.c.l.b16 %v6752
    %v6824 = vunpack.c.l.b16 %v6753
    %v6825 = vunpack.c.l.b16 %v6754
    %v6826 = vunpack.c.l.b16 %v6755
    %v6827 = vunpack.c.l.b16 %v6756
    %v6828 = vunpack.c.l.b16 %v6757
    %v6829 = vunpack.c.l.b16 %v6758
    %v6830 = vunpack.c.l.b16 %v6759
    %v6831 = vunpack.c.l.b16 %v6760
    %v6832 = vunpack.c.l.b16 %v6761
    %v6833 = vunpack.c.l.b16 %v6762
    %v6834 = vunpack.c.l.b16 %v6763
    %v6835 = vunpack.c.l.b16 %v6764
    %v6836 = vunpack.c.l.b16 %v6765
    %v6837 = vunpack.c.l.b16 %v6766
    %v6838 = vunpack.c.l.b16 %v6767
    %v6839 = vunpack.c.l.b16 %v6768
    %v6840 = vunpack.c.l.b16 %v6769
    %v6841 = vunpack.c.l.b16 %v6770
    %v6842 = vunpack.c.l.b16 %v6771
    %v6843 = vunpack.c.l.b16 %v6772
    %v6844 = vunpack.c.l.b16 %v6773
    %v6845 = vunpack.c.l.b16 %v6774
    %v6846 = vunpack.c.l.b16 %v6775
    %v6847 = vunpack.c.l.b16 %v6776
    %v6848 = vpack.c.b16 %v6817, %v6816
    %v6849 = vpack.c.b16 %v6819, %v6818
    %v6850 = vpack.c.b16 %v6821, %v6820
    %v6851 = vpack.c.b16 %v6823, %v6822
    %v6852 = vpack.c.b16 %v6825, %v6824
    %v6853 = vpack.c.b16 %v6827, %v6826
    %v6854 = vpack.c.b16 %v6829, %v6828
    %v6855 = vpack.c.b16 %v6831, %v6830
    %v6856 = vpack.c.b16 %v6833, %v6832
    %v6857 = vpack.c.b16 %v6835, %v6834
    %v6858 = vpack.c.b16 %v6837, %v6836
    %v6859 = vpack.c.b16 %v6839, %v6838
    %v6860 = vpack.c.b16 %v6841, %v6840
    %v6861 = vpack.c.b16 %v6843, %v6842
    %v6862 = vpack.c.b16 %v6845, %v6844
    %v6863 = vpack.c.b16 %v6847, %v6846
    %6880 = vmatprep.subr.bf16.mxu0 0
    %6881 = vmatpush1.bf16.msra.mxu0 %v6848
    %6882 = vmatprep.subr.bf16.mxu0 0
    %6883 = vmatpush1.bf16.msra.mxu0 %v6849
    %6884 = vmatprep.subr.bf16.mxu0 0
    %6885 = vmatpush1.bf16.msra.mxu0 %v6850
    %6886 = vmatprep.subr.bf16.mxu0 0
    %6887 = vmatpush1.bf16.msra.mxu0 %v6851
    %6888 = vmatprep.subr.bf16.mxu0 0
    %6889 = vmatpush1.bf16.msra.mxu0 %v6852
    %6890 = vmatprep.subr.bf16.mxu0 0
    %6891 = vmatpush1.bf16.msra.mxu0 %v6853
    %6892 = vmatprep.subr.bf16.mxu0 0
    %6893 = vmatpush1.bf16.msra.mxu0 %v6854
    %6894 = vmatprep.subr.bf16.mxu0 0
    %6895 = vmatpush1.bf16.msra.mxu0 %v6855
    %6896 = vmatprep.subr.bf16.mxu0 0
    %6897 = vmatpush1.bf16.msra.mxu0 %v6856
    %6898 = vmatprep.subr.bf16.mxu0 0
    %6899 = vmatpush1.bf16.msra.mxu0 %v6857
    %6900 = vmatprep.subr.bf16.mxu0 0
    %6901 = vmatpush1.bf16.msra.mxu0 %v6858
    %6902 = vmatprep.subr.bf16.mxu0 0
    %6903 = vmatpush1.bf16.msra.mxu0 %v6859
    %6904 = vmatprep.subr.bf16.mxu0 0
    %6905 = vmatpush1.bf16.msra.mxu0 %v6860
    %6906 = vmatprep.subr.bf16.mxu0 0
    %6907 = vmatpush1.bf16.msra.mxu0 %v6861
    %6908 = vmatprep.subr.bf16.mxu0 0
    %6909 = vmatpush1.bf16.msra.mxu0 %v6862
    %6910 = vmatprep.subr.bf16.mxu0 0
    %6911 = vmatpush1.bf16.msra.mxu0 %v6863
    %6912 = vmatprep.mubr.bf16.mxu0 %v6730
    %6913 = vmatmul.mubr.bf16.gmra.mrb[0].mxu0 %v6729
    %v6914 = vpop.f32.mrb[0].mxu0
    %v6915 = vadd.f32 %v6782, %v6914
    %v6916 = vpop.f32.mrb[0].mxu0
    %v6917 = vpop.f32.mrb[0].mxu0
    %v6918 = vadd.f32 %v6782, %v6917
    %v6919 = vpop.f32.mrb[0].mxu0
    %6920 = vmatprep.mubr.bf16.mxu0 %v6732
    %6921 = vmatmul.mubr.bf16.gmra.mrb[0].mxu0 %v6731
    %v6922 = vpop.f32.mrb[0].mxu0
    %v6923 = vadd.f32 %v6782, %v6922
    %v6924 = vpop.f32.mrb[0].mxu0
    %v6925 = vpop.f32.mrb[0].mxu0
    %v6926 = vadd.f32 %v6782, %v6925
    %v6927 = vpop.f32.mrb[0].mxu0
    %6928 = vmatprep.mubr.bf16.mxu0 %v6734
    %6929 = vmatmul.mubr.bf16.gmra.mrb[0].mxu0 %v6733
    %v6930 = vpop.f32.mrb[0].mxu0
    %v6931 = vadd.f32 %v6782, %v6930
    %v6932 = vpop.f32.mrb[0].mxu0
    %v6933 = vpop.f32.mrb[0].mxu0
    %v6934 = vadd.f32 %v6782, %v6933
    %v6935 = vpop.f32.mrb[0].mxu0
    %6936 = vmatprep.mubr.bf16.mxu0 %v6736
    %6937 = vmatmul.mubr.bf16.gmra.mrb[0].mxu0 %v6735
    %v6938 = vpop.f32.mrb[0].mxu0
    %v6939 = vadd.f32 %v6782, %v6938
    %v6940 = vpop.f32.mrb[0].mxu0
    %v6941 = vpop.f32.mrb[0].mxu0
    %v6942 = vadd.f32 %v6782, %v6941
    %v6943 = vpop.f32.mrb[0].mxu0
    %6944 = vmatprep.mubr.bf16.mxu0 %v6738
    %6945 = vmatmul.mubr.bf16.gmra.mrb[0].mxu0 %v6737
    %v6946 = vpop.f32.mrb[0].mxu0
    %v6947 = vadd.f32 %v6782, %v6946
    %v6948 = vpop.f32.mrb[0].mxu0
    %v6949 = vpop.f32.mrb[0].mxu0
    %v6950 = vadd.f32 %v6782, %v6949
    %v6951 = vpop.f32.mrb[0].mxu0
    %6952 = vmatprep.mubr.bf16.mxu0 %v6740
    %6953 = vmatmul.mubr.bf16.gmra.mrb[0].mxu0 %v6739
    %v6954 = vpop.f32.mrb[0].mxu0
    %v6955 = vadd.f32 %v6782, %v6954
    %v6956 = vpop.f32.mrb[0].mxu0
    %v6957 = vpop.f32.mrb[0].mxu0
    %v6958 = vadd.f32 %v6782, %v6957
    %v6959 = vpop.f32.mrb[0].mxu0
    %6960 = vmatprep.mubr.bf16.mxu0 %v6742
    %6961 = vmatmul.mubr.bf16.gmra.mrb[0].mxu0 %v6741
    %v6962 = vpop.f32.mrb[0].mxu0
    %v6963 = vadd.f32 %v6782, %v6962
    %v6964 = vpop.f32.mrb[0].mxu0
    %v6965 = vpop.f32.mrb[0].mxu0
    %v6966 = vadd.f32 %v6782, %v6965
    %v6967 = vpop.f32.mrb[0].mxu0
    %6968 = vmatprep.mubr.bf16.mxu0 %v6744
    %6969 = vmatmul.mubr.bf16.gmra.mrb[0].mxu0 %v6743
    %v6970 = vpop.f32.mrb[0].mxu0
    %v6971 = vadd.f32 %v6782, %v6970
    %v6972 = vpop.f32.mrb[0].mxu0
    %v6973 = vpop.f32.mrb[0].mxu0
    %v6974 = vadd.f32 %v6782, %v6973
    %v6975 = vpop.f32.mrb[0].mxu0
    %6976 = vdwg.mxu0
    %v6977 = vpack.c.bf16 %v6918, %v6915
    %v6978 = vpack.c.bf16 %v6926, %v6923
    %v6979 = vpack.c.bf16 %v6934, %v6931
    %v6980 = vpack.c.bf16 %v6942, %v6939
    %v6981 = vpack.c.bf16 %v6950, %v6947
    %v6982 = vpack.c.bf16 %v6958, %v6955
    %v6983 = vpack.c.bf16 %v6966, %v6963
    %v6984 = vpack.c.bf16 %v6974, %v6971
    %v6985 = vld [vmem:[#allocation17] sm:$0xff]
    %v6986 = vld [vmem:[#allocation17 + $0x8] sm:$0xff]
    %v6987 = vld [vmem:[#allocation17 + $0x10] sm:$0xff]
    %v6988 = vld [vmem:[#allocation17 + $0x18] sm:$0xff]
    %v6989 = vld [vmem:[#allocation17 + $0x20] sm:$0xff]
    %v6990 = vld [vmem:[#allocation17 + $0x28] sm:$0xff]
    %v6991 = vld [vmem:[#allocation17 + $0x30] sm:$0xff]
    %v6992 = vld [vmem:[#allocation17 + $0x38] sm:$0xff]
    %v6993 = vld [vmem:[#allocation17 + $0x40] sm:$0xff]
    %v6994 = vld [vmem:[#allocation17 + $0x48] sm:$0xff]
    %v6995 = vld [vmem:[#allocation17 + $0x50] sm:$0xff]
    %v6996 = vld [vmem:[#allocation17 + $0x58] sm:$0xff]
    %v6997 = vld [vmem:[#allocation17 + $0x60] sm:$0xff]
    %v6998 = vld [vmem:[#allocation17 + $0x68] sm:$0xff]
    %v6999 = vld [vmem:[#allocation17 + $0x70] sm:$0xff]
    %v7000 = vld [vmem:[#allocation17 + $0x78] sm:$0xff]
    %v7001 = vld [vmem:[#allocation19] sm:$0x3]
    %v7003 = vlaneseq
    %v7004 = vshrl.u32 %v7003, 7
    %v7005 = vsub.s32 0, %v7004
    %v7006 = vrot.slane %v7001, %v7005
    %v7007 = vlaneseq
    %v7008 = vshrl.u32 %v7007, 7
    %v7009 = vsub.s32 1, %v7008
    %v7010 = vrot.slane %v7001, %v7009
    %v7029 = vunpack.c.l.b16 %v6985
    %v7030 = vunpack.c.h.b16 %v6985
    %v7031 = vunpack.c.l.b16 %v6986
    %v7032 = vunpack.c.h.b16 %v6986
    %v7033 = vunpack.c.l.b16 %v6987
    %v7034 = vunpack.c.h.b16 %v6987
    %v7035 = vunpack.c.l.b16 %v6988
    %v7036 = vunpack.c.h.b16 %v6988
    %v7037 = vunpack.c.l.b16 %v6989
    %v7038 = vunpack.c.h.b16 %v6989
    %v7039 = vunpack.c.l.b16 %v6990
    %v7040 = vunpack.c.h.b16 %v6990
    %v7041 = vunpack.c.l.b16 %v6991
    %v7042 = vunpack.c.h.b16 %v6991
    %v7043 = vunpack.c.l.b16 %v6992
    %v7044 = vunpack.c.h.b16 %v6992
    %v7045 = vunpack.c.l.b16 %v6993
    %v7046 = vunpack.c.h.b16 %v6993
    %v7047 = vunpack.c.l.b16 %v6994
    %v7048 = vunpack.c.h.b16 %v6994
    %v7049 = vunpack.c.l.b16 %v6995
    %v7050 = vunpack.c.h.b16 %v6995
    %v7051 = vunpack.c.l.b16 %v6996
    %v7052 = vunpack.c.h.b16 %v6996
    %v7053 = vunpack.c.l.b16 %v6997
    %v7054 = vunpack.c.h.b16 %v6997
    %v7055 = vunpack.c.l.b16 %v6998
    %v7056 = vunpack.c.h.b16 %v6998
    %v7057 = vunpack.c.l.b16 %v6999
    %v7058 = vunpack.c.h.b16 %v6999
    %v7059 = vunpack.c.l.b16 %v7000
    %v7060 = vunpack.c.h.b16 %v7000
    %v7061 = vpack.c.b16 %v7031, %v7029
    %v7062 = vpack.c.b16 %v7032, %v7030
    %v7063 = vpack.c.b16 %v7035, %v7033
    %v7064 = vpack.c.b16 %v7036, %v7034
    %v7065 = vpack.c.b16 %v7039, %v7037
    %v7066 = vpack.c.b16 %v7040, %v7038
    %v7067 = vpack.c.b16 %v7043, %v7041
    %v7068 = vpack.c.b16 %v7044, %v7042
    %v7069 = vpack.c.b16 %v7047, %v7045
    %v7070 = vpack.c.b16 %v7048, %v7046
    %v7071 = vpack.c.b16 %v7051, %v7049
    %v7072 = vpack.c.b16 %v7052, %v7050
    %v7073 = vpack.c.b16 %v7055, %v7053
    %v7074 = vpack.c.b16 %v7056, %v7054
    %v7075 = vpack.c.b16 %v7059, %v7057
    %v7076 = vpack.c.b16 %v7060, %v7058
    %7093 = vmatprep.subr.bf16.mxu0 %v7062
    %7094 = vmatpush1.bf16.msra.mxu0 %v7061
    %7095 = vmatprep.subr.bf16.mxu0 %v7064
    %7096 = vmatpush1.bf16.msra.mxu0 %v7063
    %7097 = vmatprep.subr.bf16.mxu0 %v7066
    %7098 = vmatpush1.bf16.msra.mxu0 %v7065
    %7099 = vmatprep.subr.bf16.mxu0 %v7068
    %7100 = vmatpush1.bf16.msra.mxu0 %v7067
    %7101 = vmatprep.subr.bf16.mxu0 %v7070
    %7102 = vmatpush1.bf16.msra.mxu0 %v7069
    %7103 = vmatprep.subr.bf16.mxu0 %v7072
    %7104 = vmatpush1.bf16.msra.mxu0 %v7071
    %7105 = vmatprep.subr.bf16.mxu0 %v7074
    %7106 = vmatpush1.bf16.msra.mxu0 %v7073
    %7107 = vmatprep.subr.bf16.mxu0 %v7076
    %7108 = vmatpush1.bf16.msra.mxu0 %v7075
    %7109 = vmatprep.subr.bf16.mxu0 0
    %7110 = vmatpush1.bf16.msra.mxu0 0
    %7111 = vmatprep.subr.bf16.mxu0 0
    %7112 = vmatpush1.bf16.msra.mxu0 0
    %7113 = vmatprep.subr.bf16.mxu0 0
    %7114 = vmatpush1.bf16.msra.mxu0 0
    %7115 = vmatprep.subr.bf16.mxu0 0
    %7116 = vmatpush1.bf16.msra.mxu0 0
    %7117 = vmatprep.subr.bf16.mxu0 0
    %7118 = vmatpush1.bf16.msra.mxu0 0
    %7119 = vmatprep.subr.bf16.mxu0 0
    %7120 = vmatpush1.bf16.msra.mxu0 0
    %7121 = vmatprep.subr.bf16.mxu0 0
    %7122 = vmatpush1.bf16.msra.mxu0 0
    %7123 = vmatprep.subr.bf16.mxu0 0
    %7124 = vmatpush1.bf16.msra.mxu0 0
    %7125 = vmatprep.mubr.bf16.mxu0 0
    %7126 = vmatmul.mubr.bf16.gmra.mrb[0].mxu0 %v6977
    %v7127 = vpop.f32.mrb[0].mxu0
    %v7128 = vadd.f32 %v7006, %v7127
    %v7129 = vpop.f32.mrb[0].mxu0
    %v7130 = vadd.f32 %v7010, %v7129
    %v7131 = vpop.f32.mrb[0].mxu0
    %v7132 = vadd.f32 %v7006, %v7131
    %v7133 = vpop.f32.mrb[0].mxu0
    %v7134 = vadd.f32 %v7010, %v7133
    %7135 = vmatprep.mubr.bf16.mxu0 0
    %7136 = vmatmul.mubr.bf16.gmra.mrb[0].mxu0 %v6978
    %v7137 = vpop.f32.mrb[0].mxu0
    %v7138 = vadd.f32 %v7006, %v7137
    %v7139 = vpop.f32.mrb[0].mxu0
    %v7140 = vadd.f32 %v7010, %v7139
    %v7141 = vpop.f32.mrb[0].mxu0
    %v7142 = vadd.f32 %v7006, %v7141
    %v7143 = vpop.f32.mrb[0].mxu0
    %v7144 = vadd.f32 %v7010, %v7143
    %7145 = vmatprep.mubr.bf16.mxu0 0
    %7146 = vmatmul.mubr.bf16.gmra.mrb[0].mxu0 %v6979
    %v7147 = vpop.f32.mrb[0].mxu0
    %v7148 = vadd.f32 %v7006, %v7147
    %v7149 = vpop.f32.mrb[0].mxu0
    %v7150 = vadd.f32 %v7010, %v7149
    %v7151 = vpop.f32.mrb[0].mxu0
    %v7152 = vadd.f32 %v7006, %v7151
    %v7153 = vpop.f32.mrb[0].mxu0
    %v7154 = vadd.f32 %v7010, %v7153
    %7155 = vmatprep.mubr.bf16.mxu0 0
    %7156 = vmatmul.mubr.bf16.gmra.mrb[0].mxu0 %v6980
    %v7157 = vpop.f32.mrb[0].mxu0
    %v7158 = vadd.f32 %v7006, %v7157
    %v7159 = vpop.f32.mrb[0].mxu0
    %v7160 = vadd.f32 %v7010, %v7159
    %v7161 = vpop.f32.mrb[0].mxu0
    %v7162 = vadd.f32 %v7006, %v7161
    %v7163 = vpop.f32.mrb[0].mxu0
    %v7164 = vadd.f32 %v7010, %v7163
    %7165 = vmatprep.mubr.bf16.mxu0 0
    %7166 = vmatmul.mubr.bf16.gmra.mrb[0].mxu0 %v6981
    %v7167 = vpop.f32.mrb[0].mxu0
    %v7168 = vadd.f32 %v7006, %v7167
    %v7169 = vpop.f32.mrb[0].mxu0
    %v7170 = vadd.f32 %v7010, %v7169
    %v7171 = vpop.f32.mrb[0].mxu0
    %v7172 = vadd.f32 %v7006, %v7171
    %v7173 = vpop.f32.mrb[0].mxu0
    %v7174 = vadd.f32 %v7010, %v7173
    %7175 = vmatprep.mubr.bf16.mxu0 0
    %7176 = vmatmul.mubr.bf16.gmra.mrb[0].mxu0 %v6982
    %v7177 = vpop.f32.mrb[0].mxu0
    %v7178 = vadd.f32 %v7006, %v7177
    %v7179 = vpop.f32.mrb[0].mxu0
    %v7180 = vadd.f32 %v7010, %v7179
    %v7181 = vpop.f32.mrb[0].mxu0
    %v7182 = vadd.f32 %v7006, %v7181
    %v7183 = vpop.f32.mrb[0].mxu0
    %v7184 = vadd.f32 %v7010, %v7183
    %7185 = vmatprep.mubr.bf16.mxu0 0
    %7186 = vmatmul.mubr.bf16.gmra.mrb[0].mxu0 %v6983
    %v7187 = vpop.f32.mrb[0].mxu0
    %v7188 = vadd.f32 %v7006, %v7187
    %v7189 = vpop.f32.mrb[0].mxu0
    %v7190 = vadd.f32 %v7010, %v7189
    %v7191 = vpop.f32.mrb[0].mxu0
    %v7192 = vadd.f32 %v7006, %v7191
    %v7193 = vpop.f32.mrb[0].mxu0
    %v7194 = vadd.f32 %v7010, %v7193
    %7195 = vmatprep.mubr.bf16.mxu0 0
    %7196 = vmatmul.mubr.bf16.gmra.mrb[0].mxu0 %v6984
    %v7197 = vpop.f32.mrb[0].mxu0
    %v7198 = vadd.f32 %v7006, %v7197
    %v7199 = vpop.f32.mrb[0].mxu0
    %v7200 = vadd.f32 %v7010, %v7199
    %v7201 = vpop.f32.mrb[0].mxu0
    %v7202 = vadd.f32 %v7006, %v7201
    %v7203 = vpop.f32.mrb[0].mxu0
    %v7204 = vadd.f32 %v7010, %v7203
    %7205 = vdwg.mxu0
    %v7206 = vmax.f32 %v7128, 0.0
    %v7207 = vmax.f32 %v7130, 0.0
    %v7208 = vmax.f32 %v7132, 0.0
    %v7209 = vmax.f32 %v7134, 0.0
    %v7210 = vmax.f32 %v7138, 0.0
    %v7211 = vmax.f32 %v7140, 0.0
    %v7212 = vmax.f32 %v7142, 0.0
    %v7213 = vmax.f32 %v7144, 0.0
    %v7214 = vmax.f32 %v7148, 0.0
    %v7215 = vmax.f32 %v7150, 0.0
    %v7216 = vmax.f32 %v7152, 0.0
    %v7217 = vmax.f32 %v7154, 0.0
    %v7218 = vmax.f32 %v7158, 0.0
    %v7219 = vmax.f32 %v7160, 0.0
    %v7220 = vmax.f32 %v7162, 0.0
    %v7221 = vmax.f32 %v7164, 0.0
    %v7222 = vmax.f32 %v7168, 0.0
    %v7223 = vmax.f32 %v7170, 0.0
    %v7224 = vmax.f32 %v7172, 0.0
    %v7225 = vmax.f32 %v7174, 0.0
    %v7226 = vmax.f32 %v7178, 0.0
    %v7227 = vmax.f32 %v7180, 0.0
    %v7228 = vmax.f32 %v7182, 0.0
    %v7229 = vmax.f32 %v7184, 0.0
    %v7230 = vmax.f32 %v7188, 0.0
    %v7231 = vmax.f32 %v7190, 0.0
    %v7232 = vmax.f32 %v7192, 0.0
    %v7233 = vmax.f32 %v7194, 0.0
    %v7234 = vmax.f32 %v7198, 0.0
    %v7235 = vmax.f32 %v7200, 0.0
    %v7236 = vmax.f32 %v7202, 0.0
    %v7237 = vmax.f32 %v7204, 0.0
    %v7238 = vpack.c.bf16 %v7208, %v7206
    %v7239 = vpack.c.bf16 %v7209, %v7207
    %v7240 = vpack.c.bf16 %v7212, %v7210
    %v7241 = vpack.c.bf16 %v7213, %v7211
    %v7242 = vpack.c.bf16 %v7216, %v7214
    %v7243 = vpack.c.bf16 %v7217, %v7215
    %v7244 = vpack.c.bf16 %v7220, %v7218
    %v7245 = vpack.c.bf16 %v7221, %v7219
    %v7246 = vpack.c.bf16 %v7224, %v7222
    %v7247 = vpack.c.bf16 %v7225, %v7223
    %v7248 = vpack.c.bf16 %v7228, %v7226
    %v7249 = vpack.c.bf16 %v7229, %v7227
    %v7250 = vpack.c.bf16 %v7232, %v7230
    %v7251 = vpack.c.bf16 %v7233, %v7231
    %v7252 = vpack.c.bf16 %v7236, %v7234
    %v7253 = vpack.c.bf16 %v7237, %v7235
    %v7254 = vld [vmem:[#allocation20] sm:$0xff]
    %v7255 = vld [vmem:[#allocation20 + $0x8] sm:$0xf]
    %v7256 = vld [vmem:[#allocation20 + $0xc] sm:$0xff]
    %v7257 = vld [vmem:[#allocation20 + $0x14] sm:$0xf]
    %v7258 = vld [vmem:[#allocation20 + $0x18] sm:$0xff]
    %v7259 = vld [vmem:[#allocation20 + $0x20] sm:$0xf]
    %v7260 = vld [vmem:[#allocation20 + $0x24] sm:$0xff]
    %v7261 = vld [vmem:[#allocation20 + $0x2c] sm:$0xf]
    %v7262 = vld [vmem:[#allocation20 + $0x30] sm:$0xff]
    %v7263 = vld [vmem:[#allocation20 + $0x38] sm:$0xf]
    %v7264 = vld [vmem:[#allocation20 + $0x3c] sm:$0xff]
    %v7265 = vld [vmem:[#allocation20 + $0x44] sm:$0xf]
    %v7266 = vld [vmem:[#allocation20 + $0x48] sm:$0xff]
    %v7267 = vld [vmem:[#allocation20 + $0x50] sm:$0xf]
    %v7268 = vld [vmem:[#allocation20 + $0x54] sm:$0xff]
    %v7269 = vld [vmem:[#allocation20 + $0x5c] sm:$0xf]
    %v7270 = vld [vmem:[#allocation20 + $0x60] sm:$0xff]
    %v7271 = vld [vmem:[#allocation20 + $0x68] sm:$0xf]
    %v7272 = vld [vmem:[#allocation20 + $0x6c] sm:$0xff]
    %v7273 = vld [vmem:[#allocation20 + $0x74] sm:$0xf]
    %v7274 = vld [vmem:[#allocation20 + $0x78] sm:$0xff]
    %v7275 = vld [vmem:[#allocation20 + $0x80] sm:$0xf]
    %v7276 = vld [vmem:[#allocation20 + $0x84] sm:$0xff]
    %v7277 = vld [vmem:[#allocation20 + $0x8c] sm:$0xf]
    %v7278 = vld [vmem:[#allocation20 + $0x90] sm:$0xff]
    %v7279 = vld [vmem:[#allocation20 + $0x98] sm:$0xf]
    %v7280 = vld [vmem:[#allocation20 + $0x9c] sm:$0xff]
    %v7281 = vld [vmem:[#allocation20 + $0xa4] sm:$0xf]
    %v7282 = vld [vmem:[#allocation20 + $0xa8] sm:$0xff]
    %v7283 = vld [vmem:[#allocation20 + $0xb0] sm:$0xf]
    %v7284 = vld [vmem:[#allocation20 + $0xb4] sm:$0xff]
    %v7285 = vld [vmem:[#allocation20 + $0xbc] sm:$0xf]
    %v7286 = vld [vmem:[#allocation20 + $0xc0] sm:$0xff]
    %v7287 = vld [vmem:[#allocation20 + $0xc8] sm:$0xf]
    %v7288 = vld [vmem:[#allocation20 + $0xcc] sm:$0xff]
    %v7289 = vld [vmem:[#allocation20 + $0xd4] sm:$0xf]
    %v7290 = vld [vmem:[#allocation20 + $0xd8] sm:$0xff]
    %v7291 = vld [vmem:[#allocation20 + $0xe0] sm:$0xf]
    %v7292 = vld [vmem:[#allocation20 + $0xe4] sm:$0xff]
    %v7293 = vld [vmem:[#allocation20 + $0xec] sm:$0xf]
    %v7294 = vld [vmem:[#allocation20 + $0xf0] sm:$0xff]
    %v7295 = vld [vmem:[#allocation20 + $0xf8] sm:$0xf]
    %v7296 = vld [vmem:[#allocation20 + $0xfc] sm:$0xff]
    %v7297 = vld [vmem:[#allocation20 + $0x104] sm:$0xf]
    %v7298 = vld [vmem:[#allocation20 + $0x108] sm:$0xff]
    %v7299 = vld [vmem:[#allocation20 + $0x110] sm:$0xf]
    %v7300 = vld [vmem:[#allocation20 + $0x114] sm:$0xff]
    %v7301 = vld [vmem:[#allocation20 + $0x11c] sm:$0xf]
    %v7302 = vld [vmem:[#allocation20 + $0x120] sm:$0xff]
    %v7303 = vld [vmem:[#allocation20 + $0x128] sm:$0xf]
    %v7304 = vld [vmem:[#allocation20 + $0x12c] sm:$0xff]
    %v7305 = vld [vmem:[#allocation20 + $0x134] sm:$0xf]
    %v7306 = vld [vmem:[#allocation20 + $0x138] sm:$0xff]
    %v7307 = vld [vmem:[#allocation20 + $0x140] sm:$0xf]
    %v7308 = vld [vmem:[#allocation20 + $0x144] sm:$0xff]
    %v7309 = vld [vmem:[#allocation20 + $0x14c] sm:$0xf]
    %v7310 = vld [vmem:[#allocation20 + $0x150] sm:$0xff]
    %v7311 = vld [vmem:[#allocation20 + $0x158] sm:$0xf]
    %v7312 = vld [vmem:[#allocation20 + $0x15c] sm:$0xff]
    %v7313 = vld [vmem:[#allocation20 + $0x164] sm:$0xf]
    %v7314 = vld [vmem:[#allocation20 + $0x168] sm:$0xff]
    %v7315 = vld [vmem:[#allocation20 + $0x170] sm:$0xf]
    %v7316 = vld [vmem:[#allocation20 + $0x174] sm:$0xff]
    %v7317 = vld [vmem:[#allocation20 + $0x17c] sm:$0xf]
    %v7318 = vld [vmem:[#allocation22] sm:$0x7]
    %v7320 = vlaneseq
    %v7321 = vshrl.u32 %v7320, 7
    %v7322 = vsub.s32 0, %v7321
    %v7323 = vrot.slane %v7318, %v7322
    %v7324 = vlaneseq
    %v7325 = vshrl.u32 %v7324, 7
    %v7326 = vsub.s32 1, %v7325
    %v7327 = vrot.slane %v7318, %v7326
    %v7328 = vlaneseq
    %v7329 = vshrl.u32 %v7328, 7
    %v7330 = vsub.s32 2, %v7329
    %v7331 = vrot.slane %v7318, %v7330
    %v7399 = vunpack.c.l.b16 %v7254
    %v7400 = vunpack.c.h.b16 %v7254
    %v7401 = vunpack.c.l.b16 %v7255
    %v7402 = vunpack.c.l.b16 %v7256
    %v7403 = vunpack.c.h.b16 %v7256
    %v7404 = vunpack.c.l.b16 %v7257
    %v7405 = vunpack.c.l.b16 %v7258
    %v7406 = vunpack.c.h.b16 %v7258
    %v7407 = vunpack.c.l.b16 %v7259
    %v7408 = vunpack.c.l.b16 %v7260
    %v7409 = vunpack.c.h.b16 %v7260
    %v7410 = vunpack.c.l.b16 %v7261
    %v7411 = vunpack.c.l.b16 %v7262
    %v7412 = vunpack.c.h.b16 %v7262
    %v7413 = vunpack.c.l.b16 %v7263
    %v7414 = vunpack.c.l.b16 %v7264
    %v7415 = vunpack.c.h.b16 %v7264
    %v7416 = vunpack.c.l.b16 %v7265
    %v7417 = vunpack.c.l.b16 %v7266
    %v7418 = vunpack.c.h.b16 %v7266
    %v7419 = vunpack.c.l.b16 %v7267
    %v7420 = vunpack.c.l.b16 %v7268
    %v7421 = vunpack.c.h.b16 %v7268
    %v7422 = vunpack.c.l.b16 %v7269
    %v7423 = vunpack.c.l.b16 %v7270
    %v7424 = vunpack.c.h.b16 %v7270
    %v7425 = vunpack.c.l.b16 %v7271
    %v7426 = vunpack.c.l.b16 %v7272
    %v7427 = vunpack.c.h.b16 %v7272
    %v7428 = vunpack.c.l.b16 %v7273
    %v7429 = vunpack.c.l.b16 %v7274
    %v7430 = vunpack.c.h.b16 %v7274
    %v7431 = vunpack.c.l.b16 %v7275
    %v7432 = vunpack.c.l.b16 %v7276
    %v7433 = vunpack.c.h.b16 %v7276
    %v7434 = vunpack.c.l.b16 %v7277
    %v7435 = vunpack.c.l.b16 %v7278
    %v7436 = vunpack.c.h.b16 %v7278
    %v7437 = vunpack.c.l.b16 %v7279
    %v7438 = vunpack.c.l.b16 %v7280
    %v7439 = vunpack.c.h.b16 %v7280
    %v7440 = vunpack.c.l.b16 %v7281
    %v7441 = vunpack.c.l.b16 %v7282
    %v7442 = vunpack.c.h.b16 %v7282
    %v7443 = vunpack.c.l.b16 %v7283
    %v7444 = vunpack.c.l.b16 %v7284
    %v7445 = vunpack.c.h.b16 %v7284
    %v7446 = vunpack.c.l.b16 %v7285
    %v7447 = vunpack.c.l.b16 %v7286
    %v7448 = vunpack.c.h.b16 %v7286
    %v7449 = vunpack.c.l.b16 %v7287
    %v7450 = vunpack.c.l.b16 %v7288
    %v7451 = vunpack.c.h.b16 %v7288
    %v7452 = vunpack.c.l.b16 %v7289
    %v7453 = vunpack.c.l.b16 %v7290
    %v7454 = vunpack.c.h.b16 %v7290
    %v7455 = vunpack.c.l.b16 %v7291
    %v7456 = vunpack.c.l.b16 %v7292
    %v7457 = vunpack.c.h.b16 %v7292
    %v7458 = vunpack.c.l.b16 %v7293
    %v7459 = vunpack.c.l.b16 %v7294
    %v7460 = vunpack.c.h.b16 %v7294
    %v7461 = vunpack.c.l.b16 %v7295
    %v7462 = vunpack.c.l.b16 %v7296
    %v7463 = vunpack.c.h.b16 %v7296
    %v7464 = vunpack.c.l.b16 %v7297
    %v7465 = vunpack.c.l.b16 %v7298
    %v7466 = vunpack.c.h.b16 %v7298
    %v7467 = vunpack.c.l.b16 %v7299
    %v7468 = vunpack.c.l.b16 %v7300
    %v7469 = vunpack.c.h.b16 %v7300
    %v7470 = vunpack.c.l.b16 %v7301
    %v7471 = vunpack.c.l.b16 %v7302
    %v7472 = vunpack.c.h.b16 %v7302
    %v7473 = vunpack.c.l.b16 %v7303
    %v7474 = vunpack.c.l.b16 %v7304
    %v7475 = vunpack.c.h.b16 %v7304
    %v7476 = vunpack.c.l.b16 %v7305
    %v7477 = vunpack.c.l.b16 %v7306
    %v7478 = vunpack.c.h.b16 %v7306
    %v7479 = vunpack.c.l.b16 %v7307
    %v7480 = vunpack.c.l.b16 %v7308
    %v7481 = vunpack.c.h.b16 %v7308
    %v7482 = vunpack.c.l.b16 %v7309
    %v7483 = vunpack.c.l.b16 %v7310
    %v7484 = vunpack.c.h.b16 %v7310
    %v7485 = vunpack.c.l.b16 %v7311
    %v7486 = vunpack.c.l.b16 %v7312
    %v7487 = vunpack.c.h.b16 %v7312
    %v7488 = vunpack.c.l.b16 %v7313
    %v7489 = vunpack.c.l.b16 %v7314
    %v7490 = vunpack.c.h.b16 %v7314
    %v7491 = vunpack.c.l.b16 %v7315
    %v7492 = vunpack.c.l.b16 %v7316
    %v7493 = vunpack.c.h.b16 %v7316
    %v7494 = vunpack.c.l.b16 %v7317
    %v7495 = vpack.c.b16 %v7402, %v7399
    %v7496 = vpack.c.b16 %v7403, %v7400
    %v7497 = vpack.c.b16 %v7404, %v7401
    %v7498 = vpack.c.b16 %v7408, %v7405
    %v7499 = vpack.c.b16 %v7409, %v7406
    %v7500 = vpack.c.b16 %v7410, %v7407
    %v7501 = vpack.c.b16 %v7414, %v7411
    %v7502 = vpack.c.b16 %v7415, %v7412
    %v7503 = vpack.c.b16 %v7416, %v7413
    %v7504 = vpack.c.b16 %v7420, %v7417
    %v7505 = vpack.c.b16 %v7421, %v7418
    %v7506 = vpack.c.b16 %v7422, %v7419
    %v7507 = vpack.c.b16 %v7426, %v7423
    %v7508 = vpack.c.b16 %v7427, %v7424
    %v7509 = vpack.c.b16 %v7428, %v7425
    %v7510 = vpack.c.b16 %v7432, %v7429
    %v7511 = vpack.c.b16 %v7433, %v7430
    %v7512 = vpack.c.b16 %v7434, %v7431
    %v7513 = vpack.c.b16 %v7438, %v7435
    %v7514 = vpack.c.b16 %v7439, %v7436
    %v7515 = vpack.c.b16 %v7440, %v7437
    %v7516 = vpack.c.b16 %v7444, %v7441
    %v7517 = vpack.c.b16 %v7445, %v7442
    %v7518 = vpack.c.b16 %v7446, %v7443
    %v7519 = vpack.c.b16 %v7450, %v7447
    %v7520 = vpack.c.b16 %v7451, %v7448
    %v7521 = vpack.c.b16 %v7452, %v7449
    %v7522 = vpack.c.b16 %v7456, %v7453
    %v7523 = vpack.c.b16 %v7457, %v7454
    %v7524 = vpack.c.b16 %v7458, %v7455
    %v7525 = vpack.c.b16 %v7462, %v7459
    %v7526 = vpack.c.b16 %v7463, %v7460
    %v7527 = vpack.c.b16 %v7464, %v7461
    %v7528 = vpack.c.b16 %v7468, %v7465
    %v7529 = vpack.c.b16 %v7469, %v7466
    %v7530 = vpack.c.b16 %v7470, %v7467
    %v7531 = vpack.c.b16 %v7474, %v7471
    %v7532 = vpack.c.b16 %v7475, %v7472
    %v7533 = vpack.c.b16 %v7476, %v7473
    %v7534 = vpack.c.b16 %v7480, %v7477
    %v7535 = vpack.c.b16 %v7481, %v7478
    %v7536 = vpack.c.b16 %v7482, %v7479
    %v7537 = vpack.c.b16 %v7486, %v7483
    %v7538 = vpack.c.b16 %v7487, %v7484
    %v7539 = vpack.c.b16 %v7488, %v7485
    %v7540 = vpack.c.b16 %v7492, %v7489
    %v7541 = vpack.c.b16 %v7493, %v7490
    %v7542 = vpack.c.b16 %v7494, %v7491
    %7591 = vmatprep.subr.bf16.mxu0 %v7496
    %7592 = vmatpush1.bf16.msra.mxu0 %v7495
    %7593 = vmatprep.subr.bf16.mxu0 %v7499
    %7594 = vmatpush1.bf16.msra.mxu0 %v7498
    %7595 = vmatprep.subr.bf16.mxu0 %v7502
    %7596 = vmatpush1.bf16.msra.mxu0 %v7501
    %7597 = vmatprep.subr.bf16.mxu0 %v7505
    %7598 = vmatpush1.bf16.msra.mxu0 %v7504
    %7599 = vmatprep.subr.bf16.mxu0 %v7508
    %7600 = vmatpush1.bf16.msra.mxu0 %v7507
    %7601 = vmatprep.subr.bf16.mxu0 %v7511
    %7602 = vmatpush1.bf16.msra.mxu0 %v7510
    %7603 = vmatprep.subr.bf16.mxu0 %v7514
    %7604 = vmatpush1.bf16.msra.mxu0 %v7513
    %7605 = vmatprep.subr.bf16.mxu0 %v7517
    %7606 = vmatpush1.bf16.msra.mxu0 %v7516
    %7607 = vmatprep.subr.bf16.mxu0 %v7520
    %7608 = vmatpush1.bf16.msra.mxu0 %v7519
    %7609 = vmatprep.subr.bf16.mxu0 %v7523
    %7610 = vmatpush1.bf16.msra.mxu0 %v7522
    %7611 = vmatprep.subr.bf16.mxu0 %v7526
    %7612 = vmatpush1.bf16.msra.mxu0 %v7525
    %7613 = vmatprep.subr.bf16.mxu0 %v7529
    %7614 = vmatpush1.bf16.msra.mxu0 %v7528
    %7615 = vmatprep.subr.bf16.mxu0 %v7532
    %7616 = vmatpush1.bf16.msra.mxu0 %v7531
    %7617 = vmatprep.subr.bf16.mxu0 %v7535
    %7618 = vmatpush1.bf16.msra.mxu0 %v7534
    %7619 = vmatprep.subr.bf16.mxu0 %v7538
    %7620 = vmatpush1.bf16.msra.mxu0 %v7537
    %7621 = vmatprep.subr.bf16.mxu0 %v7541
    %7622 = vmatpush1.bf16.msra.mxu0 %v7540
    %7623 = vmatprep.mubr.bf16.mxu0 %v7239
    %7624 = vmatmul.mubr.bf16.gmra.mrb[0].mxu0 %v7238
    %v7625 = vpop.f32.mrb[0].mxu0
    %v7626 = vadd.f32 %v7323, %v7625
    %v7627 = vpop.f32.mrb[0].mxu0
    %v7628 = vadd.f32 %v7327, %v7627
    %v7629 = vpop.f32.mrb[0].mxu0
    %v7630 = vadd.f32 %v7323, %v7629
    %v7631 = vpop.f32.mrb[0].mxu0
    %v7632 = vadd.f32 %v7327, %v7631
    %7633 = vmatprep.mubr.bf16.mxu0 %v7241
    %7634 = vmatmul.mubr.bf16.gmra.mrb[0].mxu0 %v7240
    %v7635 = vpop.f32.mrb[0].mxu0
    %v7636 = vadd.f32 %v7323, %v7635
    %v7637 = vpop.f32.mrb[0].mxu0
    %v7638 = vadd.f32 %v7327, %v7637
    %v7639 = vpop.f32.mrb[0].mxu0
    %v7640 = vadd.f32 %v7323, %v7639
    %v7641 = vpop.f32.mrb[0].mxu0
    %v7642 = vadd.f32 %v7327, %v7641
    %7643 = vmatprep.mubr.bf16.mxu0 %v7243
    %7644 = vmatmul.mubr.bf16.gmra.mrb[0].mxu0 %v7242
    %v7645 = vpop.f32.mrb[0].mxu0
    %v7646 = vadd.f32 %v7323, %v7645
    %v7647 = vpop.f32.mrb[0].mxu0
    %v7648 = vadd.f32 %v7327, %v7647
    %v7649 = vpop.f32.mrb[0].mxu0
    %v7650 = vadd.f32 %v7323, %v7649
    %v7651 = vpop.f32.mrb[0].mxu0
    %v7652 = vadd.f32 %v7327, %v7651
    %7653 = vmatprep.mubr.bf16.mxu0 %v7245
    %7654 = vmatmul.mubr.bf16.gmra.mrb[0].mxu0 %v7244
    %v7655 = vpop.f32.mrb[0].mxu0
    %v7656 = vadd.f32 %v7323, %v7655
    %v7657 = vpop.f32.mrb[0].mxu0
    %v7658 = vadd.f32 %v7327, %v7657
    %v7659 = vpop.f32.mrb[0].mxu0
    %v7660 = vadd.f32 %v7323, %v7659
    %v7661 = vpop.f32.mrb[0].mxu0
    %v7662 = vadd.f32 %v7327, %v7661
    %7663 = vmatprep.mubr.bf16.mxu0 %v7247
    %7664 = vmatmul.mubr.bf16.gmra.mrb[0].mxu0 %v7246
    %v7665 = vpop.f32.mrb[0].mxu0
    %v7666 = vadd.f32 %v7323, %v7665
    %v7667 = vpop.f32.mrb[0].mxu0
    %v7668 = vadd.f32 %v7327, %v7667
    %v7669 = vpop.f32.mrb[0].mxu0
    %v7670 = vadd.f32 %v7323, %v7669
    %v7671 = vpop.f32.mrb[0].mxu0
    %v7672 = vadd.f32 %v7327, %v7671
    %7673 = vmatprep.mubr.bf16.mxu0 %v7249
    %7674 = vmatmul.mubr.bf16.gmra.mrb[0].mxu0 %v7248
    %v7675 = vpop.f32.mrb[0].mxu0
    %v7676 = vadd.f32 %v7323, %v7675
    %v7677 = vpop.f32.mrb[0].mxu0
    %v7678 = vadd.f32 %v7327, %v7677
    %v7679 = vpop.f32.mrb[0].mxu0
    %v7680 = vadd.f32 %v7323, %v7679
    %v7681 = vpop.f32.mrb[0].mxu0
    %v7682 = vadd.f32 %v7327, %v7681
    %7683 = vmatprep.mubr.bf16.mxu0 %v7251
    %7684 = vmatmul.mubr.bf16.gmra.mrb[0].mxu0 %v7250
    %v7685 = vpop.f32.mrb[0].mxu0
    %v7686 = vadd.f32 %v7323, %v7685
    %v7687 = vpop.f32.mrb[0].mxu0
    %v7688 = vadd.f32 %v7327, %v7687
    %v7689 = vpop.f32.mrb[0].mxu0
    %v7690 = vadd.f32 %v7323, %v7689
    %v7691 = vpop.f32.mrb[0].mxu0
    %v7692 = vadd.f32 %v7327, %v7691
    %7693 = vmatprep.mubr.bf16.mxu0 %v7253
    %7694 = vmatmul.mubr.bf16.gmra.mrb[0].mxu0 %v7252
    %v7695 = vpop.f32.mrb[0].mxu0
    %v7696 = vadd.f32 %v7323, %v7695
    %v7697 = vpop.f32.mrb[0].mxu0
    %v7698 = vadd.f32 %v7327, %v7697
    %v7699 = vpop.f32.mrb[0].mxu0
    %v7700 = vadd.f32 %v7323, %v7699
    %v7701 = vpop.f32.mrb[0].mxu0
    %v7702 = vadd.f32 %v7327, %v7701
    %7703 = vdwg.mxu0
    %7704 = vmatprep.subr.bf16.mxu0 0
    %7705 = vmatpush1.bf16.msra.mxu0 %v7497
    %7706 = vmatprep.subr.bf16.mxu0 0
    %7707 = vmatpush1.bf16.msra.mxu0 %v7500
    %7708 = vmatprep.subr.bf16.mxu0 0
    %7709 = vmatpush1.bf16.msra.mxu0 %v7503
    %7710 = vmatprep.subr.bf16.mxu0 0
    %7711 = vmatpush1.bf16.msra.mxu0 %v7506
    %7712 = vmatprep.subr.bf16.mxu0 0
    %7713 = vmatpush1.bf16.msra.mxu0 %v7509
    %7714 = vmatprep.subr.bf16.mxu0 0
    %7715 = vmatpush1.bf16.msra.mxu0 %v7512
    %7716 = vmatprep.subr.bf16.mxu0 0
    %7717 = vmatpush1.bf16.msra.mxu0 %v7515
    %7718 = vmatprep.subr.bf16.mxu0 0
    %7719 = vmatpush1.bf16.msra.mxu0 %v7518
    %7720 = vmatprep.subr.bf16.mxu0 0
    %7721 = vmatpush1.bf16.msra.mxu0 %v7521
    %7722 = vmatprep.subr.bf16.mxu0 0
    %7723 = vmatpush1.bf16.msra.mxu0 %v7524
    %7724 = vmatprep.subr.bf16.mxu0 0
    %7725 = vmatpush1.bf16.msra.mxu0 %v7527
    %7726 = vmatprep.subr.bf16.mxu0 0
    %7727 = vmatpush1.bf16.msra.mxu0 %v7530
    %7728 = vmatprep.subr.bf16.mxu0 0
    %7729 = vmatpush1.bf16.msra.mxu0 %v7533
    %7730 = vmatprep.subr.bf16.mxu0 0
    %7731 = vmatpush1.bf16.msra.mxu0 %v7536
    %7732 = vmatprep.subr.bf16.mxu0 0
    %7733 = vmatpush1.bf16.msra.mxu0 %v7539
    %7734 = vmatprep.subr.bf16.mxu0 0
    %7735 = vmatpush1.bf16.msra.mxu0 %v7542
    %7736 = vmatprep.mubr.bf16.mxu0 %v7239
    %7737 = vmatmul.mubr.bf16.gmra.mrb[0].mxu0 %v7238
    %v7738 = vpop.f32.mrb[0].mxu0
    %v7739 = vadd.f32 %v7331, %v7738
    %v7740 = vpop.f32.mrb[0].mxu0
    %v7741 = vpop.f32.mrb[0].mxu0
    %v7742 = vadd.f32 %v7331, %v7741
    %v7743 = vpop.f32.mrb[0].mxu0
    %7744 = vmatprep.mubr.bf16.mxu0 %v7241
    %7745 = vmatmul.mubr.bf16.gmra.mrb[0].mxu0 %v7240
    %v7746 = vpop.f32.mrb[0].mxu0
    %v7747 = vadd.f32 %v7331, %v7746
    %v7748 = vpop.f32.mrb[0].mxu0
    %v7749 = vpop.f32.mrb[0].mxu0
    %v7750 = vadd.f32 %v7331, %v7749
    %v7751 = vpop.f32.mrb[0].mxu0
    %7752 = vmatprep.mubr.bf16.mxu0 %v7243
    %7753 = vmatmul.mubr.bf16.gmra.mrb[0].mxu0 %v7242
    %v7754 = vpop.f32.mrb[0].mxu0
    %v7755 = vadd.f32 %v7331, %v7754
    %v7756 = vpop.f32.mrb[0].mxu0
    %v7757 = vpop.f32.mrb[0].mxu0
    %v7758 = vadd.f32 %v7331, %v7757
    %v7759 = vpop.f32.mrb[0].mxu0
    %7760 = vmatprep.mubr.bf16.mxu0 %v7245
    %7761 = vmatmul.mubr.bf16.gmra.mrb[0].mxu0 %v7244
    %v7762 = vpop.f32.mrb[0].mxu0
    %v7763 = vadd.f32 %v7331, %v7762
    %v7764 = vpop.f32.mrb[0].mxu0
    %v7765 = vpop.f32.mrb[0].mxu0
    %v7766 = vadd.f32 %v7331, %v7765
    %v7767 = vpop.f32.mrb[0].mxu0
    %7768 = vmatprep.mubr.bf16.mxu0 %v7247
    %7769 = vmatmul.mubr.bf16.gmra.mrb[0].mxu0 %v7246
    %v7770 = vpop.f32.mrb[0].mxu0
    %v7771 = vadd.f32 %v7331, %v7770
    %v7772 = vpop.f32.mrb[0].mxu0
    %v7773 = vpop.f32.mrb[0].mxu0
    %v7774 = vadd.f32 %v7331, %v7773
    %v7775 = vpop.f32.mrb[0].mxu0
    %7776 = vmatprep.mubr.bf16.mxu0 %v7249
    %7777 = vmatmul.mubr.bf16.gmra.mrb[0].mxu0 %v7248
    %v7778 = vpop.f32.mrb[0].mxu0
    %v7779 = vadd.f32 %v7331, %v7778
    %v7780 = vpop.f32.mrb[0].mxu0
    %v7781 = vpop.f32.mrb[0].mxu0
    %v7782 = vadd.f32 %v7331, %v7781
    %v7783 = vpop.f32.mrb[0].mxu0
    %7784 = vmatprep.mubr.bf16.mxu0 %v7251
    %7785 = vmatmul.mubr.bf16.gmra.mrb[0].mxu0 %v7250
    %v7786 = vpop.f32.mrb[0].mxu0
    %v7787 = vadd.f32 %v7331, %v7786
    %v7788 = vpop.f32.mrb[0].mxu0
    %v7789 = vpop.f32.mrb[0].mxu0
    %v7790 = vadd.f32 %v7331, %v7789
    %v7791 = vpop.f32.mrb[0].mxu0
    %7792 = vmatprep.mubr.bf16.mxu0 %v7253
    %7793 = vmatmul.mubr.bf16.gmra.mrb[0].mxu0 %v7252
    %v7794 = vpop.f32.mrb[0].mxu0
    %v7795 = vadd.f32 %v7331, %v7794
    %v7796 = vpop.f32.mrb[0].mxu0
    %v7797 = vpop.f32.mrb[0].mxu0
    %v7798 = vadd.f32 %v7331, %v7797
    %v7799 = vpop.f32.mrb[0].mxu0
    %7800 = vdwg.mxu0
    %v7801 = vmax.f32 %v7626, 0.0
    %v7802 = vmax.f32 %v7628, 0.0
    %v7803 = vmax.f32 %v7739, 0.0
    %v7804 = vmax.f32 %v7630, 0.0
    %v7805 = vmax.f32 %v7632, 0.0
    %v7806 = vmax.f32 %v7742, 0.0
    %v7807 = vmax.f32 %v7636, 0.0
    %v7808 = vmax.f32 %v7638, 0.0
    %v7809 = vmax.f32 %v7747, 0.0
    %v7810 = vmax.f32 %v7640, 0.0
    %v7811 = vmax.f32 %v7642, 0.0
    %v7812 = vmax.f32 %v7750, 0.0
    %v7813 = vmax.f32 %v7646, 0.0
    %v7814 = vmax.f32 %v7648, 0.0
    %v7815 = vmax.f32 %v7755, 0.0
    %v7816 = vmax.f32 %v7650, 0.0
    %v7817 = vmax.f32 %v7652, 0.0
    %v7818 = vmax.f32 %v7758, 0.0
    %v7819 = vmax.f32 %v7656, 0.0
    %v7820 = vmax.f32 %v7658, 0.0
    %v7821 = vmax.f32 %v7763, 0.0
    %v7822 = vmax.f32 %v7660, 0.0
    %v7823 = vmax.f32 %v7662, 0.0
    %v7824 = vmax.f32 %v7766, 0.0
    %v7825 = vmax.f32 %v7666, 0.0
    %v7826 = vmax.f32 %v7668, 0.0
    %v7827 = vmax.f32 %v7771, 0.0
    %v7828 = vmax.f32 %v7670, 0.0
    %v7829 = vmax.f32 %v7672, 0.0
    %v7830 = vmax.f32 %v7774, 0.0
    %v7831 = vmax.f32 %v7676, 0.0
    %v7832 = vmax.f32 %v7678, 0.0
    %v7833 = vmax.f32 %v7779, 0.0
    %v7834 = vmax.f32 %v7680, 0.0
    %v7835 = vmax.f32 %v7682, 0.0
    %v7836 = vmax.f32 %v7782, 0.0
    %v7837 = vmax.f32 %v7686, 0.0
    %v7838 = vmax.f32 %v7688, 0.0
    %v7839 = vmax.f32 %v7787, 0.0
    %v7840 = vmax.f32 %v7690, 0.0
    %v7841 = vmax.f32 %v7692, 0.0
    %v7842 = vmax.f32 %v7790, 0.0
    %v7843 = vmax.f32 %v7696, 0.0
    %v7844 = vmax.f32 %v7698, 0.0
    %v7845 = vmax.f32 %v7795, 0.0
    %v7846 = vmax.f32 %v7700, 0.0
    %v7847 = vmax.f32 %v7702, 0.0
    %v7848 = vmax.f32 %v7798, 0.0
    %v7849 = vpack.c.bf16 %v7804, %v7801
    %v7850 = vpack.c.bf16 %v7805, %v7802
    %v7851 = vpack.c.bf16 %v7806, %v7803
    %v7852 = vpack.c.bf16 %v7810, %v7807
    %v7853 = vpack.c.bf16 %v7811, %v7808
    %v7854 = vpack.c.bf16 %v7812, %v7809
    %v7855 = vpack.c.bf16 %v7816, %v7813
    %v7856 = vpack.c.bf16 %v7817, %v7814
    %v7857 = vpack.c.bf16 %v7818, %v7815
    %v7858 = vpack.c.bf16 %v7822, %v7819
    %v7859 = vpack.c.bf16 %v7823, %v7820
    %v7860 = vpack.c.bf16 %v7824, %v7821
    %v7861 = vpack.c.bf16 %v7828, %v7825
    %v7862 = vpack.c.bf16 %v7829, %v7826
    %v7863 = vpack.c.bf16 %v7830, %v7827
    %v7864 = vpack.c.bf16 %v7834, %v7831
    %v7865 = vpack.c.bf16 %v7835, %v7832
    %v7866 = vpack.c.bf16 %v7836, %v7833
    %v7867 = vpack.c.bf16 %v7840, %v7837
    %v7868 = vpack.c.bf16 %v7841, %v7838
    %v7869 = vpack.c.bf16 %v7842, %v7839
    %v7870 = vpack.c.bf16 %v7846, %v7843
    %v7871 = vpack.c.bf16 %v7847, %v7844
    %v7872 = vpack.c.bf16 %v7848, %v7845
    %v7873 = vld [vmem:[#allocation23] sm:$0xff]
    %v7874 = vld [vmem:[#allocation23 + $0x8] sm:$0xff]
    %v7875 = vld [vmem:[#allocation23 + $0x10] sm:$0xff]
    %v7876 = vld [vmem:[#allocation23 + $0x18] sm:$0xff]
    %v7877 = vld [vmem:[#allocation23 + $0x20] sm:$0xff]
    %v7878 = vld [vmem:[#allocation23 + $0x28] sm:$0xff]
    %v7879 = vld [vmem:[#allocation23 + $0x30] sm:$0xff]
    %v7880 = vld [vmem:[#allocation23 + $0x38] sm:$0xff]
    %v7881 = vld [vmem:[#allocation23 + $0x40] sm:$0xff]
    %v7882 = vld [vmem:[#allocation23 + $0x48] sm:$0xff]
    %v7883 = vld [vmem:[#allocation23 + $0x50] sm:$0xff]
    %v7884 = vld [vmem:[#allocation23 + $0x58] sm:$0xff]
    %v7885 = vld [vmem:[#allocation23 + $0x60] sm:$0xff]
    %v7886 = vld [vmem:[#allocation23 + $0x68] sm:$0xff]
    %v7887 = vld [vmem:[#allocation23 + $0x70] sm:$0xff]
    %v7888 = vld [vmem:[#allocation23 + $0x78] sm:$0xff]
    %v7889 = vld [vmem:[#allocation23 + $0x80] sm:$0xff]
    %v7890 = vld [vmem:[#allocation23 + $0x88] sm:$0xff]
    %v7891 = vld [vmem:[#allocation23 + $0x90] sm:$0xff]
    %v7892 = vld [vmem:[#allocation23 + $0x98] sm:$0xff]
    %v7893 = vld [vmem:[#allocation23 + $0xa0] sm:$0xff]
    %v7894 = vld [vmem:[#allocation23 + $0xa8] sm:$0xff]
    %v7895 = vld [vmem:[#allocation23 + $0xb0] sm:$0xff]
    %v7896 = vld [vmem:[#allocation23 + $0xb8] sm:$0xff]
    %v7897 = vld [vmem:[#allocation23 + $0xc0] sm:$0xff]
    %v7898 = vld [vmem:[#allocation23 + $0xc8] sm:$0xff]
    %v7899 = vld [vmem:[#allocation23 + $0xd0] sm:$0xff]
    %v7900 = vld [vmem:[#allocation23 + $0xd8] sm:$0xff]
    %v7901 = vld [vmem:[#allocation23 + $0xe0] sm:$0xff]
    %v7902 = vld [vmem:[#allocation23 + $0xe8] sm:$0xff]
    %v7903 = vld [vmem:[#allocation23 + $0xf0] sm:$0xff]
    %v7904 = vld [vmem:[#allocation23 + $0xf8] sm:$0xff]
    %v7905 = vld [vmem:[#allocation23 + $0x100] sm:$0xff]
    %v7906 = vld [vmem:[#allocation23 + $0x108] sm:$0xff]
    %v7907 = vld [vmem:[#allocation23 + $0x110] sm:$0xff]
    %v7908 = vld [vmem:[#allocation23 + $0x118] sm:$0xff]
    %v7909 = vld [vmem:[#allocation23 + $0x120] sm:$0xff]
    %v7910 = vld [vmem:[#allocation23 + $0x128] sm:$0xff]
    %v7911 = vld [vmem:[#allocation23 + $0x130] sm:$0xff]
    %v7912 = vld [vmem:[#allocation23 + $0x138] sm:$0xff]
    %v7913 = vld [vmem:[#allocation23 + $0x140] sm:$0xff]
    %v7914 = vld [vmem:[#allocation23 + $0x148] sm:$0xff]
    %v7915 = vld [vmem:[#allocation23 + $0x150] sm:$0xff]
    %v7916 = vld [vmem:[#allocation23 + $0x158] sm:$0xff]
    %v7917 = vld [vmem:[#allocation23 + $0x160] sm:$0xff]
    %v7918 = vld [vmem:[#allocation23 + $0x168] sm:$0xff]
    %v7919 = vld [vmem:[#allocation23 + $0x170] sm:$0xff]
    %v7920 = vld [vmem:[#allocation23 + $0x178] sm:$0xff]
    %v7921 = vld [vmem:[#allocation23 + $0x180] sm:$0xff]
    %v7922 = vld [vmem:[#allocation23 + $0x188] sm:$0xff]
    %v7923 = vld [vmem:[#allocation23 + $0x190] sm:$0xff]
    %v7924 = vld [vmem:[#allocation23 + $0x198] sm:$0xff]
    %v7925 = vld [vmem:[#allocation23 + $0x1a0] sm:$0xff]
    %v7926 = vld [vmem:[#allocation23 + $0x1a8] sm:$0xff]
    %v7927 = vld [vmem:[#allocation23 + $0x1b0] sm:$0xff]
    %v7928 = vld [vmem:[#allocation23 + $0x1b8] sm:$0xff]
    %v7929 = vld [vmem:[#allocation23 + $0x1c0] sm:$0xff]
    %v7930 = vld [vmem:[#allocation23 + $0x1c8] sm:$0xff]
    %v7931 = vld [vmem:[#allocation23 + $0x1d0] sm:$0xff]
    %v7932 = vld [vmem:[#allocation23 + $0x1d8] sm:$0xff]
    %v7933 = vld [vmem:[#allocation23 + $0x1e0] sm:$0xff]
    %v7934 = vld [vmem:[#allocation23 + $0x1e8] sm:$0xff]
    %v7935 = vld [vmem:[#allocation23 + $0x1f0] sm:$0xff]
    %v7936 = vld [vmem:[#allocation23 + $0x1f8] sm:$0xff]
    %v7937 = vld [vmem:[#allocation23 + $0x200] sm:$0xff]
    %v7938 = vld [vmem:[#allocation23 + $0x208] sm:$0xff]
    %v7939 = vld [vmem:[#allocation23 + $0x210] sm:$0xff]
    %v7940 = vld [vmem:[#allocation23 + $0x218] sm:$0xff]
    %v7941 = vld [vmem:[#allocation23 + $0x220] sm:$0xff]
    %v7942 = vld [vmem:[#allocation23 + $0x228] sm:$0xff]
    %v7943 = vld [vmem:[#allocation23 + $0x230] sm:$0xff]
    %v7944 = vld [vmem:[#allocation23 + $0x238] sm:$0xff]
    %v7945 = vld [vmem:[#allocation23 + $0x240] sm:$0xff]
    %v7946 = vld [vmem:[#allocation23 + $0x248] sm:$0xff]
    %v7947 = vld [vmem:[#allocation23 + $0x250] sm:$0xff]
    %v7948 = vld [vmem:[#allocation23 + $0x258] sm:$0xff]
    %v7949 = vld [vmem:[#allocation23 + $0x260] sm:$0xff]
    %v7950 = vld [vmem:[#allocation23 + $0x268] sm:$0xff]
    %v7951 = vld [vmem:[#allocation23 + $0x270] sm:$0xff]
    %v7952 = vld [vmem:[#allocation23 + $0x278] sm:$0xff]
    %v7953 = vld [vmem:[#allocation23 + $0x280] sm:$0xff]
    %v7954 = vld [vmem:[#allocation23 + $0x288] sm:$0xff]
    %v7955 = vld [vmem:[#allocation23 + $0x290] sm:$0xff]
    %v7956 = vld [vmem:[#allocation23 + $0x298] sm:$0xff]
    %v7957 = vld [vmem:[#allocation23 + $0x2a0] sm:$0xff]
    %v7958 = vld [vmem:[#allocation23 + $0x2a8] sm:$0xff]
    %v7959 = vld [vmem:[#allocation23 + $0x2b0] sm:$0xff]
    %v7960 = vld [vmem:[#allocation23 + $0x2b8] sm:$0xff]
    %v7961 = vld [vmem:[#allocation23 + $0x2c0] sm:$0xff]
    %v7962 = vld [vmem:[#allocation23 + $0x2c8] sm:$0xff]
    %v7963 = vld [vmem:[#allocation23 + $0x2d0] sm:$0xff]
    %v7964 = vld [vmem:[#allocation23 + $0x2d8] sm:$0xff]
    %v7965 = vld [vmem:[#allocation23 + $0x2e0] sm:$0xff]
    %v7966 = vld [vmem:[#allocation23 + $0x2e8] sm:$0xff]
    %v7967 = vld [vmem:[#allocation23 + $0x2f0] sm:$0xff]
    %v7968 = vld [vmem:[#allocation23 + $0x2f8] sm:$0xff]
    %v7969 = vld [vmem:[#allocation23 + $0x300] sm:$0xff]
    %v7970 = vld [vmem:[#allocation23 + $0x308] sm:$0xff]
    %v7971 = vld [vmem:[#allocation23 + $0x310] sm:$0xff]
    %v7972 = vld [vmem:[#allocation23 + $0x318] sm:$0xff]
    %v7973 = vld [vmem:[#allocation23 + $0x320] sm:$0xff]
    %v7974 = vld [vmem:[#allocation23 + $0x328] sm:$0xff]
    %v7975 = vld [vmem:[#allocation23 + $0x330] sm:$0xff]
    %v7976 = vld [vmem:[#allocation23 + $0x338] sm:$0xff]
    %v7977 = vld [vmem:[#allocation23 + $0x340] sm:$0xff]
    %v7978 = vld [vmem:[#allocation23 + $0x348] sm:$0xff]
    %v7979 = vld [vmem:[#allocation23 + $0x350] sm:$0xff]
    %v7980 = vld [vmem:[#allocation23 + $0x358] sm:$0xff]
    %v7981 = vld [vmem:[#allocation23 + $0x360] sm:$0xff]
    %v7982 = vld [vmem:[#allocation23 + $0x368] sm:$0xff]
    %v7983 = vld [vmem:[#allocation23 + $0x370] sm:$0xff]
    %v7984 = vld [vmem:[#allocation23 + $0x378] sm:$0xff]
    %v7985 = vld [vmem:[#allocation23 + $0x380] sm:$0xff]
    %v7986 = vld [vmem:[#allocation23 + $0x388] sm:$0xff]
    %v7987 = vld [vmem:[#allocation23 + $0x390] sm:$0xff]
    %v7988 = vld [vmem:[#allocation23 + $0x398] sm:$0xff]
    %v7989 = vld [vmem:[#allocation23 + $0x3a0] sm:$0xff]
    %v7990 = vld [vmem:[#allocation23 + $0x3a8] sm:$0xff]
    %v7991 = vld [vmem:[#allocation23 + $0x3b0] sm:$0xff]
    %v7992 = vld [vmem:[#allocation23 + $0x3b8] sm:$0xff]
    %v7993 = vld [vmem:[#allocation23 + $0x3c0] sm:$0xff]
    %v7994 = vld [vmem:[#allocation23 + $0x3c8] sm:$0xff]
    %v7995 = vld [vmem:[#allocation23 + $0x3d0] sm:$0xff]
    %v7996 = vld [vmem:[#allocation23 + $0x3d8] sm:$0xff]
    %v7997 = vld [vmem:[#allocation23 + $0x3e0] sm:$0xff]
    %v7998 = vld [vmem:[#allocation23 + $0x3e8] sm:$0xff]
    %v7999 = vld [vmem:[#allocation23 + $0x3f0] sm:$0xff]
    %v8000 = vld [vmem:[#allocation23 + $0x3f8] sm:$0xff]
    %v8001 = vld [vmem:[#allocation23 + $0x400] sm:$0xff]
    %v8002 = vld [vmem:[#allocation23 + $0x408] sm:$0xff]
    %v8003 = vld [vmem:[#allocation23 + $0x410] sm:$0xff]
    %v8004 = vld [vmem:[#allocation23 + $0x418] sm:$0xff]
    %v8005 = vld [vmem:[#allocation23 + $0x420] sm:$0xff]
    %v8006 = vld [vmem:[#allocation23 + $0x428] sm:$0xff]
    %v8007 = vld [vmem:[#allocation23 + $0x430] sm:$0xff]
    %v8008 = vld [vmem:[#allocation23 + $0x438] sm:$0xff]
    %v8009 = vld [vmem:[#allocation23 + $0x440] sm:$0xff]
    %v8010 = vld [vmem:[#allocation23 + $0x448] sm:$0xff]
    %v8011 = vld [vmem:[#allocation23 + $0x450] sm:$0xff]
    %v8012 = vld [vmem:[#allocation23 + $0x458] sm:$0xff]
    %v8013 = vld [vmem:[#allocation23 + $0x460] sm:$0xff]
    %v8014 = vld [vmem:[#allocation23 + $0x468] sm:$0xff]
    %v8015 = vld [vmem:[#allocation23 + $0x470] sm:$0xff]
    %v8016 = vld [vmem:[#allocation23 + $0x478] sm:$0xff]
    %v8017 = vld [vmem:[#allocation25] sm:$0x3f]
    %v8019 = vlaneseq
    %v8020 = vshrl.u32 %v8019, 7
    %v8021 = vsub.s32 0, %v8020
    %v8022 = vrot.slane %v8017, %v8021
    %v8023 = vlaneseq
    %v8024 = vshrl.u32 %v8023, 7
    %v8025 = vsub.s32 1, %v8024
    %v8026 = vrot.slane %v8017, %v8025
    %v8027 = vlaneseq
    %v8028 = vshrl.u32 %v8027, 7
    %v8029 = vsub.s32 2, %v8028
    %v8030 = vrot.slane %v8017, %v8029
    %v8031 = vlaneseq
    %v8032 = vshrl.u32 %v8031, 7
    %v8033 = vsub.s32 3, %v8032
    %v8034 = vrot.slane %v8017, %v8033
    %v8035 = vlaneseq
    %v8036 = vshrl.u32 %v8035, 7
    %v8037 = vsub.s32 4, %v8036
    %v8038 = vrot.slane %v8017, %v8037
    %v8039 = vlaneseq
    %v8040 = vshrl.u32 %v8039, 7
    %v8041 = vsub.s32 5, %v8040
    %v8042 = vrot.slane %v8017, %v8041
    %v8193 = vunpack.c.l.b16 %v7873
    %v8194 = vunpack.c.h.b16 %v7873
    %v8195 = vunpack.c.l.b16 %v7874
    %v8196 = vunpack.c.h.b16 %v7874
    %v8197 = vunpack.c.l.b16 %v7875
    %v8198 = vunpack.c.h.b16 %v7875
    %v8199 = vunpack.c.l.b16 %v7876
    %v8200 = vunpack.c.h.b16 %v7876
    %v8201 = vunpack.c.l.b16 %v7877
    %v8202 = vunpack.c.h.b16 %v7877
    %v8203 = vunpack.c.l.b16 %v7878
    %v8204 = vunpack.c.h.b16 %v7878
    %v8205 = vunpack.c.l.b16 %v7879
    %v8206 = vunpack.c.h.b16 %v7879
    %v8207 = vunpack.c.l.b16 %v7880
    %v8208 = vunpack.c.h.b16 %v7880
    %v8209 = vunpack.c.l.b16 %v7881
    %v8210 = vunpack.c.h.b16 %v7881
    %v8211 = vunpack.c.l.b16 %v7882
    %v8212 = vunpack.c.h.b16 %v7882
    %v8213 = vunpack.c.l.b16 %v7883
    %v8214 = vunpack.c.h.b16 %v7883
    %v8215 = vunpack.c.l.b16 %v7884
    %v8216 = vunpack.c.h.b16 %v7884
    %v8217 = vunpack.c.l.b16 %v7885
    %v8218 = vunpack.c.h.b16 %v7885
    %v8219 = vunpack.c.l.b16 %v7886
    %v8220 = vunpack.c.h.b16 %v7886
    %v8221 = vunpack.c.l.b16 %v7887
    %v8222 = vunpack.c.h.b16 %v7887
    %v8223 = vunpack.c.l.b16 %v7888
    %v8224 = vunpack.c.h.b16 %v7888
    %v8225 = vunpack.c.l.b16 %v7889
    %v8226 = vunpack.c.h.b16 %v7889
    %v8227 = vunpack.c.l.b16 %v7890
    %v8228 = vunpack.c.h.b16 %v7890
    %v8229 = vunpack.c.l.b16 %v7891
    %v8230 = vunpack.c.h.b16 %v7891
    %v8231 = vunpack.c.l.b16 %v7892
    %v8232 = vunpack.c.h.b16 %v7892
    %v8233 = vunpack.c.l.b16 %v7893
    %v8234 = vunpack.c.h.b16 %v7893
    %v8235 = vunpack.c.l.b16 %v7894
    %v8236 = vunpack.c.h.b16 %v7894
    %v8237 = vunpack.c.l.b16 %v7895
    %v8238 = vunpack.c.h.b16 %v7895
    %v8239 = vunpack.c.l.b16 %v7896
    %v8240 = vunpack.c.h.b16 %v7896
    %v8241 = vunpack.c.l.b16 %v7897
    %v8242 = vunpack.c.h.b16 %v7897
    %v8243 = vunpack.c.l.b16 %v7898
    %v8244 = vunpack.c.h.b16 %v7898
    %v8245 = vunpack.c.l.b16 %v7899
    %v8246 = vunpack.c.h.b16 %v7899
    %v8247 = vunpack.c.l.b16 %v7900
    %v8248 = vunpack.c.h.b16 %v7900
    %v8249 = vunpack.c.l.b16 %v7901
    %v8250 = vunpack.c.h.b16 %v7901
    %v8251 = vunpack.c.l.b16 %v7902
    %v8252 = vunpack.c.h.b16 %v7902
    %v8253 = vunpack.c.l.b16 %v7903
    %v8254 = vunpack.c.h.b16 %v7903
    %v8255 = vunpack.c.l.b16 %v7904
    %v8256 = vunpack.c.h.b16 %v7904
    %v8257 = vunpack.c.l.b16 %v7905
    %v8258 = vunpack.c.h.b16 %v7905
    %v8259 = vunpack.c.l.b16 %v7906
    %v8260 = vunpack.c.h.b16 %v7906
    %v8261 = vunpack.c.l.b16 %v7907
    %v8262 = vunpack.c.h.b16 %v7907
    %v8263 = vunpack.c.l.b16 %v7908
    %v8264 = vunpack.c.h.b16 %v7908
    %v8265 = vunpack.c.l.b16 %v7909
    %v8266 = vunpack.c.h.b16 %v7909
    %v8267 = vunpack.c.l.b16 %v7910
    %v8268 = vunpack.c.h.b16 %v7910
    %v8269 = vunpack.c.l.b16 %v7911
    %v8270 = vunpack.c.h.b16 %v7911
    %v8271 = vunpack.c.l.b16 %v7912
    %v8272 = vunpack.c.h.b16 %v7912
    %v8273 = vunpack.c.l.b16 %v7913
    %v8274 = vunpack.c.h.b16 %v7913
    %v8275 = vunpack.c.l.b16 %v7914
    %v8276 = vunpack.c.h.b16 %v7914
    %v8277 = vunpack.c.l.b16 %v7915
    %v8278 = vunpack.c.h.b16 %v7915
    %v8279 = vunpack.c.l.b16 %v7916
    %v8280 = vunpack.c.h.b16 %v7916
    %v8281 = vunpack.c.l.b16 %v7917
    %v8282 = vunpack.c.h.b16 %v7917
    %v8283 = vunpack.c.l.b16 %v7918
    %v8284 = vunpack.c.h.b16 %v7918
    %v8285 = vunpack.c.l.b16 %v7919
    %v8286 = vunpack.c.h.b16 %v7919
    %v8287 = vunpack.c.l.b16 %v7920
    %v8288 = vunpack.c.h.b16 %v7920
    %v8289 = vunpack.c.l.b16 %v7921
    %v8290 = vunpack.c.h.b16 %v7921
    %v8291 = vunpack.c.l.b16 %v7922
    %v8292 = vunpack.c.h.b16 %v7922
    %v8293 = vunpack.c.l.b16 %v7923
    %v8294 = vunpack.c.h.b16 %v7923
    %v8295 = vunpack.c.l.b16 %v7924
    %v8296 = vunpack.c.h.b16 %v7924
    %v8297 = vunpack.c.l.b16 %v7925
    %v8298 = vunpack.c.h.b16 %v7925
    %v8299 = vunpack.c.l.b16 %v7926
    %v8300 = vunpack.c.h.b16 %v7926
    %v8301 = vunpack.c.l.b16 %v7927
    %v8302 = vunpack.c.h.b16 %v7927
    %v8303 = vunpack.c.l.b16 %v7928
    %v8304 = vunpack.c.h.b16 %v7928
    %v8305 = vunpack.c.l.b16 %v7929
    %v8306 = vunpack.c.h.b16 %v7929
    %v8307 = vunpack.c.l.b16 %v7930
    %v8308 = vunpack.c.h.b16 %v7930
    %v8309 = vunpack.c.l.b16 %v7931
    %v8310 = vunpack.c.h.b16 %v7931
    %v8311 = vunpack.c.l.b16 %v7932
    %v8312 = vunpack.c.h.b16 %v7932
    %v8313 = vunpack.c.l.b16 %v7933
    %v8314 = vunpack.c.h.b16 %v7933
    %v8315 = vunpack.c.l.b16 %v7934
    %v8316 = vunpack.c.h.b16 %v7934
    %v8317 = vunpack.c.l.b16 %v7935
    %v8318 = vunpack.c.h.b16 %v7935
    %v8319 = vunpack.c.l.b16 %v7936
    %v8320 = vunpack.c.h.b16 %v7936
    %v8321 = vunpack.c.l.b16 %v7937
    %v8322 = vunpack.c.h.b16 %v7937
    %v8323 = vunpack.c.l.b16 %v7938
    %v8324 = vunpack.c.h.b16 %v7938
    %v8325 = vunpack.c.l.b16 %v7939
    %v8326 = vunpack.c.h.b16 %v7939
    %v8327 = vunpack.c.l.b16 %v7940
    %v8328 = vunpack.c.h.b16 %v7940
    %v8329 = vunpack.c.l.b16 %v7941
    %v8330 = vunpack.c.h.b16 %v7941
    %v8331 = vunpack.c.l.b16 %v7942
    %v8332 = vunpack.c.h.b16 %v7942
    %v8333 = vunpack.c.l.b16 %v7943
    %v8334 = vunpack.c.h.b16 %v7943
    %v8335 = vunpack.c.l.b16 %v7944
    %v8336 = vunpack.c.h.b16 %v7944
    %v8337 = vunpack.c.l.b16 %v7945
    %v8338 = vunpack.c.h.b16 %v7945
    %v8339 = vunpack.c.l.b16 %v7946
    %v8340 = vunpack.c.h.b16 %v7946
    %v8341 = vunpack.c.l.b16 %v7947
    %v8342 = vunpack.c.h.b16 %v7947
    %v8343 = vunpack.c.l.b16 %v7948
    %v8344 = vunpack.c.h.b16 %v7948
    %v8345 = vunpack.c.l.b16 %v7949
    %v8346 = vunpack.c.h.b16 %v7949
    %v8347 = vunpack.c.l.b16 %v7950
    %v8348 = vunpack.c.h.b16 %v7950
    %v8349 = vunpack.c.l.b16 %v7951
    %v8350 = vunpack.c.h.b16 %v7951
    %v8351 = vunpack.c.l.b16 %v7952
    %v8352 = vunpack.c.h.b16 %v7952
    %v8353 = vunpack.c.l.b16 %v7953
    %v8354 = vunpack.c.h.b16 %v7953
    %v8355 = vunpack.c.l.b16 %v7954
    %v8356 = vunpack.c.h.b16 %v7954
    %v8357 = vunpack.c.l.b16 %v7955
    %v8358 = vunpack.c.h.b16 %v7955
    %v8359 = vunpack.c.l.b16 %v7956
    %v8360 = vunpack.c.h.b16 %v7956
    %v8361 = vunpack.c.l.b16 %v7957
    %v8362 = vunpack.c.h.b16 %v7957
    %v8363 = vunpack.c.l.b16 %v7958
    %v8364 = vunpack.c.h.b16 %v7958
    %v8365 = vunpack.c.l.b16 %v7959
    %v8366 = vunpack.c.h.b16 %v7959
    %v8367 = vunpack.c.l.b16 %v7960
    %v8368 = vunpack.c.h.b16 %v7960
    %v8369 = vunpack.c.l.b16 %v7961
    %v8370 = vunpack.c.h.b16 %v7961
    %v8371 = vunpack.c.l.b16 %v7962
    %v8372 = vunpack.c.h.b16 %v7962
    %v8373 = vunpack.c.l.b16 %v7963
    %v8374 = vunpack.c.h.b16 %v7963
    %v8375 = vunpack.c.l.b16 %v7964
    %v8376 = vunpack.c.h.b16 %v7964
    %v8377 = vunpack.c.l.b16 %v7965
    %v8378 = vunpack.c.h.b16 %v7965
    %v8379 = vunpack.c.l.b16 %v7966
    %v8380 = vunpack.c.h.b16 %v7966
    %v8381 = vunpack.c.l.b16 %v7967
    %v8382 = vunpack.c.h.b16 %v7967
    %v8383 = vunpack.c.l.b16 %v7968
    %v8384 = vunpack.c.h.b16 %v7968
    %v8385 = vunpack.c.l.b16 %v7969
    %v8386 = vunpack.c.h.b16 %v7969
    %v8387 = vunpack.c.l.b16 %v7970
    %v8388 = vunpack.c.h.b16 %v7970
    %v8389 = vunpack.c.l.b16 %v7971
    %v8390 = vunpack.c.h.b16 %v7971
    %v8391 = vunpack.c.l.b16 %v7972
    %v8392 = vunpack.c.h.b16 %v7972
    %v8393 = vunpack.c.l.b16 %v7973
    %v8394 = vunpack.c.h.b16 %v7973
    %v8395 = vunpack.c.l.b16 %v7974
    %v8396 = vunpack.c.h.b16 %v7974
    %v8397 = vunpack.c.l.b16 %v7975
    %v8398 = vunpack.c.h.b16 %v7975
    %v8399 = vunpack.c.l.b16 %v7976
    %v8400 = vunpack.c.h.b16 %v7976
    %v8401 = vunpack.c.l.b16 %v7977
    %v8402 = vunpack.c.h.b16 %v7977
    %v8403 = vunpack.c.l.b16 %v7978
    %v8404 = vunpack.c.h.b16 %v7978
    %v8405 = vunpack.c.l.b16 %v7979
    %v8406 = vunpack.c.h.b16 %v7979
    %v8407 = vunpack.c.l.b16 %v7980
    %v8408 = vunpack.c.h.b16 %v7980
    %v8409 = vunpack.c.l.b16 %v7981
    %v8410 = vunpack.c.h.b16 %v7981
    %v8411 = vunpack.c.l.b16 %v7982
    %v8412 = vunpack.c.h.b16 %v7982
    %v8413 = vunpack.c.l.b16 %v7983
    %v8414 = vunpack.c.h.b16 %v7983
    %v8415 = vunpack.c.l.b16 %v7984
    %v8416 = vunpack.c.h.b16 %v7984
    %v8417 = vunpack.c.l.b16 %v7985
    %v8418 = vunpack.c.h.b16 %v7985
    %v8419 = vunpack.c.l.b16 %v7986
    %v8420 = vunpack.c.h.b16 %v7986
    %v8421 = vunpack.c.l.b16 %v7987
    %v8422 = vunpack.c.h.b16 %v7987
    %v8423 = vunpack.c.l.b16 %v7988
    %v8424 = vunpack.c.h.b16 %v7988
    %v8425 = vunpack.c.l.b16 %v7989
    %v8426 = vunpack.c.h.b16 %v7989
    %v8427 = vunpack.c.l.b16 %v7990
    %v8428 = vunpack.c.h.b16 %v7990
    %v8429 = vunpack.c.l.b16 %v7991
    %v8430 = vunpack.c.h.b16 %v7991
    %v8431 = vunpack.c.l.b16 %v7992
    %v8432 = vunpack.c.h.b16 %v7992
    %v8433 = vunpack.c.l.b16 %v7993
    %v8434 = vunpack.c.h.b16 %v7993
    %v8435 = vunpack.c.l.b16 %v7994
    %v8436 = vunpack.c.h.b16 %v7994
    %v8437 = vunpack.c.l.b16 %v7995
    %v8438 = vunpack.c.h.b16 %v7995
    %v8439 = vunpack.c.l.b16 %v7996
    %v8440 = vunpack.c.h.b16 %v7996
    %v8441 = vunpack.c.l.b16 %v7997
    %v8442 = vunpack.c.h.b16 %v7997
    %v8443 = vunpack.c.l.b16 %v7998
    %v8444 = vunpack.c.h.b16 %v7998
    %v8445 = vunpack.c.l.b16 %v7999
    %v8446 = vunpack.c.h.b16 %v7999
    %v8447 = vunpack.c.l.b16 %v8000
    %v8448 = vunpack.c.h.b16 %v8000
    %v8449 = vunpack.c.l.b16 %v8001
    %v8450 = vunpack.c.h.b16 %v8001
    %v8451 = vunpack.c.l.b16 %v8002
    %v8452 = vunpack.c.h.b16 %v8002
    %v8453 = vunpack.c.l.b16 %v8003
    %v8454 = vunpack.c.h.b16 %v8003
    %v8455 = vunpack.c.l.b16 %v8004
    %v8456 = vunpack.c.h.b16 %v8004
    %v8457 = vunpack.c.l.b16 %v8005
    %v8458 = vunpack.c.h.b16 %v8005
    %v8459 = vunpack.c.l.b16 %v8006
    %v8460 = vunpack.c.h.b16 %v8006
    %v8461 = vunpack.c.l.b16 %v8007
    %v8462 = vunpack.c.h.b16 %v8007
    %v8463 = vunpack.c.l.b16 %v8008
    %v8464 = vunpack.c.h.b16 %v8008
    %v8465 = vunpack.c.l.b16 %v8009
    %v8466 = vunpack.c.h.b16 %v8009
    %v8467 = vunpack.c.l.b16 %v8010
    %v8468 = vunpack.c.h.b16 %v8010
    %v8469 = vunpack.c.l.b16 %v8011
    %v8470 = vunpack.c.h.b16 %v8011
    %v8471 = vunpack.c.l.b16 %v8012
    %v8472 = vunpack.c.h.b16 %v8012
    %v8473 = vunpack.c.l.b16 %v8013
    %v8474 = vunpack.c.h.b16 %v8013
    %v8475 = vunpack.c.l.b16 %v8014
    %v8476 = vunpack.c.h.b16 %v8014
    %v8477 = vunpack.c.l.b16 %v8015
    %v8478 = vunpack.c.h.b16 %v8015
    %v8479 = vunpack.c.l.b16 %v8016
    %v8480 = vunpack.c.h.b16 %v8016
    %v8481 = vpack.c.b16 %v8199, %v8193
    %v8482 = vpack.c.b16 %v8200, %v8194
    %v8483 = vpack.c.b16 %v8201, %v8195
    %v8484 = vpack.c.b16 %v8202, %v8196
    %v8485 = vpack.c.b16 %v8203, %v8197
    %v8486 = vpack.c.b16 %v8204, %v8198
    %v8487 = vpack.c.b16 %v8211, %v8205
    %v8488 = vpack.c.b16 %v8212, %v8206
    %v8489 = vpack.c.b16 %v8213, %v8207
    %v8490 = vpack.c.b16 %v8214, %v8208
    %v8491 = vpack.c.b16 %v8215, %v8209
    %v8492 = vpack.c.b16 %v8216, %v8210
    %v8493 = vpack.c.b16 %v8223, %v8217
    %v8494 = vpack.c.b16 %v8224, %v8218
    %v8495 = vpack.c.b16 %v8225, %v8219
    %v8496 = vpack.c.b16 %v8226, %v8220
    %v8497 = vpack.c.b16 %v8227, %v8221
    %v8498 = vpack.c.b16 %v8228, %v8222
    %v8499 = vpack.c.b16 %v8235, %v8229
    %v8500 = vpack.c.b16 %v8236, %v8230
    %v8501 = vpack.c.b16 %v8237, %v8231
    %v8502 = vpack.c.b16 %v8238, %v8232
    %v8503 = vpack.c.b16 %v8239, %v8233
    %v8504 = vpack.c.b16 %v8240, %v8234
    %v8505 = vpack.c.b16 %v8247, %v8241
    %v8506 = vpack.c.b16 %v8248, %v8242
    %v8507 = vpack.c.b16 %v8249, %v8243
    %v8508 = vpack.c.b16 %v8250, %v8244
    %v8509 = vpack.c.b16 %v8251, %v8245
    %v8510 = vpack.c.b16 %v8252, %v8246
    %v8511 = vpack.c.b16 %v8259, %v8253
    %v8512 = vpack.c.b16 %v8260, %v8254
    %v8513 = vpack.c.b16 %v8261, %v8255
    %v8514 = vpack.c.b16 %v8262, %v8256
    %v8515 = vpack.c.b16 %v8263, %v8257
    %v8516 = vpack.c.b16 %v8264, %v8258
    %v8517 = vpack.c.b16 %v8271, %v8265
    %v8518 = vpack.c.b16 %v8272, %v8266
    %v8519 = vpack.c.b16 %v8273, %v8267
    %v8520 = vpack.c.b16 %v8274, %v8268
    %v8521 = vpack.c.b16 %v8275, %v8269
    %v8522 = vpack.c.b16 %v8276, %v8270
    %v8523 = vpack.c.b16 %v8283, %v8277
    %v8524 = vpack.c.b16 %v8284, %v8278
    %v8525 = vpack.c.b16 %v8285, %v8279
    %v8526 = vpack.c.b16 %v8286, %v8280
    %v8527 = vpack.c.b16 %v8287, %v8281
    %v8528 = vpack.c.b16 %v8288, %v8282
    %v8529 = vpack.c.b16 %v8295, %v8289
    %v8530 = vpack.c.b16 %v8296, %v8290
    %v8531 = vpack.c.b16 %v8297, %v8291
    %v8532 = vpack.c.b16 %v8298, %v8292
    %v8533 = vpack.c.b16 %v8299, %v8293
    %v8534 = vpack.c.b16 %v8300, %v8294
    %v8535 = vpack.c.b16 %v8307, %v8301
    %v8536 = vpack.c.b16 %v8308, %v8302
    %v8537 = vpack.c.b16 %v8309, %v8303
    %v8538 = vpack.c.b16 %v8310, %v8304
    %v8539 = vpack.c.b16 %v8311, %v8305
    %v8540 = vpack.c.b16 %v8312, %v8306
    %v8541 = vpack.c.b16 %v8319, %v8313
    %v8542 = vpack.c.b16 %v8320, %v8314
    %v8543 = vpack.c.b16 %v8321, %v8315
    %v8544 = vpack.c.b16 %v8322, %v8316
    %v8545 = vpack.c.b16 %v8323, %v8317
    %v8546 = vpack.c.b16 %v8324, %v8318
    %v8547 = vpack.c.b16 %v8331, %v8325
    %v8548 = vpack.c.b16 %v8332, %v8326
    %v8549 = vpack.c.b16 %v8333, %v8327
    %v8550 = vpack.c.b16 %v8334, %v8328
    %v8551 = vpack.c.b16 %v8335, %v8329
    %v8552 = vpack.c.b16 %v8336, %v8330
    %v8553 = vpack.c.b16 %v8343, %v8337
    %v8554 = vpack.c.b16 %v8344, %v8338
    %v8555 = vpack.c.b16 %v8345, %v8339
    %v8556 = vpack.c.b16 %v8346, %v8340
    %v8557 = vpack.c.b16 %v8347, %v8341
    %v8558 = vpack.c.b16 %v8348, %v8342
    %v8559 = vpack.c.b16 %v8355, %v8349
    %v8560 = vpack.c.b16 %v8356, %v8350
    %v8561 = vpack.c.b16 %v8357, %v8351
    %v8562 = vpack.c.b16 %v8358, %v8352
    %v8563 = vpack.c.b16 %v8359, %v8353
    %v8564 = vpack.c.b16 %v8360, %v8354
    %v8565 = vpack.c.b16 %v8367, %v8361
    %v8566 = vpack.c.b16 %v8368, %v8362
    %v8567 = vpack.c.b16 %v8369, %v8363
    %v8568 = vpack.c.b16 %v8370, %v8364
    %v8569 = vpack.c.b16 %v8371, %v8365
    %v8570 = vpack.c.b16 %v8372, %v8366
    %v8571 = vpack.c.b16 %v8379, %v8373
    %v8572 = vpack.c.b16 %v8380, %v8374
    %v8573 = vpack.c.b16 %v8381, %v8375
    %v8574 = vpack.c.b16 %v8382, %v8376
    %v8575 = vpack.c.b16 %v8383, %v8377
    %v8576 = vpack.c.b16 %v8384, %v8378
    %v8577 = vpack.c.b16 %v8391, %v8385
    %v8578 = vpack.c.b16 %v8392, %v8386
    %v8579 = vpack.c.b16 %v8393, %v8387
    %v8580 = vpack.c.b16 %v8394, %v8388
    %v8581 = vpack.c.b16 %v8395, %v8389
    %v8582 = vpack.c.b16 %v8396, %v8390
    %v8583 = vpack.c.b16 %v8403, %v8397
    %v8584 = vpack.c.b16 %v8404, %v8398
    %v8585 = vpack.c.b16 %v8405, %v8399
    %v8586 = vpack.c.b16 %v8406, %v8400
    %v8587 = vpack.c.b16 %v8407, %v8401
    %v8588 = vpack.c.b16 %v8408, %v8402
    %v8589 = vpack.c.b16 %v8415, %v8409
    %v8590 = vpack.c.b16 %v8416, %v8410
    %v8591 = vpack.c.b16 %v8417, %v8411
    %v8592 = vpack.c.b16 %v8418, %v8412
    %v8593 = vpack.c.b16 %v8419, %v8413
    %v8594 = vpack.c.b16 %v8420, %v8414
    %v8595 = vpack.c.b16 %v8427, %v8421
    %v8596 = vpack.c.b16 %v8428, %v8422
    %v8597 = vpack.c.b16 %v8429, %v8423
    %v8598 = vpack.c.b16 %v8430, %v8424
    %v8599 = vpack.c.b16 %v8431, %v8425
    %v8600 = vpack.c.b16 %v8432, %v8426
    %v8601 = vpack.c.b16 %v8439, %v8433
    %v8602 = vpack.c.b16 %v8440, %v8434
    %v8603 = vpack.c.b16 %v8441, %v8435
    %v8604 = vpack.c.b16 %v8442, %v8436
    %v8605 = vpack.c.b16 %v8443, %v8437
    %v8606 = vpack.c.b16 %v8444, %v8438
    %v8607 = vpack.c.b16 %v8451, %v8445
    %v8608 = vpack.c.b16 %v8452, %v8446
    %v8609 = vpack.c.b16 %v8453, %v8447
    %v8610 = vpack.c.b16 %v8454, %v8448
    %v8611 = vpack.c.b16 %v8455, %v8449
    %v8612 = vpack.c.b16 %v8456, %v8450
    %v8613 = vpack.c.b16 %v8463, %v8457
    %v8614 = vpack.c.b16 %v8464, %v8458
    %v8615 = vpack.c.b16 %v8465, %v8459
    %v8616 = vpack.c.b16 %v8466, %v8460
    %v8617 = vpack.c.b16 %v8467, %v8461
    %v8618 = vpack.c.b16 %v8468, %v8462
    %v8619 = vpack.c.b16 %v8475, %v8469
    %v8620 = vpack.c.b16 %v8476, %v8470
    %v8621 = vpack.c.b16 %v8477, %v8471
    %v8622 = vpack.c.b16 %v8478, %v8472
    %v8623 = vpack.c.b16 %v8479, %v8473
    %v8624 = vpack.c.b16 %v8480, %v8474
    %8769 = vmatprep.subr.bf16.mxu0 %v8482
    %8770 = vmatpush1.bf16.msra.mxu0 %v8481
    %8771 = vmatprep.subr.bf16.mxu0 %v8488
    %8772 = vmatpush1.bf16.msra.mxu0 %v8487
    %8773 = vmatprep.subr.bf16.mxu0 %v8494
    %8774 = vmatpush1.bf16.msra.mxu0 %v8493
    %8775 = vmatprep.subr.bf16.mxu0 %v8500
    %8776 = vmatpush1.bf16.msra.mxu0 %v8499
    %8777 = vmatprep.subr.bf16.mxu0 %v8506
    %8778 = vmatpush1.bf16.msra.mxu0 %v8505
    %8779 = vmatprep.subr.bf16.mxu0 %v8512
    %8780 = vmatpush1.bf16.msra.mxu0 %v8511
    %8781 = vmatprep.subr.bf16.mxu0 %v8518
    %8782 = vmatpush1.bf16.msra.mxu0 %v8517
    %8783 = vmatprep.subr.bf16.mxu0 %v8524
    %8784 = vmatpush1.bf16.msra.mxu0 %v8523
    %8785 = vmatprep.subr.bf16.mxu0 %v8530
    %8786 = vmatpush1.bf16.msra.mxu0 %v8529
    %8787 = vmatprep.subr.bf16.mxu0 %v8536
    %8788 = vmatpush1.bf16.msra.mxu0 %v8535
    %8789 = vmatprep.subr.bf16.mxu0 %v8542
    %8790 = vmatpush1.bf16.msra.mxu0 %v8541
    %8791 = vmatprep.subr.bf16.mxu0 %v8548
    %8792 = vmatpush1.bf16.msra.mxu0 %v8547
    %8793 = vmatprep.subr.bf16.mxu0 %v8554
    %8794 = vmatpush1.bf16.msra.mxu0 %v8553
    %8795 = vmatprep.subr.bf16.mxu0 %v8560
    %8796 = vmatpush1.bf16.msra.mxu0 %v8559
    %8797 = vmatprep.subr.bf16.mxu0 %v8566
    %8798 = vmatpush1.bf16.msra.mxu0 %v8565
    %8799 = vmatprep.subr.bf16.mxu0 %v8572
    %8800 = vmatpush1.bf16.msra.mxu0 %v8571
    %8801 = vmatprep.mubr.bf16.mxu0 %v7850
    %8802 = vmatmul.mubr.bf16.gmra.mrb[0].mxu0 %v7849
    %v8803 = vpop.f32.mrb[0].mxu0
    %v8804 = vadd.f32 %v8022, %v8803
    %v8805 = vpop.f32.mrb[0].mxu0
    %v8806 = vadd.f32 %v8026, %v8805
    %v8807 = vpop.f32.mrb[0].mxu0
    %v8808 = vadd.f32 %v8022, %v8807
    %v8809 = vpop.f32.mrb[0].mxu0
    %v8810 = vadd.f32 %v8026, %v8809
    %8811 = vmatprep.mubr.bf16.mxu0 %v7853
    %8812 = vmatmul.mubr.bf16.gmra.mrb[0].mxu0 %v7852
    %v8813 = vpop.f32.mrb[0].mxu0
    %v8814 = vadd.f32 %v8022, %v8813
    %v8815 = vpop.f32.mrb[0].mxu0
    %v8816 = vadd.f32 %v8026, %v8815
    %v8817 = vpop.f32.mrb[0].mxu0
    %v8818 = vadd.f32 %v8022, %v8817
    %v8819 = vpop.f32.mrb[0].mxu0
    %v8820 = vadd.f32 %v8026, %v8819
    %8821 = vmatprep.mubr.bf16.mxu0 %v7856
    %8822 = vmatmul.mubr.bf16.gmra.mrb[0].mxu0 %v7855
    %v8823 = vpop.f32.mrb[0].mxu0
    %v8824 = vadd.f32 %v8022, %v8823
    %v8825 = vpop.f32.mrb[0].mxu0
    %v8826 = vadd.f32 %v8026, %v8825
    %v8827 = vpop.f32.mrb[0].mxu0
    %v8828 = vadd.f32 %v8022, %v8827
    %v8829 = vpop.f32.mrb[0].mxu0
    %v8830 = vadd.f32 %v8026, %v8829
    %8831 = vmatprep.mubr.bf16.mxu0 %v7859
    %8832 = vmatmul.mubr.bf16.gmra.mrb[0].mxu0 %v7858
    %v8833 = vpop.f32.mrb[0].mxu0
    %v8834 = vadd.f32 %v8022, %v8833
    %v8835 = vpop.f32.mrb[0].mxu0
    %v8836 = vadd.f32 %v8026, %v8835
    %v8837 = vpop.f32.mrb[0].mxu0
    %v8838 = vadd.f32 %v8022, %v8837
    %v8839 = vpop.f32.mrb[0].mxu0
    %v8840 = vadd.f32 %v8026, %v8839
    %8841 = vmatprep.mubr.bf16.mxu0 %v7862
    %8842 = vmatmul.mubr.bf16.gmra.mrb[0].mxu0 %v7861
    %v8843 = vpop.f32.mrb[0].mxu0
    %v8844 = vadd.f32 %v8022, %v8843
    %v8845 = vpop.f32.mrb[0].mxu0
    %v8846 = vadd.f32 %v8026, %v8845
    %v8847 = vpop.f32.mrb[0].mxu0
    %v8848 = vadd.f32 %v8022, %v8847
    %v8849 = vpop.f32.mrb[0].mxu0
    %v8850 = vadd.f32 %v8026, %v8849
    %8851 = vmatprep.mubr.bf16.mxu0 %v7865
    %8852 = vmatmul.mubr.bf16.gmra.mrb[0].mxu0 %v7864
    %v8853 = vpop.f32.mrb[0].mxu0
    %v8854 = vadd.f32 %v8022, %v8853
    %v8855 = vpop.f32.mrb[0].mxu0
    %v8856 = vadd.f32 %v8026, %v8855
    %v8857 = vpop.f32.mrb[0].mxu0
    %v8858 = vadd.f32 %v8022, %v8857
    %v8859 = vpop.f32.mrb[0].mxu0
    %v8860 = vadd.f32 %v8026, %v8859
    %8861 = vmatprep.mubr.bf16.mxu0 %v7868
    %8862 = vmatmul.mubr.bf16.gmra.mrb[0].mxu0 %v7867
    %v8863 = vpop.f32.mrb[0].mxu0
    %v8864 = vadd.f32 %v8022, %v8863
    %v8865 = vpop.f32.mrb[0].mxu0
    %v8866 = vadd.f32 %v8026, %v8865
    %v8867 = vpop.f32.mrb[0].mxu0
    %v8868 = vadd.f32 %v8022, %v8867
    %v8869 = vpop.f32.mrb[0].mxu0
    %v8870 = vadd.f32 %v8026, %v8869
    %8871 = vmatprep.mubr.bf16.mxu0 %v7871
    %8872 = vmatmul.mubr.bf16.gmra.mrb[0].mxu0 %v7870
    %v8873 = vpop.f32.mrb[0].mxu0
    %v8874 = vadd.f32 %v8022, %v8873
    %v8875 = vpop.f32.mrb[0].mxu0
    %v8876 = vadd.f32 %v8026, %v8875
    %v8877 = vpop.f32.mrb[0].mxu0
    %v8878 = vadd.f32 %v8022, %v8877
    %v8879 = vpop.f32.mrb[0].mxu0
    %v8880 = vadd.f32 %v8026, %v8879
    %8881 = vdwg.mxu0
    %8882 = vmatprep.subr.bf16.mxu0 %v8578
    %8883 = vmatpush1.bf16.msra.mxu0 %v8577
    %8884 = vmatprep.subr.bf16.mxu0 %v8584
    %8885 = vmatpush1.bf16.msra.mxu0 %v8583
    %8886 = vmatprep.subr.bf16.mxu0 %v8590
    %8887 = vmatpush1.bf16.msra.mxu0 %v8589
    %8888 = vmatprep.subr.bf16.mxu0 %v8596
    %8889 = vmatpush1.bf16.msra.mxu0 %v8595
    %8890 = vmatprep.subr.bf16.mxu0 %v8602
    %8891 = vmatpush1.bf16.msra.mxu0 %v8601
    %8892 = vmatprep.subr.bf16.mxu0 %v8608
    %8893 = vmatpush1.bf16.msra.mxu0 %v8607
    %8894 = vmatprep.subr.bf16.mxu0 %v8614
    %8895 = vmatpush1.bf16.msra.mxu0 %v8613
    %8896 = vmatprep.subr.bf16.mxu0 %v8620
    %8897 = vmatpush1.bf16.msra.mxu0 %v8619
    %8898 = vmatprep.subr.bf16.mxu0 0
    %8899 = vmatpush1.bf16.msra.mxu0 0
    %8900 = vmatprep.subr.bf16.mxu0 0
    %8901 = vmatpush1.bf16.msra.mxu0 0
    %8902 = vmatprep.subr.bf16.mxu0 0
    %8903 = vmatpush1.bf16.msra.mxu0 0
    %8904 = vmatprep.subr.bf16.mxu0 0
    %8905 = vmatpush1.bf16.msra.mxu0 0
    %8906 = vmatprep.subr.bf16.mxu0 0
    %8907 = vmatpush1.bf16.msra.mxu0 0
    %8908 = vmatprep.subr.bf16.mxu0 0
    %8909 = vmatpush1.bf16.msra.mxu0 0
    %8910 = vmatprep.subr.bf16.mxu0 0
    %8911 = vmatpush1.bf16.msra.mxu0 0
    %8912 = vmatprep.subr.bf16.mxu0 0
    %8913 = vmatpush1.bf16.msra.mxu0 0
    %8914 = vmatprep.mubr.bf16.mxu0 0
    %8915 = vmatmul.mubr.bf16.gmra.mrb[0].mxu0 %v7851
    %v8916 = vpop.f32.mrb[0].mxu0
    %v8917 = vadd.f32 %v8804, %v8916
    %v8918 = vpop.f32.mrb[0].mxu0
    %v8919 = vadd.f32 %v8806, %v8918
    %v8920 = vpop.f32.mrb[0].mxu0
    %v8921 = vadd.f32 %v8808, %v8920
    %v8922 = vpop.f32.mrb[0].mxu0
    %v8923 = vadd.f32 %v8810, %v8922
    %8924 = vmatprep.mubr.bf16.mxu0 0
    %8925 = vmatmul.mubr.bf16.gmra.mrb[0].mxu0 %v7854
    %v8926 = vpop.f32.mrb[0].mxu0
    %v8927 = vadd.f32 %v8814, %v8926
    %v8928 = vpop.f32.mrb[0].mxu0
    %v8929 = vadd.f32 %v8816, %v8928
    %v8930 = vpop.f32.mrb[0].mxu0
    %v8931 = vadd.f32 %v8818, %v8930
    %v8932 = vpop.f32.mrb[0].mxu0
    %v8933 = vadd.f32 %v8820, %v8932
    %8934 = vmatprep.mubr.bf16.mxu0 0
    %8935 = vmatmul.mubr.bf16.gmra.mrb[0].mxu0 %v7857
    %v8936 = vpop.f32.mrb[0].mxu0
    %v8937 = vadd.f32 %v8824, %v8936
    %v8938 = vpop.f32.mrb[0].mxu0
    %v8939 = vadd.f32 %v8826, %v8938
    %v8940 = vpop.f32.mrb[0].mxu0
    %v8941 = vadd.f32 %v8828, %v8940
    %v8942 = vpop.f32.mrb[0].mxu0
    %v8943 = vadd.f32 %v8830, %v8942
    %8944 = vmatprep.mubr.bf16.mxu0 0
    %8945 = vmatmul.mubr.bf16.gmra.mrb[0].mxu0 %v7860
    %v8946 = vpop.f32.mrb[0].mxu0
    %v8947 = vadd.f32 %v8834, %v8946
    %v8948 = vpop.f32.mrb[0].mxu0
    %v8949 = vadd.f32 %v8836, %v8948
    %v8950 = vpop.f32.mrb[0].mxu0
    %v8951 = vadd.f32 %v8838, %v8950
    %v8952 = vpop.f32.mrb[0].mxu0
    %v8953 = vadd.f32 %v8840, %v8952
    %8954 = vmatprep.mubr.bf16.mxu0 0
    %8955 = vmatmul.mubr.bf16.gmra.mrb[0].mxu0 %v7863
    %v8956 = vpop.f32.mrb[0].mxu0
    %v8957 = vadd.f32 %v8844, %v8956
    %v8958 = vpop.f32.mrb[0].mxu0
    %v8959 = vadd.f32 %v8846, %v8958
    %v8960 = vpop.f32.mrb[0].mxu0
    %v8961 = vadd.f32 %v8848, %v8960
    %v8962 = vpop.f32.mrb[0].mxu0
    %v8963 = vadd.f32 %v8850, %v8962
    %8964 = vmatprep.mubr.bf16.mxu0 0
    %8965 = vmatmul.mubr.bf16.gmra.mrb[0].mxu0 %v7866
    %v8966 = vpop.f32.mrb[0].mxu0
    %v8967 = vadd.f32 %v8854, %v8966
    %v8968 = vpop.f32.mrb[0].mxu0
    %v8969 = vadd.f32 %v8856, %v8968
    %v8970 = vpop.f32.mrb[0].mxu0
    %v8971 = vadd.f32 %v8858, %v8970
    %v8972 = vpop.f32.mrb[0].mxu0
    %v8973 = vadd.f32 %v8860, %v8972
    %8974 = vmatprep.mubr.bf16.mxu0 0
    %8975 = vmatmul.mubr.bf16.gmra.mrb[0].mxu0 %v7869
    %v8976 = vpop.f32.mrb[0].mxu0
    %v8977 = vadd.f32 %v8864, %v8976
    %v8978 = vpop.f32.mrb[0].mxu0
    %v8979 = vadd.f32 %v8866, %v8978
    %v8980 = vpop.f32.mrb[0].mxu0
    %v8981 = vadd.f32 %v8868, %v8980
    %v8982 = vpop.f32.mrb[0].mxu0
    %v8983 = vadd.f32 %v8870, %v8982
    %8984 = vmatprep.mubr.bf16.mxu0 0
    %8985 = vmatmul.mubr.bf16.gmra.mrb[0].mxu0 %v7872
    %v8986 = vpop.f32.mrb[0].mxu0
    %v8987 = vadd.f32 %v8874, %v8986
    %v8988 = vpop.f32.mrb[0].mxu0
    %v8989 = vadd.f32 %v8876, %v8988
    %v8990 = vpop.f32.mrb[0].mxu0
    %v8991 = vadd.f32 %v8878, %v8990
    %v8992 = vpop.f32.mrb[0].mxu0
    %v8993 = vadd.f32 %v8880, %v8992
    %8994 = vdwg.mxu0
    %8995 = vmatprep.subr.bf16.mxu0 %v8484
    %8996 = vmatpush1.bf16.msra.mxu0 %v8483
    %8997 = vmatprep.subr.bf16.mxu0 %v8490
    %8998 = vmatpush1.bf16.msra.mxu0 %v8489
    %8999 = vmatprep.subr.bf16.mxu0 %v8496
    %9000 = vmatpush1.bf16.msra.mxu0 %v8495
    %9001 = vmatprep.subr.bf16.mxu0 %v8502
    %9002 = vmatpush1.bf16.msra.mxu0 %v8501
    %9003 = vmatprep.subr.bf16.mxu0 %v8508
    %9004 = vmatpush1.bf16.msra.mxu0 %v8507
    %9005 = vmatprep.subr.bf16.mxu0 %v8514
    %9006 = vmatpush1.bf16.msra.mxu0 %v8513
    %9007 = vmatprep.subr.bf16.mxu0 %v8520
    %9008 = vmatpush1.bf16.msra.mxu0 %v8519
    %9009 = vmatprep.subr.bf16.mxu0 %v8526
    %9010 = vmatpush1.bf16.msra.mxu0 %v8525
    %9011 = vmatprep.subr.bf16.mxu0 %v8532
    %9012 = vmatpush1.bf16.msra.mxu0 %v8531
    %9013 = vmatprep.subr.bf16.mxu0 %v8538
    %9014 = vmatpush1.bf16.msra.mxu0 %v8537
    %9015 = vmatprep.subr.bf16.mxu0 %v8544
    %9016 = vmatpush1.bf16.msra.mxu0 %v8543
    %9017 = vmatprep.subr.bf16.mxu0 %v8550
    %9018 = vmatpush1.bf16.msra.mxu0 %v8549
    %9019 = vmatprep.subr.bf16.mxu0 %v8556
    %9020 = vmatpush1.bf16.msra.mxu0 %v8555
    %9021 = vmatprep.subr.bf16.mxu0 %v8562
    %9022 = vmatpush1.bf16.msra.mxu0 %v8561
    %9023 = vmatprep.subr.bf16.mxu0 %v8568
    %9024 = vmatpush1.bf16.msra.mxu0 %v8567
    %9025 = vmatprep.subr.bf16.mxu0 %v8574
    %9026 = vmatpush1.bf16.msra.mxu0 %v8573
    %9027 = vmatprep.mubr.bf16.mxu0 %v7850
    %9028 = vmatmul.mubr.bf16.gmra.mrb[0].mxu0 %v7849
    %v9029 = vpop.f32.mrb[0].mxu0
    %v9030 = vadd.f32 %v8030, %v9029
    %v9031 = vpop.f32.mrb[0].mxu0
    %v9032 = vadd.f32 %v8034, %v9031
    %v9033 = vpop.f32.mrb[0].mxu0
    %v9034 = vadd.f32 %v8030, %v9033
    %v9035 = vpop.f32.mrb[0].mxu0
    %v9036 = vadd.f32 %v8034, %v9035
    %9037 = vmatprep.mubr.bf16.mxu0 %v7853
    %9038 = vmatmul.mubr.bf16.gmra.mrb[0].mxu0 %v7852
    %v9039 = vpop.f32.mrb[0].mxu0
    %v9040 = vadd.f32 %v8030, %v9039
    %v9041 = vpop.f32.mrb[0].mxu0
    %v9042 = vadd.f32 %v8034, %v9041
    %v9043 = vpop.f32.mrb[0].mxu0
    %v9044 = vadd.f32 %v8030, %v9043
    %v9045 = vpop.f32.mrb[0].mxu0
    %v9046 = vadd.f32 %v8034, %v9045
    %9047 = vmatprep.mubr.bf16.mxu0 %v7856
    %9048 = vmatmul.mubr.bf16.gmra.mrb[0].mxu0 %v7855
    %v9049 = vpop.f32.mrb[0].mxu0
    %v9050 = vadd.f32 %v8030, %v9049
    %v9051 = vpop.f32.mrb[0].mxu0
    %v9052 = vadd.f32 %v8034, %v9051
    %v9053 = vpop.f32.mrb[0].mxu0
    %v9054 = vadd.f32 %v8030, %v9053
    %v9055 = vpop.f32.mrb[0].mxu0
    %v9056 = vadd.f32 %v8034, %v9055
    %9057 = vmatprep.mubr.bf16.mxu0 %v7859
    %9058 = vmatmul.mubr.bf16.gmra.mrb[0].mxu0 %v7858
    %v9059 = vpop.f32.mrb[0].mxu0
    %v9060 = vadd.f32 %v8030, %v9059
    %v9061 = vpop.f32.mrb[0].mxu0
    %v9062 = vadd.f32 %v8034, %v9061
    %v9063 = vpop.f32.mrb[0].mxu0
    %v9064 = vadd.f32 %v8030, %v9063
    %v9065 = vpop.f32.mrb[0].mxu0
    %v9066 = vadd.f32 %v8034, %v9065
    %9067 = vmatprep.mubr.bf16.mxu0 %v7862
    %9068 = vmatmul.mubr.bf16.gmra.mrb[0].mxu0 %v7861
    %v9069 = vpop.f32.mrb[0].mxu0
    %v9070 = vadd.f32 %v8030, %v9069
    %v9071 = vpop.f32.mrb[0].mxu0
    %v9072 = vadd.f32 %v8034, %v9071
    %v9073 = vpop.f32.mrb[0].mxu0
    %v9074 = vadd.f32 %v8030, %v9073
    %v9075 = vpop.f32.mrb[0].mxu0
    %v9076 = vadd.f32 %v8034, %v9075
    %9077 = vmatprep.mubr.bf16.mxu0 %v7865
    %9078 = vmatmul.mubr.bf16.gmra.mrb[0].mxu0 %v7864
    %v9079 = vpop.f32.mrb[0].mxu0
    %v9080 = vadd.f32 %v8030, %v9079
    %v9081 = vpop.f32.mrb[0].mxu0
    %v9082 = vadd.f32 %v8034, %v9081
    %v9083 = vpop.f32.mrb[0].mxu0
    %v9084 = vadd.f32 %v8030, %v9083
    %v9085 = vpop.f32.mrb[0].mxu0
    %v9086 = vadd.f32 %v8034, %v9085
    %9087 = vmatprep.mubr.bf16.mxu0 %v7868
    %9088 = vmatmul.mubr.bf16.gmra.mrb[0].mxu0 %v7867
    %v9089 = vpop.f32.mrb[0].mxu0
    %v9090 = vadd.f32 %v8030, %v9089
    %v9091 = vpop.f32.mrb[0].mxu0
    %v9092 = vadd.f32 %v8034, %v9091
    %v9093 = vpop.f32.mrb[0].mxu0
    %v9094 = vadd.f32 %v8030, %v9093
    %v9095 = vpop.f32.mrb[0].mxu0
    %v9096 = vadd.f32 %v8034, %v9095
    %9097 = vmatprep.mubr.bf16.mxu0 %v7871
    %9098 = vmatmul.mubr.bf16.gmra.mrb[0].mxu0 %v7870
    %v9099 = vpop.f32.mrb[0].mxu0
    %v9100 = vadd.f32 %v8030, %v9099
    %v9101 = vpop.f32.mrb[0].mxu0
    %v9102 = vadd.f32 %v8034, %v9101
    %v9103 = vpop.f32.mrb[0].mxu0
    %v9104 = vadd.f32 %v8030, %v9103
    %v9105 = vpop.f32.mrb[0].mxu0
    %v9106 = vadd.f32 %v8034, %v9105
    %9107 = vdwg.mxu0
    %9108 = vmatprep.subr.bf16.mxu0 %v8580
    %9109 = vmatpush1.bf16.msra.mxu0 %v8579
    %9110 = vmatprep.subr.bf16.mxu0 %v8586
    %9111 = vmatpush1.bf16.msra.mxu0 %v8585
    %9112 = vmatprep.subr.bf16.mxu0 %v8592
    %9113 = vmatpush1.bf16.msra.mxu0 %v8591
    %9114 = vmatprep.subr.bf16.mxu0 %v8598
    %9115 = vmatpush1.bf16.msra.mxu0 %v8597
    %9116 = vmatprep.subr.bf16.mxu0 %v8604
    %9117 = vmatpush1.bf16.msra.mxu0 %v8603
    %9118 = vmatprep.subr.bf16.mxu0 %v8610
    %9119 = vmatpush1.bf16.msra.mxu0 %v8609
    %9120 = vmatprep.subr.bf16.mxu0 %v8616
    %9121 = vmatpush1.bf16.msra.mxu0 %v8615
    %9122 = vmatprep.subr.bf16.mxu0 %v8622
    %9123 = vmatpush1.bf16.msra.mxu0 %v8621
    %9124 = vmatprep.subr.bf16.mxu0 0
    %9125 = vmatpush1.bf16.msra.mxu0 0
    %9126 = vmatprep.subr.bf16.mxu0 0
    %9127 = vmatpush1.bf16.msra.mxu0 0
    %9128 = vmatprep.subr.bf16.mxu0 0
    %9129 = vmatpush1.bf16.msra.mxu0 0
    %9130 = vmatprep.subr.bf16.mxu0 0
    %9131 = vmatpush1.bf16.msra.mxu0 0
    %9132 = vmatprep.subr.bf16.mxu0 0
    %9133 = vmatpush1.bf16.msra.mxu0 0
    %9134 = vmatprep.subr.bf16.mxu0 0
    %9135 = vmatpush1.bf16.msra.mxu0 0
    %9136 = vmatprep.subr.bf16.mxu0 0
    %9137 = vmatpush1.bf16.msra.mxu0 0
    %9138 = vmatprep.subr.bf16.mxu0 0
    %9139 = vmatpush1.bf16.msra.mxu0 0
    %9140 = vmatprep.mubr.bf16.mxu0 0
    %9141 = vmatmul.mubr.bf16.gmra.mrb[0].mxu0 %v7851
    %v9142 = vpop.f32.mrb[0].mxu0
    %v9143 = vadd.f32 %v9030, %v9142
    %v9144 = vpop.f32.mrb[0].mxu0
    %v9145 = vadd.f32 %v9032, %v9144
    %v9146 = vpop.f32.mrb[0].mxu0
    %v9147 = vadd.f32 %v9034, %v9146
    %v9148 = vpop.f32.mrb[0].mxu0
    %v9149 = vadd.f32 %v9036, %v9148
    %9150 = vmatprep.mubr.bf16.mxu0 0
    %9151 = vmatmul.mubr.bf16.gmra.mrb[0].mxu0 %v7854
    %v9152 = vpop.f32.mrb[0].mxu0
    %v9153 = vadd.f32 %v9040, %v9152
    %v9154 = vpop.f32.mrb[0].mxu0
    %v9155 = vadd.f32 %v9042, %v9154
    %v9156 = vpop.f32.mrb[0].mxu0
    %v9157 = vadd.f32 %v9044, %v9156
    %v9158 = vpop.f32.mrb[0].mxu0
    %v9159 = vadd.f32 %v9046, %v9158
    %9160 = vmatprep.mubr.bf16.mxu0 0
    %9161 = vmatmul.mubr.bf16.gmra.mrb[0].mxu0 %v7857
    %v9162 = vpop.f32.mrb[0].mxu0
    %v9163 = vadd.f32 %v9050, %v9162
    %v9164 = vpop.f32.mrb[0].mxu0
    %v9165 = vadd.f32 %v9052, %v9164
    %v9166 = vpop.f32.mrb[0].mxu0
    %v9167 = vadd.f32 %v9054, %v9166
    %v9168 = vpop.f32.mrb[0].mxu0
    %v9169 = vadd.f32 %v9056, %v9168
    %9170 = vmatprep.mubr.bf16.mxu0 0
    %9171 = vmatmul.mubr.bf16.gmra.mrb[0].mxu0 %v7860
    %v9172 = vpop.f32.mrb[0].mxu0
    %v9173 = vadd.f32 %v9060, %v9172
    %v9174 = vpop.f32.mrb[0].mxu0
    %v9175 = vadd.f32 %v9062, %v9174
    %v9176 = vpop.f32.mrb[0].mxu0
    %v9177 = vadd.f32 %v9064, %v9176
    %v9178 = vpop.f32.mrb[0].mxu0
    %v9179 = vadd.f32 %v9066, %v9178
    %9180 = vmatprep.mubr.bf16.mxu0 0
    %9181 = vmatmul.mubr.bf16.gmra.mrb[0].mxu0 %v7863
    %v9182 = vpop.f32.mrb[0].mxu0
    %v9183 = vadd.f32 %v9070, %v9182
    %v9184 = vpop.f32.mrb[0].mxu0
    %v9185 = vadd.f32 %v9072, %v9184
    %v9186 = vpop.f32.mrb[0].mxu0
    %v9187 = vadd.f32 %v9074, %v9186
    %v9188 = vpop.f32.mrb[0].mxu0
    %v9189 = vadd.f32 %v9076, %v9188
    %9190 = vmatprep.mubr.bf16.mxu0 0
    %9191 = vmatmul.mubr.bf16.gmra.mrb[0].mxu0 %v7866
    %v9192 = vpop.f32.mrb[0].mxu0
    %v9193 = vadd.f32 %v9080, %v9192
    %v9194 = vpop.f32.mrb[0].mxu0
    %v9195 = vadd.f32 %v9082, %v9194
    %v9196 = vpop.f32.mrb[0].mxu0
    %v9197 = vadd.f32 %v9084, %v9196
    %v9198 = vpop.f32.mrb[0].mxu0
    %v9199 = vadd.f32 %v9086, %v9198
    %9200 = vmatprep.mubr.bf16.mxu0 0
    %9201 = vmatmul.mubr.bf16.gmra.mrb[0].mxu0 %v7869
    %v9202 = vpop.f32.mrb[0].mxu0
    %v9203 = vadd.f32 %v9090, %v9202
    %v9204 = vpop.f32.mrb[0].mxu0
    %v9205 = vadd.f32 %v9092, %v9204
    %v9206 = vpop.f32.mrb[0].mxu0
    %v9207 = vadd.f32 %v9094, %v9206
    %v9208 = vpop.f32.mrb[0].mxu0
    %v9209 = vadd.f32 %v9096, %v9208
    %9210 = vmatprep.mubr.bf16.mxu0 0
    %9211 = vmatmul.mubr.bf16.gmra.mrb[0].mxu0 %v7872
    %v9212 = vpop.f32.mrb[0].mxu0
    %v9213 = vadd.f32 %v9100, %v9212
    %v9214 = vpop.f32.mrb[0].mxu0
    %v9215 = vadd.f32 %v9102, %v9214
    %v9216 = vpop.f32.mrb[0].mxu0
    %v9217 = vadd.f32 %v9104, %v9216
    %v9218 = vpop.f32.mrb[0].mxu0
    %v9219 = vadd.f32 %v9106, %v9218
    %9220 = vdwg.mxu0
    %9221 = vmatprep.subr.bf16.mxu0 %v8486
    %9222 = vmatpush1.bf16.msra.mxu0 %v8485
    %9223 = vmatprep.subr.bf16.mxu0 %v8492
    %9224 = vmatpush1.bf16.msra.mxu0 %v8491
    %9225 = vmatprep.subr.bf16.mxu0 %v8498
    %9226 = vmatpush1.bf16.msra.mxu0 %v8497
    %9227 = vmatprep.subr.bf16.mxu0 %v8504
    %9228 = vmatpush1.bf16.msra.mxu0 %v8503
    %9229 = vmatprep.subr.bf16.mxu0 %v8510
    %9230 = vmatpush1.bf16.msra.mxu0 %v8509
    %9231 = vmatprep.subr.bf16.mxu0 %v8516
    %9232 = vmatpush1.bf16.msra.mxu0 %v8515
    %9233 = vmatprep.subr.bf16.mxu0 %v8522
    %9234 = vmatpush1.bf16.msra.mxu0 %v8521
    %9235 = vmatprep.subr.bf16.mxu0 %v8528
    %9236 = vmatpush1.bf16.msra.mxu0 %v8527
    %9237 = vmatprep.subr.bf16.mxu0 %v8534
    %9238 = vmatpush1.bf16.msra.mxu0 %v8533
    %9239 = vmatprep.subr.bf16.mxu0 %v8540
    %9240 = vmatpush1.bf16.msra.mxu0 %v8539
    %9241 = vmatprep.subr.bf16.mxu0 %v8546
    %9242 = vmatpush1.bf16.msra.mxu0 %v8545
    %9243 = vmatprep.subr.bf16.mxu0 %v8552
    %9244 = vmatpush1.bf16.msra.mxu0 %v8551
    %9245 = vmatprep.subr.bf16.mxu0 %v8558
    %9246 = vmatpush1.bf16.msra.mxu0 %v8557
    %9247 = vmatprep.subr.bf16.mxu0 %v8564
    %9248 = vmatpush1.bf16.msra.mxu0 %v8563
    %9249 = vmatprep.subr.bf16.mxu0 %v8570
    %9250 = vmatpush1.bf16.msra.mxu0 %v8569
    %9251 = vmatprep.subr.bf16.mxu0 %v8576
    %9252 = vmatpush1.bf16.msra.mxu0 %v8575
    %9253 = vmatprep.mubr.bf16.mxu0 %v7850
    %9254 = vmatmul.mubr.bf16.gmra.mrb[0].mxu0 %v7849
    %v9255 = vpop.f32.mrb[0].mxu0
    %v9256 = vadd.f32 %v8038, %v9255
    %v9257 = vpop.f32.mrb[0].mxu0
    %v9258 = vadd.f32 %v8042, %v9257
    %v9259 = vpop.f32.mrb[0].mxu0
    %v9260 = vadd.f32 %v8038, %v9259
    %v9261 = vpop.f32.mrb[0].mxu0
    %v9262 = vadd.f32 %v8042, %v9261
    %9263 = vmatprep.mubr.bf16.mxu0 %v7853
    %9264 = vmatmul.mubr.bf16.gmra.mrb[0].mxu0 %v7852
    %v9265 = vpop.f32.mrb[0].mxu0
    %v9266 = vadd.f32 %v8038, %v9265
    %v9267 = vpop.f32.mrb[0].mxu0
    %v9268 = vadd.f32 %v8042, %v9267
    %v9269 = vpop.f32.mrb[0].mxu0
    %v9270 = vadd.f32 %v8038, %v9269
    %v9271 = vpop.f32.mrb[0].mxu0
    %v9272 = vadd.f32 %v8042, %v9271
    %9273 = vmatprep.mubr.bf16.mxu0 %v7856
    %9274 = vmatmul.mubr.bf16.gmra.mrb[0].mxu0 %v7855
    %v9275 = vpop.f32.mrb[0].mxu0
    %v9276 = vadd.f32 %v8038, %v9275
    %v9277 = vpop.f32.mrb[0].mxu0
    %v9278 = vadd.f32 %v8042, %v9277
    %v9279 = vpop.f32.mrb[0].mxu0
    %v9280 = vadd.f32 %v8038, %v9279
    %v9281 = vpop.f32.mrb[0].mxu0
    %v9282 = vadd.f32 %v8042, %v9281
    %9283 = vmatprep.mubr.bf16.mxu0 %v7859
    %9284 = vmatmul.mubr.bf16.gmra.mrb[0].mxu0 %v7858
    %v9285 = vpop.f32.mrb[0].mxu0
    %v9286 = vadd.f32 %v8038, %v9285
    %v9287 = vpop.f32.mrb[0].mxu0
    %v9288 = vadd.f32 %v8042, %v9287
    %v9289 = vpop.f32.mrb[0].mxu0
    %v9290 = vadd.f32 %v8038, %v9289
    %v9291 = vpop.f32.mrb[0].mxu0
    %v9292 = vadd.f32 %v8042, %v9291
    %9293 = vmatprep.mubr.bf16.mxu0 %v7862
    %9294 = vmatmul.mubr.bf16.gmra.mrb[0].mxu0 %v7861
    %v9295 = vpop.f32.mrb[0].mxu0
    %v9296 = vadd.f32 %v8038, %v9295
    %v9297 = vpop.f32.mrb[0].mxu0
    %v9298 = vadd.f32 %v8042, %v9297
    %v9299 = vpop.f32.mrb[0].mxu0
    %v9300 = vadd.f32 %v8038, %v9299
    %v9301 = vpop.f32.mrb[0].mxu0
    %v9302 = vadd.f32 %v8042, %v9301
    %9303 = vmatprep.mubr.bf16.mxu0 %v7865
    %9304 = vmatmul.mubr.bf16.gmra.mrb[0].mxu0 %v7864
    %v9305 = vpop.f32.mrb[0].mxu0
    %v9306 = vadd.f32 %v8038, %v9305
    %v9307 = vpop.f32.mrb[0].mxu0
    %v9308 = vadd.f32 %v8042, %v9307
    %v9309 = vpop.f32.mrb[0].mxu0
    %v9310 = vadd.f32 %v8038, %v9309
    %v9311 = vpop.f32.mrb[0].mxu0
    %v9312 = vadd.f32 %v8042, %v9311
    %9313 = vmatprep.mubr.bf16.mxu0 %v7868
    %9314 = vmatmul.mubr.bf16.gmra.mrb[0].mxu0 %v7867
    %v9315 = vpop.f32.mrb[0].mxu0
    %v9316 = vadd.f32 %v8038, %v9315
    %v9317 = vpop.f32.mrb[0].mxu0
    %v9318 = vadd.f32 %v8042, %v9317
    %v9319 = vpop.f32.mrb[0].mxu0
    %v9320 = vadd.f32 %v8038, %v9319
    %v9321 = vpop.f32.mrb[0].mxu0
    %v9322 = vadd.f32 %v8042, %v9321
    %9323 = vmatprep.mubr.bf16.mxu0 %v7871
    %9324 = vmatmul.mubr.bf16.gmra.mrb[0].mxu0 %v7870
    %v9325 = vpop.f32.mrb[0].mxu0
    %v9326 = vadd.f32 %v8038, %v9325
    %v9327 = vpop.f32.mrb[0].mxu0
    %v9328 = vadd.f32 %v8042, %v9327
    %v9329 = vpop.f32.mrb[0].mxu0
    %v9330 = vadd.f32 %v8038, %v9329
    %v9331 = vpop.f32.mrb[0].mxu0
    %v9332 = vadd.f32 %v8042, %v9331
    %9333 = vdwg.mxu0
    %9334 = vmatprep.subr.bf16.mxu0 %v8582
    %9335 = vmatpush1.bf16.msra.mxu0 %v8581
    %9336 = vmatprep.subr.bf16.mxu0 %v8588
    %9337 = vmatpush1.bf16.msra.mxu0 %v8587
    %9338 = vmatprep.subr.bf16.mxu0 %v8594
    %9339 = vmatpush1.bf16.msra.mxu0 %v8593
    %9340 = vmatprep.subr.bf16.mxu0 %v8600
    %9341 = vmatpush1.bf16.msra.mxu0 %v8599
    %9342 = vmatprep.subr.bf16.mxu0 %v8606
    %9343 = vmatpush1.bf16.msra.mxu0 %v8605
    %9344 = vmatprep.subr.bf16.mxu0 %v8612
    %9345 = vmatpush1.bf16.msra.mxu0 %v8611
    %9346 = vmatprep.subr.bf16.mxu0 %v8618
    %9347 = vmatpush1.bf16.msra.mxu0 %v8617
    %9348 = vmatprep.subr.bf16.mxu0 %v8624
    %9349 = vmatpush1.bf16.msra.mxu0 %v8623
    %9350 = vmatprep.subr.bf16.mxu0 0
    %9351 = vmatpush1.bf16.msra.mxu0 0
    %9352 = vmatprep.subr.bf16.mxu0 0
    %9353 = vmatpush1.bf16.msra.mxu0 0
    %9354 = vmatprep.subr.bf16.mxu0 0
    %9355 = vmatpush1.bf16.msra.mxu0 0
    %9356 = vmatprep.subr.bf16.mxu0 0
    %9357 = vmatpush1.bf16.msra.mxu0 0
    %9358 = vmatprep.subr.bf16.mxu0 0
    %9359 = vmatpush1.bf16.msra.mxu0 0
    %9360 = vmatprep.subr.bf16.mxu0 0
    %9361 = vmatpush1.bf16.msra.mxu0 0
    %9362 = vmatprep.subr.bf16.mxu0 0
    %9363 = vmatpush1.bf16.msra.mxu0 0
    %9364 = vmatprep.subr.bf16.mxu0 0
    %9365 = vmatpush1.bf16.msra.mxu0 0
    %9366 = vmatprep.mubr.bf16.mxu0 0
    %9367 = vmatmul.mubr.bf16.gmra.mrb[0].mxu0 %v7851
    %v9368 = vpop.f32.mrb[0].mxu0
    %v9369 = vadd.f32 %v9256, %v9368
    %v9370 = vpop.f32.mrb[0].mxu0
    %v9371 = vadd.f32 %v9258, %v9370
    %v9372 = vpop.f32.mrb[0].mxu0
    %v9373 = vadd.f32 %v9260, %v9372
    %v9374 = vpop.f32.mrb[0].mxu0
    %v9375 = vadd.f32 %v9262, %v9374
    %9376 = vmatprep.mubr.bf16.mxu0 0
    %9377 = vmatmul.mubr.bf16.gmra.mrb[0].mxu0 %v7854
    %v9378 = vpop.f32.mrb[0].mxu0
    %v9379 = vadd.f32 %v9266, %v9378
    %v9380 = vpop.f32.mrb[0].mxu0
    %v9381 = vadd.f32 %v9268, %v9380
    %v9382 = vpop.f32.mrb[0].mxu0
    %v9383 = vadd.f32 %v9270, %v9382
    %v9384 = vpop.f32.mrb[0].mxu0
    %v9385 = vadd.f32 %v9272, %v9384
    %9386 = vmatprep.mubr.bf16.mxu0 0
    %9387 = vmatmul.mubr.bf16.gmra.mrb[0].mxu0 %v7857
    %v9388 = vpop.f32.mrb[0].mxu0
    %v9389 = vadd.f32 %v9276, %v9388
    %v9390 = vpop.f32.mrb[0].mxu0
    %v9391 = vadd.f32 %v9278, %v9390
    %v9392 = vpop.f32.mrb[0].mxu0
    %v9393 = vadd.f32 %v9280, %v9392
    %v9394 = vpop.f32.mrb[0].mxu0
    %v9395 = vadd.f32 %v9282, %v9394
    %9396 = vmatprep.mubr.bf16.mxu0 0
    %9397 = vmatmul.mubr.bf16.gmra.mrb[0].mxu0 %v7860
    %v9398 = vpop.f32.mrb[0].mxu0
    %v9399 = vadd.f32 %v9286, %v9398
    %v9400 = vpop.f32.mrb[0].mxu0
    %v9401 = vadd.f32 %v9288, %v9400
    %v9402 = vpop.f32.mrb[0].mxu0
    %v9403 = vadd.f32 %v9290, %v9402
    %v9404 = vpop.f32.mrb[0].mxu0
    %v9405 = vadd.f32 %v9292, %v9404
    %9406 = vmatprep.mubr.bf16.mxu0 0
    %9407 = vmatmul.mubr.bf16.gmra.mrb[0].mxu0 %v7863
    %v9408 = vpop.f32.mrb[0].mxu0
    %v9409 = vadd.f32 %v9296, %v9408
    %v9410 = vpop.f32.mrb[0].mxu0
    %v9411 = vadd.f32 %v9298, %v9410
    %v9412 = vpop.f32.mrb[0].mxu0
    %v9413 = vadd.f32 %v9300, %v9412
    %v9414 = vpop.f32.mrb[0].mxu0
    %v9415 = vadd.f32 %v9302, %v9414
    %9416 = vmatprep.mubr.bf16.mxu0 0
    %9417 = vmatmul.mubr.bf16.gmra.mrb[0].mxu0 %v7866
    %v9418 = vpop.f32.mrb[0].mxu0
    %v9419 = vadd.f32 %v9306, %v9418
    %v9420 = vpop.f32.mrb[0].mxu0
    %v9421 = vadd.f32 %v9308, %v9420
    %v9422 = vpop.f32.mrb[0].mxu0
    %v9423 = vadd.f32 %v9310, %v9422
    %v9424 = vpop.f32.mrb[0].mxu0
    %v9425 = vadd.f32 %v9312, %v9424
    %9426 = vmatprep.mubr.bf16.mxu0 0
    %9427 = vmatmul.mubr.bf16.gmra.mrb[0].mxu0 %v7869
    %v9428 = vpop.f32.mrb[0].mxu0
    %v9429 = vadd.f32 %v9316, %v9428
    %v9430 = vpop.f32.mrb[0].mxu0
    %v9431 = vadd.f32 %v9318, %v9430
    %v9432 = vpop.f32.mrb[0].mxu0
    %v9433 = vadd.f32 %v9320, %v9432
    %v9434 = vpop.f32.mrb[0].mxu0
    %v9435 = vadd.f32 %v9322, %v9434
    %9436 = vmatprep.mubr.bf16.mxu0 0
    %9437 = vmatmul.mubr.bf16.gmra.mrb[0].mxu0 %v7872
    %v9438 = vpop.f32.mrb[0].mxu0
    %v9439 = vadd.f32 %v9326, %v9438
    %v9440 = vpop.f32.mrb[0].mxu0
    %v9441 = vadd.f32 %v9328, %v9440
    %v9442 = vpop.f32.mrb[0].mxu0
    %v9443 = vadd.f32 %v9330, %v9442
    %v9444 = vpop.f32.mrb[0].mxu0
    %v9445 = vadd.f32 %v9332, %v9444
    %9446 = vdwg.mxu0
    %v9447 = vmax.f32 %v8917, 0.0
    %v9448 = vmax.f32 %v8919, 0.0
    %v9449 = vmax.f32 %v9143, 0.0
    %v9450 = vmax.f32 %v9145, 0.0
    %v9451 = vmax.f32 %v9369, 0.0
    %v9452 = vmax.f32 %v9371, 0.0
    %v9453 = vmax.f32 %v8921, 0.0
    %v9454 = vmax.f32 %v8923, 0.0
    %v9455 = vmax.f32 %v9147, 0.0
    %v9456 = vmax.f32 %v9149, 0.0
    %v9457 = vmax.f32 %v9373, 0.0
    %v9458 = vmax.f32 %v9375, 0.0
    %v9459 = vmax.f32 %v8927, 0.0
    %v9460 = vmax.f32 %v8929, 0.0
    %v9461 = vmax.f32 %v9153, 0.0
    %v9462 = vmax.f32 %v9155, 0.0
    %v9463 = vmax.f32 %v9379, 0.0
    %v9464 = vmax.f32 %v9381, 0.0
    %v9465 = vmax.f32 %v8931, 0.0
    %v9466 = vmax.f32 %v8933, 0.0
    %v9467 = vmax.f32 %v9157, 0.0
    %v9468 = vmax.f32 %v9159, 0.0
    %v9469 = vmax.f32 %v9383, 0.0
    %v9470 = vmax.f32 %v9385, 0.0
    %v9471 = vmax.f32 %v8937, 0.0
    %v9472 = vmax.f32 %v8939, 0.0
    %v9473 = vmax.f32 %v9163, 0.0
    %v9474 = vmax.f32 %v9165, 0.0
    %v9475 = vmax.f32 %v9389, 0.0
    %v9476 = vmax.f32 %v9391, 0.0
    %v9477 = vmax.f32 %v8941, 0.0
    %v9478 = vmax.f32 %v8943, 0.0
    %v9479 = vmax.f32 %v9167, 0.0
    %v9480 = vmax.f32 %v9169, 0.0
    %v9481 = vmax.f32 %v9393, 0.0
    %v9482 = vmax.f32 %v9395, 0.0
    %v9483 = vmax.f32 %v8947, 0.0
    %v9484 = vmax.f32 %v8949, 0.0
    %v9485 = vmax.f32 %v9173, 0.0
    %v9486 = vmax.f32 %v9175, 0.0
    %v9487 = vmax.f32 %v9399, 0.0
    %v9488 = vmax.f32 %v9401, 0.0
    %v9489 = vmax.f32 %v8951, 0.0
    %v9490 = vmax.f32 %v8953, 0.0
    %v9491 = vmax.f32 %v9177, 0.0
    %v9492 = vmax.f32 %v9179, 0.0
    %v9493 = vmax.f32 %v9403, 0.0
    %v9494 = vmax.f32 %v9405, 0.0
    %v9495 = vmax.f32 %v8957, 0.0
    %v9496 = vmax.f32 %v8959, 0.0
    %v9497 = vmax.f32 %v9183, 0.0
    %v9498 = vmax.f32 %v9185, 0.0
    %v9499 = vmax.f32 %v9409, 0.0
    %v9500 = vmax.f32 %v9411, 0.0
    %v9501 = vmax.f32 %v8961, 0.0
    %v9502 = vmax.f32 %v8963, 0.0
    %v9503 = vmax.f32 %v9187, 0.0
    %v9504 = vmax.f32 %v9189, 0.0
    %v9505 = vmax.f32 %v9413, 0.0
    %v9506 = vmax.f32 %v9415, 0.0
    %v9507 = vmax.f32 %v8967, 0.0
    %v9508 = vmax.f32 %v8969, 0.0
    %v9509 = vmax.f32 %v9193, 0.0
    %v9510 = vmax.f32 %v9195, 0.0
    %v9511 = vmax.f32 %v9419, 0.0
    %v9512 = vmax.f32 %v9421, 0.0
    %v9513 = vmax.f32 %v8971, 0.0
    %v9514 = vmax.f32 %v8973, 0.0
    %v9515 = vmax.f32 %v9197, 0.0
    %v9516 = vmax.f32 %v9199, 0.0
    %v9517 = vmax.f32 %v9423, 0.0
    %v9518 = vmax.f32 %v9425, 0.0
    %v9519 = vmax.f32 %v8977, 0.0
    %v9520 = vmax.f32 %v8979, 0.0
    %v9521 = vmax.f32 %v9203, 0.0
    %v9522 = vmax.f32 %v9205, 0.0
    %v9523 = vmax.f32 %v9429, 0.0
    %v9524 = vmax.f32 %v9431, 0.0
    %v9525 = vmax.f32 %v8981, 0.0
    %v9526 = vmax.f32 %v8983, 0.0
    %v9527 = vmax.f32 %v9207, 0.0
    %v9528 = vmax.f32 %v9209, 0.0
    %v9529 = vmax.f32 %v9433, 0.0
    %v9530 = vmax.f32 %v9435, 0.0
    %v9531 = vmax.f32 %v8987, 0.0
    %v9532 = vmax.f32 %v8989, 0.0
    %v9533 = vmax.f32 %v9213, 0.0
    %v9534 = vmax.f32 %v9215, 0.0
    %v9535 = vmax.f32 %v9439, 0.0
    %v9536 = vmax.f32 %v9441, 0.0
    %v9537 = vmax.f32 %v8991, 0.0
    %v9538 = vmax.f32 %v8993, 0.0
    %v9539 = vmax.f32 %v9217, 0.0
    %v9540 = vmax.f32 %v9219, 0.0
    %v9541 = vmax.f32 %v9443, 0.0
    %v9542 = vmax.f32 %v9445, 0.0
    %v9543 = vpack.c.bf16 %v9453, %v9447
    %v9544 = vpack.c.bf16 %v9454, %v9448
    %v9545 = vpack.c.bf16 %v9455, %v9449
    %v9546 = vpack.c.bf16 %v9456, %v9450
    %v9547 = vpack.c.bf16 %v9457, %v9451
    %v9548 = vpack.c.bf16 %v9458, %v9452
    %v9549 = vpack.c.bf16 %v9465, %v9459
    %v9550 = vpack.c.bf16 %v9466, %v9460
    %v9551 = vpack.c.bf16 %v9467, %v9461
    %v9552 = vpack.c.bf16 %v9468, %v9462
    %v9553 = vpack.c.bf16 %v9469, %v9463
    %v9554 = vpack.c.bf16 %v9470, %v9464
    %v9555 = vpack.c.bf16 %v9477, %v9471
    %v9556 = vpack.c.bf16 %v9478, %v9472
    %v9557 = vpack.c.bf16 %v9479, %v9473
    %v9558 = vpack.c.bf16 %v9480, %v9474
    %v9559 = vpack.c.bf16 %v9481, %v9475
    %v9560 = vpack.c.bf16 %v9482, %v9476
    %v9561 = vpack.c.bf16 %v9489, %v9483
    %v9562 = vpack.c.bf16 %v9490, %v9484
    %v9563 = vpack.c.bf16 %v9491, %v9485
    %v9564 = vpack.c.bf16 %v9492, %v9486
    %v9565 = vpack.c.bf16 %v9493, %v9487
    %v9566 = vpack.c.bf16 %v9494, %v9488
    %v9567 = vpack.c.bf16 %v9501, %v9495
    %v9568 = vpack.c.bf16 %v9502, %v9496
    %v9569 = vpack.c.bf16 %v9503, %v9497
    %v9570 = vpack.c.bf16 %v9504, %v9498
    %v9571 = vpack.c.bf16 %v9505, %v9499
    %v9572 = vpack.c.bf16 %v9506, %v9500
    %v9573 = vpack.c.bf16 %v9513, %v9507
    %v9574 = vpack.c.bf16 %v9514, %v9508
    %v9575 = vpack.c.bf16 %v9515, %v9509
    %v9576 = vpack.c.bf16 %v9516, %v9510
    %v9577 = vpack.c.bf16 %v9517, %v9511
    %v9578 = vpack.c.bf16 %v9518, %v9512
    %v9579 = vpack.c.bf16 %v9525, %v9519
    %v9580 = vpack.c.bf16 %v9526, %v9520
    %v9581 = vpack.c.bf16 %v9527, %v9521
    %v9582 = vpack.c.bf16 %v9528, %v9522
    %v9583 = vpack.c.bf16 %v9529, %v9523
    %v9584 = vpack.c.bf16 %v9530, %v9524
    %v9585 = vpack.c.bf16 %v9537, %v9531
    %v9586 = vpack.c.bf16 %v9538, %v9532
    %v9587 = vpack.c.bf16 %v9539, %v9533
    %v9588 = vpack.c.bf16 %v9540, %v9534
    %v9589 = vpack.c.bf16 %v9541, %v9535
    %v9590 = vpack.c.bf16 %v9542, %v9536
    %v9591 = vld [vmem:[#allocation26] sm:$0xff]
    %v9592 = vld [vmem:[#allocation26 + $0x8] sm:$0xff]
    %v9593 = vld [vmem:[#allocation26 + $0x10] sm:$0xff]
    %v9594 = vld [vmem:[#allocation26 + $0x18] sm:$0xff]
    %v9595 = vld [vmem:[#allocation26 + $0x20] sm:$0xff]
    %v9596 = vld [vmem:[#allocation26 + $0x28] sm:$0xff]
    %v9597 = vld [vmem:[#allocation26 + $0x30] sm:$0xff]
    %v9598 = vld [vmem:[#allocation26 + $0x38] sm:$0xff]
    %v9599 = vld [vmem:[#allocation26 + $0x40] sm:$0xff]
    %v9600 = vld [vmem:[#allocation26 + $0x48] sm:$0xff]
    %v9601 = vld [vmem:[#allocation26 + $0x50] sm:$0xff]
    %v9602 = vld [vmem:[#allocation26 + $0x58] sm:$0xff]
    %v9603 = vld [vmem:[#allocation26 + $0x60] sm:$0xff]
    %v9604 = vld [vmem:[#allocation26 + $0x68] sm:$0xff]
    %v9605 = vld [vmem:[#allocation26 + $0x70] sm:$0xff]
    %v9606 = vld [vmem:[#allocation26 + $0x78] sm:$0xff]
    %v9607 = vld [vmem:[#allocation26 + $0x80] sm:$0xff]
    %v9608 = vld [vmem:[#allocation26 + $0x88] sm:$0xff]
    %v9609 = vld [vmem:[#allocation26 + $0x90] sm:$0xff]
    %v9610 = vld [vmem:[#allocation26 + $0x98] sm:$0xff]
    %v9611 = vld [vmem:[#allocation26 + $0xa0] sm:$0xff]
    %v9612 = vld [vmem:[#allocation26 + $0xa8] sm:$0xff]
    %v9613 = vld [vmem:[#allocation26 + $0xb0] sm:$0xff]
    %v9614 = vld [vmem:[#allocation26 + $0xb8] sm:$0xff]
    %v9615 = vld [vmem:[#allocation26 + $0xc0] sm:$0xff]
    %v9616 = vld [vmem:[#allocation26 + $0xc8] sm:$0xff]
    %v9617 = vld [vmem:[#allocation26 + $0xd0] sm:$0xff]
    %v9618 = vld [vmem:[#allocation26 + $0xd8] sm:$0xff]
    %v9619 = vld [vmem:[#allocation26 + $0xe0] sm:$0xff]
    %v9620 = vld [vmem:[#allocation26 + $0xe8] sm:$0xff]
    %v9621 = vld [vmem:[#allocation26 + $0xf0] sm:$0xff]
    %v9622 = vld [vmem:[#allocation26 + $0xf8] sm:$0xff]
    %v9623 = vld [vmem:[#allocation26 + $0x100] sm:$0xff]
    %v9624 = vld [vmem:[#allocation26 + $0x108] sm:$0xff]
    %v9625 = vld [vmem:[#allocation26 + $0x110] sm:$0xff]
    %v9626 = vld [vmem:[#allocation26 + $0x118] sm:$0xff]
    %v9627 = vld [vmem:[#allocation26 + $0x120] sm:$0xff]
    %v9628 = vld [vmem:[#allocation26 + $0x128] sm:$0xff]
    %v9629 = vld [vmem:[#allocation26 + $0x130] sm:$0xff]
    %v9630 = vld [vmem:[#allocation26 + $0x138] sm:$0xff]
    %v9631 = vld [vmem:[#allocation26 + $0x140] sm:$0xff]
    %v9632 = vld [vmem:[#allocation26 + $0x148] sm:$0xff]
    %v9633 = vld [vmem:[#allocation26 + $0x150] sm:$0xff]
    %v9634 = vld [vmem:[#allocation26 + $0x158] sm:$0xff]
    %v9635 = vld [vmem:[#allocation26 + $0x160] sm:$0xff]
    %v9636 = vld [vmem:[#allocation26 + $0x168] sm:$0xff]
    %v9637 = vld [vmem:[#allocation26 + $0x170] sm:$0xff]
    %v9638 = vld [vmem:[#allocation26 + $0x178] sm:$0xff]
    %v9639 = vld [vmem:[#allocation26 + $0x180] sm:$0xff]
    %v9640 = vld [vmem:[#allocation26 + $0x188] sm:$0xff]
    %v9641 = vld [vmem:[#allocation26 + $0x190] sm:$0xff]
    %v9642 = vld [vmem:[#allocation26 + $0x198] sm:$0xff]
    %v9643 = vld [vmem:[#allocation26 + $0x1a0] sm:$0xff]
    %v9644 = vld [vmem:[#allocation26 + $0x1a8] sm:$0xff]
    %v9645 = vld [vmem:[#allocation26 + $0x1b0] sm:$0xff]
    %v9646 = vld [vmem:[#allocation26 + $0x1b8] sm:$0xff]
    %v9647 = vld [vmem:[#allocation26 + $0x1c0] sm:$0xff]
    %v9648 = vld [vmem:[#allocation26 + $0x1c8] sm:$0xff]
    %v9649 = vld [vmem:[#allocation26 + $0x1d0] sm:$0xff]
    %v9650 = vld [vmem:[#allocation26 + $0x1d8] sm:$0xff]
    %v9651 = vld [vmem:[#allocation26 + $0x1e0] sm:$0xff]
    %v9652 = vld [vmem:[#allocation26 + $0x1e8] sm:$0xff]
    %v9653 = vld [vmem:[#allocation26 + $0x1f0] sm:$0xff]
    %v9654 = vld [vmem:[#allocation26 + $0x1f8] sm:$0xff]
    %v9655 = vld [vmem:[#allocation26 + $0x200] sm:$0xff]
    %v9656 = vld [vmem:[#allocation26 + $0x208] sm:$0xff]
    %v9657 = vld [vmem:[#allocation26 + $0x210] sm:$0xff]
    %v9658 = vld [vmem:[#allocation26 + $0x218] sm:$0xff]
    %v9659 = vld [vmem:[#allocation26 + $0x220] sm:$0xff]
    %v9660 = vld [vmem:[#allocation26 + $0x228] sm:$0xff]
    %v9661 = vld [vmem:[#allocation26 + $0x230] sm:$0xff]
    %v9662 = vld [vmem:[#allocation26 + $0x238] sm:$0xff]
    %v9663 = vld [vmem:[#allocation26 + $0x240] sm:$0xff]
    %v9664 = vld [vmem:[#allocation26 + $0x248] sm:$0xff]
    %v9665 = vld [vmem:[#allocation26 + $0x250] sm:$0xff]
    %v9666 = vld [vmem:[#allocation26 + $0x258] sm:$0xff]
    %v9667 = vld [vmem:[#allocation26 + $0x260] sm:$0xff]
    %v9668 = vld [vmem:[#allocation26 + $0x268] sm:$0xff]
    %v9669 = vld [vmem:[#allocation26 + $0x270] sm:$0xff]
    %v9670 = vld [vmem:[#allocation26 + $0x278] sm:$0xff]
    %v9671 = vld [vmem:[#allocation26 + $0x280] sm:$0xff]
    %v9672 = vld [vmem:[#allocation26 + $0x288] sm:$0xff]
    %v9673 = vld [vmem:[#allocation26 + $0x290] sm:$0xff]
    %v9674 = vld [vmem:[#allocation26 + $0x298] sm:$0xff]
    %v9675 = vld [vmem:[#allocation26 + $0x2a0] sm:$0xff]
    %v9676 = vld [vmem:[#allocation26 + $0x2a8] sm:$0xff]
    %v9677 = vld [vmem:[#allocation26 + $0x2b0] sm:$0xff]
    %v9678 = vld [vmem:[#allocation26 + $0x2b8] sm:$0xff]
    %v9679 = vld [vmem:[#allocation26 + $0x2c0] sm:$0xff]
    %v9680 = vld [vmem:[#allocation26 + $0x2c8] sm:$0xff]
    %v9681 = vld [vmem:[#allocation26 + $0x2d0] sm:$0xff]
    %v9682 = vld [vmem:[#allocation26 + $0x2d8] sm:$0xff]
    %v9683 = vld [vmem:[#allocation26 + $0x2e0] sm:$0xff]
    %v9684 = vld [vmem:[#allocation26 + $0x2e8] sm:$0xff]
    %v9685 = vld [vmem:[#allocation26 + $0x2f0] sm:$0xff]
    %v9686 = vld [vmem:[#allocation26 + $0x2f8] sm:$0xff]
    %v9687 = vld [vmem:[#allocation26 + $0x300] sm:$0xff]
    %v9688 = vld [vmem:[#allocation26 + $0x308] sm:$0xff]
    %v9689 = vld [vmem:[#allocation26 + $0x310] sm:$0xff]
    %v9690 = vld [vmem:[#allocation26 + $0x318] sm:$0xff]
    %v9691 = vld [vmem:[#allocation26 + $0x320] sm:$0xff]
    %v9692 = vld [vmem:[#allocation26 + $0x328] sm:$0xff]
    %v9693 = vld [vmem:[#allocation26 + $0x330] sm:$0xff]
    %v9694 = vld [vmem:[#allocation26 + $0x338] sm:$0xff]
    %v9695 = vld [vmem:[#allocation26 + $0x340] sm:$0xff]
    %v9696 = vld [vmem:[#allocation26 + $0x348] sm:$0xff]
    %v9697 = vld [vmem:[#allocation26 + $0x350] sm:$0xff]
    %v9698 = vld [vmem:[#allocation26 + $0x358] sm:$0xff]
    %v9699 = vld [vmem:[#allocation26 + $0x360] sm:$0xff]
    %v9700 = vld [vmem:[#allocation26 + $0x368] sm:$0xff]
    %v9701 = vld [vmem:[#allocation26 + $0x370] sm:$0xff]
    %v9702 = vld [vmem:[#allocation26 + $0x378] sm:$0xff]
    %v9703 = vld [vmem:[#allocation26 + $0x380] sm:$0xff]
    %v9704 = vld [vmem:[#allocation26 + $0x388] sm:$0xff]
    %v9705 = vld [vmem:[#allocation26 + $0x390] sm:$0xff]
    %v9706 = vld [vmem:[#allocation26 + $0x398] sm:$0xff]
    %v9707 = vld [vmem:[#allocation26 + $0x3a0] sm:$0xff]
    %v9708 = vld [vmem:[#allocation26 + $0x3a8] sm:$0xff]
    %v9709 = vld [vmem:[#allocation26 + $0x3b0] sm:$0xff]
    %v9710 = vld [vmem:[#allocation26 + $0x3b8] sm:$0xff]
    %v9711 = vld [vmem:[#allocation26 + $0x3c0] sm:$0xff]
    %v9712 = vld [vmem:[#allocation26 + $0x3c8] sm:$0xff]
    %v9713 = vld [vmem:[#allocation26 + $0x3d0] sm:$0xff]
    %v9714 = vld [vmem:[#allocation26 + $0x3d8] sm:$0xff]
    %v9715 = vld [vmem:[#allocation26 + $0x3e0] sm:$0xff]
    %v9716 = vld [vmem:[#allocation26 + $0x3e8] sm:$0xff]
    %v9717 = vld [vmem:[#allocation26 + $0x3f0] sm:$0xff]
    %v9718 = vld [vmem:[#allocation26 + $0x3f8] sm:$0xff]
    %v9719 = vld [vmem:[#allocation26 + $0x400] sm:$0xff]
    %v9720 = vld [vmem:[#allocation26 + $0x408] sm:$0xff]
    %v9721 = vld [vmem:[#allocation26 + $0x410] sm:$0xff]
    %v9722 = vld [vmem:[#allocation26 + $0x418] sm:$0xff]
    %v9723 = vld [vmem:[#allocation26 + $0x420] sm:$0xff]
    %v9724 = vld [vmem:[#allocation26 + $0x428] sm:$0xff]
    %v9725 = vld [vmem:[#allocation26 + $0x430] sm:$0xff]
    %v9726 = vld [vmem:[#allocation26 + $0x438] sm:$0xff]
    %v9727 = vld [vmem:[#allocation26 + $0x440] sm:$0xff]
    %v9728 = vld [vmem:[#allocation26 + $0x448] sm:$0xff]
    %v9729 = vld [vmem:[#allocation26 + $0x450] sm:$0xff]
    %v9730 = vld [vmem:[#allocation26 + $0x458] sm:$0xff]
    %v9731 = vld [vmem:[#allocation26 + $0x460] sm:$0xff]
    %v9732 = vld [vmem:[#allocation26 + $0x468] sm:$0xff]
    %v9733 = vld [vmem:[#allocation26 + $0x470] sm:$0xff]
    %v9734 = vld [vmem:[#allocation26 + $0x478] sm:$0xff]
    %v9735 = vld [vmem:[#allocation26 + $0x480] sm:$0xff]
    %v9736 = vld [vmem:[#allocation26 + $0x488] sm:$0xff]
    %v9737 = vld [vmem:[#allocation26 + $0x490] sm:$0xff]
    %v9738 = vld [vmem:[#allocation26 + $0x498] sm:$0xff]
    %v9739 = vld [vmem:[#allocation26 + $0x4a0] sm:$0xff]
    %v9740 = vld [vmem:[#allocation26 + $0x4a8] sm:$0xff]
    %v9741 = vld [vmem:[#allocation26 + $0x4b0] sm:$0xff]
    %v9742 = vld [vmem:[#allocation26 + $0x4b8] sm:$0xff]
    %v9743 = vld [vmem:[#allocation26 + $0x4c0] sm:$0xff]
    %v9744 = vld [vmem:[#allocation26 + $0x4c8] sm:$0xff]
    %v9745 = vld [vmem:[#allocation26 + $0x4d0] sm:$0xff]
    %v9746 = vld [vmem:[#allocation26 + $0x4d8] sm:$0xff]
    %v9747 = vld [vmem:[#allocation26 + $0x4e0] sm:$0xff]
    %v9748 = vld [vmem:[#allocation26 + $0x4e8] sm:$0xff]
    %v9749 = vld [vmem:[#allocation26 + $0x4f0] sm:$0xff]
    %v9750 = vld [vmem:[#allocation26 + $0x4f8] sm:$0xff]
    %v9751 = vld [vmem:[#allocation26 + $0x500] sm:$0xff]
    %v9752 = vld [vmem:[#allocation26 + $0x508] sm:$0xff]
    %v9753 = vld [vmem:[#allocation26 + $0x510] sm:$0xff]
    %v9754 = vld [vmem:[#allocation26 + $0x518] sm:$0xff]
    %v9755 = vld [vmem:[#allocation26 + $0x520] sm:$0xff]
    %v9756 = vld [vmem:[#allocation26 + $0x528] sm:$0xff]
    %v9757 = vld [vmem:[#allocation26 + $0x530] sm:$0xff]
    %v9758 = vld [vmem:[#allocation26 + $0x538] sm:$0xff]
    %v9759 = vld [vmem:[#allocation26 + $0x540] sm:$0xff]
    %v9760 = vld [vmem:[#allocation26 + $0x548] sm:$0xff]
    %v9761 = vld [vmem:[#allocation26 + $0x550] sm:$0xff]
    %v9762 = vld [vmem:[#allocation26 + $0x558] sm:$0xff]
    %v9763 = vld [vmem:[#allocation26 + $0x560] sm:$0xff]
    %v9764 = vld [vmem:[#allocation26 + $0x568] sm:$0xff]
    %v9765 = vld [vmem:[#allocation26 + $0x570] sm:$0xff]
    %v9766 = vld [vmem:[#allocation26 + $0x578] sm:$0xff]
    %v9767 = vld [vmem:[#allocation26 + $0x580] sm:$0xff]
    %v9768 = vld [vmem:[#allocation26 + $0x588] sm:$0xff]
    %v9769 = vld [vmem:[#allocation26 + $0x590] sm:$0xff]
    %v9770 = vld [vmem:[#allocation26 + $0x598] sm:$0xff]
    %v9771 = vld [vmem:[#allocation26 + $0x5a0] sm:$0xff]
    %v9772 = vld [vmem:[#allocation26 + $0x5a8] sm:$0xff]
    %v9773 = vld [vmem:[#allocation26 + $0x5b0] sm:$0xff]
    %v9774 = vld [vmem:[#allocation26 + $0x5b8] sm:$0xff]
    %v9775 = vld [vmem:[#allocation26 + $0x5c0] sm:$0xff]
    %v9776 = vld [vmem:[#allocation26 + $0x5c8] sm:$0xff]
    %v9777 = vld [vmem:[#allocation26 + $0x5d0] sm:$0xff]
    %v9778 = vld [vmem:[#allocation26 + $0x5d8] sm:$0xff]
    %v9779 = vld [vmem:[#allocation26 + $0x5e0] sm:$0xff]
    %v9780 = vld [vmem:[#allocation26 + $0x5e8] sm:$0xff]
    %v9781 = vld [vmem:[#allocation26 + $0x5f0] sm:$0xff]
    %v9782 = vld [vmem:[#allocation26 + $0x5f8] sm:$0xff]
    %v9783 = vld [vmem:[#allocation26 + $0x600] sm:$0xff]
    %v9784 = vld [vmem:[#allocation26 + $0x608] sm:$0xff]
    %v9785 = vld [vmem:[#allocation26 + $0x610] sm:$0xff]
    %v9786 = vld [vmem:[#allocation26 + $0x618] sm:$0xff]
    %v9787 = vld [vmem:[#allocation26 + $0x620] sm:$0xff]
    %v9788 = vld [vmem:[#allocation26 + $0x628] sm:$0xff]
    %v9789 = vld [vmem:[#allocation26 + $0x630] sm:$0xff]
    %v9790 = vld [vmem:[#allocation26 + $0x638] sm:$0xff]
    %v9791 = vld [vmem:[#allocation26 + $0x640] sm:$0xff]
    %v9792 = vld [vmem:[#allocation26 + $0x648] sm:$0xff]
    %v9793 = vld [vmem:[#allocation26 + $0x650] sm:$0xff]
    %v9794 = vld [vmem:[#allocation26 + $0x658] sm:$0xff]
    %v9795 = vld [vmem:[#allocation26 + $0x660] sm:$0xff]
    %v9796 = vld [vmem:[#allocation26 + $0x668] sm:$0xff]
    %v9797 = vld [vmem:[#allocation26 + $0x670] sm:$0xff]
    %v9798 = vld [vmem:[#allocation26 + $0x678] sm:$0xff]
    %v9799 = vld [vmem:[#allocation26 + $0x680] sm:$0xff]
    %v9800 = vld [vmem:[#allocation26 + $0x688] sm:$0xff]
    %v9801 = vld [vmem:[#allocation26 + $0x690] sm:$0xff]
    %v9802 = vld [vmem:[#allocation26 + $0x698] sm:$0xff]
    %v9803 = vld [vmem:[#allocation26 + $0x6a0] sm:$0xff]
    %v9804 = vld [vmem:[#allocation26 + $0x6a8] sm:$0xff]
    %v9805 = vld [vmem:[#allocation26 + $0x6b0] sm:$0xff]
    %v9806 = vld [vmem:[#allocation26 + $0x6b8] sm:$0xff]
    %v9807 = vld [vmem:[#allocation26 + $0x6c0] sm:$0xff]
    %v9808 = vld [vmem:[#allocation26 + $0x6c8] sm:$0xff]
    %v9809 = vld [vmem:[#allocation26 + $0x6d0] sm:$0xff]
    %v9810 = vld [vmem:[#allocation26 + $0x6d8] sm:$0xff]
    %v9811 = vld [vmem:[#allocation26 + $0x6e0] sm:$0xff]
    %v9812 = vld [vmem:[#allocation26 + $0x6e8] sm:$0xff]
    %v9813 = vld [vmem:[#allocation26 + $0x6f0] sm:$0xff]
    %v9814 = vld [vmem:[#allocation26 + $0x6f8] sm:$0xff]
    %v9815 = vld [vmem:[#allocation26 + $0x700] sm:$0xff]
    %v9816 = vld [vmem:[#allocation26 + $0x708] sm:$0xff]
    %v9817 = vld [vmem:[#allocation26 + $0x710] sm:$0xff]
    %v9818 = vld [vmem:[#allocation26 + $0x718] sm:$0xff]
    %v9819 = vld [vmem:[#allocation26 + $0x720] sm:$0xff]
    %v9820 = vld [vmem:[#allocation26 + $0x728] sm:$0xff]
    %v9821 = vld [vmem:[#allocation26 + $0x730] sm:$0xff]
    %v9822 = vld [vmem:[#allocation26 + $0x738] sm:$0xff]
    %v9823 = vld [vmem:[#allocation26 + $0x740] sm:$0xff]
    %v9824 = vld [vmem:[#allocation26 + $0x748] sm:$0xff]
    %v9825 = vld [vmem:[#allocation26 + $0x750] sm:$0xff]
    %v9826 = vld [vmem:[#allocation26 + $0x758] sm:$0xff]
    %v9827 = vld [vmem:[#allocation26 + $0x760] sm:$0xff]
    %v9828 = vld [vmem:[#allocation26 + $0x768] sm:$0xff]
    %v9829 = vld [vmem:[#allocation26 + $0x770] sm:$0xff]
    %v9830 = vld [vmem:[#allocation26 + $0x778] sm:$0xff]
    %v9831 = vld [vmem:[#allocation26 + $0x780] sm:$0xff]
    %v9832 = vld [vmem:[#allocation26 + $0x788] sm:$0xff]
    %v9833 = vld [vmem:[#allocation26 + $0x790] sm:$0xff]
    %v9834 = vld [vmem:[#allocation26 + $0x798] sm:$0xff]
    %v9835 = vld [vmem:[#allocation26 + $0x7a0] sm:$0xff]
    %v9836 = vld [vmem:[#allocation26 + $0x7a8] sm:$0xff]
    %v9837 = vld [vmem:[#allocation26 + $0x7b0] sm:$0xff]
    %v9838 = vld [vmem:[#allocation26 + $0x7b8] sm:$0xff]
    %v9839 = vld [vmem:[#allocation26 + $0x7c0] sm:$0xff]
    %v9840 = vld [vmem:[#allocation26 + $0x7c8] sm:$0xff]
    %v9841 = vld [vmem:[#allocation26 + $0x7d0] sm:$0xff]
    %v9842 = vld [vmem:[#allocation26 + $0x7d8] sm:$0xff]
    %v9843 = vld [vmem:[#allocation26 + $0x7e0] sm:$0xff]
    %v9844 = vld [vmem:[#allocation26 + $0x7e8] sm:$0xff]
    %v9845 = vld [vmem:[#allocation26 + $0x7f0] sm:$0xff]
    %v9846 = vld [vmem:[#allocation26 + $0x7f8] sm:$0xff]
    %v9847 = vld [vmem:[#allocation26 + $0x800] sm:$0xff]
    %v9848 = vld [vmem:[#allocation26 + $0x808] sm:$0xff]
    %v9849 = vld [vmem:[#allocation26 + $0x810] sm:$0xff]
    %v9850 = vld [vmem:[#allocation26 + $0x818] sm:$0xff]
    %v9851 = vld [vmem:[#allocation26 + $0x820] sm:$0xff]
    %v9852 = vld [vmem:[#allocation26 + $0x828] sm:$0xff]
    %v9853 = vld [vmem:[#allocation26 + $0x830] sm:$0xff]
    %v9854 = vld [vmem:[#allocation26 + $0x838] sm:$0xff]
    %v9855 = vld [vmem:[#allocation26 + $0x840] sm:$0xff]
    %v9856 = vld [vmem:[#allocation26 + $0x848] sm:$0xff]
    %v9857 = vld [vmem:[#allocation26 + $0x850] sm:$0xff]
    %v9858 = vld [vmem:[#allocation26 + $0x858] sm:$0xff]
    %v9859 = vld [vmem:[#allocation26 + $0x860] sm:$0xff]
    %v9860 = vld [vmem:[#allocation26 + $0x868] sm:$0xff]
    %v9861 = vld [vmem:[#allocation26 + $0x870] sm:$0xff]
    %v9862 = vld [vmem:[#allocation26 + $0x878] sm:$0xff]
    %v9863 = vld [vmem:[#allocation26 + $0x880] sm:$0xff]
    %v9864 = vld [vmem:[#allocation26 + $0x888] sm:$0xff]
    %v9865 = vld [vmem:[#allocation26 + $0x890] sm:$0xff]
    %v9866 = vld [vmem:[#allocation26 + $0x898] sm:$0xff]
    %v9867 = vld [vmem:[#allocation26 + $0x8a0] sm:$0xff]
    %v9868 = vld [vmem:[#allocation26 + $0x8a8] sm:$0xff]
    %v9869 = vld [vmem:[#allocation26 + $0x8b0] sm:$0xff]
    %v9870 = vld [vmem:[#allocation26 + $0x8b8] sm:$0xff]
    %v9871 = vld [vmem:[#allocation26 + $0x8c0] sm:$0xff]
    %v9872 = vld [vmem:[#allocation26 + $0x8c8] sm:$0xff]
    %v9873 = vld [vmem:[#allocation26 + $0x8d0] sm:$0xff]
    %v9874 = vld [vmem:[#allocation26 + $0x8d8] sm:$0xff]
    %v9875 = vld [vmem:[#allocation26 + $0x8e0] sm:$0xff]
    %v9876 = vld [vmem:[#allocation26 + $0x8e8] sm:$0xff]
    %v9877 = vld [vmem:[#allocation26 + $0x8f0] sm:$0xff]
    %v9878 = vld [vmem:[#allocation26 + $0x8f8] sm:$0xff]
    %v9879 = vld [vmem:[#allocation26 + $0x900] sm:$0xff]
    %v9880 = vld [vmem:[#allocation26 + $0x908] sm:$0xff]
    %v9881 = vld [vmem:[#allocation26 + $0x910] sm:$0xff]
    %v9882 = vld [vmem:[#allocation26 + $0x918] sm:$0xff]
    %v9883 = vld [vmem:[#allocation26 + $0x920] sm:$0xff]
    %v9884 = vld [vmem:[#allocation26 + $0x928] sm:$0xff]
    %v9885 = vld [vmem:[#allocation26 + $0x930] sm:$0xff]
    %v9886 = vld [vmem:[#allocation26 + $0x938] sm:$0xff]
    %v9887 = vld [vmem:[#allocation26 + $0x940] sm:$0xff]
    %v9888 = vld [vmem:[#allocation26 + $0x948] sm:$0xff]
    %v9889 = vld [vmem:[#allocation26 + $0x950] sm:$0xff]
    %v9890 = vld [vmem:[#allocation26 + $0x958] sm:$0xff]
    %v9891 = vld [vmem:[#allocation26 + $0x960] sm:$0xff]
    %v9892 = vld [vmem:[#allocation26 + $0x968] sm:$0xff]
    %v9893 = vld [vmem:[#allocation26 + $0x970] sm:$0xff]
    %v9894 = vld [vmem:[#allocation26 + $0x978] sm:$0xff]
    %v9895 = vld [vmem:[#allocation26 + $0x980] sm:$0xff]
    %v9896 = vld [vmem:[#allocation26 + $0x988] sm:$0xff]
    %v9897 = vld [vmem:[#allocation26 + $0x990] sm:$0xff]
    %v9898 = vld [vmem:[#allocation26 + $0x998] sm:$0xff]
    %v9899 = vld [vmem:[#allocation26 + $0x9a0] sm:$0xff]
    %v9900 = vld [vmem:[#allocation26 + $0x9a8] sm:$0xff]
    %v9901 = vld [vmem:[#allocation26 + $0x9b0] sm:$0xff]
    %v9902 = vld [vmem:[#allocation26 + $0x9b8] sm:$0xff]
    %v9903 = vld [vmem:[#allocation26 + $0x9c0] sm:$0xff]
    %v9904 = vld [vmem:[#allocation26 + $0x9c8] sm:$0xff]
    %v9905 = vld [vmem:[#allocation26 + $0x9d0] sm:$0xff]
    %v9906 = vld [vmem:[#allocation26 + $0x9d8] sm:$0xff]
    %v9907 = vld [vmem:[#allocation26 + $0x9e0] sm:$0xff]
    %v9908 = vld [vmem:[#allocation26 + $0x9e8] sm:$0xff]
    %v9909 = vld [vmem:[#allocation26 + $0x9f0] sm:$0xff]
    %v9910 = vld [vmem:[#allocation26 + $0x9f8] sm:$0xff]
    %v9911 = vld [vmem:[#allocation26 + $0xa00] sm:$0xff]
    %v9912 = vld [vmem:[#allocation26 + $0xa08] sm:$0xff]
    %v9913 = vld [vmem:[#allocation26 + $0xa10] sm:$0xff]
    %v9914 = vld [vmem:[#allocation26 + $0xa18] sm:$0xff]
    %v9915 = vld [vmem:[#allocation26 + $0xa20] sm:$0xff]
    %v9916 = vld [vmem:[#allocation26 + $0xa28] sm:$0xff]
    %v9917 = vld [vmem:[#allocation26 + $0xa30] sm:$0xff]
    %v9918 = vld [vmem:[#allocation26 + $0xa38] sm:$0xff]
    %v9919 = vld [vmem:[#allocation26 + $0xa40] sm:$0xff]
    %v9920 = vld [vmem:[#allocation26 + $0xa48] sm:$0xff]
    %v9921 = vld [vmem:[#allocation26 + $0xa50] sm:$0xff]
    %v9922 = vld [vmem:[#allocation26 + $0xa58] sm:$0xff]
    %v9923 = vld [vmem:[#allocation26 + $0xa60] sm:$0xff]
    %v9924 = vld [vmem:[#allocation26 + $0xa68] sm:$0xff]
    %v9925 = vld [vmem:[#allocation26 + $0xa70] sm:$0xff]
    %v9926 = vld [vmem:[#allocation26 + $0xa78] sm:$0xff]
    %v9927 = vld [vmem:[#allocation26 + $0xa80] sm:$0xff]
    %v9928 = vld [vmem:[#allocation26 + $0xa88] sm:$0xff]
    %v9929 = vld [vmem:[#allocation26 + $0xa90] sm:$0xff]
    %v9930 = vld [vmem:[#allocation26 + $0xa98] sm:$0xff]
    %v9931 = vld [vmem:[#allocation26 + $0xaa0] sm:$0xff]
    %v9932 = vld [vmem:[#allocation26 + $0xaa8] sm:$0xff]
    %v9933 = vld [vmem:[#allocation26 + $0xab0] sm:$0xff]
    %v9934 = vld [vmem:[#allocation26 + $0xab8] sm:$0xff]
    %v9935 = vld [vmem:[#allocation26 + $0xac0] sm:$0xff]
    %v9936 = vld [vmem:[#allocation26 + $0xac8] sm:$0xff]
    %v9937 = vld [vmem:[#allocation26 + $0xad0] sm:$0xff]
    %v9938 = vld [vmem:[#allocation26 + $0xad8] sm:$0xff]
    %v9939 = vld [vmem:[#allocation26 + $0xae0] sm:$0xff]
    %v9940 = vld [vmem:[#allocation26 + $0xae8] sm:$0xff]
    %v9941 = vld [vmem:[#allocation26 + $0xaf0] sm:$0xff]
    %v9942 = vld [vmem:[#allocation26 + $0xaf8] sm:$0xff]
    %v9943 = vld [vmem:[#allocation26 + $0xb00] sm:$0xff]
    %v9944 = vld [vmem:[#allocation26 + $0xb08] sm:$0xff]
    %v9945 = vld [vmem:[#allocation26 + $0xb10] sm:$0xff]
    %v9946 = vld [vmem:[#allocation26 + $0xb18] sm:$0xff]
    %v9947 = vld [vmem:[#allocation26 + $0xb20] sm:$0xff]
    %v9948 = vld [vmem:[#allocation26 + $0xb28] sm:$0xff]
    %v9949 = vld [vmem:[#allocation26 + $0xb30] sm:$0xff]
    %v9950 = vld [vmem:[#allocation26 + $0xb38] sm:$0xff]
    %v9951 = vld [vmem:[#allocation26 + $0xb40] sm:$0xff]
    %v9952 = vld [vmem:[#allocation26 + $0xb48] sm:$0xff]
    %v9953 = vld [vmem:[#allocation26 + $0xb50] sm:$0xff]
    %v9954 = vld [vmem:[#allocation26 + $0xb58] sm:$0xff]
    %v9955 = vld [vmem:[#allocation26 + $0xb60] sm:$0xff]
    %v9956 = vld [vmem:[#allocation26 + $0xb68] sm:$0xff]
    %v9957 = vld [vmem:[#allocation26 + $0xb70] sm:$0xff]
    %v9958 = vld [vmem:[#allocation26 + $0xb78] sm:$0xff]
    %v9959 = vld [vmem:[#allocation26 + $0xb80] sm:$0xff]
    %v9960 = vld [vmem:[#allocation26 + $0xb88] sm:$0xff]
    %v9961 = vld [vmem:[#allocation26 + $0xb90] sm:$0xff]
    %v9962 = vld [vmem:[#allocation26 + $0xb98] sm:$0xff]
    %v9963 = vld [vmem:[#allocation26 + $0xba0] sm:$0xff]
    %v9964 = vld [vmem:[#allocation26 + $0xba8] sm:$0xff]
    %v9965 = vld [vmem:[#allocation26 + $0xbb0] sm:$0xff]
    %v9966 = vld [vmem:[#allocation26 + $0xbb8] sm:$0xff]
    %v9967 = vld [vmem:[#allocation26 + $0xbc0] sm:$0xff]
    %v9968 = vld [vmem:[#allocation26 + $0xbc8] sm:$0xff]
    %v9969 = vld [vmem:[#allocation26 + $0xbd0] sm:$0xff]
    %v9970 = vld [vmem:[#allocation26 + $0xbd8] sm:$0xff]
    %v9971 = vld [vmem:[#allocation26 + $0xbe0] sm:$0xff]
    %v9972 = vld [vmem:[#allocation26 + $0xbe8] sm:$0xff]
    %v9973 = vld [vmem:[#allocation26 + $0xbf0] sm:$0xff]
    %v9974 = vld [vmem:[#allocation26 + $0xbf8] sm:$0xff]
    %v9975 = vld [vmem:[#allocation28] sm:$0xff]
    %v9977 = vlaneseq
    %v9978 = vshrl.u32 %v9977, 7
    %v9979 = vsub.s32 0, %v9978
    %v9980 = vrot.slane %v9975, %v9979
    %v9981 = vlaneseq
    %v9982 = vshrl.u32 %v9981, 7
    %v9983 = vsub.s32 1, %v9982
    %v9984 = vrot.slane %v9975, %v9983
    %v9985 = vlaneseq
    %v9986 = vshrl.u32 %v9985, 7
    %v9987 = vsub.s32 2, %v9986
    %v9988 = vrot.slane %v9975, %v9987
    %v9989 = vlaneseq
    %v9990 = vshrl.u32 %v9989, 7
    %v9991 = vsub.s32 3, %v9990
    %v9992 = vrot.slane %v9975, %v9991
    %v9993 = vlaneseq
    %v9994 = vshrl.u32 %v9993, 7
    %v9995 = vsub.s32 4, %v9994
    %v9996 = vrot.slane %v9975, %v9995
    %v9997 = vlaneseq
    %v9998 = vshrl.u32 %v9997, 7
    %v9999 = vsub.s32 5, %v9998
    %v10000 = vrot.slane %v9975, %v9999
    %v10001 = vlaneseq
    %v10002 = vshrl.u32 %v10001, 7
    %v10003 = vsub.s32 6, %v10002
    %v10004 = vrot.slane %v9975, %v10003
    %v10005 = vlaneseq
    %v10006 = vshrl.u32 %v10005, 7
    %v10007 = vsub.s32 7, %v10006
    %v10008 = vrot.slane %v9975, %v10007
    %v10401 = vunpack.c.l.b16 %v9591
    %v10402 = vunpack.c.h.b16 %v9591
    %v10403 = vunpack.c.l.b16 %v9592
    %v10404 = vunpack.c.h.b16 %v9592
    %v10405 = vunpack.c.l.b16 %v9593
    %v10406 = vunpack.c.h.b16 %v9593
    %v10407 = vunpack.c.l.b16 %v9594
    %v10408 = vunpack.c.h.b16 %v9594
    %v10409 = vunpack.c.l.b16 %v9595
    %v10410 = vunpack.c.h.b16 %v9595
    %v10411 = vunpack.c.l.b16 %v9596
    %v10412 = vunpack.c.h.b16 %v9596
    %v10413 = vunpack.c.l.b16 %v9597
    %v10414 = vunpack.c.h.b16 %v9597
    %v10415 = vunpack.c.l.b16 %v9598
    %v10416 = vunpack.c.h.b16 %v9598
    %v10417 = vunpack.c.l.b16 %v9599
    %v10418 = vunpack.c.h.b16 %v9599
    %v10419 = vunpack.c.l.b16 %v9600
    %v10420 = vunpack.c.h.b16 %v9600
    %v10421 = vunpack.c.l.b16 %v9601
    %v10422 = vunpack.c.h.b16 %v9601
    %v10423 = vunpack.c.l.b16 %v9602
    %v10424 = vunpack.c.h.b16 %v9602
    %v10425 = vunpack.c.l.b16 %v9603
    %v10426 = vunpack.c.h.b16 %v9603
    %v10427 = vunpack.c.l.b16 %v9604
    %v10428 = vunpack.c.h.b16 %v9604
    %v10429 = vunpack.c.l.b16 %v9605
    %v10430 = vunpack.c.h.b16 %v9605
    %v10431 = vunpack.c.l.b16 %v9606
    %v10432 = vunpack.c.h.b16 %v9606
    %v10433 = vunpack.c.l.b16 %v9607
    %v10434 = vunpack.c.h.b16 %v9607
    %v10435 = vunpack.c.l.b16 %v9608
    %v10436 = vunpack.c.h.b16 %v9608
    %v10437 = vunpack.c.l.b16 %v9609
    %v10438 = vunpack.c.h.b16 %v9609
    %v10439 = vunpack.c.l.b16 %v9610
    %v10440 = vunpack.c.h.b16 %v9610
    %v10441 = vunpack.c.l.b16 %v9611
    %v10442 = vunpack.c.h.b16 %v9611
    %v10443 = vunpack.c.l.b16 %v9612
    %v10444 = vunpack.c.h.b16 %v9612
    %v10445 = vunpack.c.l.b16 %v9613
    %v10446 = vunpack.c.h.b16 %v9613
    %v10447 = vunpack.c.l.b16 %v9614
    %v10448 = vunpack.c.h.b16 %v9614
    %v10449 = vunpack.c.l.b16 %v9615
    %v10450 = vunpack.c.h.b16 %v9615
    %v10451 = vunpack.c.l.b16 %v9616
    %v10452 = vunpack.c.h.b16 %v9616
    %v10453 = vunpack.c.l.b16 %v9617
    %v10454 = vunpack.c.h.b16 %v9617
    %v10455 = vunpack.c.l.b16 %v9618
    %v10456 = vunpack.c.h.b16 %v9618
    %v10457 = vunpack.c.l.b16 %v9619
    %v10458 = vunpack.c.h.b16 %v9619
    %v10459 = vunpack.c.l.b16 %v9620
    %v10460 = vunpack.c.h.b16 %v9620
    %v10461 = vunpack.c.l.b16 %v9621
    %v10462 = vunpack.c.h.b16 %v9621
    %v10463 = vunpack.c.l.b16 %v9622
    %v10464 = vunpack.c.h.b16 %v9622
    %v10465 = vunpack.c.l.b16 %v9623
    %v10466 = vunpack.c.h.b16 %v9623
    %v10467 = vunpack.c.l.b16 %v9624
    %v10468 = vunpack.c.h.b16 %v9624
    %v10469 = vunpack.c.l.b16 %v9625
    %v10470 = vunpack.c.h.b16 %v9625
    %v10471 = vunpack.c.l.b16 %v9626
    %v10472 = vunpack.c.h.b16 %v9626
    %v10473 = vunpack.c.l.b16 %v9627
    %v10474 = vunpack.c.h.b16 %v9627
    %v10475 = vunpack.c.l.b16 %v9628
    %v10476 = vunpack.c.h.b16 %v9628
    %v10477 = vunpack.c.l.b16 %v9629
    %v10478 = vunpack.c.h.b16 %v9629
    %v10479 = vunpack.c.l.b16 %v9630
    %v10480 = vunpack.c.h.b16 %v9630
    %v10481 = vunpack.c.l.b16 %v9631
    %v10482 = vunpack.c.h.b16 %v9631
    %v10483 = vunpack.c.l.b16 %v9632
    %v10484 = vunpack.c.h.b16 %v9632
    %v10485 = vunpack.c.l.b16 %v9633
    %v10486 = vunpack.c.h.b16 %v9633
    %v10487 = vunpack.c.l.b16 %v9634
    %v10488 = vunpack.c.h.b16 %v9634
    %v10489 = vunpack.c.l.b16 %v9635
    %v10490 = vunpack.c.h.b16 %v9635
    %v10491 = vunpack.c.l.b16 %v9636
    %v10492 = vunpack.c.h.b16 %v9636
    %v10493 = vunpack.c.l.b16 %v9637
    %v10494 = vunpack.c.h.b16 %v9637
    %v10495 = vunpack.c.l.b16 %v9638
    %v10496 = vunpack.c.h.b16 %v9638
    %v10497 = vunpack.c.l.b16 %v9639
    %v10498 = vunpack.c.h.b16 %v9639
    %v10499 = vunpack.c.l.b16 %v9640
    %v10500 = vunpack.c.h.b16 %v9640
    %v10501 = vunpack.c.l.b16 %v9641
    %v10502 = vunpack.c.h.b16 %v9641
    %v10503 = vunpack.c.l.b16 %v9642
    %v10504 = vunpack.c.h.b16 %v9642
    %v10505 = vunpack.c.l.b16 %v9643
    %v10506 = vunpack.c.h.b16 %v9643
    %v10507 = vunpack.c.l.b16 %v9644
    %v10508 = vunpack.c.h.b16 %v9644
    %v10509 = vunpack.c.l.b16 %v9645
    %v10510 = vunpack.c.h.b16 %v9645
    %v10511 = vunpack.c.l.b16 %v9646
    %v10512 = vunpack.c.h.b16 %v9646
    %v10513 = vunpack.c.l.b16 %v9647
    %v10514 = vunpack.c.h.b16 %v9647
    %v10515 = vunpack.c.l.b16 %v9648
    %v10516 = vunpack.c.h.b16 %v9648
    %v10517 = vunpack.c.l.b16 %v9649
    %v10518 = vunpack.c.h.b16 %v9649
    %v10519 = vunpack.c.l.b16 %v9650
    %v10520 = vunpack.c.h.b16 %v9650
    %v10521 = vunpack.c.l.b16 %v9651
    %v10522 = vunpack.c.h.b16 %v9651
    %v10523 = vunpack.c.l.b16 %v9652
    %v10524 = vunpack.c.h.b16 %v9652
    %v10525 = vunpack.c.l.b16 %v9653
    %v10526 = vunpack.c.h.b16 %v9653
    %v10527 = vunpack.c.l.b16 %v9654
    %v10528 = vunpack.c.h.b16 %v9654
    %v10529 = vunpack.c.l.b16 %v9655
    %v10530 = vunpack.c.h.b16 %v9655
    %v10531 = vunpack.c.l.b16 %v9656
    %v10532 = vunpack.c.h.b16 %v9656
    %v10533 = vunpack.c.l.b16 %v9657
    %v10534 = vunpack.c.h.b16 %v9657
    %v10535 = vunpack.c.l.b16 %v9658
    %v10536 = vunpack.c.h.b16 %v9658
    %v10537 = vunpack.c.l.b16 %v9659
    %v10538 = vunpack.c.h.b16 %v9659
    %v10539 = vunpack.c.l.b16 %v9660
    %v10540 = vunpack.c.h.b16 %v9660
    %v10541 = vunpack.c.l.b16 %v9661
    %v10542 = vunpack.c.h.b16 %v9661
    %v10543 = vunpack.c.l.b16 %v9662
    %v10544 = vunpack.c.h.b16 %v9662
    %v10545 = vunpack.c.l.b16 %v9663
    %v10546 = vunpack.c.h.b16 %v9663
    %v10547 = vunpack.c.l.b16 %v9664
    %v10548 = vunpack.c.h.b16 %v9664
    %v10549 = vunpack.c.l.b16 %v9665
    %v10550 = vunpack.c.h.b16 %v9665
    %v10551 = vunpack.c.l.b16 %v9666
    %v10552 = vunpack.c.h.b16 %v9666
    %v10553 = vunpack.c.l.b16 %v9667
    %v10554 = vunpack.c.h.b16 %v9667
    %v10555 = vunpack.c.l.b16 %v9668
    %v10556 = vunpack.c.h.b16 %v9668
    %v10557 = vunpack.c.l.b16 %v9669
    %v10558 = vunpack.c.h.b16 %v9669
    %v10559 = vunpack.c.l.b16 %v9670
    %v10560 = vunpack.c.h.b16 %v9670
    %v10561 = vunpack.c.l.b16 %v9671
    %v10562 = vunpack.c.h.b16 %v9671
    %v10563 = vunpack.c.l.b16 %v9672
    %v10564 = vunpack.c.h.b16 %v9672
    %v10565 = vunpack.c.l.b16 %v9673
    %v10566 = vunpack.c.h.b16 %v9673
    %v10567 = vunpack.c.l.b16 %v9674
    %v10568 = vunpack.c.h.b16 %v9674
    %v10569 = vunpack.c.l.b16 %v9675
    %v10570 = vunpack.c.h.b16 %v9675
    %v10571 = vunpack.c.l.b16 %v9676
    %v10572 = vunpack.c.h.b16 %v9676
    %v10573 = vunpack.c.l.b16 %v9677
    %v10574 = vunpack.c.h.b16 %v9677
    %v10575 = vunpack.c.l.b16 %v9678
    %v10576 = vunpack.c.h.b16 %v9678
    %v10577 = vunpack.c.l.b16 %v9679
    %v10578 = vunpack.c.h.b16 %v9679
    %v10579 = vunpack.c.l.b16 %v9680
    %v10580 = vunpack.c.h.b16 %v9680
    %v10581 = vunpack.c.l.b16 %v9681
    %v10582 = vunpack.c.h.b16 %v9681
    %v10583 = vunpack.c.l.b16 %v9682
    %v10584 = vunpack.c.h.b16 %v9682
    %v10585 = vunpack.c.l.b16 %v9683
    %v10586 = vunpack.c.h.b16 %v9683
    %v10587 = vunpack.c.l.b16 %v9684
    %v10588 = vunpack.c.h.b16 %v9684
    %v10589 = vunpack.c.l.b16 %v9685
    %v10590 = vunpack.c.h.b16 %v9685
    %v10591 = vunpack.c.l.b16 %v9686
    %v10592 = vunpack.c.h.b16 %v9686
    %v10593 = vunpack.c.l.b16 %v9687
    %v10594 = vunpack.c.h.b16 %v9687
    %v10595 = vunpack.c.l.b16 %v9688
    %v10596 = vunpack.c.h.b16 %v9688
    %v10597 = vunpack.c.l.b16 %v9689
    %v10598 = vunpack.c.h.b16 %v9689
    %v10599 = vunpack.c.l.b16 %v9690
    %v10600 = vunpack.c.h.b16 %v9690
    %v10601 = vunpack.c.l.b16 %v9691
    %v10602 = vunpack.c.h.b16 %v9691
    %v10603 = vunpack.c.l.b16 %v9692
    %v10604 = vunpack.c.h.b16 %v9692
    %v10605 = vunpack.c.l.b16 %v9693
    %v10606 = vunpack.c.h.b16 %v9693
    %v10607 = vunpack.c.l.b16 %v9694
    %v10608 = vunpack.c.h.b16 %v9694
    %v10609 = vunpack.c.l.b16 %v9695
    %v10610 = vunpack.c.h.b16 %v9695
    %v10611 = vunpack.c.l.b16 %v9696
    %v10612 = vunpack.c.h.b16 %v9696
    %v10613 = vunpack.c.l.b16 %v9697
    %v10614 = vunpack.c.h.b16 %v9697
    %v10615 = vunpack.c.l.b16 %v9698
    %v10616 = vunpack.c.h.b16 %v9698
    %v10617 = vunpack.c.l.b16 %v9699
    %v10618 = vunpack.c.h.b16 %v9699
    %v10619 = vunpack.c.l.b16 %v9700
    %v10620 = vunpack.c.h.b16 %v9700
    %v10621 = vunpack.c.l.b16 %v9701
    %v10622 = vunpack.c.h.b16 %v9701
    %v10623 = vunpack.c.l.b16 %v9702
    %v10624 = vunpack.c.h.b16 %v9702
    %v10625 = vunpack.c.l.b16 %v9703
    %v10626 = vunpack.c.h.b16 %v9703
    %v10627 = vunpack.c.l.b16 %v9704
    %v10628 = vunpack.c.h.b16 %v9704
    %v10629 = vunpack.c.l.b16 %v9705
    %v10630 = vunpack.c.h.b16 %v9705
    %v10631 = vunpack.c.l.b16 %v9706
    %v10632 = vunpack.c.h.b16 %v9706
    %v10633 = vunpack.c.l.b16 %v9707
    %v10634 = vunpack.c.h.b16 %v9707
    %v10635 = vunpack.c.l.b16 %v9708
    %v10636 = vunpack.c.h.b16 %v9708
    %v10637 = vunpack.c.l.b16 %v9709
    %v10638 = vunpack.c.h.b16 %v9709
    %v10639 = vunpack.c.l.b16 %v9710
    %v10640 = vunpack.c.h.b16 %v9710
    %v10641 = vunpack.c.l.b16 %v9711
    %v10642 = vunpack.c.h.b16 %v9711
    %v10643 = vunpack.c.l.b16 %v9712
    %v10644 = vunpack.c.h.b16 %v9712
    %v10645 = vunpack.c.l.b16 %v9713
    %v10646 = vunpack.c.h.b16 %v9713
    %v10647 = vunpack.c.l.b16 %v9714
    %v10648 = vunpack.c.h.b16 %v9714
    %v10649 = vunpack.c.l.b16 %v9715
    %v10650 = vunpack.c.h.b16 %v9715
    %v10651 = vunpack.c.l.b16 %v9716
    %v10652 = vunpack.c.h.b16 %v9716
    %v10653 = vunpack.c.l.b16 %v9717
    %v10654 = vunpack.c.h.b16 %v9717
    %v10655 = vunpack.c.l.b16 %v9718
    %v10656 = vunpack.c.h.b16 %v9718
    %v10657 = vunpack.c.l.b16 %v9719
    %v10658 = vunpack.c.h.b16 %v9719
    %v10659 = vunpack.c.l.b16 %v9720
    %v10660 = vunpack.c.h.b16 %v9720
    %v10661 = vunpack.c.l.b16 %v9721
    %v10662 = vunpack.c.h.b16 %v9721
    %v10663 = vunpack.c.l.b16 %v9722
    %v10664 = vunpack.c.h.b16 %v9722
    %v10665 = vunpack.c.l.b16 %v9723
    %v10666 = vunpack.c.h.b16 %v9723
    %v10667 = vunpack.c.l.b16 %v9724
    %v10668 = vunpack.c.h.b16 %v9724
    %v10669 = vunpack.c.l.b16 %v9725
    %v10670 = vunpack.c.h.b16 %v9725
    %v10671 = vunpack.c.l.b16 %v9726
    %v10672 = vunpack.c.h.b16 %v9726
    %v10673 = vunpack.c.l.b16 %v9727
    %v10674 = vunpack.c.h.b16 %v9727
    %v10675 = vunpack.c.l.b16 %v9728
    %v10676 = vunpack.c.h.b16 %v9728
    %v10677 = vunpack.c.l.b16 %v9729
    %v10678 = vunpack.c.h.b16 %v9729
    %v10679 = vunpack.c.l.b16 %v9730
    %v10680 = vunpack.c.h.b16 %v9730
    %v10681 = vunpack.c.l.b16 %v9731
    %v10682 = vunpack.c.h.b16 %v9731
    %v10683 = vunpack.c.l.b16 %v9732
    %v10684 = vunpack.c.h.b16 %v9732
    %v10685 = vunpack.c.l.b16 %v9733
    %v10686 = vunpack.c.h.b16 %v9733
    %v10687 = vunpack.c.l.b16 %v9734
    %v10688 = vunpack.c.h.b16 %v9734
    %v10689 = vunpack.c.l.b16 %v9735
    %v10690 = vunpack.c.h.b16 %v9735
    %v10691 = vunpack.c.l.b16 %v9736
    %v10692 = vunpack.c.h.b16 %v9736
    %v10693 = vunpack.c.l.b16 %v9737
    %v10694 = vunpack.c.h.b16 %v9737
    %v10695 = vunpack.c.l.b16 %v9738
    %v10696 = vunpack.c.h.b16 %v9738
    %v10697 = vunpack.c.l.b16 %v9739
    %v10698 = vunpack.c.h.b16 %v9739
    %v10699 = vunpack.c.l.b16 %v9740
    %v10700 = vunpack.c.h.b16 %v9740
    %v10701 = vunpack.c.l.b16 %v9741
    %v10702 = vunpack.c.h.b16 %v9741
    %v10703 = vunpack.c.l.b16 %v9742
    %v10704 = vunpack.c.h.b16 %v9742
    %v10705 = vunpack.c.l.b16 %v9743
    %v10706 = vunpack.c.h.b16 %v9743
    %v10707 = vunpack.c.l.b16 %v9744
    %v10708 = vunpack.c.h.b16 %v9744
    %v10709 = vunpack.c.l.b16 %v9745
    %v10710 = vunpack.c.h.b16 %v9745
    %v10711 = vunpack.c.l.b16 %v9746
    %v10712 = vunpack.c.h.b16 %v9746
    %v10713 = vunpack.c.l.b16 %v9747
    %v10714 = vunpack.c.h.b16 %v9747
    %v10715 = vunpack.c.l.b16 %v9748
    %v10716 = vunpack.c.h.b16 %v9748
    %v10717 = vunpack.c.l.b16 %v9749
    %v10718 = vunpack.c.h.b16 %v9749
    %v10719 = vunpack.c.l.b16 %v9750
    %v10720 = vunpack.c.h.b16 %v9750
    %v10721 = vunpack.c.l.b16 %v9751
    %v10722 = vunpack.c.h.b16 %v9751
    %v10723 = vunpack.c.l.b16 %v9752
    %v10724 = vunpack.c.h.b16 %v9752
    %v10725 = vunpack.c.l.b16 %v9753
    %v10726 = vunpack.c.h.b16 %v9753
    %v10727 = vunpack.c.l.b16 %v9754
    %v10728 = vunpack.c.h.b16 %v9754
    %v10729 = vunpack.c.l.b16 %v9755
    %v10730 = vunpack.c.h.b16 %v9755
    %v10731 = vunpack.c.l.b16 %v9756
    %v10732 = vunpack.c.h.b16 %v9756
    %v10733 = vunpack.c.l.b16 %v9757
    %v10734 = vunpack.c.h.b16 %v9757
    %v10735 = vunpack.c.l.b16 %v9758
    %v10736 = vunpack.c.h.b16 %v9758
    %v10737 = vunpack.c.l.b16 %v9759
    %v10738 = vunpack.c.h.b16 %v9759
    %v10739 = vunpack.c.l.b16 %v9760
    %v10740 = vunpack.c.h.b16 %v9760
    %v10741 = vunpack.c.l.b16 %v9761
    %v10742 = vunpack.c.h.b16 %v9761
    %v10743 = vunpack.c.l.b16 %v9762
    %v10744 = vunpack.c.h.b16 %v9762
    %v10745 = vunpack.c.l.b16 %v9763
    %v10746 = vunpack.c.h.b16 %v9763
    %v10747 = vunpack.c.l.b16 %v9764
    %v10748 = vunpack.c.h.b16 %v9764
    %v10749 = vunpack.c.l.b16 %v9765
    %v10750 = vunpack.c.h.b16 %v9765
    %v10751 = vunpack.c.l.b16 %v9766
    %v10752 = vunpack.c.h.b16 %v9766
    %v10753 = vunpack.c.l.b16 %v9767
    %v10754 = vunpack.c.h.b16 %v9767
    %v10755 = vunpack.c.l.b16 %v9768
    %v10756 = vunpack.c.h.b16 %v9768
    %v10757 = vunpack.c.l.b16 %v9769
    %v10758 = vunpack.c.h.b16 %v9769
    %v10759 = vunpack.c.l.b16 %v9770
    %v10760 = vunpack.c.h.b16 %v9770
    %v10761 = vunpack.c.l.b16 %v9771
    %v10762 = vunpack.c.h.b16 %v9771
    %v10763 = vunpack.c.l.b16 %v9772
    %v10764 = vunpack.c.h.b16 %v9772
    %v10765 = vunpack.c.l.b16 %v9773
    %v10766 = vunpack.c.h.b16 %v9773
    %v10767 = vunpack.c.l.b16 %v9774
    %v10768 = vunpack.c.h.b16 %v9774
    %v10769 = vunpack.c.l.b16 %v9775
    %v10770 = vunpack.c.h.b16 %v9775
    %v10771 = vunpack.c.l.b16 %v9776
    %v10772 = vunpack.c.h.b16 %v9776
    %v10773 = vunpack.c.l.b16 %v9777
    %v10774 = vunpack.c.h.b16 %v9777
    %v10775 = vunpack.c.l.b16 %v9778
    %v10776 = vunpack.c.h.b16 %v9778
    %v10777 = vunpack.c.l.b16 %v9779
    %v10778 = vunpack.c.h.b16 %v9779
    %v10779 = vunpack.c.l.b16 %v9780
    %v10780 = vunpack.c.h.b16 %v9780
    %v10781 = vunpack.c.l.b16 %v9781
    %v10782 = vunpack.c.h.b16 %v9781
    %v10783 = vunpack.c.l.b16 %v9782
    %v10784 = vunpack.c.h.b16 %v9782
    %v10785 = vunpack.c.l.b16 %v9783
    %v10786 = vunpack.c.h.b16 %v9783
    %v10787 = vunpack.c.l.b16 %v9784
    %v10788 = vunpack.c.h.b16 %v9784
    %v10789 = vunpack.c.l.b16 %v9785
    %v10790 = vunpack.c.h.b16 %v9785
    %v10791 = vunpack.c.l.b16 %v9786
    %v10792 = vunpack.c.h.b16 %v9786
    %v10793 = vunpack.c.l.b16 %v9787
    %v10794 = vunpack.c.h.b16 %v9787
    %v10795 = vunpack.c.l.b16 %v9788
    %v10796 = vunpack.c.h.b16 %v9788
    %v10797 = vunpack.c.l.b16 %v9789
    %v10798 = vunpack.c.h.b16 %v9789
    %v10799 = vunpack.c.l.b16 %v9790
    %v10800 = vunpack.c.h.b16 %v9790
    %v10801 = vunpack.c.l.b16 %v9791
    %v10802 = vunpack.c.h.b16 %v9791
    %v10803 = vunpack.c.l.b16 %v9792
    %v10804 = vunpack.c.h.b16 %v9792
    %v10805 = vunpack.c.l.b16 %v9793
    %v10806 = vunpack.c.h.b16 %v9793
    %v10807 = vunpack.c.l.b16 %v9794
    %v10808 = vunpack.c.h.b16 %v9794
    %v10809 = vunpack.c.l.b16 %v9795
    %v10810 = vunpack.c.h.b16 %v9795
    %v10811 = vunpack.c.l.b16 %v9796
    %v10812 = vunpack.c.h.b16 %v9796
    %v10813 = vunpack.c.l.b16 %v9797
    %v10814 = vunpack.c.h.b16 %v9797
    %v10815 = vunpack.c.l.b16 %v9798
    %v10816 = vunpack.c.h.b16 %v9798
    %v10817 = vunpack.c.l.b16 %v9799
    %v10818 = vunpack.c.h.b16 %v9799
    %v10819 = vunpack.c.l.b16 %v9800
    %v10820 = vunpack.c.h.b16 %v9800
    %v10821 = vunpack.c.l.b16 %v9801
    %v10822 = vunpack.c.h.b16 %v9801
    %v10823 = vunpack.c.l.b16 %v9802
    %v10824 = vunpack.c.h.b16 %v9802
    %v10825 = vunpack.c.l.b16 %v9803
    %v10826 = vunpack.c.h.b16 %v9803
    %v10827 = vunpack.c.l.b16 %v9804
    %v10828 = vunpack.c.h.b16 %v9804
    %v10829 = vunpack.c.l.b16 %v9805
    %v10830 = vunpack.c.h.b16 %v9805
    %v10831 = vunpack.c.l.b16 %v9806
    %v10832 = vunpack.c.h.b16 %v9806
    %v10833 = vunpack.c.l.b16 %v9807
    %v10834 = vunpack.c.h.b16 %v9807
    %v10835 = vunpack.c.l.b16 %v9808
    %v10836 = vunpack.c.h.b16 %v9808
    %v10837 = vunpack.c.l.b16 %v9809
    %v10838 = vunpack.c.h.b16 %v9809
    %v10839 = vunpack.c.l.b16 %v9810
    %v10840 = vunpack.c.h.b16 %v9810
    %v10841 = vunpack.c.l.b16 %v9811
    %v10842 = vunpack.c.h.b16 %v9811
    %v10843 = vunpack.c.l.b16 %v9812
    %v10844 = vunpack.c.h.b16 %v9812
    %v10845 = vunpack.c.l.b16 %v9813
    %v10846 = vunpack.c.h.b16 %v9813
    %v10847 = vunpack.c.l.b16 %v9814
    %v10848 = vunpack.c.h.b16 %v9814
    %v10849 = vunpack.c.l.b16 %v9815
    %v10850 = vunpack.c.h.b16 %v9815
    %v10851 = vunpack.c.l.b16 %v9816
    %v10852 = vunpack.c.h.b16 %v9816
    %v10853 = vunpack.c.l.b16 %v9817
    %v10854 = vunpack.c.h.b16 %v9817
    %v10855 = vunpack.c.l.b16 %v9818
    %v10856 = vunpack.c.h.b16 %v9818
    %v10857 = vunpack.c.l.b16 %v9819
    %v10858 = vunpack.c.h.b16 %v9819
    %v10859 = vunpack.c.l.b16 %v9820
    %v10860 = vunpack.c.h.b16 %v9820
    %v10861 = vunpack.c.l.b16 %v9821
    %v10862 = vunpack.c.h.b16 %v9821
    %v10863 = vunpack.c.l.b16 %v9822
    %v10864 = vunpack.c.h.b16 %v9822
    %v10865 = vunpack.c.l.b16 %v9823
    %v10866 = vunpack.c.h.b16 %v9823
    %v10867 = vunpack.c.l.b16 %v9824
    %v10868 = vunpack.c.h.b16 %v9824
    %v10869 = vunpack.c.l.b16 %v9825
    %v10870 = vunpack.c.h.b16 %v9825
    %v10871 = vunpack.c.l.b16 %v9826
    %v10872 = vunpack.c.h.b16 %v9826
    %v10873 = vunpack.c.l.b16 %v9827
    %v10874 = vunpack.c.h.b16 %v9827
    %v10875 = vunpack.c.l.b16 %v9828
    %v10876 = vunpack.c.h.b16 %v9828
    %v10877 = vunpack.c.l.b16 %v9829
    %v10878 = vunpack.c.h.b16 %v9829
    %v10879 = vunpack.c.l.b16 %v9830
    %v10880 = vunpack.c.h.b16 %v9830
    %v10881 = vunpack.c.l.b16 %v9831
    %v10882 = vunpack.c.h.b16 %v9831
    %v10883 = vunpack.c.l.b16 %v9832
    %v10884 = vunpack.c.h.b16 %v9832
    %v10885 = vunpack.c.l.b16 %v9833
    %v10886 = vunpack.c.h.b16 %v9833
    %v10887 = vunpack.c.l.b16 %v9834
    %v10888 = vunpack.c.h.b16 %v9834
    %v10889 = vunpack.c.l.b16 %v9835
    %v10890 = vunpack.c.h.b16 %v9835
    %v10891 = vunpack.c.l.b16 %v9836
    %v10892 = vunpack.c.h.b16 %v9836
    %v10893 = vunpack.c.l.b16 %v9837
    %v10894 = vunpack.c.h.b16 %v9837
    %v10895 = vunpack.c.l.b16 %v9838
    %v10896 = vunpack.c.h.b16 %v9838
    %v10897 = vunpack.c.l.b16 %v9839
    %v10898 = vunpack.c.h.b16 %v9839
    %v10899 = vunpack.c.l.b16 %v9840
    %v10900 = vunpack.c.h.b16 %v9840
    %v10901 = vunpack.c.l.b16 %v9841
    %v10902 = vunpack.c.h.b16 %v9841
    %v10903 = vunpack.c.l.b16 %v9842
    %v10904 = vunpack.c.h.b16 %v9842
    %v10905 = vunpack.c.l.b16 %v9843
    %v10906 = vunpack.c.h.b16 %v9843
    %v10907 = vunpack.c.l.b16 %v9844
    %v10908 = vunpack.c.h.b16 %v9844
    %v10909 = vunpack.c.l.b16 %v9845
    %v10910 = vunpack.c.h.b16 %v9845
    %v10911 = vunpack.c.l.b16 %v9846
    %v10912 = vunpack.c.h.b16 %v9846
    %v10913 = vunpack.c.l.b16 %v9847
    %v10914 = vunpack.c.h.b16 %v9847
    %v10915 = vunpack.c.l.b16 %v9848
    %v10916 = vunpack.c.h.b16 %v9848
    %v10917 = vunpack.c.l.b16 %v9849
    %v10918 = vunpack.c.h.b16 %v9849
    %v10919 = vunpack.c.l.b16 %v9850
    %v10920 = vunpack.c.h.b16 %v9850
    %v10921 = vunpack.c.l.b16 %v9851
    %v10922 = vunpack.c.h.b16 %v9851
    %v10923 = vunpack.c.l.b16 %v9852
    %v10924 = vunpack.c.h.b16 %v9852
    %v10925 = vunpack.c.l.b16 %v9853
    %v10926 = vunpack.c.h.b16 %v9853
    %v10927 = vunpack.c.l.b16 %v9854
    %v10928 = vunpack.c.h.b16 %v9854
    %v10929 = vunpack.c.l.b16 %v9855
    %v10930 = vunpack.c.h.b16 %v9855
    %v10931 = vunpack.c.l.b16 %v9856
    %v10932 = vunpack.c.h.b16 %v9856
    %v10933 = vunpack.c.l.b16 %v9857
    %v10934 = vunpack.c.h.b16 %v9857
    %v10935 = vunpack.c.l.b16 %v9858
    %v10936 = vunpack.c.h.b16 %v9858
    %v10937 = vunpack.c.l.b16 %v9859
    %v10938 = vunpack.c.h.b16 %v9859
    %v10939 = vunpack.c.l.b16 %v9860
    %v10940 = vunpack.c.h.b16 %v9860
    %v10941 = vunpack.c.l.b16 %v9861
    %v10942 = vunpack.c.h.b16 %v9861
    %v10943 = vunpack.c.l.b16 %v9862
    %v10944 = vunpack.c.h.b16 %v9862
    %v10945 = vunpack.c.l.b16 %v9863
    %v10946 = vunpack.c.h.b16 %v9863
    %v10947 = vunpack.c.l.b16 %v9864
    %v10948 = vunpack.c.h.b16 %v9864
    %v10949 = vunpack.c.l.b16 %v9865
    %v10950 = vunpack.c.h.b16 %v9865
    %v10951 = vunpack.c.l.b16 %v9866
    %v10952 = vunpack.c.h.b16 %v9866
    %v10953 = vunpack.c.l.b16 %v9867
    %v10954 = vunpack.c.h.b16 %v9867
    %v10955 = vunpack.c.l.b16 %v9868
    %v10956 = vunpack.c.h.b16 %v9868
    %v10957 = vunpack.c.l.b16 %v9869
    %v10958 = vunpack.c.h.b16 %v9869
    %v10959 = vunpack.c.l.b16 %v9870
    %v10960 = vunpack.c.h.b16 %v9870
    %v10961 = vunpack.c.l.b16 %v9871
    %v10962 = vunpack.c.h.b16 %v9871
    %v10963 = vunpack.c.l.b16 %v9872
    %v10964 = vunpack.c.h.b16 %v9872
    %v10965 = vunpack.c.l.b16 %v9873
    %v10966 = vunpack.c.h.b16 %v9873
    %v10967 = vunpack.c.l.b16 %v9874
    %v10968 = vunpack.c.h.b16 %v9874
    %v10969 = vunpack.c.l.b16 %v9875
    %v10970 = vunpack.c.h.b16 %v9875
    %v10971 = vunpack.c.l.b16 %v9876
    %v10972 = vunpack.c.h.b16 %v9876
    %v10973 = vunpack.c.l.b16 %v9877
    %v10974 = vunpack.c.h.b16 %v9877
    %v10975 = vunpack.c.l.b16 %v9878
    %v10976 = vunpack.c.h.b16 %v9878
    %v10977 = vunpack.c.l.b16 %v9879
    %v10978 = vunpack.c.h.b16 %v9879
    %v10979 = vunpack.c.l.b16 %v9880
    %v10980 = vunpack.c.h.b16 %v9880
    %v10981 = vunpack.c.l.b16 %v9881
    %v10982 = vunpack.c.h.b16 %v9881
    %v10983 = vunpack.c.l.b16 %v9882
    %v10984 = vunpack.c.h.b16 %v9882
    %v10985 = vunpack.c.l.b16 %v9883
    %v10986 = vunpack.c.h.b16 %v9883
    %v10987 = vunpack.c.l.b16 %v9884
    %v10988 = vunpack.c.h.b16 %v9884
    %v10989 = vunpack.c.l.b16 %v9885
    %v10990 = vunpack.c.h.b16 %v9885
    %v10991 = vunpack.c.l.b16 %v9886
    %v10992 = vunpack.c.h.b16 %v9886
    %v10993 = vunpack.c.l.b16 %v9887
    %v10994 = vunpack.c.h.b16 %v9887
    %v10995 = vunpack.c.l.b16 %v9888
    %v10996 = vunpack.c.h.b16 %v9888
    %v10997 = vunpack.c.l.b16 %v9889
    %v10998 = vunpack.c.h.b16 %v9889
    %v10999 = vunpack.c.l.b16 %v9890
    %v11000 = vunpack.c.h.b16 %v9890
    %v11001 = vunpack.c.l.b16 %v9891
    %v11002 = vunpack.c.h.b16 %v9891
    %v11003 = vunpack.c.l.b16 %v9892
    %v11004 = vunpack.c.h.b16 %v9892
    %v11005 = vunpack.c.l.b16 %v9893
    %v11006 = vunpack.c.h.b16 %v9893
    %v11007 = vunpack.c.l.b16 %v9894
    %v11008 = vunpack.c.h.b16 %v9894
    %v11009 = vunpack.c.l.b16 %v9895
    %v11010 = vunpack.c.h.b16 %v9895
    %v11011 = vunpack.c.l.b16 %v9896
    %v11012 = vunpack.c.h.b16 %v9896
    %v11013 = vunpack.c.l.b16 %v9897
    %v11014 = vunpack.c.h.b16 %v9897
    %v11015 = vunpack.c.l.b16 %v9898
    %v11016 = vunpack.c.h.b16 %v9898
    %v11017 = vunpack.c.l.b16 %v9899
    %v11018 = vunpack.c.h.b16 %v9899
    %v11019 = vunpack.c.l.b16 %v9900
    %v11020 = vunpack.c.h.b16 %v9900
    %v11021 = vunpack.c.l.b16 %v9901
    %v11022 = vunpack.c.h.b16 %v9901
    %v11023 = vunpack.c.l.b16 %v9902
    %v11024 = vunpack.c.h.b16 %v9902
    %v11025 = vunpack.c.l.b16 %v9903
    %v11026 = vunpack.c.h.b16 %v9903
    %v11027 = vunpack.c.l.b16 %v9904
    %v11028 = vunpack.c.h.b16 %v9904
    %v11029 = vunpack.c.l.b16 %v9905
    %v11030 = vunpack.c.h.b16 %v9905
    %v11031 = vunpack.c.l.b16 %v9906
    %v11032 = vunpack.c.h.b16 %v9906
    %v11033 = vunpack.c.l.b16 %v9907
    %v11034 = vunpack.c.h.b16 %v9907
    %v11035 = vunpack.c.l.b16 %v9908
    %v11036 = vunpack.c.h.b16 %v9908
    %v11037 = vunpack.c.l.b16 %v9909
    %v11038 = vunpack.c.h.b16 %v9909
    %v11039 = vunpack.c.l.b16 %v9910
    %v11040 = vunpack.c.h.b16 %v9910
    %v11041 = vunpack.c.l.b16 %v9911
    %v11042 = vunpack.c.h.b16 %v9911
    %v11043 = vunpack.c.l.b16 %v9912
    %v11044 = vunpack.c.h.b16 %v9912
    %v11045 = vunpack.c.l.b16 %v9913
    %v11046 = vunpack.c.h.b16 %v9913
    %v11047 = vunpack.c.l.b16 %v9914
    %v11048 = vunpack.c.h.b16 %v9914
    %v11049 = vunpack.c.l.b16 %v9915
    %v11050 = vunpack.c.h.b16 %v9915
    %v11051 = vunpack.c.l.b16 %v9916
    %v11052 = vunpack.c.h.b16 %v9916
    %v11053 = vunpack.c.l.b16 %v9917
    %v11054 = vunpack.c.h.b16 %v9917
    %v11055 = vunpack.c.l.b16 %v9918
    %v11056 = vunpack.c.h.b16 %v9918
    %v11057 = vunpack.c.l.b16 %v9919
    %v11058 = vunpack.c.h.b16 %v9919
    %v11059 = vunpack.c.l.b16 %v9920
    %v11060 = vunpack.c.h.b16 %v9920
    %v11061 = vunpack.c.l.b16 %v9921
    %v11062 = vunpack.c.h.b16 %v9921
    %v11063 = vunpack.c.l.b16 %v9922
    %v11064 = vunpack.c.h.b16 %v9922
    %v11065 = vunpack.c.l.b16 %v9923
    %v11066 = vunpack.c.h.b16 %v9923
    %v11067 = vunpack.c.l.b16 %v9924
    %v11068 = vunpack.c.h.b16 %v9924
    %v11069 = vunpack.c.l.b16 %v9925
    %v11070 = vunpack.c.h.b16 %v9925
    %v11071 = vunpack.c.l.b16 %v9926
    %v11072 = vunpack.c.h.b16 %v9926
    %v11073 = vunpack.c.l.b16 %v9927
    %v11074 = vunpack.c.h.b16 %v9927
    %v11075 = vunpack.c.l.b16 %v9928
    %v11076 = vunpack.c.h.b16 %v9928
    %v11077 = vunpack.c.l.b16 %v9929
    %v11078 = vunpack.c.h.b16 %v9929
    %v11079 = vunpack.c.l.b16 %v9930
    %v11080 = vunpack.c.h.b16 %v9930
    %v11081 = vunpack.c.l.b16 %v9931
    %v11082 = vunpack.c.h.b16 %v9931
    %v11083 = vunpack.c.l.b16 %v9932
    %v11084 = vunpack.c.h.b16 %v9932
    %v11085 = vunpack.c.l.b16 %v9933
    %v11086 = vunpack.c.h.b16 %v9933
    %v11087 = vunpack.c.l.b16 %v9934
    %v11088 = vunpack.c.h.b16 %v9934
    %v11089 = vunpack.c.l.b16 %v9935
    %v11090 = vunpack.c.h.b16 %v9935
    %v11091 = vunpack.c.l.b16 %v9936
    %v11092 = vunpack.c.h.b16 %v9936
    %v11093 = vunpack.c.l.b16 %v9937
    %v11094 = vunpack.c.h.b16 %v9937
    %v11095 = vunpack.c.l.b16 %v9938
    %v11096 = vunpack.c.h.b16 %v9938
    %v11097 = vunpack.c.l.b16 %v9939
    %v11098 = vunpack.c.h.b16 %v9939
    %v11099 = vunpack.c.l.b16 %v9940
    %v11100 = vunpack.c.h.b16 %v9940
    %v11101 = vunpack.c.l.b16 %v9941
    %v11102 = vunpack.c.h.b16 %v9941
    %v11103 = vunpack.c.l.b16 %v9942
    %v11104 = vunpack.c.h.b16 %v9942
    %v11105 = vunpack.c.l.b16 %v9943
    %v11106 = vunpack.c.h.b16 %v9943
    %v11107 = vunpack.c.l.b16 %v9944
    %v11108 = vunpack.c.h.b16 %v9944
    %v11109 = vunpack.c.l.b16 %v9945
    %v11110 = vunpack.c.h.b16 %v9945
    %v11111 = vunpack.c.l.b16 %v9946
    %v11112 = vunpack.c.h.b16 %v9946
    %v11113 = vunpack.c.l.b16 %v9947
    %v11114 = vunpack.c.h.b16 %v9947
    %v11115 = vunpack.c.l.b16 %v9948
    %v11116 = vunpack.c.h.b16 %v9948
    %v11117 = vunpack.c.l.b16 %v9949
    %v11118 = vunpack.c.h.b16 %v9949
    %v11119 = vunpack.c.l.b16 %v9950
    %v11120 = vunpack.c.h.b16 %v9950
    %v11121 = vunpack.c.l.b16 %v9951
    %v11122 = vunpack.c.h.b16 %v9951
    %v11123 = vunpack.c.l.b16 %v9952
    %v11124 = vunpack.c.h.b16 %v9952
    %v11125 = vunpack.c.l.b16 %v9953
    %v11126 = vunpack.c.h.b16 %v9953
    %v11127 = vunpack.c.l.b16 %v9954
    %v11128 = vunpack.c.h.b16 %v9954
    %v11129 = vunpack.c.l.b16 %v9955
    %v11130 = vunpack.c.h.b16 %v9955
    %v11131 = vunpack.c.l.b16 %v9956
    %v11132 = vunpack.c.h.b16 %v9956
    %v11133 = vunpack.c.l.b16 %v9957
    %v11134 = vunpack.c.h.b16 %v9957
    %v11135 = vunpack.c.l.b16 %v9958
    %v11136 = vunpack.c.h.b16 %v9958
    %v11137 = vunpack.c.l.b16 %v9959
    %v11138 = vunpack.c.h.b16 %v9959
    %v11139 = vunpack.c.l.b16 %v9960
    %v11140 = vunpack.c.h.b16 %v9960
    %v11141 = vunpack.c.l.b16 %v9961
    %v11142 = vunpack.c.h.b16 %v9961
    %v11143 = vunpack.c.l.b16 %v9962
    %v11144 = vunpack.c.h.b16 %v9962
    %v11145 = vunpack.c.l.b16 %v9963
    %v11146 = vunpack.c.h.b16 %v9963
    %v11147 = vunpack.c.l.b16 %v9964
    %v11148 = vunpack.c.h.b16 %v9964
    %v11149 = vunpack.c.l.b16 %v9965
    %v11150 = vunpack.c.h.b16 %v9965
    %v11151 = vunpack.c.l.b16 %v9966
    %v11152 = vunpack.c.h.b16 %v9966
    %v11153 = vunpack.c.l.b16 %v9967
    %v11154 = vunpack.c.h.b16 %v9967
    %v11155 = vunpack.c.l.b16 %v9968
    %v11156 = vunpack.c.h.b16 %v9968
    %v11157 = vunpack.c.l.b16 %v9969
    %v11158 = vunpack.c.h.b16 %v9969
    %v11159 = vunpack.c.l.b16 %v9970
    %v11160 = vunpack.c.h.b16 %v9970
    %v11161 = vunpack.c.l.b16 %v9971
    %v11162 = vunpack.c.h.b16 %v9971
    %v11163 = vunpack.c.l.b16 %v9972
    %v11164 = vunpack.c.h.b16 %v9972
    %v11165 = vunpack.c.l.b16 %v9973
    %v11166 = vunpack.c.h.b16 %v9973
    %v11167 = vunpack.c.l.b16 %v9974
    %v11168 = vunpack.c.h.b16 %v9974
    %v11169 = vpack.c.b16 %v10409, %v10401
    %v11170 = vpack.c.b16 %v10410, %v10402
    %v11171 = vpack.c.b16 %v10411, %v10403
    %v11172 = vpack.c.b16 %v10412, %v10404
    %v11173 = vpack.c.b16 %v10413, %v10405
    %v11174 = vpack.c.b16 %v10414, %v10406
    %v11175 = vpack.c.b16 %v10415, %v10407
    %v11176 = vpack.c.b16 %v10416, %v10408
    %v11177 = vpack.c.b16 %v10425, %v10417
    %v11178 = vpack.c.b16 %v10426, %v10418
    %v11179 = vpack.c.b16 %v10427, %v10419
    %v11180 = vpack.c.b16 %v10428, %v10420
    %v11181 = vpack.c.b16 %v10429, %v10421
    %v11182 = vpack.c.b16 %v10430, %v10422
    %v11183 = vpack.c.b16 %v10431, %v10423
    %v11184 = vpack.c.b16 %v10432, %v10424
    %v11185 = vpack.c.b16 %v10441, %v10433
    %v11186 = vpack.c.b16 %v10442, %v10434
    %v11187 = vpack.c.b16 %v10443, %v10435
    %v11188 = vpack.c.b16 %v10444, %v10436
    %v11189 = vpack.c.b16 %v10445, %v10437
    %v11190 = vpack.c.b16 %v10446, %v10438
    %v11191 = vpack.c.b16 %v10447, %v10439
    %v11192 = vpack.c.b16 %v10448, %v10440
    %v11193 = vpack.c.b16 %v10457, %v10449
    %v11194 = vpack.c.b16 %v10458, %v10450
    %v11195 = vpack.c.b16 %v10459, %v10451
    %v11196 = vpack.c.b16 %v10460, %v10452
    %v11197 = vpack.c.b16 %v10461, %v10453
    %v11198 = vpack.c.b16 %v10462, %v10454
    %v11199 = vpack.c.b16 %v10463, %v10455
    %v11200 = vpack.c.b16 %v10464, %v10456
    %v11201 = vpack.c.b16 %v10473, %v10465
    %v11202 = vpack.c.b16 %v10474, %v10466
    %v11203 = vpack.c.b16 %v10475, %v10467
    %v11204 = vpack.c.b16 %v10476, %v10468
    %v11205 = vpack.c.b16 %v10477, %v10469
    %v11206 = vpack.c.b16 %v10478, %v10470
    %v11207 = vpack.c.b16 %v10479, %v10471
    %v11208 = vpack.c.b16 %v10480, %v10472
    %v11209 = vpack.c.b16 %v10489, %v10481
    %v11210 = vpack.c.b16 %v10490, %v10482
    %v11211 = vpack.c.b16 %v10491, %v10483
    %v11212 = vpack.c.b16 %v10492, %v10484
    %v11213 = vpack.c.b16 %v10493, %v10485
    %v11214 = vpack.c.b16 %v10494, %v10486
    %v11215 = vpack.c.b16 %v10495, %v10487
    %v11216 = vpack.c.b16 %v10496, %v10488
    %v11217 = vpack.c.b16 %v10505, %v10497
    %v11218 = vpack.c.b16 %v10506, %v10498
    %v11219 = vpack.c.b16 %v10507, %v10499
    %v11220 = vpack.c.b16 %v10508, %v10500
    %v11221 = vpack.c.b16 %v10509, %v10501
    %v11222 = vpack.c.b16 %v10510, %v10502
    %v11223 = vpack.c.b16 %v10511, %v10503
    %v11224 = vpack.c.b16 %v10512, %v10504
    %v11225 = vpack.c.b16 %v10521, %v10513
    %v11226 = vpack.c.b16 %v10522, %v10514
    %v11227 = vpack.c.b16 %v10523, %v10515
    %v11228 = vpack.c.b16 %v10524, %v10516
    %v11229 = vpack.c.b16 %v10525, %v10517
    %v11230 = vpack.c.b16 %v10526, %v10518
    %v11231 = vpack.c.b16 %v10527, %v10519
    %v11232 = vpack.c.b16 %v10528, %v10520
    %v11233 = vpack.c.b16 %v10537, %v10529
    %v11234 = vpack.c.b16 %v10538, %v10530
    %v11235 = vpack.c.b16 %v10539, %v10531
    %v11236 = vpack.c.b16 %v10540, %v10532
    %v11237 = vpack.c.b16 %v10541, %v10533
    %v11238 = vpack.c.b16 %v10542, %v10534
    %v11239 = vpack.c.b16 %v10543, %v10535
    %v11240 = vpack.c.b16 %v10544, %v10536
    %v11241 = vpack.c.b16 %v10553, %v10545
    %v11242 = vpack.c.b16 %v10554, %v10546
    %v11243 = vpack.c.b16 %v10555, %v10547
    %v11244 = vpack.c.b16 %v10556, %v10548
    %v11245 = vpack.c.b16 %v10557, %v10549
    %v11246 = vpack.c.b16 %v10558, %v10550
    %v11247 = vpack.c.b16 %v10559, %v10551
    %v11248 = vpack.c.b16 %v10560, %v10552
    %v11249 = vpack.c.b16 %v10569, %v10561
    %v11250 = vpack.c.b16 %v10570, %v10562
    %v11251 = vpack.c.b16 %v10571, %v10563
    %v11252 = vpack.c.b16 %v10572, %v10564
    %v11253 = vpack.c.b16 %v10573, %v10565
    %v11254 = vpack.c.b16 %v10574, %v10566
    %v11255 = vpack.c.b16 %v10575, %v10567
    %v11256 = vpack.c.b16 %v10576, %v10568
    %v11257 = vpack.c.b16 %v10585, %v10577
    %v11258 = vpack.c.b16 %v10586, %v10578
    %v11259 = vpack.c.b16 %v10587, %v10579
    %v11260 = vpack.c.b16 %v10588, %v10580
    %v11261 = vpack.c.b16 %v10589, %v10581
    %v11262 = vpack.c.b16 %v10590, %v10582
    %v11263 = vpack.c.b16 %v10591, %v10583
    %v11264 = vpack.c.b16 %v10592, %v10584
    %v11265 = vpack.c.b16 %v10601, %v10593
    %v11266 = vpack.c.b16 %v10602, %v10594
    %v11267 = vpack.c.b16 %v10603, %v10595
    %v11268 = vpack.c.b16 %v10604, %v10596
    %v11269 = vpack.c.b16 %v10605, %v10597
    %v11270 = vpack.c.b16 %v10606, %v10598
    %v11271 = vpack.c.b16 %v10607, %v10599
    %v11272 = vpack.c.b16 %v10608, %v10600
    %v11273 = vpack.c.b16 %v10617, %v10609
    %v11274 = vpack.c.b16 %v10618, %v10610
    %v11275 = vpack.c.b16 %v10619, %v10611
    %v11276 = vpack.c.b16 %v10620, %v10612
    %v11277 = vpack.c.b16 %v10621, %v10613
    %v11278 = vpack.c.b16 %v10622, %v10614
    %v11279 = vpack.c.b16 %v10623, %v10615
    %v11280 = vpack.c.b16 %v10624, %v10616
    %v11281 = vpack.c.b16 %v10633, %v10625
    %v11282 = vpack.c.b16 %v10634, %v10626
    %v11283 = vpack.c.b16 %v10635, %v10627
    %v11284 = vpack.c.b16 %v10636, %v10628
    %v11285 = vpack.c.b16 %v10637, %v10629
    %v11286 = vpack.c.b16 %v10638, %v10630
    %v11287 = vpack.c.b16 %v10639, %v10631
    %v11288 = vpack.c.b16 %v10640, %v10632
    %v11289 = vpack.c.b16 %v10649, %v10641
    %v11290 = vpack.c.b16 %v10650, %v10642
    %v11291 = vpack.c.b16 %v10651, %v10643
    %v11292 = vpack.c.b16 %v10652, %v10644
    %v11293 = vpack.c.b16 %v10653, %v10645
    %v11294 = vpack.c.b16 %v10654, %v10646
    %v11295 = vpack.c.b16 %v10655, %v10647
    %v11296 = vpack.c.b16 %v10656, %v10648
    %v11297 = vpack.c.b16 %v10665, %v10657
    %v11298 = vpack.c.b16 %v10666, %v10658
    %v11299 = vpack.c.b16 %v10667, %v10659
    %v11300 = vpack.c.b16 %v10668, %v10660
    %v11301 = vpack.c.b16 %v10669, %v10661
    %v11302 = vpack.c.b16 %v10670, %v10662
    %v11303 = vpack.c.b16 %v10671, %v10663
    %v11304 = vpack.c.b16 %v10672, %v10664
    %v11305 = vpack.c.b16 %v10681, %v10673
    %v11306 = vpack.c.b16 %v10682, %v10674
    %v11307 = vpack.c.b16 %v10683, %v10675
    %v11308 = vpack.c.b16 %v10684, %v10676
    %v11309 = vpack.c.b16 %v10685, %v10677
    %v11310 = vpack.c.b16 %v10686, %v10678
    %v11311 = vpack.c.b16 %v10687, %v10679
    %v11312 = vpack.c.b16 %v10688, %v10680
    %v11313 = vpack.c.b16 %v10697, %v10689
    %v11314 = vpack.c.b16 %v10698, %v10690
    %v11315 = vpack.c.b16 %v10699, %v10691
    %v11316 = vpack.c.b16 %v10700, %v10692
    %v11317 = vpack.c.b16 %v10701, %v10693
    %v11318 = vpack.c.b16 %v10702, %v10694
    %v11319 = vpack.c.b16 %v10703, %v10695
    %v11320 = vpack.c.b16 %v10704, %v10696
    %v11321 = vpack.c.b16 %v10713, %v10705
    %v11322 = vpack.c.b16 %v10714, %v10706
    %v11323 = vpack.c.b16 %v10715, %v10707
    %v11324 = vpack.c.b16 %v10716, %v10708
    %v11325 = vpack.c.b16 %v10717, %v10709
    %v11326 = vpack.c.b16 %v10718, %v10710
    %v11327 = vpack.c.b16 %v10719, %v10711
    %v11328 = vpack.c.b16 %v10720, %v10712
    %v11329 = vpack.c.b16 %v10729, %v10721
    %v11330 = vpack.c.b16 %v10730, %v10722
    %v11331 = vpack.c.b16 %v10731, %v10723
    %v11332 = vpack.c.b16 %v10732, %v10724
    %v11333 = vpack.c.b16 %v10733, %v10725
    %v11334 = vpack.c.b16 %v10734, %v10726
    %v11335 = vpack.c.b16 %v10735, %v10727
    %v11336 = vpack.c.b16 %v10736, %v10728
    %v11337 = vpack.c.b16 %v10745, %v10737
    %v11338 = vpack.c.b16 %v10746, %v10738
    %v11339 = vpack.c.b16 %v10747, %v10739
    %v11340 = vpack.c.b16 %v10748, %v10740
    %v11341 = vpack.c.b16 %v10749, %v10741
    %v11342 = vpack.c.b16 %v10750, %v10742
    %v11343 = vpack.c.b16 %v10751, %v10743
    %v11344 = vpack.c.b16 %v10752, %v10744
    %v11345 = vpack.c.b16 %v10761, %v10753
    %v11346 = vpack.c.b16 %v10762, %v10754
    %v11347 = vpack.c.b16 %v10763, %v10755
    %v11348 = vpack.c.b16 %v10764, %v10756
    %v11349 = vpack.c.b16 %v10765, %v10757
    %v11350 = vpack.c.b16 %v10766, %v10758
    %v11351 = vpack.c.b16 %v10767, %v10759
    %v11352 = vpack.c.b16 %v10768, %v10760
    %v11353 = vpack.c.b16 %v10777, %v10769
    %v11354 = vpack.c.b16 %v10778, %v10770
    %v11355 = vpack.c.b16 %v10779, %v10771
    %v11356 = vpack.c.b16 %v10780, %v10772
    %v11357 = vpack.c.b16 %v10781, %v10773
    %v11358 = vpack.c.b16 %v10782, %v10774
    %v11359 = vpack.c.b16 %v10783, %v10775
    %v11360 = vpack.c.b16 %v10784, %v10776
    %v11361 = vpack.c.b16 %v10793, %v10785
    %v11362 = vpack.c.b16 %v10794, %v10786
    %v11363 = vpack.c.b16 %v10795, %v10787
    %v11364 = vpack.c.b16 %v10796, %v10788
    %v11365 = vpack.c.b16 %v10797, %v10789
    %v11366 = vpack.c.b16 %v10798, %v10790
    %v11367 = vpack.c.b16 %v10799, %v10791
    %v11368 = vpack.c.b16 %v10800, %v10792
    %v11369 = vpack.c.b16 %v10809, %v10801
    %v11370 = vpack.c.b16 %v10810, %v10802
    %v11371 = vpack.c.b16 %v10811, %v10803
    %v11372 = vpack.c.b16 %v10812, %v10804
    %v11373 = vpack.c.b16 %v10813, %v10805
    %v11374 = vpack.c.b16 %v10814, %v10806
    %v11375 = vpack.c.b16 %v10815, %v10807
    %v11376 = vpack.c.b16 %v10816, %v10808
    %v11377 = vpack.c.b16 %v10825, %v10817
    %v11378 = vpack.c.b16 %v10826, %v10818
    %v11379 = vpack.c.b16 %v10827, %v10819
    %v11380 = vpack.c.b16 %v10828, %v10820
    %v11381 = vpack.c.b16 %v10829, %v10821
    %v11382 = vpack.c.b16 %v10830, %v10822
    %v11383 = vpack.c.b16 %v10831, %v10823
    %v11384 = vpack.c.b16 %v10832, %v10824
    %v11385 = vpack.c.b16 %v10841, %v10833
    %v11386 = vpack.c.b16 %v10842, %v10834
    %v11387 = vpack.c.b16 %v10843, %v10835
    %v11388 = vpack.c.b16 %v10844, %v10836
    %v11389 = vpack.c.b16 %v10845, %v10837
    %v11390 = vpack.c.b16 %v10846, %v10838
    %v11391 = vpack.c.b16 %v10847, %v10839
    %v11392 = vpack.c.b16 %v10848, %v10840
    %v11393 = vpack.c.b16 %v10857, %v10849
    %v11394 = vpack.c.b16 %v10858, %v10850
    %v11395 = vpack.c.b16 %v10859, %v10851
    %v11396 = vpack.c.b16 %v10860, %v10852
    %v11397 = vpack.c.b16 %v10861, %v10853
    %v11398 = vpack.c.b16 %v10862, %v10854
    %v11399 = vpack.c.b16 %v10863, %v10855
    %v11400 = vpack.c.b16 %v10864, %v10856
    %v11401 = vpack.c.b16 %v10873, %v10865
    %v11402 = vpack.c.b16 %v10874, %v10866
    %v11403 = vpack.c.b16 %v10875, %v10867
    %v11404 = vpack.c.b16 %v10876, %v10868
    %v11405 = vpack.c.b16 %v10877, %v10869
    %v11406 = vpack.c.b16 %v10878, %v10870
    %v11407 = vpack.c.b16 %v10879, %v10871
    %v11408 = vpack.c.b16 %v10880, %v10872
    %v11409 = vpack.c.b16 %v10889, %v10881
    %v11410 = vpack.c.b16 %v10890, %v10882
    %v11411 = vpack.c.b16 %v10891, %v10883
    %v11412 = vpack.c.b16 %v10892, %v10884
    %v11413 = vpack.c.b16 %v10893, %v10885
    %v11414 = vpack.c.b16 %v10894, %v10886
    %v11415 = vpack.c.b16 %v10895, %v10887
    %v11416 = vpack.c.b16 %v10896, %v10888
    %v11417 = vpack.c.b16 %v10905, %v10897
    %v11418 = vpack.c.b16 %v10906, %v10898
    %v11419 = vpack.c.b16 %v10907, %v10899
    %v11420 = vpack.c.b16 %v10908, %v10900
    %v11421 = vpack.c.b16 %v10909, %v10901
    %v11422 = vpack.c.b16 %v10910, %v10902
    %v11423 = vpack.c.b16 %v10911, %v10903
    %v11424 = vpack.c.b16 %v10912, %v10904
    %v11425 = vpack.c.b16 %v10921, %v10913
    %v11426 = vpack.c.b16 %v10922, %v10914
    %v11427 = vpack.c.b16 %v10923, %v10915
    %v11428 = vpack.c.b16 %v10924, %v10916
    %v11429 = vpack.c.b16 %v10925, %v10917
    %v11430 = vpack.c.b16 %v10926, %v10918
    %v11431 = vpack.c.b16 %v10927, %v10919
    %v11432 = vpack.c.b16 %v10928, %v10920
    %v11433 = vpack.c.b16 %v10937, %v10929
    %v11434 = vpack.c.b16 %v10938, %v10930
    %v11435 = vpack.c.b16 %v10939, %v10931
    %v11436 = vpack.c.b16 %v10940, %v10932
    %v11437 = vpack.c.b16 %v10941, %v10933
    %v11438 = vpack.c.b16 %v10942, %v10934
    %v11439 = vpack.c.b16 %v10943, %v10935
    %v11440 = vpack.c.b16 %v10944, %v10936
    %v11441 = vpack.c.b16 %v10953, %v10945
    %v11442 = vpack.c.b16 %v10954, %v10946
    %v11443 = vpack.c.b16 %v10955, %v10947
    %v11444 = vpack.c.b16 %v10956, %v10948
    %v11445 = vpack.c.b16 %v10957, %v10949
    %v11446 = vpack.c.b16 %v10958, %v10950
    %v11447 = vpack.c.b16 %v10959, %v10951
    %v11448 = vpack.c.b16 %v10960, %v10952
    %v11449 = vpack.c.b16 %v10969, %v10961
    %v11450 = vpack.c.b16 %v10970, %v10962
    %v11451 = vpack.c.b16 %v10971, %v10963
    %v11452 = vpack.c.b16 %v10972, %v10964
    %v11453 = vpack.c.b16 %v10973, %v10965
    %v11454 = vpack.c.b16 %v10974, %v10966
    %v11455 = vpack.c.b16 %v10975, %v10967
    %v11456 = vpack.c.b16 %v10976, %v10968
    %v11457 = vpack.c.b16 %v10985, %v10977
    %v11458 = vpack.c.b16 %v10986, %v10978
    %v11459 = vpack.c.b16 %v10987, %v10979
    %v11460 = vpack.c.b16 %v10988, %v10980
    %v11461 = vpack.c.b16 %v10989, %v10981
    %v11462 = vpack.c.b16 %v10990, %v10982
    %v11463 = vpack.c.b16 %v10991, %v10983
    %v11464 = vpack.c.b16 %v10992, %v10984
    %v11465 = vpack.c.b16 %v11001, %v10993
    %v11466 = vpack.c.b16 %v11002, %v10994
    %v11467 = vpack.c.b16 %v11003, %v10995
    %v11468 = vpack.c.b16 %v11004, %v10996
    %v11469 = vpack.c.b16 %v11005, %v10997
    %v11470 = vpack.c.b16 %v11006, %v10998
    %v11471 = vpack.c.b16 %v11007, %v10999
    %v11472 = vpack.c.b16 %v11008, %v11000
    %v11473 = vpack.c.b16 %v11017, %v11009
    %v11474 = vpack.c.b16 %v11018, %v11010
    %v11475 = vpack.c.b16 %v11019, %v11011
    %v11476 = vpack.c.b16 %v11020, %v11012
    %v11477 = vpack.c.b16 %v11021, %v11013
    %v11478 = vpack.c.b16 %v11022, %v11014
    %v11479 = vpack.c.b16 %v11023, %v11015
    %v11480 = vpack.c.b16 %v11024, %v11016
    %v11481 = vpack.c.b16 %v11033, %v11025
    %v11482 = vpack.c.b16 %v11034, %v11026
    %v11483 = vpack.c.b16 %v11035, %v11027
    %v11484 = vpack.c.b16 %v11036, %v11028
    %v11485 = vpack.c.b16 %v11037, %v11029
    %v11486 = vpack.c.b16 %v11038, %v11030
    %v11487 = vpack.c.b16 %v11039, %v11031
    %v11488 = vpack.c.b16 %v11040, %v11032
    %v11489 = vpack.c.b16 %v11049, %v11041
    %v11490 = vpack.c.b16 %v11050, %v11042
    %v11491 = vpack.c.b16 %v11051, %v11043
    %v11492 = vpack.c.b16 %v11052, %v11044
    %v11493 = vpack.c.b16 %v11053, %v11045
    %v11494 = vpack.c.b16 %v11054, %v11046
    %v11495 = vpack.c.b16 %v11055, %v11047
    %v11496 = vpack.c.b16 %v11056, %v11048
    %v11497 = vpack.c.b16 %v11065, %v11057
    %v11498 = vpack.c.b16 %v11066, %v11058
    %v11499 = vpack.c.b16 %v11067, %v11059
    %v11500 = vpack.c.b16 %v11068, %v11060
    %v11501 = vpack.c.b16 %v11069, %v11061
    %v11502 = vpack.c.b16 %v11070, %v11062
    %v11503 = vpack.c.b16 %v11071, %v11063
    %v11504 = vpack.c.b16 %v11072, %v11064
    %v11505 = vpack.c.b16 %v11081, %v11073
    %v11506 = vpack.c.b16 %v11082, %v11074
    %v11507 = vpack.c.b16 %v11083, %v11075
    %v11508 = vpack.c.b16 %v11084, %v11076
    %v11509 = vpack.c.b16 %v11085, %v11077
    %v11510 = vpack.c.b16 %v11086, %v11078
    %v11511 = vpack.c.b16 %v11087, %v11079
    %v11512 = vpack.c.b16 %v11088, %v11080
    %v11513 = vpack.c.b16 %v11097, %v11089
    %v11514 = vpack.c.b16 %v11098, %v11090
    %v11515 = vpack.c.b16 %v11099, %v11091
    %v11516 = vpack.c.b16 %v11100, %v11092
    %v11517 = vpack.c.b16 %v11101, %v11093
    %v11518 = vpack.c.b16 %v11102, %v11094
    %v11519 = vpack.c.b16 %v11103, %v11095
    %v11520 = vpack.c.b16 %v11104, %v11096
    %v11521 = vpack.c.b16 %v11113, %v11105
    %v11522 = vpack.c.b16 %v11114, %v11106
    %v11523 = vpack.c.b16 %v11115, %v11107
    %v11524 = vpack.c.b16 %v11116, %v11108
    %v11525 = vpack.c.b16 %v11117, %v11109
    %v11526 = vpack.c.b16 %v11118, %v11110
    %v11527 = vpack.c.b16 %v11119, %v11111
    %v11528 = vpack.c.b16 %v11120, %v11112
    %v11529 = vpack.c.b16 %v11129, %v11121
    %v11530 = vpack.c.b16 %v11130, %v11122
    %v11531 = vpack.c.b16 %v11131, %v11123
    %v11532 = vpack.c.b16 %v11132, %v11124
    %v11533 = vpack.c.b16 %v11133, %v11125
    %v11534 = vpack.c.b16 %v11134, %v11126
    %v11535 = vpack.c.b16 %v11135, %v11127
    %v11536 = vpack.c.b16 %v11136, %v11128
    %v11537 = vpack.c.b16 %v11145, %v11137
    %v11538 = vpack.c.b16 %v11146, %v11138
    %v11539 = vpack.c.b16 %v11147, %v11139
    %v11540 = vpack.c.b16 %v11148, %v11140
    %v11541 = vpack.c.b16 %v11149, %v11141
    %v11542 = vpack.c.b16 %v11150, %v11142
    %v11543 = vpack.c.b16 %v11151, %v11143
    %v11544 = vpack.c.b16 %v11152, %v11144
    %v11545 = vpack.c.b16 %v11161, %v11153
    %v11546 = vpack.c.b16 %v11162, %v11154
    %v11547 = vpack.c.b16 %v11163, %v11155
    %v11548 = vpack.c.b16 %v11164, %v11156
    %v11549 = vpack.c.b16 %v11165, %v11157
    %v11550 = vpack.c.b16 %v11166, %v11158
    %v11551 = vpack.c.b16 %v11167, %v11159
    %v11552 = vpack.c.b16 %v11168, %v11160
    %11937 = vmatprep.subr.bf16.mxu0 %v11170
    %11938 = vmatpush1.bf16.msra.mxu0 %v11169
    %11939 = vmatprep.subr.bf16.mxu0 %v11178
    %11940 = vmatpush1.bf16.msra.mxu0 %v11177
    %11941 = vmatprep.subr.bf16.mxu0 %v11186
    %11942 = vmatpush1.bf16.msra.mxu0 %v11185
    %11943 = vmatprep.subr.bf16.mxu0 %v11194
    %11944 = vmatpush1.bf16.msra.mxu0 %v11193
    %11945 = vmatprep.subr.bf16.mxu0 %v11202
    %11946 = vmatpush1.bf16.msra.mxu0 %v11201
    %11947 = vmatprep.subr.bf16.mxu0 %v11210
    %11948 = vmatpush1.bf16.msra.mxu0 %v11209
    %11949 = vmatprep.subr.bf16.mxu0 %v11218
    %11950 = vmatpush1.bf16.msra.mxu0 %v11217
    %11951 = vmatprep.subr.bf16.mxu0 %v11226
    %11952 = vmatpush1.bf16.msra.mxu0 %v11225
    %11953 = vmatprep.subr.bf16.mxu0 %v11234
    %11954 = vmatpush1.bf16.msra.mxu0 %v11233
    %11955 = vmatprep.subr.bf16.mxu0 %v11242
    %11956 = vmatpush1.bf16.msra.mxu0 %v11241
    %11957 = vmatprep.subr.bf16.mxu0 %v11250
    %11958 = vmatpush1.bf16.msra.mxu0 %v11249
    %11959 = vmatprep.subr.bf16.mxu0 %v11258
    %11960 = vmatpush1.bf16.msra.mxu0 %v11257
    %11961 = vmatprep.subr.bf16.mxu0 %v11266
    %11962 = vmatpush1.bf16.msra.mxu0 %v11265
    %11963 = vmatprep.subr.bf16.mxu0 %v11274
    %11964 = vmatpush1.bf16.msra.mxu0 %v11273
    %11965 = vmatprep.subr.bf16.mxu0 %v11282
    %11966 = vmatpush1.bf16.msra.mxu0 %v11281
    %11967 = vmatprep.subr.bf16.mxu0 %v11290
    %11968 = vmatpush1.bf16.msra.mxu0 %v11289
    %11969 = vmatprep.mubr.bf16.mxu0 %v9544
    %11970 = vmatmul.mubr.bf16.gmra.mrb[0].mxu0 %v9543
    %v11971 = vpop.f32.mrb[0].mxu0
    %v11972 = vadd.f32 %v9980, %v11971
    %v11973 = vpop.f32.mrb[0].mxu0
    %v11974 = vadd.f32 %v9984, %v11973
    %v11975 = vpop.f32.mrb[0].mxu0
    %v11976 = vadd.f32 %v9980, %v11975
    %v11977 = vpop.f32.mrb[0].mxu0
    %v11978 = vadd.f32 %v9984, %v11977
    %11979 = vmatprep.mubr.bf16.mxu0 %v9550
    %11980 = vmatmul.mubr.bf16.gmra.mrb[0].mxu0 %v9549
    %v11981 = vpop.f32.mrb[0].mxu0
    %v11982 = vadd.f32 %v9980, %v11981
    %v11983 = vpop.f32.mrb[0].mxu0
    %v11984 = vadd.f32 %v9984, %v11983
    %v11985 = vpop.f32.mrb[0].mxu0
    %v11986 = vadd.f32 %v9980, %v11985
    %v11987 = vpop.f32.mrb[0].mxu0
    %v11988 = vadd.f32 %v9984, %v11987
    %11989 = vmatprep.mubr.bf16.mxu0 %v9556
    %11990 = vmatmul.mubr.bf16.gmra.mrb[0].mxu0 %v9555
    %v11991 = vpop.f32.mrb[0].mxu0
    %v11992 = vadd.f32 %v9980, %v11991
    %v11993 = vpop.f32.mrb[0].mxu0
    %v11994 = vadd.f32 %v9984, %v11993
    %v11995 = vpop.f32.mrb[0].mxu0
    %v11996 = vadd.f32 %v9980, %v11995
    %v11997 = vpop.f32.mrb[0].mxu0
    %v11998 = vadd.f32 %v9984, %v11997
    %11999 = vmatprep.mubr.bf16.mxu0 %v9562
    %12000 = vmatmul.mubr.bf16.gmra.mrb[0].mxu0 %v9561
    %v12001 = vpop.f32.mrb[0].mxu0
    %v12002 = vadd.f32 %v9980, %v12001
    %v12003 = vpop.f32.mrb[0].mxu0
    %v12004 = vadd.f32 %v9984, %v12003
    %v12005 = vpop.f32.mrb[0].mxu0
    %v12006 = vadd.f32 %v9980, %v12005
    %v12007 = vpop.f32.mrb[0].mxu0
    %v12008 = vadd.f32 %v9984, %v12007
    %12009 = vmatprep.mubr.bf16.mxu0 %v9568
    %12010 = vmatmul.mubr.bf16.gmra.mrb[0].mxu0 %v9567
    %v12011 = vpop.f32.mrb[0].mxu0
    %v12012 = vadd.f32 %v9980, %v12011
    %v12013 = vpop.f32.mrb[0].mxu0
    %v12014 = vadd.f32 %v9984, %v12013
    %v12015 = vpop.f32.mrb[0].mxu0
    %v12016 = vadd.f32 %v9980, %v12015
    %v12017 = vpop.f32.mrb[0].mxu0
    %v12018 = vadd.f32 %v9984, %v12017
    %12019 = vmatprep.mubr.bf16.mxu0 %v9574
    %12020 = vmatmul.mubr.bf16.gmra.mrb[0].mxu0 %v9573
    %v12021 = vpop.f32.mrb[0].mxu0
    %v12022 = vadd.f32 %v9980, %v12021
    %v12023 = vpop.f32.mrb[0].mxu0
    %v12024 = vadd.f32 %v9984, %v12023
    %v12025 = vpop.f32.mrb[0].mxu0
    %v12026 = vadd.f32 %v9980, %v12025
    %v12027 = vpop.f32.mrb[0].mxu0
    %v12028 = vadd.f32 %v9984, %v12027
    %12029 = vmatprep.mubr.bf16.mxu0 %v9580
    %12030 = vmatmul.mubr.bf16.gmra.mrb[0].mxu0 %v9579
    %v12031 = vpop.f32.mrb[0].mxu0
    %v12032 = vadd.f32 %v9980, %v12031
    %v12033 = vpop.f32.mrb[0].mxu0
    %v12034 = vadd.f32 %v9984, %v12033
    %v12035 = vpop.f32.mrb[0].mxu0
    %v12036 = vadd.f32 %v9980, %v12035
    %v12037 = vpop.f32.mrb[0].mxu0
    %v12038 = vadd.f32 %v9984, %v12037
    %12039 = vmatprep.mubr.bf16.mxu0 %v9586
    %12040 = vmatmul.mubr.bf16.gmra.mrb[0].mxu0 %v9585
    %v12041 = vpop.f32.mrb[0].mxu0
    %v12042 = vadd.f32 %v9980, %v12041
    %v12043 = vpop.f32.mrb[0].mxu0
    %v12044 = vadd.f32 %v9984, %v12043
    %v12045 = vpop.f32.mrb[0].mxu0
    %v12046 = vadd.f32 %v9980, %v12045
    %v12047 = vpop.f32.mrb[0].mxu0
    %v12048 = vadd.f32 %v9984, %v12047
    %12049 = vdwg.mxu0
    %12050 = vmatprep.subr.bf16.mxu0 %v11298
    %12051 = vmatpush1.bf16.msra.mxu0 %v11297
    %12052 = vmatprep.subr.bf16.mxu0 %v11306
    %12053 = vmatpush1.bf16.msra.mxu0 %v11305
    %12054 = vmatprep.subr.bf16.mxu0 %v11314
    %12055 = vmatpush1.bf16.msra.mxu0 %v11313
    %12056 = vmatprep.subr.bf16.mxu0 %v11322
    %12057 = vmatpush1.bf16.msra.mxu0 %v11321
    %12058 = vmatprep.subr.bf16.mxu0 %v11330
    %12059 = vmatpush1.bf16.msra.mxu0 %v11329
    %12060 = vmatprep.subr.bf16.mxu0 %v11338
    %12061 = vmatpush1.bf16.msra.mxu0 %v11337
    %12062 = vmatprep.subr.bf16.mxu0 %v11346
    %12063 = vmatpush1.bf16.msra.mxu0 %v11345
    %12064 = vmatprep.subr.bf16.mxu0 %v11354
    %12065 = vmatpush1.bf16.msra.mxu0 %v11353
    %12066 = vmatprep.subr.bf16.mxu0 %v11362
    %12067 = vmatpush1.bf16.msra.mxu0 %v11361
    %12068 = vmatprep.subr.bf16.mxu0 %v11370
    %12069 = vmatpush1.bf16.msra.mxu0 %v11369
    %12070 = vmatprep.subr.bf16.mxu0 %v11378
    %12071 = vmatpush1.bf16.msra.mxu0 %v11377
    %12072 = vmatprep.subr.bf16.mxu0 %v11386
    %12073 = vmatpush1.bf16.msra.mxu0 %v11385
    %12074 = vmatprep.subr.bf16.mxu0 %v11394
    %12075 = vmatpush1.bf16.msra.mxu0 %v11393
    %12076 = vmatprep.subr.bf16.mxu0 %v11402
    %12077 = vmatpush1.bf16.msra.mxu0 %v11401
    %12078 = vmatprep.subr.bf16.mxu0 %v11410
    %12079 = vmatpush1.bf16.msra.mxu0 %v11409
    %12080 = vmatprep.subr.bf16.mxu0 %v11418
    %12081 = vmatpush1.bf16.msra.mxu0 %v11417
    %12082 = vmatprep.mubr.bf16.mxu0 %v9546
    %12083 = vmatmul.mubr.bf16.gmra.mrb[0].mxu0 %v9545
    %v12084 = vpop.f32.mrb[0].mxu0
    %v12085 = vadd.f32 %v11972, %v12084
    %v12086 = vpop.f32.mrb[0].mxu0
    %v12087 = vadd.f32 %v11974, %v12086
    %v12088 = vpop.f32.mrb[0].mxu0
    %v12089 = vadd.f32 %v11976, %v12088
    %v12090 = vpop.f32.mrb[0].mxu0
    %v12091 = vadd.f32 %v11978, %v12090
    %12092 = vmatprep.mubr.bf16.mxu0 %v9552
    %12093 = vmatmul.mubr.bf16.gmra.mrb[0].mxu0 %v9551
    %v12094 = vpop.f32.mrb[0].mxu0
    %v12095 = vadd.f32 %v11982, %v12094
    %v12096 = vpop.f32.mrb[0].mxu0
    %v12097 = vadd.f32 %v11984, %v12096
    %v12098 = vpop.f32.mrb[0].mxu0
    %v12099 = vadd.f32 %v11986, %v12098
    %v12100 = vpop.f32.mrb[0].mxu0
    %v12101 = vadd.f32 %v11988, %v12100
    %12102 = vmatprep.mubr.bf16.mxu0 %v9558
    %12103 = vmatmul.mubr.bf16.gmra.mrb[0].mxu0 %v9557
    %v12104 = vpop.f32.mrb[0].mxu0
    %v12105 = vadd.f32 %v11992, %v12104
    %v12106 = vpop.f32.mrb[0].mxu0
    %v12107 = vadd.f32 %v11994, %v12106
    %v12108 = vpop.f32.mrb[0].mxu0
    %v12109 = vadd.f32 %v11996, %v12108
    %v12110 = vpop.f32.mrb[0].mxu0
    %v12111 = vadd.f32 %v11998, %v12110
    %12112 = vmatprep.mubr.bf16.mxu0 %v9564
    %12113 = vmatmul.mubr.bf16.gmra.mrb[0].mxu0 %v9563
    %v12114 = vpop.f32.mrb[0].mxu0
    %v12115 = vadd.f32 %v12002, %v12114
    %v12116 = vpop.f32.mrb[0].mxu0
    %v12117 = vadd.f32 %v12004, %v12116
    %v12118 = vpop.f32.mrb[0].mxu0
    %v12119 = vadd.f32 %v12006, %v12118
    %v12120 = vpop.f32.mrb[0].mxu0
    %v12121 = vadd.f32 %v12008, %v12120
    %12122 = vmatprep.mubr.bf16.mxu0 %v9570
    %12123 = vmatmul.mubr.bf16.gmra.mrb[0].mxu0 %v9569
    %v12124 = vpop.f32.mrb[0].mxu0
    %v12125 = vadd.f32 %v12012, %v12124
    %v12126 = vpop.f32.mrb[0].mxu0
    %v12127 = vadd.f32 %v12014, %v12126
    %v12128 = vpop.f32.mrb[0].mxu0
    %v12129 = vadd.f32 %v12016, %v12128
    %v12130 = vpop.f32.mrb[0].mxu0
    %v12131 = vadd.f32 %v12018, %v12130
    %12132 = vmatprep.mubr.bf16.mxu0 %v9576
    %12133 = vmatmul.mubr.bf16.gmra.mrb[0].mxu0 %v9575
    %v12134 = vpop.f32.mrb[0].mxu0
    %v12135 = vadd.f32 %v12022, %v12134
    %v12136 = vpop.f32.mrb[0].mxu0
    %v12137 = vadd.f32 %v12024, %v12136
    %v12138 = vpop.f32.mrb[0].mxu0
    %v12139 = vadd.f32 %v12026, %v12138
    %v12140 = vpop.f32.mrb[0].mxu0
    %v12141 = vadd.f32 %v12028, %v12140
    %12142 = vmatprep.mubr.bf16.mxu0 %v9582
    %12143 = vmatmul.mubr.bf16.gmra.mrb[0].mxu0 %v9581
    %v12144 = vpop.f32.mrb[0].mxu0
    %v12145 = vadd.f32 %v12032, %v12144
    %v12146 = vpop.f32.mrb[0].mxu0
    %v12147 = vadd.f32 %v12034, %v12146
    %v12148 = vpop.f32.mrb[0].mxu0
    %v12149 = vadd.f32 %v12036, %v12148
    %v12150 = vpop.f32.mrb[0].mxu0
    %v12151 = vadd.f32 %v12038, %v12150
    %12152 = vmatprep.mubr.bf16.mxu0 %v9588
    %12153 = vmatmul.mubr.bf16.gmra.mrb[0].mxu0 %v9587
    %v12154 = vpop.f32.mrb[0].mxu0
    %v12155 = vadd.f32 %v12042, %v12154
    %v12156 = vpop.f32.mrb[0].mxu0
    %v12157 = vadd.f32 %v12044, %v12156
    %v12158 = vpop.f32.mrb[0].mxu0
    %v12159 = vadd.f32 %v12046, %v12158
    %v12160 = vpop.f32.mrb[0].mxu0
    %v12161 = vadd.f32 %v12048, %v12160
    %12162 = vdwg.mxu0
    %12163 = vmatprep.subr.bf16.mxu0 %v11426
    %12164 = vmatpush1.bf16.msra.mxu0 %v11425
    %12165 = vmatprep.subr.bf16.mxu0 %v11434
    %12166 = vmatpush1.bf16.msra.mxu0 %v11433
    %12167 = vmatprep.subr.bf16.mxu0 %v11442
    %12168 = vmatpush1.bf16.msra.mxu0 %v11441
    %12169 = vmatprep.subr.bf16.mxu0 %v11450
    %12170 = vmatpush1.bf16.msra.mxu0 %v11449
    %12171 = vmatprep.subr.bf16.mxu0 %v11458
    %12172 = vmatpush1.bf16.msra.mxu0 %v11457
    %12173 = vmatprep.subr.bf16.mxu0 %v11466
    %12174 = vmatpush1.bf16.msra.mxu0 %v11465
    %12175 = vmatprep.subr.bf16.mxu0 %v11474
    %12176 = vmatpush1.bf16.msra.mxu0 %v11473
    %12177 = vmatprep.subr.bf16.mxu0 %v11482
    %12178 = vmatpush1.bf16.msra.mxu0 %v11481
    %12179 = vmatprep.subr.bf16.mxu0 %v11490
    %12180 = vmatpush1.bf16.msra.mxu0 %v11489
    %12181 = vmatprep.subr.bf16.mxu0 %v11498
    %12182 = vmatpush1.bf16.msra.mxu0 %v11497
    %12183 = vmatprep.subr.bf16.mxu0 %v11506
    %12184 = vmatpush1.bf16.msra.mxu0 %v11505
    %12185 = vmatprep.subr.bf16.mxu0 %v11514
    %12186 = vmatpush1.bf16.msra.mxu0 %v11513
    %12187 = vmatprep.subr.bf16.mxu0 %v11522
    %12188 = vmatpush1.bf16.msra.mxu0 %v11521
    %12189 = vmatprep.subr.bf16.mxu0 %v11530
    %12190 = vmatpush1.bf16.msra.mxu0 %v11529
    %12191 = vmatprep.subr.bf16.mxu0 %v11538
    %12192 = vmatpush1.bf16.msra.mxu0 %v11537
    %12193 = vmatprep.subr.bf16.mxu0 %v11546
    %12194 = vmatpush1.bf16.msra.mxu0 %v11545
    %12195 = vmatprep.mubr.bf16.mxu0 %v9548
    %12196 = vmatmul.mubr.bf16.gmra.mrb[0].mxu0 %v9547
    %v12197 = vpop.f32.mrb[0].mxu0
    %v12198 = vadd.f32 %v12085, %v12197
    %v12199 = vpop.f32.mrb[0].mxu0
    %v12200 = vadd.f32 %v12087, %v12199
    %v12201 = vpop.f32.mrb[0].mxu0
    %v12202 = vadd.f32 %v12089, %v12201
    %v12203 = vpop.f32.mrb[0].mxu0
    %v12204 = vadd.f32 %v12091, %v12203
    %12205 = vmatprep.mubr.bf16.mxu0 %v9554
    %12206 = vmatmul.mubr.bf16.gmra.mrb[0].mxu0 %v9553
    %v12207 = vpop.f32.mrb[0].mxu0
    %v12208 = vadd.f32 %v12095, %v12207
    %v12209 = vpop.f32.mrb[0].mxu0
    %v12210 = vadd.f32 %v12097, %v12209
    %v12211 = vpop.f32.mrb[0].mxu0
    %v12212 = vadd.f32 %v12099, %v12211
    %v12213 = vpop.f32.mrb[0].mxu0
    %v12214 = vadd.f32 %v12101, %v12213
    %12215 = vmatprep.mubr.bf16.mxu0 %v9560
    %12216 = vmatmul.mubr.bf16.gmra.mrb[0].mxu0 %v9559
    %v12217 = vpop.f32.mrb[0].mxu0
    %v12218 = vadd.f32 %v12105, %v12217
    %v12219 = vpop.f32.mrb[0].mxu0
    %v12220 = vadd.f32 %v12107, %v12219
    %v12221 = vpop.f32.mrb[0].mxu0
    %v12222 = vadd.f32 %v12109, %v12221
    %v12223 = vpop.f32.mrb[0].mxu0
    %v12224 = vadd.f32 %v12111, %v12223
    %12225 = vmatprep.mubr.bf16.mxu0 %v9566
    %12226 = vmatmul.mubr.bf16.gmra.mrb[0].mxu0 %v9565
    %v12227 = vpop.f32.mrb[0].mxu0
    %v12228 = vadd.f32 %v12115, %v12227
    %v12229 = vpop.f32.mrb[0].mxu0
    %v12230 = vadd.f32 %v12117, %v12229
    %v12231 = vpop.f32.mrb[0].mxu0
    %v12232 = vadd.f32 %v12119, %v12231
    %v12233 = vpop.f32.mrb[0].mxu0
    %v12234 = vadd.f32 %v12121, %v12233
    %12235 = vmatprep.mubr.bf16.mxu0 %v9572
    %12236 = vmatmul.mubr.bf16.gmra.mrb[0].mxu0 %v9571
    %v12237 = vpop.f32.mrb[0].mxu0
    %v12238 = vadd.f32 %v12125, %v12237
    %v12239 = vpop.f32.mrb[0].mxu0
    %v12240 = vadd.f32 %v12127, %v12239
    %v12241 = vpop.f32.mrb[0].mxu0
    %v12242 = vadd.f32 %v12129, %v12241
    %v12243 = vpop.f32.mrb[0].mxu0
    %v12244 = vadd.f32 %v12131, %v12243
    %12245 = vmatprep.mubr.bf16.mxu0 %v9578
    %12246 = vmatmul.mubr.bf16.gmra.mrb[0].mxu0 %v9577
    %v12247 = vpop.f32.mrb[0].mxu0
    %v12248 = vadd.f32 %v12135, %v12247
    %v12249 = vpop.f32.mrb[0].mxu0
    %v12250 = vadd.f32 %v12137, %v12249
    %v12251 = vpop.f32.mrb[0].mxu0
    %v12252 = vadd.f32 %v12139, %v12251
    %v12253 = vpop.f32.mrb[0].mxu0
    %v12254 = vadd.f32 %v12141, %v12253
    %12255 = vmatprep.mubr.bf16.mxu0 %v9584
    %12256 = vmatmul.mubr.bf16.gmra.mrb[0].mxu0 %v9583
    %v12257 = vpop.f32.mrb[0].mxu0
    %v12258 = vadd.f32 %v12145, %v12257
    %v12259 = vpop.f32.mrb[0].mxu0
    %v12260 = vadd.f32 %v12147, %v12259
    %v12261 = vpop.f32.mrb[0].mxu0
    %v12262 = vadd.f32 %v12149, %v12261
    %v12263 = vpop.f32.mrb[0].mxu0
    %v12264 = vadd.f32 %v12151, %v12263
    %12265 = vmatprep.mubr.bf16.mxu0 %v9590
    %12266 = vmatmul.mubr.bf16.gmra.mrb[0].mxu0 %v9589
    %v12267 = vpop.f32.mrb[0].mxu0
    %v12268 = vadd.f32 %v12155, %v12267
    %v12269 = vpop.f32.mrb[0].mxu0
    %v12270 = vadd.f32 %v12157, %v12269
    %v12271 = vpop.f32.mrb[0].mxu0
    %v12272 = vadd.f32 %v12159, %v12271
    %v12273 = vpop.f32.mrb[0].mxu0
    %v12274 = vadd.f32 %v12161, %v12273
    %12275 = vdwg.mxu0
    %12276 = vmatprep.subr.bf16.mxu0 %v11172
    %12277 = vmatpush1.bf16.msra.mxu0 %v11171
    %12278 = vmatprep.subr.bf16.mxu0 %v11180
    %12279 = vmatpush1.bf16.msra.mxu0 %v11179
    %12280 = vmatprep.subr.bf16.mxu0 %v11188
    %12281 = vmatpush1.bf16.msra.mxu0 %v11187
    %12282 = vmatprep.subr.bf16.mxu0 %v11196
    %12283 = vmatpush1.bf16.msra.mxu0 %v11195
    %12284 = vmatprep.subr.bf16.mxu0 %v11204
    %12285 = vmatpush1.bf16.msra.mxu0 %v11203
    %12286 = vmatprep.subr.bf16.mxu0 %v11212
    %12287 = vmatpush1.bf16.msra.mxu0 %v11211
    %12288 = vmatprep.subr.bf16.mxu0 %v11220
    %12289 = vmatpush1.bf16.msra.mxu0 %v11219
    %12290 = vmatprep.subr.bf16.mxu0 %v11228
    %12291 = vmatpush1.bf16.msra.mxu0 %v11227
    %12292 = vmatprep.subr.bf16.mxu0 %v11236
    %12293 = vmatpush1.bf16.msra.mxu0 %v11235
    %12294 = vmatprep.subr.bf16.mxu0 %v11244
    %12295 = vmatpush1.bf16.msra.mxu0 %v11243
    %12296 = vmatprep.subr.bf16.mxu0 %v11252
    %12297 = vmatpush1.bf16.msra.mxu0 %v11251
    %12298 = vmatprep.subr.bf16.mxu0 %v11260
    %12299 = vmatpush1.bf16.msra.mxu0 %v11259
    %12300 = vmatprep.subr.bf16.mxu0 %v11268
    %12301 = vmatpush1.bf16.msra.mxu0 %v11267
    %12302 = vmatprep.subr.bf16.mxu0 %v11276
    %12303 = vmatpush1.bf16.msra.mxu0 %v11275
    %12304 = vmatprep.subr.bf16.mxu0 %v11284
    %12305 = vmatpush1.bf16.msra.mxu0 %v11283
    %12306 = vmatprep.subr.bf16.mxu0 %v11292
    %12307 = vmatpush1.bf16.msra.mxu0 %v11291
    %12308 = vmatprep.mubr.bf16.mxu0 %v9544
    %12309 = vmatmul.mubr.bf16.gmra.mrb[0].mxu0 %v9543
    %v12310 = vpop.f32.mrb[0].mxu0
    %v12311 = vadd.f32 %v9988, %v12310
    %v12312 = vpop.f32.mrb[0].mxu0
    %v12313 = vadd.f32 %v9992, %v12312
    %v12314 = vpop.f32.mrb[0].mxu0
    %v12315 = vadd.f32 %v9988, %v12314
    %v12316 = vpop.f32.mrb[0].mxu0
    %v12317 = vadd.f32 %v9992, %v12316
    %12318 = vmatprep.mubr.bf16.mxu0 %v9550
    %12319 = vmatmul.mubr.bf16.gmra.mrb[0].mxu0 %v9549
    %v12320 = vpop.f32.mrb[0].mxu0
    %v12321 = vadd.f32 %v9988, %v12320
    %v12322 = vpop.f32.mrb[0].mxu0
    %v12323 = vadd.f32 %v9992, %v12322
    %v12324 = vpop.f32.mrb[0].mxu0
    %v12325 = vadd.f32 %v9988, %v12324
    %v12326 = vpop.f32.mrb[0].mxu0
    %v12327 = vadd.f32 %v9992, %v12326
    %12328 = vmatprep.mubr.bf16.mxu0 %v9556
    %12329 = vmatmul.mubr.bf16.gmra.mrb[0].mxu0 %v9555
    %v12330 = vpop.f32.mrb[0].mxu0
    %v12331 = vadd.f32 %v9988, %v12330
    %v12332 = vpop.f32.mrb[0].mxu0
    %v12333 = vadd.f32 %v9992, %v12332
    %v12334 = vpop.f32.mrb[0].mxu0
    %v12335 = vadd.f32 %v9988, %v12334
    %v12336 = vpop.f32.mrb[0].mxu0
    %v12337 = vadd.f32 %v9992, %v12336
    %12338 = vmatprep.mubr.bf16.mxu0 %v9562
    %12339 = vmatmul.mubr.bf16.gmra.mrb[0].mxu0 %v9561
    %v12340 = vpop.f32.mrb[0].mxu0
    %v12341 = vadd.f32 %v9988, %v12340
    %v12342 = vpop.f32.mrb[0].mxu0
    %v12343 = vadd.f32 %v9992, %v12342
    %v12344 = vpop.f32.mrb[0].mxu0
    %v12345 = vadd.f32 %v9988, %v12344
    %v12346 = vpop.f32.mrb[0].mxu0
    %v12347 = vadd.f32 %v9992, %v12346
    %12348 = vmatprep.mubr.bf16.mxu0 %v9568
    %12349 = vmatmul.mubr.bf16.gmra.mrb[0].mxu0 %v9567
    %v12350 = vpop.f32.mrb[0].mxu0
    %v12351 = vadd.f32 %v9988, %v12350
    %v12352 = vpop.f32.mrb[0].mxu0
    %v12353 = vadd.f32 %v9992, %v12352
    %v12354 = vpop.f32.mrb[0].mxu0
    %v12355 = vadd.f32 %v9988, %v12354
    %v12356 = vpop.f32.mrb[0].mxu0
    %v12357 = vadd.f32 %v9992, %v12356
    %12358 = vmatprep.mubr.bf16.mxu0 %v9574
    %12359 = vmatmul.mubr.bf16.gmra.mrb[0].mxu0 %v9573
    %v12360 = vpop.f32.mrb[0].mxu0
    %v12361 = vadd.f32 %v9988, %v12360
    %v12362 = vpop.f32.mrb[0].mxu0
    %v12363 = vadd.f32 %v9992, %v12362
    %v12364 = vpop.f32.mrb[0].mxu0
    %v12365 = vadd.f32 %v9988, %v12364
    %v12366 = vpop.f32.mrb[0].mxu0
    %v12367 = vadd.f32 %v9992, %v12366
    %12368 = vmatprep.mubr.bf16.mxu0 %v9580
    %12369 = vmatmul.mubr.bf16.gmra.mrb[0].mxu0 %v9579
    %v12370 = vpop.f32.mrb[0].mxu0
    %v12371 = vadd.f32 %v9988, %v12370
    %v12372 = vpop.f32.mrb[0].mxu0
    %v12373 = vadd.f32 %v9992, %v12372
    %v12374 = vpop.f32.mrb[0].mxu0
    %v12375 = vadd.f32 %v9988, %v12374
    %v12376 = vpop.f32.mrb[0].mxu0
    %v12377 = vadd.f32 %v9992, %v12376
    %12378 = vmatprep.mubr.bf16.mxu0 %v9586
    %12379 = vmatmul.mubr.bf16.gmra.mrb[0].mxu0 %v9585
    %v12380 = vpop.f32.mrb[0].mxu0
    %v12381 = vadd.f32 %v9988, %v12380
    %v12382 = vpop.f32.mrb[0].mxu0
    %v12383 = vadd.f32 %v9992, %v12382
    %v12384 = vpop.f32.mrb[0].mxu0
    %v12385 = vadd.f32 %v9988, %v12384
    %v12386 = vpop.f32.mrb[0].mxu0
    %v12387 = vadd.f32 %v9992, %v12386
    %12388 = vdwg.mxu0
    %12389 = vmatprep.subr.bf16.mxu0 %v11300
    %12390 = vmatpush1.bf16.msra.mxu0 %v11299
    %12391 = vmatprep.subr.bf16.mxu0 %v11308
    %12392 = vmatpush1.bf16.msra.mxu0 %v11307
    %12393 = vmatprep.subr.bf16.mxu0 %v11316
    %12394 = vmatpush1.bf16.msra.mxu0 %v11315
    %12395 = vmatprep.subr.bf16.mxu0 %v11324
    %12396 = vmatpush1.bf16.msra.mxu0 %v11323
    %12397 = vmatprep.subr.bf16.mxu0 %v11332
    %12398 = vmatpush1.bf16.msra.mxu0 %v11331
    %12399 = vmatprep.subr.bf16.mxu0 %v11340
    %12400 = vmatpush1.bf16.msra.mxu0 %v11339
    %12401 = vmatprep.subr.bf16.mxu0 %v11348
    %12402 = vmatpush1.bf16.msra.mxu0 %v11347
    %12403 = vmatprep.subr.bf16.mxu0 %v11356
    %12404 = vmatpush1.bf16.msra.mxu0 %v11355
    %12405 = vmatprep.subr.bf16.mxu0 %v11364
    %12406 = vmatpush1.bf16.msra.mxu0 %v11363
    %12407 = vmatprep.subr.bf16.mxu0 %v11372
    %12408 = vmatpush1.bf16.msra.mxu0 %v11371
    %12409 = vmatprep.subr.bf16.mxu0 %v11380
    %12410 = vmatpush1.bf16.msra.mxu0 %v11379
    %12411 = vmatprep.subr.bf16.mxu0 %v11388
    %12412 = vmatpush1.bf16.msra.mxu0 %v11387
    %12413 = vmatprep.subr.bf16.mxu0 %v11396
    %12414 = vmatpush1.bf16.msra.mxu0 %v11395
    %12415 = vmatprep.subr.bf16.mxu0 %v11404
    %12416 = vmatpush1.bf16.msra.mxu0 %v11403
    %12417 = vmatprep.subr.bf16.mxu0 %v11412
    %12418 = vmatpush1.bf16.msra.mxu0 %v11411
    %12419 = vmatprep.subr.bf16.mxu0 %v11420
    %12420 = vmatpush1.bf16.msra.mxu0 %v11419
    %12421 = vmatprep.mubr.bf16.mxu0 %v9546
    %12422 = vmatmul.mubr.bf16.gmra.mrb[0].mxu0 %v9545
    %v12423 = vpop.f32.mrb[0].mxu0
    %v12424 = vadd.f32 %v12311, %v12423
    %v12425 = vpop.f32.mrb[0].mxu0
    %v12426 = vadd.f32 %v12313, %v12425
    %v12427 = vpop.f32.mrb[0].mxu0
    %v12428 = vadd.f32 %v12315, %v12427
    %v12429 = vpop.f32.mrb[0].mxu0
    %v12430 = vadd.f32 %v12317, %v12429
    %12431 = vmatprep.mubr.bf16.mxu0 %v9552
    %12432 = vmatmul.mubr.bf16.gmra.mrb[0].mxu0 %v9551
    %v12433 = vpop.f32.mrb[0].mxu0
    %v12434 = vadd.f32 %v12321, %v12433
    %v12435 = vpop.f32.mrb[0].mxu0
    %v12436 = vadd.f32 %v12323, %v12435
    %v12437 = vpop.f32.mrb[0].mxu0
    %v12438 = vadd.f32 %v12325, %v12437
    %v12439 = vpop.f32.mrb[0].mxu0
    %v12440 = vadd.f32 %v12327, %v12439
    %12441 = vmatprep.mubr.bf16.mxu0 %v9558
    %12442 = vmatmul.mubr.bf16.gmra.mrb[0].mxu0 %v9557
    %v12443 = vpop.f32.mrb[0].mxu0
    %v12444 = vadd.f32 %v12331, %v12443
    %v12445 = vpop.f32.mrb[0].mxu0
    %v12446 = vadd.f32 %v12333, %v12445
    %v12447 = vpop.f32.mrb[0].mxu0
    %v12448 = vadd.f32 %v12335, %v12447
    %v12449 = vpop.f32.mrb[0].mxu0
    %v12450 = vadd.f32 %v12337, %v12449
    %12451 = vmatprep.mubr.bf16.mxu0 %v9564
    %12452 = vmatmul.mubr.bf16.gmra.mrb[0].mxu0 %v9563
    %v12453 = vpop.f32.mrb[0].mxu0
    %v12454 = vadd.f32 %v12341, %v12453
    %v12455 = vpop.f32.mrb[0].mxu0
    %v12456 = vadd.f32 %v12343, %v12455
    %v12457 = vpop.f32.mrb[0].mxu0
    %v12458 = vadd.f32 %v12345, %v12457
    %v12459 = vpop.f32.mrb[0].mxu0
    %v12460 = vadd.f32 %v12347, %v12459
    %12461 = vmatprep.mubr.bf16.mxu0 %v9570
    %12462 = vmatmul.mubr.bf16.gmra.mrb[0].mxu0 %v9569
    %v12463 = vpop.f32.mrb[0].mxu0
    %v12464 = vadd.f32 %v12351, %v12463
    %v12465 = vpop.f32.mrb[0].mxu0
    %v12466 = vadd.f32 %v12353, %v12465
    %v12467 = vpop.f32.mrb[0].mxu0
    %v12468 = vadd.f32 %v12355, %v12467
    %v12469 = vpop.f32.mrb[0].mxu0
    %v12470 = vadd.f32 %v12357, %v12469
    %12471 = vmatprep.mubr.bf16.mxu0 %v9576
    %12472 = vmatmul.mubr.bf16.gmra.mrb[0].mxu0 %v9575
    %v12473 = vpop.f32.mrb[0].mxu0
    %v12474 = vadd.f32 %v12361, %v12473
    %v12475 = vpop.f32.mrb[0].mxu0
    %v12476 = vadd.f32 %v12363, %v12475
    %v12477 = vpop.f32.mrb[0].mxu0
    %v12478 = vadd.f32 %v12365, %v12477
    %v12479 = vpop.f32.mrb[0].mxu0
    %v12480 = vadd.f32 %v12367, %v12479
    %12481 = vmatprep.mubr.bf16.mxu0 %v9582
    %12482 = vmatmul.mubr.bf16.gmra.mrb[0].mxu0 %v9581
    %v12483 = vpop.f32.mrb[0].mxu0
    %v12484 = vadd.f32 %v12371, %v12483
    %v12485 = vpop.f32.mrb[0].mxu0
    %v12486 = vadd.f32 %v12373, %v12485
    %v12487 = vpop.f32.mrb[0].mxu0
    %v12488 = vadd.f32 %v12375, %v12487
    %v12489 = vpop.f32.mrb[0].mxu0
    %v12490 = vadd.f32 %v12377, %v12489
    %12491 = vmatprep.mubr.bf16.mxu0 %v9588
    %12492 = vmatmul.mubr.bf16.gmra.mrb[0].mxu0 %v9587
    %v12493 = vpop.f32.mrb[0].mxu0
    %v12494 = vadd.f32 %v12381, %v12493
    %v12495 = vpop.f32.mrb[0].mxu0
    %v12496 = vadd.f32 %v12383, %v12495
    %v12497 = vpop.f32.mrb[0].mxu0
    %v12498 = vadd.f32 %v12385, %v12497
    %v12499 = vpop.f32.mrb[0].mxu0
    %v12500 = vadd.f32 %v12387, %v12499
    %12501 = vdwg.mxu0
    %12502 = vmatprep.subr.bf16.mxu0 %v11428
    %12503 = vmatpush1.bf16.msra.mxu0 %v11427
    %12504 = vmatprep.subr.bf16.mxu0 %v11436
    %12505 = vmatpush1.bf16.msra.mxu0 %v11435
    %12506 = vmatprep.subr.bf16.mxu0 %v11444
    %12507 = vmatpush1.bf16.msra.mxu0 %v11443
    %12508 = vmatprep.subr.bf16.mxu0 %v11452
    %12509 = vmatpush1.bf16.msra.mxu0 %v11451
    %12510 = vmatprep.subr.bf16.mxu0 %v11460
    %12511 = vmatpush1.bf16.msra.mxu0 %v11459
    %12512 = vmatprep.subr.bf16.mxu0 %v11468
    %12513 = vmatpush1.bf16.msra.mxu0 %v11467
    %12514 = vmatprep.subr.bf16.mxu0 %v11476
    %12515 = vmatpush1.bf16.msra.mxu0 %v11475
    %12516 = vmatprep.subr.bf16.mxu0 %v11484
    %12517 = vmatpush1.bf16.msra.mxu0 %v11483
    %12518 = vmatprep.subr.bf16.mxu0 %v11492
    %12519 = vmatpush1.bf16.msra.mxu0 %v11491
    %12520 = vmatprep.subr.bf16.mxu0 %v11500
    %12521 = vmatpush1.bf16.msra.mxu0 %v11499
    %12522 = vmatprep.subr.bf16.mxu0 %v11508
    %12523 = vmatpush1.bf16.msra.mxu0 %v11507
    %12524 = vmatprep.subr.bf16.mxu0 %v11516
    %12525 = vmatpush1.bf16.msra.mxu0 %v11515
    %12526 = vmatprep.subr.bf16.mxu0 %v11524
    %12527 = vmatpush1.bf16.msra.mxu0 %v11523
    %12528 = vmatprep.subr.bf16.mxu0 %v11532
    %12529 = vmatpush1.bf16.msra.mxu0 %v11531
    %12530 = vmatprep.subr.bf16.mxu0 %v11540
    %12531 = vmatpush1.bf16.msra.mxu0 %v11539
    %12532 = vmatprep.subr.bf16.mxu0 %v11548
    %12533 = vmatpush1.bf16.msra.mxu0 %v11547
    %12534 = vmatprep.mubr.bf16.mxu0 %v9548
    %12535 = vmatmul.mubr.bf16.gmra.mrb[0].mxu0 %v9547
    %v12536 = vpop.f32.mrb[0].mxu0
    %v12537 = vadd.f32 %v12424, %v12536
    %v12538 = vpop.f32.mrb[0].mxu0
    %v12539 = vadd.f32 %v12426, %v12538
    %v12540 = vpop.f32.mrb[0].mxu0
    %v12541 = vadd.f32 %v12428, %v12540
    %v12542 = vpop.f32.mrb[0].mxu0
    %v12543 = vadd.f32 %v12430, %v12542
    %12544 = vmatprep.mubr.bf16.mxu0 %v9554
    %12545 = vmatmul.mubr.bf16.gmra.mrb[0].mxu0 %v9553
    %v12546 = vpop.f32.mrb[0].mxu0
    %v12547 = vadd.f32 %v12434, %v12546
    %v12548 = vpop.f32.mrb[0].mxu0
    %v12549 = vadd.f32 %v12436, %v12548
    %v12550 = vpop.f32.mrb[0].mxu0
    %v12551 = vadd.f32 %v12438, %v12550
    %v12552 = vpop.f32.mrb[0].mxu0
    %v12553 = vadd.f32 %v12440, %v12552
    %12554 = vmatprep.mubr.bf16.mxu0 %v9560
    %12555 = vmatmul.mubr.bf16.gmra.mrb[0].mxu0 %v9559
    %v12556 = vpop.f32.mrb[0].mxu0
    %v12557 = vadd.f32 %v12444, %v12556
    %v12558 = vpop.f32.mrb[0].mxu0
    %v12559 = vadd.f32 %v12446, %v12558
    %v12560 = vpop.f32.mrb[0].mxu0
    %v12561 = vadd.f32 %v12448, %v12560
    %v12562 = vpop.f32.mrb[0].mxu0
    %v12563 = vadd.f32 %v12450, %v12562
    %12564 = vmatprep.mubr.bf16.mxu0 %v9566
    %12565 = vmatmul.mubr.bf16.gmra.mrb[0].mxu0 %v9565
    %v12566 = vpop.f32.mrb[0].mxu0
    %v12567 = vadd.f32 %v12454, %v12566
    %v12568 = vpop.f32.mrb[0].mxu0
    %v12569 = vadd.f32 %v12456, %v12568
    %v12570 = vpop.f32.mrb[0].mxu0
    %v12571 = vadd.f32 %v12458, %v12570
    %v12572 = vpop.f32.mrb[0].mxu0
    %v12573 = vadd.f32 %v12460, %v12572
    %12574 = vmatprep.mubr.bf16.mxu0 %v9572
    %12575 = vmatmul.mubr.bf16.gmra.mrb[0].mxu0 %v9571
    %v12576 = vpop.f32.mrb[0].mxu0
    %v12577 = vadd.f32 %v12464, %v12576
    %v12578 = vpop.f32.mrb[0].mxu0
    %v12579 = vadd.f32 %v12466, %v12578
    %v12580 = vpop.f32.mrb[0].mxu0
    %v12581 = vadd.f32 %v12468, %v12580
    %v12582 = vpop.f32.mrb[0].mxu0
    %v12583 = vadd.f32 %v12470, %v12582
    %12584 = vmatprep.mubr.bf16.mxu0 %v9578
    %12585 = vmatmul.mubr.bf16.gmra.mrb[0].mxu0 %v9577
    %v12586 = vpop.f32.mrb[0].mxu0
    %v12587 = vadd.f32 %v12474, %v12586
    %v12588 = vpop.f32.mrb[0].mxu0
    %v12589 = vadd.f32 %v12476, %v12588
    %v12590 = vpop.f32.mrb[0].mxu0
    %v12591 = vadd.f32 %v12478, %v12590
    %v12592 = vpop.f32.mrb[0].mxu0
    %v12593 = vadd.f32 %v12480, %v12592
    %12594 = vmatprep.mubr.bf16.mxu0 %v9584
    %12595 = vmatmul.mubr.bf16.gmra.mrb[0].mxu0 %v9583
    %v12596 = vpop.f32.mrb[0].mxu0
    %v12597 = vadd.f32 %v12484, %v12596
    %v12598 = vpop.f32.mrb[0].mxu0
    %v12599 = vadd.f32 %v12486, %v12598
    %v12600 = vpop.f32.mrb[0].mxu0
    %v12601 = vadd.f32 %v12488, %v12600
    %v12602 = vpop.f32.mrb[0].mxu0
    %v12603 = vadd.f32 %v12490, %v12602
    %12604 = vmatprep.mubr.bf16.mxu0 %v9590
    %12605 = vmatmul.mubr.bf16.gmra.mrb[0].mxu0 %v9589
    %v12606 = vpop.f32.mrb[0].mxu0
    %v12607 = vadd.f32 %v12494, %v12606
    %v12608 = vpop.f32.mrb[0].mxu0
    %v12609 = vadd.f32 %v12496, %v12608
    %v12610 = vpop.f32.mrb[0].mxu0
    %v12611 = vadd.f32 %v12498, %v12610
    %v12612 = vpop.f32.mrb[0].mxu0
    %v12613 = vadd.f32 %v12500, %v12612
    %12614 = vdwg.mxu0
    %12615 = vmatprep.subr.bf16.mxu0 %v11174
    %12616 = vmatpush1.bf16.msra.mxu0 %v11173
    %12617 = vmatprep.subr.bf16.mxu0 %v11182
    %12618 = vmatpush1.bf16.msra.mxu0 %v11181
    %12619 = vmatprep.subr.bf16.mxu0 %v11190
    %12620 = vmatpush1.bf16.msra.mxu0 %v11189
    %12621 = vmatprep.subr.bf16.mxu0 %v11198
    %12622 = vmatpush1.bf16.msra.mxu0 %v11197
    %12623 = vmatprep.subr.bf16.mxu0 %v11206
    %12624 = vmatpush1.bf16.msra.mxu0 %v11205
    %12625 = vmatprep.subr.bf16.mxu0 %v11214
    %12626 = vmatpush1.bf16.msra.mxu0 %v11213
    %12627 = vmatprep.subr.bf16.mxu0 %v11222
    %12628 = vmatpush1.bf16.msra.mxu0 %v11221
    %12629 = vmatprep.subr.bf16.mxu0 %v11230
    %12630 = vmatpush1.bf16.msra.mxu0 %v11229
    %12631 = vmatprep.subr.bf16.mxu0 %v11238
    %12632 = vmatpush1.bf16.msra.mxu0 %v11237
    %12633 = vmatprep.subr.bf16.mxu0 %v11246
    %12634 = vmatpush1.bf16.msra.mxu0 %v11245
    %12635 = vmatprep.subr.bf16.mxu0 %v11254
    %12636 = vmatpush1.bf16.msra.mxu0 %v11253
    %12637 = vmatprep.subr.bf16.mxu0 %v11262
    %12638 = vmatpush1.bf16.msra.mxu0 %v11261
    %12639 = vmatprep.subr.bf16.mxu0 %v11270
    %12640 = vmatpush1.bf16.msra.mxu0 %v11269
    %12641 = vmatprep.subr.bf16.mxu0 %v11278
    %12642 = vmatpush1.bf16.msra.mxu0 %v11277
    %12643 = vmatprep.subr.bf16.mxu0 %v11286
    %12644 = vmatpush1.bf16.msra.mxu0 %v11285
    %12645 = vmatprep.subr.bf16.mxu0 %v11294
    %12646 = vmatpush1.bf16.msra.mxu0 %v11293
    %12647 = vmatprep.mubr.bf16.mxu0 %v9544
    %12648 = vmatmul.mubr.bf16.gmra.mrb[0].mxu0 %v9543
    %v12649 = vpop.f32.mrb[0].mxu0
    %v12650 = vadd.f32 %v9996, %v12649
    %v12651 = vpop.f32.mrb[0].mxu0
    %v12652 = vadd.f32 %v10000, %v12651
    %v12653 = vpop.f32.mrb[0].mxu0
    %v12654 = vadd.f32 %v9996, %v12653
    %v12655 = vpop.f32.mrb[0].mxu0
    %v12656 = vadd.f32 %v10000, %v12655
    %12657 = vmatprep.mubr.bf16.mxu0 %v9550
    %12658 = vmatmul.mubr.bf16.gmra.mrb[0].mxu0 %v9549
    %v12659 = vpop.f32.mrb[0].mxu0
    %v12660 = vadd.f32 %v9996, %v12659
    %v12661 = vpop.f32.mrb[0].mxu0
    %v12662 = vadd.f32 %v10000, %v12661
    %v12663 = vpop.f32.mrb[0].mxu0
    %v12664 = vadd.f32 %v9996, %v12663
    %v12665 = vpop.f32.mrb[0].mxu0
    %v12666 = vadd.f32 %v10000, %v12665
    %12667 = vmatprep.mubr.bf16.mxu0 %v9556
    %12668 = vmatmul.mubr.bf16.gmra.mrb[0].mxu0 %v9555
    %v12669 = vpop.f32.mrb[0].mxu0
    %v12670 = vadd.f32 %v9996, %v12669
    %v12671 = vpop.f32.mrb[0].mxu0
    %v12672 = vadd.f32 %v10000, %v12671
    %v12673 = vpop.f32.mrb[0].mxu0
    %v12674 = vadd.f32 %v9996, %v12673
    %v12675 = vpop.f32.mrb[0].mxu0
    %v12676 = vadd.f32 %v10000, %v12675
    %12677 = vmatprep.mubr.bf16.mxu0 %v9562
    %12678 = vmatmul.mubr.bf16.gmra.mrb[0].mxu0 %v9561
    %v12679 = vpop.f32.mrb[0].mxu0
    %v12680 = vadd.f32 %v9996, %v12679
    %v12681 = vpop.f32.mrb[0].mxu0
    %v12682 = vadd.f32 %v10000, %v12681
    %v12683 = vpop.f32.mrb[0].mxu0
    %v12684 = vadd.f32 %v9996, %v12683
    %v12685 = vpop.f32.mrb[0].mxu0
    %v12686 = vadd.f32 %v10000, %v12685
    %12687 = vmatprep.mubr.bf16.mxu0 %v9568
    %12688 = vmatmul.mubr.bf16.gmra.mrb[0].mxu0 %v9567
    %v12689 = vpop.f32.mrb[0].mxu0
    %v12690 = vadd.f32 %v9996, %v12689
    %v12691 = vpop.f32.mrb[0].mxu0
    %v12692 = vadd.f32 %v10000, %v12691
    %v12693 = vpop.f32.mrb[0].mxu0
    %v12694 = vadd.f32 %v9996, %v12693
    %v12695 = vpop.f32.mrb[0].mxu0
    %v12696 = vadd.f32 %v10000, %v12695
    %12697 = vmatprep.mubr.bf16.mxu0 %v9574
    %12698 = vmatmul.mubr.bf16.gmra.mrb[0].mxu0 %v9573
    %v12699 = vpop.f32.mrb[0].mxu0
    %v12700 = vadd.f32 %v9996, %v12699
    %v12701 = vpop.f32.mrb[0].mxu0
    %v12702 = vadd.f32 %v10000, %v12701
    %v12703 = vpop.f32.mrb[0].mxu0
    %v12704 = vadd.f32 %v9996, %v12703
    %v12705 = vpop.f32.mrb[0].mxu0
    %v12706 = vadd.f32 %v10000, %v12705
    %12707 = vmatprep.mubr.bf16.mxu0 %v9580
    %12708 = vmatmul.mubr.bf16.gmra.mrb[0].mxu0 %v9579
    %v12709 = vpop.f32.mrb[0].mxu0
    %v12710 = vadd.f32 %v9996, %v12709
    %v12711 = vpop.f32.mrb[0].mxu0
    %v12712 = vadd.f32 %v10000, %v12711
    %v12713 = vpop.f32.mrb[0].mxu0
    %v12714 = vadd.f32 %v9996, %v12713
    %v12715 = vpop.f32.mrb[0].mxu0
    %v12716 = vadd.f32 %v10000, %v12715
    %12717 = vmatprep.mubr.bf16.mxu0 %v9586
    %12718 = vmatmul.mubr.bf16.gmra.mrb[0].mxu0 %v9585
    %v12719 = vpop.f32.mrb[0].mxu0
    %v12720 = vadd.f32 %v9996, %v12719
    %v12721 = vpop.f32.mrb[0].mxu0
    %v12722 = vadd.f32 %v10000, %v12721
    %v12723 = vpop.f32.mrb[0].mxu0
    %v12724 = vadd.f32 %v9996, %v12723
    %v12725 = vpop.f32.mrb[0].mxu0
    %v12726 = vadd.f32 %v10000, %v12725
    %12727 = vdwg.mxu0
    %12728 = vmatprep.subr.bf16.mxu0 %v11302
    %12729 = vmatpush1.bf16.msra.mxu0 %v11301
    %12730 = vmatprep.subr.bf16.mxu0 %v11310
    %12731 = vmatpush1.bf16.msra.mxu0 %v11309
    %12732 = vmatprep.subr.bf16.mxu0 %v11318
    %12733 = vmatpush1.bf16.msra.mxu0 %v11317
    %12734 = vmatprep.subr.bf16.mxu0 %v11326
    %12735 = vmatpush1.bf16.msra.mxu0 %v11325
    %12736 = vmatprep.subr.bf16.mxu0 %v11334
    %12737 = vmatpush1.bf16.msra.mxu0 %v11333
    %12738 = vmatprep.subr.bf16.mxu0 %v11342
    %12739 = vmatpush1.bf16.msra.mxu0 %v11341
    %12740 = vmatprep.subr.bf16.mxu0 %v11350
    %12741 = vmatpush1.bf16.msra.mxu0 %v11349
    %12742 = vmatprep.subr.bf16.mxu0 %v11358
    %12743 = vmatpush1.bf16.msra.mxu0 %v11357
    %12744 = vmatprep.subr.bf16.mxu0 %v11366
    %12745 = vmatpush1.bf16.msra.mxu0 %v11365
    %12746 = vmatprep.subr.bf16.mxu0 %v11374
    %12747 = vmatpush1.bf16.msra.mxu0 %v11373
    %12748 = vmatprep.subr.bf16.mxu0 %v11382
    %12749 = vmatpush1.bf16.msra.mxu0 %v11381
    %12750 = vmatprep.subr.bf16.mxu0 %v11390
    %12751 = vmatpush1.bf16.msra.mxu0 %v11389
    %12752 = vmatprep.subr.bf16.mxu0 %v11398
    %12753 = vmatpush1.bf16.msra.mxu0 %v11397
    %12754 = vmatprep.subr.bf16.mxu0 %v11406
    %12755 = vmatpush1.bf16.msra.mxu0 %v11405
    %12756 = vmatprep.subr.bf16.mxu0 %v11414
    %12757 = vmatpush1.bf16.msra.mxu0 %v11413
    %12758 = vmatprep.subr.bf16.mxu0 %v11422
    %12759 = vmatpush1.bf16.msra.mxu0 %v11421
    %12760 = vmatprep.mubr.bf16.mxu0 %v9546
    %12761 = vmatmul.mubr.bf16.gmra.mrb[0].mxu0 %v9545
    %v12762 = vpop.f32.mrb[0].mxu0
    %v12763 = vadd.f32 %v12650, %v12762
    %v12764 = vpop.f32.mrb[0].mxu0
    %v12765 = vadd.f32 %v12652, %v12764
    %v12766 = vpop.f32.mrb[0].mxu0
    %v12767 = vadd.f32 %v12654, %v12766
    %v12768 = vpop.f32.mrb[0].mxu0
    %v12769 = vadd.f32 %v12656, %v12768
    %12770 = vmatprep.mubr.bf16.mxu0 %v9552
    %12771 = vmatmul.mubr.bf16.gmra.mrb[0].mxu0 %v9551
    %v12772 = vpop.f32.mrb[0].mxu0
    %v12773 = vadd.f32 %v12660, %v12772
    %v12774 = vpop.f32.mrb[0].mxu0
    %v12775 = vadd.f32 %v12662, %v12774
    %v12776 = vpop.f32.mrb[0].mxu0
    %v12777 = vadd.f32 %v12664, %v12776
    %v12778 = vpop.f32.mrb[0].mxu0
    %v12779 = vadd.f32 %v12666, %v12778
    %12780 = vmatprep.mubr.bf16.mxu0 %v9558
    %12781 = vmatmul.mubr.bf16.gmra.mrb[0].mxu0 %v9557
    %v12782 = vpop.f32.mrb[0].mxu0
    %v12783 = vadd.f32 %v12670, %v12782
    %v12784 = vpop.f32.mrb[0].mxu0
    %v12785 = vadd.f32 %v12672, %v12784
    %v12786 = vpop.f32.mrb[0].mxu0
    %v12787 = vadd.f32 %v12674, %v12786
    %v12788 = vpop.f32.mrb[0].mxu0
    %v12789 = vadd.f32 %v12676, %v12788
    %12790 = vmatprep.mubr.bf16.mxu0 %v9564
    %12791 = vmatmul.mubr.bf16.gmra.mrb[0].mxu0 %v9563
    %v12792 = vpop.f32.mrb[0].mxu0
    %v12793 = vadd.f32 %v12680, %v12792
    %v12794 = vpop.f32.mrb[0].mxu0
    %v12795 = vadd.f32 %v12682, %v12794
    %v12796 = vpop.f32.mrb[0].mxu0
    %v12797 = vadd.f32 %v12684, %v12796
    %v12798 = vpop.f32.mrb[0].mxu0
    %v12799 = vadd.f32 %v12686, %v12798
    %12800 = vmatprep.mubr.bf16.mxu0 %v9570
    %12801 = vmatmul.mubr.bf16.gmra.mrb[0].mxu0 %v9569
    %v12802 = vpop.f32.mrb[0].mxu0
    %v12803 = vadd.f32 %v12690, %v12802
    %v12804 = vpop.f32.mrb[0].mxu0
    %v12805 = vadd.f32 %v12692, %v12804
    %v12806 = vpop.f32.mrb[0].mxu0
    %v12807 = vadd.f32 %v12694, %v12806
    %v12808 = vpop.f32.mrb[0].mxu0
    %v12809 = vadd.f32 %v12696, %v12808
    %12810 = vmatprep.mubr.bf16.mxu0 %v9576
    %12811 = vmatmul.mubr.bf16.gmra.mrb[0].mxu0 %v9575
    %v12812 = vpop.f32.mrb[0].mxu0
    %v12813 = vadd.f32 %v12700, %v12812
    %v12814 = vpop.f32.mrb[0].mxu0
    %v12815 = vadd.f32 %v12702, %v12814
    %v12816 = vpop.f32.mrb[0].mxu0
    %v12817 = vadd.f32 %v12704, %v12816
    %v12818 = vpop.f32.mrb[0].mxu0
    %v12819 = vadd.f32 %v12706, %v12818
    %12820 = vmatprep.mubr.bf16.mxu0 %v9582
    %12821 = vmatmul.mubr.bf16.gmra.mrb[0].mxu0 %v9581
    %v12822 = vpop.f32.mrb[0].mxu0
    %v12823 = vadd.f32 %v12710, %v12822
    %v12824 = vpop.f32.mrb[0].mxu0
    %v12825 = vadd.f32 %v12712, %v12824
    %v12826 = vpop.f32.mrb[0].mxu0
    %v12827 = vadd.f32 %v12714, %v12826
    %v12828 = vpop.f32.mrb[0].mxu0
    %v12829 = vadd.f32 %v12716, %v12828
    %12830 = vmatprep.mubr.bf16.mxu0 %v9588
    %12831 = vmatmul.mubr.bf16.gmra.mrb[0].mxu0 %v9587
    %v12832 = vpop.f32.mrb[0].mxu0
    %v12833 = vadd.f32 %v12720, %v12832
    %v12834 = vpop.f32.mrb[0].mxu0
    %v12835 = vadd.f32 %v12722, %v12834
    %v12836 = vpop.f32.mrb[0].mxu0
    %v12837 = vadd.f32 %v12724, %v12836
    %v12838 = vpop.f32.mrb[0].mxu0
    %v12839 = vadd.f32 %v12726, %v12838
    %12840 = vdwg.mxu0
    %12841 = vmatprep.subr.bf16.mxu0 %v11430
    %12842 = vmatpush1.bf16.msra.mxu0 %v11429
    %12843 = vmatprep.subr.bf16.mxu0 %v11438
    %12844 = vmatpush1.bf16.msra.mxu0 %v11437
    %12845 = vmatprep.subr.bf16.mxu0 %v11446
    %12846 = vmatpush1.bf16.msra.mxu0 %v11445
    %12847 = vmatprep.subr.bf16.mxu0 %v11454
    %12848 = vmatpush1.bf16.msra.mxu0 %v11453
    %12849 = vmatprep.subr.bf16.mxu0 %v11462
    %12850 = vmatpush1.bf16.msra.mxu0 %v11461
    %12851 = vmatprep.subr.bf16.mxu0 %v11470
    %12852 = vmatpush1.bf16.msra.mxu0 %v11469
    %12853 = vmatprep.subr.bf16.mxu0 %v11478
    %12854 = vmatpush1.bf16.msra.mxu0 %v11477
    %12855 = vmatprep.subr.bf16.mxu0 %v11486
    %12856 = vmatpush1.bf16.msra.mxu0 %v11485
    %12857 = vmatprep.subr.bf16.mxu0 %v11494
    %12858 = vmatpush1.bf16.msra.mxu0 %v11493
    %12859 = vmatprep.subr.bf16.mxu0 %v11502
    %12860 = vmatpush1.bf16.msra.mxu0 %v11501
    %12861 = vmatprep.subr.bf16.mxu0 %v11510
    %12862 = vmatpush1.bf16.msra.mxu0 %v11509
    %12863 = vmatprep.subr.bf16.mxu0 %v11518
    %12864 = vmatpush1.bf16.msra.mxu0 %v11517
    %12865 = vmatprep.subr.bf16.mxu0 %v11526
    %12866 = vmatpush1.bf16.msra.mxu0 %v11525
    %12867 = vmatprep.subr.bf16.mxu0 %v11534
    %12868 = vmatpush1.bf16.msra.mxu0 %v11533
    %12869 = vmatprep.subr.bf16.mxu0 %v11542
    %12870 = vmatpush1.bf16.msra.mxu0 %v11541
    %12871 = vmatprep.subr.bf16.mxu0 %v11550
    %12872 = vmatpush1.bf16.msra.mxu0 %v11549
    %12873 = vmatprep.mubr.bf16.mxu0 %v9548
    %12874 = vmatmul.mubr.bf16.gmra.mrb[0].mxu0 %v9547
    %v12875 = vpop.f32.mrb[0].mxu0
    %v12876 = vadd.f32 %v12763, %v12875
    %v12877 = vpop.f32.mrb[0].mxu0
    %v12878 = vadd.f32 %v12765, %v12877
    %v12879 = vpop.f32.mrb[0].mxu0
    %v12880 = vadd.f32 %v12767, %v12879
    %v12881 = vpop.f32.mrb[0].mxu0
    %v12882 = vadd.f32 %v12769, %v12881
    %12883 = vmatprep.mubr.bf16.mxu0 %v9554
    %12884 = vmatmul.mubr.bf16.gmra.mrb[0].mxu0 %v9553
    %v12885 = vpop.f32.mrb[0].mxu0
    %v12886 = vadd.f32 %v12773, %v12885
    %v12887 = vpop.f32.mrb[0].mxu0
    %v12888 = vadd.f32 %v12775, %v12887
    %v12889 = vpop.f32.mrb[0].mxu0
    %v12890 = vadd.f32 %v12777, %v12889
    %v12891 = vpop.f32.mrb[0].mxu0
    %v12892 = vadd.f32 %v12779, %v12891
    %12893 = vmatprep.mubr.bf16.mxu0 %v9560
    %12894 = vmatmul.mubr.bf16.gmra.mrb[0].mxu0 %v9559
    %v12895 = vpop.f32.mrb[0].mxu0
    %v12896 = vadd.f32 %v12783, %v12895
    %v12897 = vpop.f32.mrb[0].mxu0
    %v12898 = vadd.f32 %v12785, %v12897
    %v12899 = vpop.f32.mrb[0].mxu0
    %v12900 = vadd.f32 %v12787, %v12899
    %v12901 = vpop.f32.mrb[0].mxu0
    %v12902 = vadd.f32 %v12789, %v12901
    %12903 = vmatprep.mubr.bf16.mxu0 %v9566
    %12904 = vmatmul.mubr.bf16.gmra.mrb[0].mxu0 %v9565
    %v12905 = vpop.f32.mrb[0].mxu0
    %v12906 = vadd.f32 %v12793, %v12905
    %v12907 = vpop.f32.mrb[0].mxu0
    %v12908 = vadd.f32 %v12795, %v12907
    %v12909 = vpop.f32.mrb[0].mxu0
    %v12910 = vadd.f32 %v12797, %v12909
    %v12911 = vpop.f32.mrb[0].mxu0
    %v12912 = vadd.f32 %v12799, %v12911
    %12913 = vmatprep.mubr.bf16.mxu0 %v9572
    %12914 = vmatmul.mubr.bf16.gmra.mrb[0].mxu0 %v9571
    %v12915 = vpop.f32.mrb[0].mxu0
    %v12916 = vadd.f32 %v12803, %v12915
    %v12917 = vpop.f32.mrb[0].mxu0
    %v12918 = vadd.f32 %v12805, %v12917
    %v12919 = vpop.f32.mrb[0].mxu0
    %v12920 = vadd.f32 %v12807, %v12919
    %v12921 = vpop.f32.mrb[0].mxu0
    %v12922 = vadd.f32 %v12809, %v12921
    %12923 = vmatprep.mubr.bf16.mxu0 %v9578
    %12924 = vmatmul.mubr.bf16.gmra.mrb[0].mxu0 %v9577
    %v12925 = vpop.f32.mrb[0].mxu0
    %v12926 = vadd.f32 %v12813, %v12925
    %v12927 = vpop.f32.mrb[0].mxu0
    %v12928 = vadd.f32 %v12815, %v12927
    %v12929 = vpop.f32.mrb[0].mxu0
    %v12930 = vadd.f32 %v12817, %v12929
    %v12931 = vpop.f32.mrb[0].mxu0
    %v12932 = vadd.f32 %v12819, %v12931
    %12933 = vmatprep.mubr.bf16.mxu0 %v9584
    %12934 = vmatmul.mubr.bf16.gmra.mrb[0].mxu0 %v9583
    %v12935 = vpop.f32.mrb[0].mxu0
    %v12936 = vadd.f32 %v12823, %v12935
    %v12937 = vpop.f32.mrb[0].mxu0
    %v12938 = vadd.f32 %v12825, %v12937
    %v12939 = vpop.f32.mrb[0].mxu0
    %v12940 = vadd.f32 %v12827, %v12939
    %v12941 = vpop.f32.mrb[0].mxu0
    %v12942 = vadd.f32 %v12829, %v12941
    %12943 = vmatprep.mubr.bf16.mxu0 %v9590
    %12944 = vmatmul.mubr.bf16.gmra.mrb[0].mxu0 %v9589
    %v12945 = vpop.f32.mrb[0].mxu0
    %v12946 = vadd.f32 %v12833, %v12945
    %v12947 = vpop.f32.mrb[0].mxu0
    %v12948 = vadd.f32 %v12835, %v12947
    %v12949 = vpop.f32.mrb[0].mxu0
    %v12950 = vadd.f32 %v12837, %v12949
    %v12951 = vpop.f32.mrb[0].mxu0
    %v12952 = vadd.f32 %v12839, %v12951
    %12953 = vdwg.mxu0
    %12954 = vmatprep.subr.bf16.mxu0 %v11176
    %12955 = vmatpush1.bf16.msra.mxu0 %v11175
    %12956 = vmatprep.subr.bf16.mxu0 %v11184
    %12957 = vmatpush1.bf16.msra.mxu0 %v11183
    %12958 = vmatprep.subr.bf16.mxu0 %v11192
    %12959 = vmatpush1.bf16.msra.mxu0 %v11191
    %12960 = vmatprep.subr.bf16.mxu0 %v11200
    %12961 = vmatpush1.bf16.msra.mxu0 %v11199
    %12962 = vmatprep.subr.bf16.mxu0 %v11208
    %12963 = vmatpush1.bf16.msra.mxu0 %v11207
    %12964 = vmatprep.subr.bf16.mxu0 %v11216
    %12965 = vmatpush1.bf16.msra.mxu0 %v11215
    %12966 = vmatprep.subr.bf16.mxu0 %v11224
    %12967 = vmatpush1.bf16.msra.mxu0 %v11223
    %12968 = vmatprep.subr.bf16.mxu0 %v11232
    %12969 = vmatpush1.bf16.msra.mxu0 %v11231
    %12970 = vmatprep.subr.bf16.mxu0 %v11240
    %12971 = vmatpush1.bf16.msra.mxu0 %v11239
    %12972 = vmatprep.subr.bf16.mxu0 %v11248
    %12973 = vmatpush1.bf16.msra.mxu0 %v11247
    %12974 = vmatprep.subr.bf16.mxu0 %v11256
    %12975 = vmatpush1.bf16.msra.mxu0 %v11255
    %12976 = vmatprep.subr.bf16.mxu0 %v11264
    %12977 = vmatpush1.bf16.msra.mxu0 %v11263
    %12978 = vmatprep.subr.bf16.mxu0 %v11272
    %12979 = vmatpush1.bf16.msra.mxu0 %v11271
    %12980 = vmatprep.subr.bf16.mxu0 %v11280
    %12981 = vmatpush1.bf16.msra.mxu0 %v11279
    %12982 = vmatprep.subr.bf16.mxu0 %v11288
    %12983 = vmatpush1.bf16.msra.mxu0 %v11287
    %12984 = vmatprep.subr.bf16.mxu0 %v11296
    %12985 = vmatpush1.bf16.msra.mxu0 %v11295
    %12986 = vmatprep.mubr.bf16.mxu0 %v9544
    %12987 = vmatmul.mubr.bf16.gmra.mrb[0].mxu0 %v9543
    %v12988 = vpop.f32.mrb[0].mxu0
    %v12989 = vadd.f32 %v10004, %v12988
    %v12990 = vpop.f32.mrb[0].mxu0
    %v12991 = vadd.f32 %v10008, %v12990
    %v12992 = vpop.f32.mrb[0].mxu0
    %v12993 = vadd.f32 %v10004, %v12992
    %v12994 = vpop.f32.mrb[0].mxu0
    %v12995 = vadd.f32 %v10008, %v12994
    %12996 = vmatprep.mubr.bf16.mxu0 %v9550
    %12997 = vmatmul.mubr.bf16.gmra.mrb[0].mxu0 %v9549
    %v12998 = vpop.f32.mrb[0].mxu0
    %v12999 = vadd.f32 %v10004, %v12998
    %v13000 = vpop.f32.mrb[0].mxu0
    %v13001 = vadd.f32 %v10008, %v13000
    %v13002 = vpop.f32.mrb[0].mxu0
    %v13003 = vadd.f32 %v10004, %v13002
    %v13004 = vpop.f32.mrb[0].mxu0
    %v13005 = vadd.f32 %v10008, %v13004
    %13006 = vmatprep.mubr.bf16.mxu0 %v9556
    %13007 = vmatmul.mubr.bf16.gmra.mrb[0].mxu0 %v9555
    %v13008 = vpop.f32.mrb[0].mxu0
    %v13009 = vadd.f32 %v10004, %v13008
    %v13010 = vpop.f32.mrb[0].mxu0
    %v13011 = vadd.f32 %v10008, %v13010
    %v13012 = vpop.f32.mrb[0].mxu0
    %v13013 = vadd.f32 %v10004, %v13012
    %v13014 = vpop.f32.mrb[0].mxu0
    %v13015 = vadd.f32 %v10008, %v13014
    %13016 = vmatprep.mubr.bf16.mxu0 %v9562
    %13017 = vmatmul.mubr.bf16.gmra.mrb[0].mxu0 %v9561
    %v13018 = vpop.f32.mrb[0].mxu0
    %v13019 = vadd.f32 %v10004, %v13018
    %v13020 = vpop.f32.mrb[0].mxu0
    %v13021 = vadd.f32 %v10008, %v13020
    %v13022 = vpop.f32.mrb[0].mxu0
    %v13023 = vadd.f32 %v10004, %v13022
    %v13024 = vpop.f32.mrb[0].mxu0
    %v13025 = vadd.f32 %v10008, %v13024
    %13026 = vmatprep.mubr.bf16.mxu0 %v9568
    %13027 = vmatmul.mubr.bf16.gmra.mrb[0].mxu0 %v9567
    %v13028 = vpop.f32.mrb[0].mxu0
    %v13029 = vadd.f32 %v10004, %v13028
    %v13030 = vpop.f32.mrb[0].mxu0
    %v13031 = vadd.f32 %v10008, %v13030
    %v13032 = vpop.f32.mrb[0].mxu0
    %v13033 = vadd.f32 %v10004, %v13032
    %v13034 = vpop.f32.mrb[0].mxu0
    %v13035 = vadd.f32 %v10008, %v13034
    %13036 = vmatprep.mubr.bf16.mxu0 %v9574
    %13037 = vmatmul.mubr.bf16.gmra.mrb[0].mxu0 %v9573
    %v13038 = vpop.f32.mrb[0].mxu0
    %v13039 = vadd.f32 %v10004, %v13038
    %v13040 = vpop.f32.mrb[0].mxu0
    %v13041 = vadd.f32 %v10008, %v13040
    %v13042 = vpop.f32.mrb[0].mxu0
    %v13043 = vadd.f32 %v10004, %v13042
    %v13044 = vpop.f32.mrb[0].mxu0
    %v13045 = vadd.f32 %v10008, %v13044
    %13046 = vmatprep.mubr.bf16.mxu0 %v9580
    %13047 = vmatmul.mubr.bf16.gmra.mrb[0].mxu0 %v9579
    %v13048 = vpop.f32.mrb[0].mxu0
    %v13049 = vadd.f32 %v10004, %v13048
    %v13050 = vpop.f32.mrb[0].mxu0
    %v13051 = vadd.f32 %v10008, %v13050
    %v13052 = vpop.f32.mrb[0].mxu0
    %v13053 = vadd.f32 %v10004, %v13052
    %v13054 = vpop.f32.mrb[0].mxu0
    %v13055 = vadd.f32 %v10008, %v13054
    %13056 = vmatprep.mubr.bf16.mxu0 %v9586
    %13057 = vmatmul.mubr.bf16.gmra.mrb[0].mxu0 %v9585
    %v13058 = vpop.f32.mrb[0].mxu0
    %v13059 = vadd.f32 %v10004, %v13058
    %v13060 = vpop.f32.mrb[0].mxu0
    %v13061 = vadd.f32 %v10008, %v13060
    %v13062 = vpop.f32.mrb[0].mxu0
    %v13063 = vadd.f32 %v10004, %v13062
    %v13064 = vpop.f32.mrb[0].mxu0
    %v13065 = vadd.f32 %v10008, %v13064
    %13066 = vdwg.mxu0
    %13067 = vmatprep.subr.bf16.mxu0 %v11304
    %13068 = vmatpush1.bf16.msra.mxu0 %v11303
    %13069 = vmatprep.subr.bf16.mxu0 %v11312
    %13070 = vmatpush1.bf16.msra.mxu0 %v11311
    %13071 = vmatprep.subr.bf16.mxu0 %v11320
    %13072 = vmatpush1.bf16.msra.mxu0 %v11319
    %13073 = vmatprep.subr.bf16.mxu0 %v11328
    %13074 = vmatpush1.bf16.msra.mxu0 %v11327
    %13075 = vmatprep.subr.bf16.mxu0 %v11336
    %13076 = vmatpush1.bf16.msra.mxu0 %v11335
    %13077 = vmatprep.subr.bf16.mxu0 %v11344
    %13078 = vmatpush1.bf16.msra.mxu0 %v11343
    %13079 = vmatprep.subr.bf16.mxu0 %v11352
    %13080 = vmatpush1.bf16.msra.mxu0 %v11351
    %13081 = vmatprep.subr.bf16.mxu0 %v11360
    %13082 = vmatpush1.bf16.msra.mxu0 %v11359
    %13083 = vmatprep.subr.bf16.mxu0 %v11368
    %13084 = vmatpush1.bf16.msra.mxu0 %v11367
    %13085 = vmatprep.subr.bf16.mxu0 %v11376
    %13086 = vmatpush1.bf16.msra.mxu0 %v11375
    %13087 = vmatprep.subr.bf16.mxu0 %v11384
    %13088 = vmatpush1.bf16.msra.mxu0 %v11383
    %13089 = vmatprep.subr.bf16.mxu0 %v11392
    %13090 = vmatpush1.bf16.msra.mxu0 %v11391
    %13091 = vmatprep.subr.bf16.mxu0 %v11400
    %13092 = vmatpush1.bf16.msra.mxu0 %v11399
    %13093 = vmatprep.subr.bf16.mxu0 %v11408
    %13094 = vmatpush1.bf16.msra.mxu0 %v11407
    %13095 = vmatprep.subr.bf16.mxu0 %v11416
    %13096 = vmatpush1.bf16.msra.mxu0 %v11415
    %13097 = vmatprep.subr.bf16.mxu0 %v11424
    %13098 = vmatpush1.bf16.msra.mxu0 %v11423
    %13099 = vmatprep.mubr.bf16.mxu0 %v9546
    %13100 = vmatmul.mubr.bf16.gmra.mrb[0].mxu0 %v9545
    %v13101 = vpop.f32.mrb[0].mxu0
    %v13102 = vadd.f32 %v12989, %v13101
    %v13103 = vpop.f32.mrb[0].mxu0
    %v13104 = vadd.f32 %v12991, %v13103
    %v13105 = vpop.f32.mrb[0].mxu0
    %v13106 = vadd.f32 %v12993, %v13105
    %v13107 = vpop.f32.mrb[0].mxu0
    %v13108 = vadd.f32 %v12995, %v13107
    %13109 = vmatprep.mubr.bf16.mxu0 %v9552
    %13110 = vmatmul.mubr.bf16.gmra.mrb[0].mxu0 %v9551
    %v13111 = vpop.f32.mrb[0].mxu0
    %v13112 = vadd.f32 %v12999, %v13111
    %v13113 = vpop.f32.mrb[0].mxu0
    %v13114 = vadd.f32 %v13001, %v13113
    %v13115 = vpop.f32.mrb[0].mxu0
    %v13116 = vadd.f32 %v13003, %v13115
    %v13117 = vpop.f32.mrb[0].mxu0
    %v13118 = vadd.f32 %v13005, %v13117
    %13119 = vmatprep.mubr.bf16.mxu0 %v9558
    %13120 = vmatmul.mubr.bf16.gmra.mrb[0].mxu0 %v9557
    %v13121 = vpop.f32.mrb[0].mxu0
    %v13122 = vadd.f32 %v13009, %v13121
    %v13123 = vpop.f32.mrb[0].mxu0
    %v13124 = vadd.f32 %v13011, %v13123
    %v13125 = vpop.f32.mrb[0].mxu0
    %v13126 = vadd.f32 %v13013, %v13125
    %v13127 = vpop.f32.mrb[0].mxu0
    %v13128 = vadd.f32 %v13015, %v13127
    %13129 = vmatprep.mubr.bf16.mxu0 %v9564
    %13130 = vmatmul.mubr.bf16.gmra.mrb[0].mxu0 %v9563
    %v13131 = vpop.f32.mrb[0].mxu0
    %v13132 = vadd.f32 %v13019, %v13131
    %v13133 = vpop.f32.mrb[0].mxu0
    %v13134 = vadd.f32 %v13021, %v13133
    %v13135 = vpop.f32.mrb[0].mxu0
    %v13136 = vadd.f32 %v13023, %v13135
    %v13137 = vpop.f32.mrb[0].mxu0
    %v13138 = vadd.f32 %v13025, %v13137
    %13139 = vmatprep.mubr.bf16.mxu0 %v9570
    %13140 = vmatmul.mubr.bf16.gmra.mrb[0].mxu0 %v9569
    %v13141 = vpop.f32.mrb[0].mxu0
    %v13142 = vadd.f32 %v13029, %v13141
    %v13143 = vpop.f32.mrb[0].mxu0
    %v13144 = vadd.f32 %v13031, %v13143
    %v13145 = vpop.f32.mrb[0].mxu0
    %v13146 = vadd.f32 %v13033, %v13145
    %v13147 = vpop.f32.mrb[0].mxu0
    %v13148 = vadd.f32 %v13035, %v13147
    %13149 = vmatprep.mubr.bf16.mxu0 %v9576
    %13150 = vmatmul.mubr.bf16.gmra.mrb[0].mxu0 %v9575
    %v13151 = vpop.f32.mrb[0].mxu0
    %v13152 = vadd.f32 %v13039, %v13151
    %v13153 = vpop.f32.mrb[0].mxu0
    %v13154 = vadd.f32 %v13041, %v13153
    %v13155 = vpop.f32.mrb[0].mxu0
    %v13156 = vadd.f32 %v13043, %v13155
    %v13157 = vpop.f32.mrb[0].mxu0
    %v13158 = vadd.f32 %v13045, %v13157
    %13159 = vmatprep.mubr.bf16.mxu0 %v9582
    %13160 = vmatmul.mubr.bf16.gmra.mrb[0].mxu0 %v9581
    %v13161 = vpop.f32.mrb[0].mxu0
    %v13162 = vadd.f32 %v13049, %v13161
    %v13163 = vpop.f32.mrb[0].mxu0
    %v13164 = vadd.f32 %v13051, %v13163
    %v13165 = vpop.f32.mrb[0].mxu0
    %v13166 = vadd.f32 %v13053, %v13165
    %v13167 = vpop.f32.mrb[0].mxu0
    %v13168 = vadd.f32 %v13055, %v13167
    %13169 = vmatprep.mubr.bf16.mxu0 %v9588
    %13170 = vmatmul.mubr.bf16.gmra.mrb[0].mxu0 %v9587
    %v13171 = vpop.f32.mrb[0].mxu0
    %v13172 = vadd.f32 %v13059, %v13171
    %v13173 = vpop.f32.mrb[0].mxu0
    %v13174 = vadd.f32 %v13061, %v13173
    %v13175 = vpop.f32.mrb[0].mxu0
    %v13176 = vadd.f32 %v13063, %v13175
    %v13177 = vpop.f32.mrb[0].mxu0
    %v13178 = vadd.f32 %v13065, %v13177
    %13179 = vdwg.mxu0
    %13180 = vmatprep.subr.bf16.mxu0 %v11432
    %13181 = vmatpush1.bf16.msra.mxu0 %v11431
    %13182 = vmatprep.subr.bf16.mxu0 %v11440
    %13183 = vmatpush1.bf16.msra.mxu0 %v11439
    %13184 = vmatprep.subr.bf16.mxu0 %v11448
    %13185 = vmatpush1.bf16.msra.mxu0 %v11447
    %13186 = vmatprep.subr.bf16.mxu0 %v11456
    %13187 = vmatpush1.bf16.msra.mxu0 %v11455
    %13188 = vmatprep.subr.bf16.mxu0 %v11464
    %13189 = vmatpush1.bf16.msra.mxu0 %v11463
    %13190 = vmatprep.subr.bf16.mxu0 %v11472
    %13191 = vmatpush1.bf16.msra.mxu0 %v11471
    %13192 = vmatprep.subr.bf16.mxu0 %v11480
    %13193 = vmatpush1.bf16.msra.mxu0 %v11479
    %13194 = vmatprep.subr.bf16.mxu0 %v11488
    %13195 = vmatpush1.bf16.msra.mxu0 %v11487
    %13196 = vmatprep.subr.bf16.mxu0 %v11496
    %13197 = vmatpush1.bf16.msra.mxu0 %v11495
    %13198 = vmatprep.subr.bf16.mxu0 %v11504
    %13199 = vmatpush1.bf16.msra.mxu0 %v11503
    %13200 = vmatprep.subr.bf16.mxu0 %v11512
    %13201 = vmatpush1.bf16.msra.mxu0 %v11511
    %13202 = vmatprep.subr.bf16.mxu0 %v11520
    %13203 = vmatpush1.bf16.msra.mxu0 %v11519
    %13204 = vmatprep.subr.bf16.mxu0 %v11528
    %13205 = vmatpush1.bf16.msra.mxu0 %v11527
    %13206 = vmatprep.subr.bf16.mxu0 %v11536
    %13207 = vmatpush1.bf16.msra.mxu0 %v11535
    %13208 = vmatprep.subr.bf16.mxu0 %v11544
    %13209 = vmatpush1.bf16.msra.mxu0 %v11543
    %13210 = vmatprep.subr.bf16.mxu0 %v11552
    %13211 = vmatpush1.bf16.msra.mxu0 %v11551
    %13212 = vmatprep.mubr.bf16.mxu0 %v9548
    %13213 = vmatmul.mubr.bf16.gmra.mrb[0].mxu0 %v9547
    %v13214 = vpop.f32.mrb[0].mxu0
    %v13215 = vadd.f32 %v13102, %v13214
    %v13216 = vpop.f32.mrb[0].mxu0
    %v13217 = vadd.f32 %v13104, %v13216
    %v13218 = vpop.f32.mrb[0].mxu0
    %v13219 = vadd.f32 %v13106, %v13218
    %v13220 = vpop.f32.mrb[0].mxu0
    %v13221 = vadd.f32 %v13108, %v13220
    %13222 = vmatprep.mubr.bf16.mxu0 %v9554
    %13223 = vmatmul.mubr.bf16.gmra.mrb[0].mxu0 %v9553
    %v13224 = vpop.f32.mrb[0].mxu0
    %v13225 = vadd.f32 %v13112, %v13224
    %v13226 = vpop.f32.mrb[0].mxu0
    %v13227 = vadd.f32 %v13114, %v13226
    %v13228 = vpop.f32.mrb[0].mxu0
    %v13229 = vadd.f32 %v13116, %v13228
    %v13230 = vpop.f32.mrb[0].mxu0
    %v13231 = vadd.f32 %v13118, %v13230
    %13232 = vmatprep.mubr.bf16.mxu0 %v9560
    %13233 = vmatmul.mubr.bf16.gmra.mrb[0].mxu0 %v9559
    %v13234 = vpop.f32.mrb[0].mxu0
    %v13235 = vadd.f32 %v13122, %v13234
    %v13236 = vpop.f32.mrb[0].mxu0
    %v13237 = vadd.f32 %v13124, %v13236
    %v13238 = vpop.f32.mrb[0].mxu0
    %v13239 = vadd.f32 %v13126, %v13238
    %v13240 = vpop.f32.mrb[0].mxu0
    %v13241 = vadd.f32 %v13128, %v13240
    %13242 = vmatprep.mubr.bf16.mxu0 %v9566
    %13243 = vmatmul.mubr.bf16.gmra.mrb[0].mxu0 %v9565
    %v13244 = vpop.f32.mrb[0].mxu0
    %v13245 = vadd.f32 %v13132, %v13244
    %v13246 = vpop.f32.mrb[0].mxu0
    %v13247 = vadd.f32 %v13134, %v13246
    %v13248 = vpop.f32.mrb[0].mxu0
    %v13249 = vadd.f32 %v13136, %v13248
    %v13250 = vpop.f32.mrb[0].mxu0
    %v13251 = vadd.f32 %v13138, %v13250
    %13252 = vmatprep.mubr.bf16.mxu0 %v9572
    %13253 = vmatmul.mubr.bf16.gmra.mrb[0].mxu0 %v9571
    %v13254 = vpop.f32.mrb[0].mxu0
    %v13255 = vadd.f32 %v13142, %v13254
    %v13256 = vpop.f32.mrb[0].mxu0
    %v13257 = vadd.f32 %v13144, %v13256
    %v13258 = vpop.f32.mrb[0].mxu0
    %v13259 = vadd.f32 %v13146, %v13258
    %v13260 = vpop.f32.mrb[0].mxu0
    %v13261 = vadd.f32 %v13148, %v13260
    %13262 = vmatprep.mubr.bf16.mxu0 %v9578
    %13263 = vmatmul.mubr.bf16.gmra.mrb[0].mxu0 %v9577
    %v13264 = vpop.f32.mrb[0].mxu0
    %v13265 = vadd.f32 %v13152, %v13264
    %v13266 = vpop.f32.mrb[0].mxu0
    %v13267 = vadd.f32 %v13154, %v13266
    %v13268 = vpop.f32.mrb[0].mxu0
    %v13269 = vadd.f32 %v13156, %v13268
    %v13270 = vpop.f32.mrb[0].mxu0
    %v13271 = vadd.f32 %v13158, %v13270
    %13272 = vmatprep.mubr.bf16.mxu0 %v9584
    %13273 = vmatmul.mubr.bf16.gmra.mrb[0].mxu0 %v9583
    %v13274 = vpop.f32.mrb[0].mxu0
    %v13275 = vadd.f32 %v13162, %v13274
    %v13276 = vpop.f32.mrb[0].mxu0
    %v13277 = vadd.f32 %v13164, %v13276
    %v13278 = vpop.f32.mrb[0].mxu0
    %v13279 = vadd.f32 %v13166, %v13278
    %v13280 = vpop.f32.mrb[0].mxu0
    %v13281 = vadd.f32 %v13168, %v13280
    %13282 = vmatprep.mubr.bf16.mxu0 %v9590
    %13283 = vmatmul.mubr.bf16.gmra.mrb[0].mxu0 %v9589
    %v13284 = vpop.f32.mrb[0].mxu0
    %v13285 = vadd.f32 %v13172, %v13284
    %v13286 = vpop.f32.mrb[0].mxu0
    %v13287 = vadd.f32 %v13174, %v13286
    %v13288 = vpop.f32.mrb[0].mxu0
    %v13289 = vadd.f32 %v13176, %v13288
    %v13290 = vpop.f32.mrb[0].mxu0
    %v13291 = vadd.f32 %v13178, %v13290
    %13292 = vdwg.mxu0
    %13293 = vst [vmem:[#allocation29] sm:$0xff] %v12198
    %13294 = vst [vmem:[#allocation29 + $0x8] sm:$0xff] %v12200
    %13295 = vst [vmem:[#allocation29 + $0x10] sm:$0xff] %v12537
    %13296 = vst [vmem:[#allocation29 + $0x18] sm:$0xff] %v12539
    %13297 = vst [vmem:[#allocation29 + $0x20] sm:$0xff] %v12876
    %13298 = vst [vmem:[#allocation29 + $0x28] sm:$0xff] %v12878
    %13299 = vst [vmem:[#allocation29 + $0x30] sm:$0xff] %v13215
    %13300 = vst [vmem:[#allocation29 + $0x38] sm:$0xff] %v13217
    %13301 = vst [vmem:[#allocation29 + $0x40] sm:$0xff] %v12202
    %13302 = vst [vmem:[#allocation29 + $0x48] sm:$0xff] %v12204
    %13303 = vst [vmem:[#allocation29 + $0x50] sm:$0xff] %v12541
    %13304 = vst [vmem:[#allocation29 + $0x58] sm:$0xff] %v12543
    %13305 = vst [vmem:[#allocation29 + $0x60] sm:$0xff] %v12880
    %13306 = vst [vmem:[#allocation29 + $0x68] sm:$0xff] %v12882
    %13307 = vst [vmem:[#allocation29 + $0x70] sm:$0xff] %v13219
    %13308 = vst [vmem:[#allocation29 + $0x78] sm:$0xff] %v13221
    %13309 = vst [vmem:[#allocation29 + $0x80] sm:$0xff] %v12208
    %13310 = vst [vmem:[#allocation29 + $0x88] sm:$0xff] %v12210
    %13311 = vst [vmem:[#allocation29 + $0x90] sm:$0xff] %v12547
    %13312 = vst [vmem:[#allocation29 + $0x98] sm:$0xff] %v12549
    %13313 = vst [vmem:[#allocation29 + $0xa0] sm:$0xff] %v12886
    %13314 = vst [vmem:[#allocation29 + $0xa8] sm:$0xff] %v12888
    %13315 = vst [vmem:[#allocation29 + $0xb0] sm:$0xff] %v13225
    %13316 = vst [vmem:[#allocation29 + $0xb8] sm:$0xff] %v13227
    %13317 = vst [vmem:[#allocation29 + $0xc0] sm:$0xff] %v12212
    %13318 = vst [vmem:[#allocation29 + $0xc8] sm:$0xff] %v12214
    %13319 = vst [vmem:[#allocation29 + $0xd0] sm:$0xff] %v12551
    %13320 = vst [vmem:[#allocation29 + $0xd8] sm:$0xff] %v12553
    %13321 = vst [vmem:[#allocation29 + $0xe0] sm:$0xff] %v12890
    %13322 = vst [vmem:[#allocation29 + $0xe8] sm:$0xff] %v12892
    %13323 = vst [vmem:[#allocation29 + $0xf0] sm:$0xff] %v13229
    %13324 = vst [vmem:[#allocation29 + $0xf8] sm:$0xff] %v13231
    %13325 = vst [vmem:[#allocation29 + $0x100] sm:$0xff] %v12218
    %13326 = vst [vmem:[#allocation29 + $0x108] sm:$0xff] %v12220
    %13327 = vst [vmem:[#allocation29 + $0x110] sm:$0xff] %v12557
    %13328 = vst [vmem:[#allocation29 + $0x118] sm:$0xff] %v12559
    %13329 = vst [vmem:[#allocation29 + $0x120] sm:$0xff] %v12896
    %13330 = vst [vmem:[#allocation29 + $0x128] sm:$0xff] %v12898
    %13331 = vst [vmem:[#allocation29 + $0x130] sm:$0xff] %v13235
    %13332 = vst [vmem:[#allocation29 + $0x138] sm:$0xff] %v13237
    %13333 = vst [vmem:[#allocation29 + $0x140] sm:$0xff] %v12222
    %13334 = vst [vmem:[#allocation29 + $0x148] sm:$0xff] %v12224
    %13335 = vst [vmem:[#allocation29 + $0x150] sm:$0xff] %v12561
    %13336 = vst [vmem:[#allocation29 + $0x158] sm:$0xff] %v12563
    %13337 = vst [vmem:[#allocation29 + $0x160] sm:$0xff] %v12900
    %13338 = vst [vmem:[#allocation29 + $0x168] sm:$0xff] %v12902
    %13339 = vst [vmem:[#allocation29 + $0x170] sm:$0xff] %v13239
    %13340 = vst [vmem:[#allocation29 + $0x178] sm:$0xff] %v13241
    %13341 = vst [vmem:[#allocation29 + $0x180] sm:$0xff] %v12228
    %13342 = vst [vmem:[#allocation29 + $0x188] sm:$0xff] %v12230
    %13343 = vst [vmem:[#allocation29 + $0x190] sm:$0xff] %v12567
    %13344 = vst [vmem:[#allocation29 + $0x198] sm:$0xff] %v12569
    %13345 = vst [vmem:[#allocation29 + $0x1a0] sm:$0xff] %v12906
    %13346 = vst [vmem:[#allocation29 + $0x1a8] sm:$0xff] %v12908
    %13347 = vst [vmem:[#allocation29 + $0x1b0] sm:$0xff] %v13245
    %13348 = vst [vmem:[#allocation29 + $0x1b8] sm:$0xff] %v13247
    %13349 = vst [vmem:[#allocation29 + $0x1c0] sm:$0xff] %v12232
    %13350 = vst [vmem:[#allocation29 + $0x1c8] sm:$0xff] %v12234
    %13351 = vst [vmem:[#allocation29 + $0x1d0] sm:$0xff] %v12571
    %13352 = vst [vmem:[#allocation29 + $0x1d8] sm:$0xff] %v12573
    %13353 = vst [vmem:[#allocation29 + $0x1e0] sm:$0xff] %v12910
    %13354 = vst [vmem:[#allocation29 + $0x1e8] sm:$0xff] %v12912
    %13355 = vst [vmem:[#allocation29 + $0x1f0] sm:$0xff] %v13249
    %13356 = vst [vmem:[#allocation29 + $0x1f8] sm:$0xff] %v13251
    %13357 = vst [vmem:[#allocation29 + $0x200] sm:$0xff] %v12238
    %13358 = vst [vmem:[#allocation29 + $0x208] sm:$0xff] %v12240
    %13359 = vst [vmem:[#allocation29 + $0x210] sm:$0xff] %v12577
    %13360 = vst [vmem:[#allocation29 + $0x218] sm:$0xff] %v12579
    %13361 = vst [vmem:[#allocation29 + $0x220] sm:$0xff] %v12916
    %13362 = vst [vmem:[#allocation29 + $0x228] sm:$0xff] %v12918
    %13363 = vst [vmem:[#allocation29 + $0x230] sm:$0xff] %v13255
    %13364 = vst [vmem:[#allocation29 + $0x238] sm:$0xff] %v13257
    %13365 = vst [vmem:[#allocation29 + $0x240] sm:$0xff] %v12242
    %13366 = vst [vmem:[#allocation29 + $0x248] sm:$0xff] %v12244
    %13367 = vst [vmem:[#allocation29 + $0x250] sm:$0xff] %v12581
    %13368 = vst [vmem:[#allocation29 + $0x258] sm:$0xff] %v12583
    %13369 = vst [vmem:[#allocation29 + $0x260] sm:$0xff] %v12920
    %13370 = vst [vmem:[#allocation29 + $0x268] sm:$0xff] %v12922
    %13371 = vst [vmem:[#allocation29 + $0x270] sm:$0xff] %v13259
    %13372 = vst [vmem:[#allocation29 + $0x278] sm:$0xff] %v13261
    %13373 = vst [vmem:[#allocation29 + $0x280] sm:$0xff] %v12248
    %13374 = vst [vmem:[#allocation29 + $0x288] sm:$0xff] %v12250
    %13375 = vst [vmem:[#allocation29 + $0x290] sm:$0xff] %v12587
    %13376 = vst [vmem:[#allocation29 + $0x298] sm:$0xff] %v12589
    %13377 = vst [vmem:[#allocation29 + $0x2a0] sm:$0xff] %v12926
    %13378 = vst [vmem:[#allocation29 + $0x2a8] sm:$0xff] %v12928
    %13379 = vst [vmem:[#allocation29 + $0x2b0] sm:$0xff] %v13265
    %13380 = vst [vmem:[#allocation29 + $0x2b8] sm:$0xff] %v13267
    %13381 = vst [vmem:[#allocation29 + $0x2c0] sm:$0xff] %v12252
    %13382 = vst [vmem:[#allocation29 + $0x2c8] sm:$0xff] %v12254
    %13383 = vst [vmem:[#allocation29 + $0x2d0] sm:$0xff] %v12591
    %13384 = vst [vmem:[#allocation29 + $0x2d8] sm:$0xff] %v12593
    %13385 = vst [vmem:[#allocation29 + $0x2e0] sm:$0xff] %v12930
    %13386 = vst [vmem:[#allocation29 + $0x2e8] sm:$0xff] %v12932
    %13387 = vst [vmem:[#allocation29 + $0x2f0] sm:$0xff] %v13269
    %13388 = vst [vmem:[#allocation29 + $0x2f8] sm:$0xff] %v13271
    %13389 = vst [vmem:[#allocation29 + $0x300] sm:$0xff] %v12258
    %13390 = vst [vmem:[#allocation29 + $0x308] sm:$0xff] %v12260
    %13391 = vst [vmem:[#allocation29 + $0x310] sm:$0xff] %v12597
    %13392 = vst [vmem:[#allocation29 + $0x318] sm:$0xff] %v12599
    %13393 = vst [vmem:[#allocation29 + $0x320] sm:$0xff] %v12936
    %13394 = vst [vmem:[#allocation29 + $0x328] sm:$0xff] %v12938
    %13395 = vst [vmem:[#allocation29 + $0x330] sm:$0xff] %v13275
    %13396 = vst [vmem:[#allocation29 + $0x338] sm:$0xff] %v13277
    %13397 = vst [vmem:[#allocation29 + $0x340] sm:$0xff] %v12262
    %13398 = vst [vmem:[#allocation29 + $0x348] sm:$0xff] %v12264
    %13399 = vst [vmem:[#allocation29 + $0x350] sm:$0xff] %v12601
    %13400 = vst [vmem:[#allocation29 + $0x358] sm:$0xff] %v12603
    %13401 = vst [vmem:[#allocation29 + $0x360] sm:$0xff] %v12940
    %13402 = vst [vmem:[#allocation29 + $0x368] sm:$0xff] %v12942
    %13403 = vst [vmem:[#allocation29 + $0x370] sm:$0xff] %v13279
    %13404 = vst [vmem:[#allocation29 + $0x378] sm:$0xff] %v13281
    %13405 = vst [vmem:[#allocation29 + $0x380] sm:$0xff] %v12268
    %13406 = vst [vmem:[#allocation29 + $0x388] sm:$0xff] %v12270
    %13407 = vst [vmem:[#allocation29 + $0x390] sm:$0xff] %v12607
    %13408 = vst [vmem:[#allocation29 + $0x398] sm:$0xff] %v12609
    %13409 = vst [vmem:[#allocation29 + $0x3a0] sm:$0xff] %v12946
    %13410 = vst [vmem:[#allocation29 + $0x3a8] sm:$0xff] %v12948
    %13411 = vst [vmem:[#allocation29 + $0x3b0] sm:$0xff] %v13285
    %13412 = vst [vmem:[#allocation29 + $0x3b8] sm:$0xff] %v13287
    %13413 = vst [vmem:[#allocation29 + $0x3c0] sm:$0xff] %v12272
    %13414 = vst [vmem:[#allocation29 + $0x3c8] sm:$0xff] %v12274
    %13415 = vst [vmem:[#allocation29 + $0x3d0] sm:$0xff] %v12611
    %13416 = vst [vmem:[#allocation29 + $0x3d8] sm:$0xff] %v12613
    %13417 = vst [vmem:[#allocation29 + $0x3e0] sm:$0xff] %v12950
    %13418 = vst [vmem:[#allocation29 + $0x3e8] sm:$0xff] %v12952
    %13419 = vst [vmem:[#allocation29 + $0x3f0] sm:$0xff] %v13289
    %13420 = vst [vmem:[#allocation29 + $0x3f8] sm:$0xff] %v13291
    // Predicated region
    $region138: #{tpu_custom_call.1} parent=1 // pred_check
      _
    $region139: #{tpu_custom_call.1} parent=1 // pred_check_branch
      %13422 = sbr.rel (0) target = $region141
    $region140: #{tpu_custom_call.1} parent=1 // pred_region
      %s13424 = ssub.s32 16384, 16384
      %13425 = vsyncadd [#allocation4], %s13424
      %s13426 = sshll.u32 [#allocation29], 4
      %s13427 = int_to_ptr.vmem [resolvable:$true] %s13426
      %13432 = dma.vmem_to_hbm [thread:$0]  %s13427, 16384, %s17, [#allocation4], 1024, 1024, 64
    $region141: #{tpu_custom_call.1} parent=1 // pred_fallthru
      _
    // Predicated region
    $region142: #{tpu_custom_call.1} parent=1 // pred_check
      _
    $region143: #{tpu_custom_call.1} parent=1 // pred_check_branch
      %13434 = sbr.rel (0) target = $region145
    $region144: #{tpu_custom_call.1} parent=1 // pred_region
      %13435 = dma.done [#allocation4], 16384
    $region145: #{tpu_custom_call.1} parent=1 // pred_fallthru
      _
    %13436 = vsyncpa [#allocation3], 1
    %13437 = vsyncpa [#allocation6], 1
    %13438 = vsyncpa [#allocation9], 1
    %13439 = vsyncpa [#allocation12], 1
    %13440 = vsyncpa [#allocation15], 1
    %13441 = vsyncpa [#allocation18], 1
    %13442 = vsyncpa [#allocation21], 1
    %13443 = vsyncpa [#allocation24], 1
    %13444 = vsyncpa [#allocation27], 1
    %13445 = vsyncpa [#allocation4], 1

</llo_original>
